<compile_context>
chip_gen: v7x
topology: tpu7x:2x2x1
jax: 0.10.0
libtpu: 0.0.40
codegen_flags: <defaults>
</compile_context>

<pallas_src>
import jax
import jax.numpy as jnp
from jax import lax
from jax.experimental import pallas as pl
from jax.experimental.pallas import tpu as pltpu


# ----------------------------------------------------------------------------
# Fused kernel: conv1 -> conv2 -> conv3 -> maxpool(2,2)+argmax, one image/step.
# ----------------------------------------------------------------------------
def _segnet_down3_kernel(x_ref, w1_ref, s1_ref, b1_ref,
                         w2_ref, s2_ref, b2_ref,
                         w3_ref, s3_ref, b3_ref,
                         out_ref, idx_ref,
                         xp1, xp23, y3s):
    H, W = x_ref.shape[0], x_ref.shape[1]
    Hh, Wh = H // 2, W // 2

    def zero_border(pad_ref):
        # Only the 1-pixel border ever needs to be zero; the interior is fully
        # overwritten below.  (Much cheaper than a full-buffer fill.)
        Hp, Wp, c = pad_ref.shape
        z_row = jnp.zeros((1, Wp, c), pad_ref.dtype)
        z_col = jnp.zeros((Hp, 1, c), pad_ref.dtype)
        pad_ref[0:1, :, :] = z_row
        pad_ref[Hp - 1:Hp, :, :] = z_row
        pad_ref[:, 0:1, :] = z_col
        pad_ref[:, Wp - 1:Wp, :] = z_col

    def conv_bn_relu(pad_ref, x_in, w_ref, s_ref, b_ref, border_is_zero=False):
        cin = pad_ref.shape[-1]
        cout = w_ref.shape[-1]
        if not border_is_zero:
            zero_border(pad_ref)
        # pad=1 input built in bf16 VMEM scratch (no HBM pad pass).
        pad_ref[1:H + 1, 1:W + 1, :] = x_in.astype(pad_ref.dtype)
        # im2col: one K-packed MXU matmul (K = 9*cin); taps already bf16.
        taps = [pad_ref[kh:kh + H, kw:kw + W, :]
                for kh in range(3) for kw in range(3)]
        cols = jnp.concatenate(taps, axis=-1).reshape(H * W, 9 * cin)
        y = jnp.dot(cols, w_ref[...], preferred_element_type=jnp.float32)  # MXU, f32 acc
        y = jnp.maximum(y * s_ref[...] + b_ref[...], jnp.float32(0.0))     # folded BN + ReLU
        return y.reshape(H, W, cout)                                       # f32

    y1 = conv_bn_relu(xp1, x_ref[...], w1_ref, s1_ref, b1_ref)
    y2 = conv_bn_relu(xp23, y1, w2_ref, s2_ref, b2_ref)
    # conv3 reuses conv2's scratch (border already zero) and writes its result straight
    # into the pool-layout scratch (leading-dim reshape only: last two dims unchanged).
    y3 = conv_bn_relu(xp23, y2, w3_ref, s3_ref, b3_ref, border_is_zero=True)
    c = y3.shape[-1]
    y3s[...] = y3.reshape(Hh, 2, W, c)

    # MaxPool2d(2,2) + PyTorch-style flat (h*W + w) argmax.  All ref reads use slice
    # indexers only (size-1 ds + sublane-strided ds); no integer indexers.
    v00 = y3s[:, pl.ds(0, 1), pl.ds(0, Wh, 2), :].reshape(Hh, Wh, c)   # even h, even w
    v01 = y3s[:, pl.ds(0, 1), pl.ds(1, Wh, 2), :].reshape(Hh, Wh, c)   # even h, odd  w
    v10 = y3s[:, pl.ds(1, 1), pl.ds(0, Wh, 2), :].reshape(Hh, Wh, c)   # odd  h, even w
    v11 = y3s[:, pl.ds(1, 1), pl.ds(1, Wh, 2), :].reshape(Hh, Wh, c)   # odd  h, odd  w
    m = jnp.maximum(jnp.maximum(v00, v01), jnp.maximum(v10, v11))

    # Channel-invariant index base; broadcasts over the lane (channel) axis in the where.
    ii = lax.broadcasted_iota(jnp.int32, (Hh, Wh, 1), 0)
    jj = lax.broadcasted_iota(jnp.int32, (Hh, Wh, 1), 1)
    f00 = (2 * ii) * W + 2 * jj
    idx = jnp.where(v00 == m, f00,
          jnp.where(v01 == m, f00 + 1,
          jnp.where(v10 == m, f00 + W, f00 + W + 1)))   # first-max (row-major) tie-break

    out_ref[...] = m.astype(out_ref.dtype)
    idx_ref[...] = idx


# ----------------------------------------------------------------------------
# Wrapper (PyTorch-style NCHW in / (outputs, indices, unpooled_shape) out).
# ----------------------------------------------------------------------------
def segnet_down3_forward(inputs_nchw, params):
    N, Cin, H, W = inputs_nchw.shape
    assert H % 2 == 0 and W % 2 == 0
    w1, s1, b1 = params["conv1"]
    w2, s2, b2 = params["conv2"]
    w3, s3, b3 = params["conv3"]
    Cout = w1.shape[-1]
    Hh, Wh = H // 2, W // 2

    x = jnp.transpose(inputs_nchw, (0, 2, 3, 1))          # NHWC, channels on lanes

    def pack_w(w):   # HWIO (3,3,cin,cout) -> (9*cin, cout) bf16, matches im2col order
        return w.reshape(-1, w.shape[-1]).astype(jnp.bfloat16)

    def pack_v(v):
        return v.reshape(1, -1).astype(jnp.float32)

    wspec1 = pl.BlockSpec((9 * Cin, Cout), lambda n: (0, 0))
    wspec23 = pl.BlockSpec((9 * Cout, Cout), lambda n: (0, 0))
    vspec = pl.BlockSpec((1, Cout), lambda n: (0, 0))

    flops = 2 * N * H * W * 9 * (Cin * Cout + 2 * Cout * Cout)
    bytes_accessed = (N * H * W * Cin * 4
                      + (9 * Cin * Cout + 18 * Cout * Cout) * 2
                      + 6 * Cout * 4
                      + N * Hh * Wh * Cout * (4 + 4))
    cost = pl.CostEstimate(flops=flops, transcendentals=0,
                           bytes_accessed=bytes_accessed)

    pooled, idx = pl.pallas_call(
        _segnet_down3_kernel,
        out_shape=(jax.ShapeDtypeStruct((N, Hh, Wh, Cout), jnp.float32),
                   jax.ShapeDtypeStruct((N, Hh, Wh, Cout), jnp.int32)),
        grid=(N,),
        in_specs=[
            pl.BlockSpec((None, H, W, Cin), lambda n: (n, 0, 0, 0)),
            wspec1, vspec, vspec,
            wspec23, vspec, vspec,
            wspec23, vspec, vspec,
        ],
        out_specs=(pl.BlockSpec((None, Hh, Wh, Cout), lambda n: (n, 0, 0, 0)),
                   pl.BlockSpec((None, Hh, Wh, Cout), lambda n: (n, 0, 0, 0))),
        scratch_shapes=[
            pltpu.VMEM((H + 2, W + 2, Cin), jnp.bfloat16),    # padded conv1 input (bf16)
            pltpu.VMEM((H + 2, W + 2, Cout), jnp.bfloat16),   # shared padded conv2/conv3 input
            pltpu.VMEM((Hh, 2, W, Cout), jnp.float32),        # conv3 output, pool layout
        ],
        compiler_params=pltpu.CompilerParams(
            dimension_semantics=("parallel",),
            # >= v5e's 16 MiB scoped default; raise toward ~100 MiB once H-tiling lands
            # on v5e/v6e (128 MiB physical); keep well under 64 MiB for v7x.
            vmem_limit_bytes=32 * 1024 * 1024,
        ),
        cost_estimate=cost,
    )(x, pack_w(w1), pack_v(s1), pack_v(b1),
      pack_w(w2), pack_v(s2), pack_v(b2),
      pack_w(w3), pack_v(s3), pack_v(b3))

    outputs = jnp.transpose(pooled, (0, 3, 1, 2))          # NCHW
    indices = jnp.transpose(idx, (0, 3, 1, 2))             # NCHW, int32
    unpooled_shape = (N, Cout, H, W)
    return outputs, indices, unpooled_shape


# ----------------------------------------------------------------------------
# Parameter init (PyTorch-like ranges) + eval-mode BN folding.
# ----------------------------------------------------------------------------
def init_cbr_params(key, cin, cout, eps=1e-5):
    k1, k2, k3, k4 = jax.random.split(key, 4)
    fan_in = cin * 9
    bound = fan_in ** -0.5
    w = jax.random.uniform(k1, (3, 3, cin, cout), jnp.float32, -bound, bound)   # HWIO
    b = jax.random.uniform(k2, (cout,), jnp.float32, -bound, bound)
    gamma = 1.0 + 0.1 * jax.random.normal(k3, (cout,), jnp.float32)
    beta = 0.1 * jax.random.normal(k4, (cout,), jnp.float32)
    running_mean = jnp.zeros((cout,), jnp.float32)
    running_var = jnp.ones((cout,), jnp.float32)
    scale = gamma / jnp.sqrt(running_var + eps)             # eval-mode BN folded affine
    bias = beta + (b - running_mean) * scale
    return w, scale, bias


# ----------------------------------------------------------------------------
# Pure-JAX reference (matmul operands rounded to bf16 exactly like the kernel).
# ----------------------------------------------------------------------------
def reference_forward(x_nchw, params):
    x = jnp.transpose(x_nchw, (0, 2, 3, 1))
    for name in ("conv1", "conv2", "conv3"):
        w, scale, bias = params[name]
        xb = x.astype(jnp.bfloat16).astype(jnp.float32)
        wb = w.astype(jnp.bfloat16).astype(jnp.float32)
        y = lax.conv_general_dilated(
            xb, wb, window_strides=(1, 1), padding=((1, 1), (1, 1)),
            dimension_numbers=("NHWC", "HWIO", "NHWC"),
            precision=lax.Precision.HIGHEST)
        x = jnp.maximum(y * scale.reshape(1, 1, 1, -1) + bias.reshape(1, 1, 1, -1), 0.0)
    n, h, w_, c = x.shape
    pooled = x.reshape(n, h // 2, 2, w_ // 2, 2, c).max(axis=(2, 4))
    return jnp.transpose(pooled, (0, 3, 1, 2)), jnp.transpose(x, (0, 3, 1, 2))


if __name__ == "__main__":
    key = jax.random.PRNGKey(0)
    N, in_size, out_size = 2, 16, 32
    H = W = 16
    Hh, Wh = H // 2, W // 2

    k_x, k1, k2, k3 = jax.random.split(key, 4)
    x = jax.random.normal(k_x, (N, in_size, H, W), jnp.float32)
    params = {
        "conv1": init_cbr_params(k1, in_size, out_size),
        "conv2": init_cbr_params(k2, out_size, out_size),
        "conv3": init_cbr_params(k3, out_size, out_size),
    }

    outputs, indices, unpooled_shape = segnet_down3_forward(x, params)
    outputs, indices = jax.block_until_ready((outputs, indices))

    assert outputs.shape == (N, out_size, Hh, Wh), outputs.shape
    assert indices.shape == (N, out_size, Hh, Wh), indices.shape
    assert unpooled_shape == (N, out_size, H, W), unpooled_shape
    assert bool(jnp.all(jnp.isfinite(outputs)))

    # pooled values vs. pure-JAX reference
    ref_pool, ref_pre = reference_forward(x, params)
    assert float(jnp.max(jnp.abs(outputs - ref_pool))) < 1e-2

    # index semantics: each flat index lies inside its own 2x2 window and points at the max
    ih, iw = indices // W, indices % W
    oi = jnp.arange(Hh).reshape(1, 1, Hh, 1)
    oj = jnp.arange(Wh).reshape(1, 1, 1, Wh)
    assert bool(jnp.all((ih // 2 == oi) & (iw // 2 == oj)))
    gathered = jnp.take_along_axis(ref_pre.reshape(N, out_size, H * W),
                                   indices.reshape(N, out_size, Hh * Wh), axis=2)
    assert float(jnp.max(jnp.abs(gathered.reshape(outputs.shape) - outputs))) < 1e-2

    print("KERNEL_OK")
</pallas_src>

<mosaic_0001>
module attributes {stable_mosaic.version = 11 : i64} {
  func.func @_segnet_down3_kernel(%arg0: i32, %arg1: memref<1x16x16x16xf32, #tpu.memory_space<vmem>>, %arg2: memref<144x32xbf16, #tpu.memory_space<vmem>>, %arg3: memref<1x32xf32, #tpu.memory_space<vmem>>, %arg4: memref<1x32xf32, #tpu.memory_space<vmem>>, %arg5: memref<288x32xbf16, #tpu.memory_space<vmem>>, %arg6: memref<1x32xf32, #tpu.memory_space<vmem>>, %arg7: memref<1x32xf32, #tpu.memory_space<vmem>>, %arg8: memref<288x32xbf16, #tpu.memory_space<vmem>>, %arg9: memref<1x32xf32, #tpu.memory_space<vmem>>, %arg10: memref<1x32xf32, #tpu.memory_space<vmem>>, %arg11: memref<1x8x8x32xf32, #tpu.memory_space<vmem>>, %arg12: memref<1x8x8x32xi32, #tpu.memory_space<vmem>>, %arg13: memref<18x18x16xbf16, #tpu.memory_space<vmem>>, %arg14: memref<18x18x32xbf16, #tpu.memory_space<vmem>>, %arg15: memref<8x2x16x32xf32, #tpu.memory_space<vmem>>) attributes {dimension_semantics = [#tpu.dimension_semantics<parallel>], iteration_bounds = array<i64: 2>, scalar_prefetch = 0 : i64, scratch_operands = 3 : i64, tpu.core_type = #tpu.core_type<tc>, window_params = [{transform_indices = @transform_0, window_bounds = array<i64: 1, 16, 16, 16>}, {pipeline_mode = #tpu.pipeline_mode<synchronous>, transform_indices = @transform_1, window_bounds = array<i64: 144, 32>}, {pipeline_mode = #tpu.pipeline_mode<synchronous>, transform_indices = @transform_2, window_bounds = array<i64: 1, 32>}, {pipeline_mode = #tpu.pipeline_mode<synchronous>, transform_indices = @transform_3, window_bounds = array<i64: 1, 32>}, {pipeline_mode = #tpu.pipeline_mode<synchronous>, transform_indices = @transform_4, window_bounds = array<i64: 288, 32>}, {pipeline_mode = #tpu.pipeline_mode<synchronous>, transform_indices = @transform_5, window_bounds = array<i64: 1, 32>}, {pipeline_mode = #tpu.pipeline_mode<synchronous>, transform_indices = @transform_6, window_bounds = array<i64: 1, 32>}, {pipeline_mode = #tpu.pipeline_mode<synchronous>, transform_indices = @transform_7, window_bounds = array<i64: 288, 32>}, {pipeline_mode = #tpu.pipeline_mode<synchronous>, transform_indices = @transform_8, window_bounds = array<i64: 1, 32>}, {pipeline_mode = #tpu.pipeline_mode<synchronous>, transform_indices = @transform_9, window_bounds = array<i64: 1, 32>}, {transform_indices = @transform_10, window_bounds = array<i64: 1, 8, 8, 32>}, {transform_indices = @transform_11, window_bounds = array<i64: 1, 8, 8, 32>}]} {
    %c0 = arith.constant 0 : index
    %c0_0 = arith.constant 0 : index
    %c0_1 = arith.constant 0 : index
    %c0_2 = arith.constant 0 : index
    %0 = vector.load %arg1[%c0, %c0_0, %c0_1, %c0_2] : memref<1x16x16x16xf32, #tpu.memory_space<vmem>>, vector<1x16x16x16xf32>
    %1 = vector.shape_cast %0 : vector<1x16x16x16xf32> to vector<16x16x16xf32>
    %cst = arith.constant 0.000000e+00 : bf16
    %2 = vector.broadcast %cst : bf16 to vector<1x18x16xbf16>
    %cst_3 = arith.constant 0.000000e+00 : bf16
    %3 = vector.broadcast %cst_3 : bf16 to vector<18x1x16xbf16>
    %c0_4 = arith.constant 0 : index
    %c0_5 = arith.constant 0 : index
    %c0_6 = arith.constant 0 : index
    %4 = vector.load %arg13[%c0_4, %c0_5, %c0_6] : memref<18x18x16xbf16, #tpu.memory_space<vmem>>, vector<1x18x16xbf16>
    tpu.vector_store %arg13[%c0_4, %c0_5, %c0_6], %2 {strides = array<i32>} : memref<18x18x16xbf16, #tpu.memory_space<vmem>>, vector<1x18x16xbf16>,
    %c17 = arith.constant 17 : index
    %c0_7 = arith.constant 0 : index
    %c0_8 = arith.constant 0 : index
    %5 = vector.load %arg13[%c17, %c0_7, %c0_8] : memref<18x18x16xbf16, #tpu.memory_space<vmem>>, vector<1x18x16xbf16>
    tpu.vector_store %arg13[%c17, %c0_7, %c0_8], %2 {strides = array<i32>} : memref<18x18x16xbf16, #tpu.memory_space<vmem>>, vector<1x18x16xbf16>,
    %c0_9 = arith.constant 0 : index
    %c0_10 = arith.constant 0 : index
    %c0_11 = arith.constant 0 : index
    %6 = vector.load %arg13[%c0_9, %c0_10, %c0_11] : memref<18x18x16xbf16, #tpu.memory_space<vmem>>, vector<18x1x16xbf16>
    tpu.vector_store %arg13[%c0_9, %c0_10, %c0_11], %3 {strides = array<i32>} : memref<18x18x16xbf16, #tpu.memory_space<vmem>>, vector<18x1x16xbf16>,
    %c0_12 = arith.constant 0 : index
    %c17_13 = arith.constant 17 : index
    %c0_14 = arith.constant 0 : index
    %7 = vector.load %arg13[%c0_12, %c17_13, %c0_14] : memref<18x18x16xbf16, #tpu.memory_space<vmem>>, vector<18x1x16xbf16>
    tpu.vector_store %arg13[%c0_12, %c17_13, %c0_14], %3 {strides = array<i32>} : memref<18x18x16xbf16, #tpu.memory_space<vmem>>, vector<18x1x16xbf16>,
    %8 = arith.truncf %1 : vector<16x16x16xf32> to vector<16x16x16xbf16>
    %c1 = arith.constant 1 : index
    %c1_15 = arith.constant 1 : index
    %c0_16 = arith.constant 0 : index
    %9 = vector.load %arg13[%c1, %c1_15, %c0_16] : memref<18x18x16xbf16, #tpu.memory_space<vmem>>, vector<16x16x16xbf16>
    tpu.vector_store %arg13[%c1, %c1_15, %c0_16], %8 {strides = array<i32>} : memref<18x18x16xbf16, #tpu.memory_space<vmem>>, vector<16x16x16xbf16>,
    %c0_17 = arith.constant 0 : index
    %c0_18 = arith.constant 0 : index
    %c0_19 = arith.constant 0 : index
    %10 = vector.load %arg13[%c0_17, %c0_18, %c0_19] : memref<18x18x16xbf16, #tpu.memory_space<vmem>>, vector<16x16x16xbf16>
    %c0_20 = arith.constant 0 : index
    %c1_21 = arith.constant 1 : index
    %c0_22 = arith.constant 0 : index
    %11 = vector.load %arg13[%c0_20, %c1_21, %c0_22] : memref<18x18x16xbf16, #tpu.memory_space<vmem>>, vector<16x16x16xbf16>
    %c0_23 = arith.constant 0 : index
    %c2 = arith.constant 2 : index
    %c0_24 = arith.constant 0 : index
    %12 = vector.load %arg13[%c0_23, %c2, %c0_24] : memref<18x18x16xbf16, #tpu.memory_space<vmem>>, vector<16x16x16xbf16>
    %c1_25 = arith.constant 1 : index
    %c0_26 = arith.constant 0 : index
    %c0_27 = arith.constant 0 : index
    %13 = vector.load %arg13[%c1_25, %c0_26, %c0_27] : memref<18x18x16xbf16, #tpu.memory_space<vmem>>, vector<16x16x16xbf16>
    %c1_28 = arith.constant 1 : index
    %c1_29 = arith.constant 1 : index
    %c0_30 = arith.constant 0 : index
    %14 = vector.load %arg13[%c1_28, %c1_29, %c0_30] : memref<18x18x16xbf16, #tpu.memory_space<vmem>>, vector<16x16x16xbf16>
    %c1_31 = arith.constant 1 : index
    %c2_32 = arith.constant 2 : index
    %c0_33 = arith.constant 0 : index
    %15 = vector.load %arg13[%c1_31, %c2_32, %c0_33] : memref<18x18x16xbf16, #tpu.memory_space<vmem>>, vector<16x16x16xbf16>
    %c2_34 = arith.constant 2 : index
    %c0_35 = arith.constant 0 : index
    %c0_36 = arith.constant 0 : index
    %16 = vector.load %arg13[%c2_34, %c0_35, %c0_36] : memref<18x18x16xbf16, #tpu.memory_space<vmem>>, vector<16x16x16xbf16>
    %c2_37 = arith.constant 2 : index
    %c1_38 = arith.constant 1 : index
    %c0_39 = arith.constant 0 : index
    %17 = vector.load %arg13[%c2_37, %c1_38, %c0_39] : memref<18x18x16xbf16, #tpu.memory_space<vmem>>, vector<16x16x16xbf16>
    %c2_40 = arith.constant 2 : index
    %c2_41 = arith.constant 2 : index
    %c0_42 = arith.constant 0 : index
    %18 = vector.load %arg13[%c2_40, %c2_41, %c0_42] : memref<18x18x16xbf16, #tpu.memory_space<vmem>>, vector<16x16x16xbf16>
    %19 = tpu.concatenate %10, %11, %12, %13, %14, %15, %16, %17, %18 in 2 : vector<16x16x16xbf16>, vector<16x16x16xbf16>, vector<16x16x16xbf16>, vector<16x16x16xbf16>, vector<16x16x16xbf16>, vector<16x16x16xbf16>, vector<16x16x16xbf16>, vector<16x16x16xbf16>, vector<16x16x16xbf16> -> vector<16x16x144xbf16>
    %20 = vector.shape_cast %19 : vector<16x16x144xbf16> to vector<256x144xbf16>
    %c0_43 = arith.constant 0 : index
    %c0_44 = arith.constant 0 : index
    %21 = vector.load %arg2[%c0_43, %c0_44] : memref<144x32xbf16, #tpu.memory_space<vmem>>, vector<144x32xbf16>
    %cst_45 = arith.constant dense<0.000000e+00> : vector<256x32xf32>
    %22 = tpu.matmul %20, %21, %cst_45 {dimension_numbers = #tpu.dot_dimension_numbers<[1], [0], [0], [1], [0, 0, 1, 1], [], []>} : vector<256x144xbf16>, vector<144x32xbf16>, vector<256x32xf32> -> vector<256x32xf32>
    %c0_46 = arith.constant 0 : index
    %c0_47 = arith.constant 0 : index
    %23 = vector.load %arg3[%c0_46, %c0_47] : memref<1x32xf32, #tpu.memory_space<vmem>>, vector<1x32xf32>
    %24 = vector.broadcast %23 : vector<1x32xf32> to vector<256x32xf32>
    %25 = arith.mulf %22, %24 : vector<256x32xf32>
    %c0_48 = arith.constant 0 : index
    %c0_49 = arith.constant 0 : index
    %26 = vector.load %arg4[%c0_48, %c0_49] : memref<1x32xf32, #tpu.memory_space<vmem>>, vector<1x32xf32>
    %27 = vector.broadcast %26 : vector<1x32xf32> to vector<256x32xf32>
    %28 = arith.addf %25, %27 : vector<256x32xf32>
    %cst_50 = arith.constant 0.000000e+00 : f32
    %29 = vector.broadcast %cst_50 : f32 to vector<256x32xf32>
    %30 = arith.maximumf %28, %29 : vector<256x32xf32>
    %31 = vector.shape_cast %30 : vector<256x32xf32> to vector<16x16x32xf32>
    %cst_51 = arith.constant 0.000000e+00 : bf16
    %32 = vector.broadcast %cst_51 : bf16 to vector<1x18x32xbf16>
    %cst_52 = arith.constant 0.000000e+00 : bf16
    %33 = vector.broadcast %cst_52 : bf16 to vector<18x1x32xbf16>
    %c0_53 = arith.constant 0 : index
    %c0_54 = arith.constant 0 : index
    %c0_55 = arith.constant 0 : index
    %34 = vector.load %arg14[%c0_53, %c0_54, %c0_55] : memref<18x18x32xbf16, #tpu.memory_space<vmem>>, vector<1x18x32xbf16>
    tpu.vector_store %arg14[%c0_53, %c0_54, %c0_55], %32 {strides = array<i32>} : memref<18x18x32xbf16, #tpu.memory_space<vmem>>, vector<1x18x32xbf16>,
    %c17_56 = arith.constant 17 : index
    %c0_57 = arith.constant 0 : index
    %c0_58 = arith.constant 0 : index
    %35 = vector.load %arg14[%c17_56, %c0_57, %c0_58] : memref<18x18x32xbf16, #tpu.memory_space<vmem>>, vector<1x18x32xbf16>
    tpu.vector_store %arg14[%c17_56, %c0_57, %c0_58], %32 {strides = array<i32>} : memref<18x18x32xbf16, #tpu.memory_space<vmem>>, vector<1x18x32xbf16>,
    %c0_59 = arith.constant 0 : index
    %c0_60 = arith.constant 0 : index
    %c0_61 = arith.constant 0 : index
    %36 = vector.load %arg14[%c0_59, %c0_60, %c0_61] : memref<18x18x32xbf16, #tpu.memory_space<vmem>>, vector<18x1x32xbf16>
    tpu.vector_store %arg14[%c0_59, %c0_60, %c0_61], %33 {strides = array<i32>} : memref<18x18x32xbf16, #tpu.memory_space<vmem>>, vector<18x1x32xbf16>,
    %c0_62 = arith.constant 0 : index
    %c17_63 = arith.constant 17 : index
    %c0_64 = arith.constant 0 : index
    %37 = vector.load %arg14[%c0_62, %c17_63, %c0_64] : memref<18x18x32xbf16, #tpu.memory_space<vmem>>, vector<18x1x32xbf16>
    tpu.vector_store %arg14[%c0_62, %c17_63, %c0_64], %33 {strides = array<i32>} : memref<18x18x32xbf16, #tpu.memory_space<vmem>>, vector<18x1x32xbf16>,
    %38 = arith.truncf %31 : vector<16x16x32xf32> to vector<16x16x32xbf16>
    %c1_65 = arith.constant 1 : index
    %c1_66 = arith.constant 1 : index
    %c0_67 = arith.constant 0 : index
    %39 = vector.load %arg14[%c1_65, %c1_66, %c0_67] : memref<18x18x32xbf16, #tpu.memory_space<vmem>>, vector<16x16x32xbf16>
    tpu.vector_store %arg14[%c1_65, %c1_66, %c0_67], %38 {strides = array<i32>} : memref<18x18x32xbf16, #tpu.memory_space<vmem>>, vector<16x16x32xbf16>,
    %c0_68 = arith.constant 0 : index
    %c0_69 = arith.constant 0 : index
    %c0_70 = arith.constant 0 : index
    %40 = vector.load %arg14[%c0_68, %c0_69, %c0_70] : memref<18x18x32xbf16, #tpu.memory_space<vmem>>, vector<16x16x32xbf16>
    %c0_71 = arith.constant 0 : index
    %c1_72 = arith.constant 1 : index
    %c0_73 = arith.constant 0 : index
    %41 = vector.load %arg14[%c0_71, %c1_72, %c0_73] : memref<18x18x32xbf16, #tpu.memory_space<vmem>>, vector<16x16x32xbf16>
    %c0_74 = arith.constant 0 : index
    %c2_75 = arith.constant 2 : index
    %c0_76 = arith.constant 0 : index
    %42 = vector.load %arg14[%c0_74, %c2_75, %c0_76] : memref<18x18x32xbf16, #tpu.memory_space<vmem>>, vector<16x16x32xbf16>
    %c1_77 = arith.constant 1 : index
    %c0_78 = arith.constant 0 : index
    %c0_79 = arith.constant 0 : index
    %43 = vector.load %arg14[%c1_77, %c0_78, %c0_79] : memref<18x18x32xbf16, #tpu.memory_space<vmem>>, vector<16x16x32xbf16>
    %c1_80 = arith.constant 1 : index
    %c1_81 = arith.constant 1 : index
    %c0_82 = arith.constant 0 : index
    %44 = vector.load %arg14[%c1_80, %c1_81, %c0_82] : memref<18x18x32xbf16, #tpu.memory_space<vmem>>, vector<16x16x32xbf16>
    %c1_83 = arith.constant 1 : index
    %c2_84 = arith.constant 2 : index
    %c0_85 = arith.constant 0 : index
    %45 = vector.load %arg14[%c1_83, %c2_84, %c0_85] : memref<18x18x32xbf16, #tpu.memory_space<vmem>>, vector<16x16x32xbf16>
    %c2_86 = arith.constant 2 : index
    %c0_87 = arith.constant 0 : index
    %c0_88 = arith.constant 0 : index
    %46 = vector.load %arg14[%c2_86, %c0_87, %c0_88] : memref<18x18x32xbf16, #tpu.memory_space<vmem>>, vector<16x16x32xbf16>
    %c2_89 = arith.constant 2 : index
    %c1_90 = arith.constant 1 : index
    %c0_91 = arith.constant 0 : index
    %47 = vector.load %arg14[%c2_89, %c1_90, %c0_91] : memref<18x18x32xbf16, #tpu.memory_space<vmem>>, vector<16x16x32xbf16>
    %c2_92 = arith.constant 2 : index
    %c2_93 = arith.constant 2 : index
    %c0_94 = arith.constant 0 : index
    %48 = vector.load %arg14[%c2_92, %c2_93, %c0_94] : memref<18x18x32xbf16, #tpu.memory_space<vmem>>, vector<16x16x32xbf16>
    %49 = tpu.concatenate %40, %41, %42, %43, %44, %45, %46, %47, %48 in 2 : vector<16x16x32xbf16>, vector<16x16x32xbf16>, vector<16x16x32xbf16>, vector<16x16x32xbf16>, vector<16x16x32xbf16>, vector<16x16x32xbf16>, vector<16x16x32xbf16>, vector<16x16x32xbf16>, vector<16x16x32xbf16> -> vector<16x16x288xbf16>
    %50 = vector.shape_cast %49 : vector<16x16x288xbf16> to vector<256x288xbf16>
    %c0_95 = arith.constant 0 : index
    %c0_96 = arith.constant 0 : index
    %51 = vector.load %arg5[%c0_95, %c0_96] : memref<288x32xbf16, #tpu.memory_space<vmem>>, vector<288x32xbf16>
    %cst_97 = arith.constant dense<0.000000e+00> : vector<256x32xf32>
    %52 = tpu.matmul %50, %51, %cst_97 {dimension_numbers = #tpu.dot_dimension_numbers<[1], [0], [0], [1], [0, 0, 1, 1], [], []>} : vector<256x288xbf16>, vector<288x32xbf16>, vector<256x32xf32> -> vector<256x32xf32>
    %c0_98 = arith.constant 0 : index
    %c0_99 = arith.constant 0 : index
    %53 = vector.load %arg6[%c0_98, %c0_99] : memref<1x32xf32, #tpu.memory_space<vmem>>, vector<1x32xf32>
    %54 = vector.broadcast %53 : vector<1x32xf32> to vector<256x32xf32>
    %55 = arith.mulf %52, %54 : vector<256x32xf32>
    %c0_100 = arith.constant 0 : index
    %c0_101 = arith.constant 0 : index
    %56 = vector.load %arg7[%c0_100, %c0_101] : memref<1x32xf32, #tpu.memory_space<vmem>>, vector<1x32xf32>
    %57 = vector.broadcast %56 : vector<1x32xf32> to vector<256x32xf32>
    %58 = arith.addf %55, %57 : vector<256x32xf32>
    %cst_102 = arith.constant 0.000000e+00 : f32
    %59 = vector.broadcast %cst_102 : f32 to vector<256x32xf32>
    %60 = arith.maximumf %58, %59 : vector<256x32xf32>
    %61 = vector.shape_cast %60 : vector<256x32xf32> to vector<16x16x32xf32>
    %62 = arith.truncf %61 : vector<16x16x32xf32> to vector<16x16x32xbf16>
    %c1_103 = arith.constant 1 : index
    %c1_104 = arith.constant 1 : index
    %c0_105 = arith.constant 0 : index
    %63 = vector.load %arg14[%c1_103, %c1_104, %c0_105] : memref<18x18x32xbf16, #tpu.memory_space<vmem>>, vector<16x16x32xbf16>
    tpu.vector_store %arg14[%c1_103, %c1_104, %c0_105], %62 {strides = array<i32>} : memref<18x18x32xbf16, #tpu.memory_space<vmem>>, vector<16x16x32xbf16>,
    %c0_106 = arith.constant 0 : index
    %c0_107 = arith.constant 0 : index
    %c0_108 = arith.constant 0 : index
    %64 = vector.load %arg14[%c0_106, %c0_107, %c0_108] : memref<18x18x32xbf16, #tpu.memory_space<vmem>>, vector<16x16x32xbf16>
    %c0_109 = arith.constant 0 : index
    %c1_110 = arith.constant 1 : index
    %c0_111 = arith.constant 0 : index
    %65 = vector.load %arg14[%c0_109, %c1_110, %c0_111] : memref<18x18x32xbf16, #tpu.memory_space<vmem>>, vector<16x16x32xbf16>
    %c0_112 = arith.constant 0 : index
    %c2_113 = arith.constant 2 : index
    %c0_114 = arith.constant 0 : index
    %66 = vector.load %arg14[%c0_112, %c2_113, %c0_114] : memref<18x18x32xbf16, #tpu.memory_space<vmem>>, vector<16x16x32xbf16>
    %c1_115 = arith.constant 1 : index
    %c0_116 = arith.constant 0 : index
    %c0_117 = arith.constant 0 : index
    %67 = vector.load %arg14[%c1_115, %c0_116, %c0_117] : memref<18x18x32xbf16, #tpu.memory_space<vmem>>, vector<16x16x32xbf16>
    %c1_118 = arith.constant 1 : index
    %c1_119 = arith.constant 1 : index
    %c0_120 = arith.constant 0 : index
    %68 = vector.load %arg14[%c1_118, %c1_119, %c0_120] : memref<18x18x32xbf16, #tpu.memory_space<vmem>>, vector<16x16x32xbf16>
    %c1_121 = arith.constant 1 : index
    %c2_122 = arith.constant 2 : index
    %c0_123 = arith.constant 0 : index
    %69 = vector.load %arg14[%c1_121, %c2_122, %c0_123] : memref<18x18x32xbf16, #tpu.memory_space<vmem>>, vector<16x16x32xbf16>
    %c2_124 = arith.constant 2 : index
    %c0_125 = arith.constant 0 : index
    %c0_126 = arith.constant 0 : index
    %70 = vector.load %arg14[%c2_124, %c0_125, %c0_126] : memref<18x18x32xbf16, #tpu.memory_space<vmem>>, vector<16x16x32xbf16>
    %c2_127 = arith.constant 2 : index
    %c1_128 = arith.constant 1 : index
    %c0_129 = arith.constant 0 : index
    %71 = vector.load %arg14[%c2_127, %c1_128, %c0_129] : memref<18x18x32xbf16, #tpu.memory_space<vmem>>, vector<16x16x32xbf16>
    %c2_130 = arith.constant 2 : index
    %c2_131 = arith.constant 2 : index
    %c0_132 = arith.constant 0 : index
    %72 = vector.load %arg14[%c2_130, %c2_131, %c0_132] : memref<18x18x32xbf16, #tpu.memory_space<vmem>>, vector<16x16x32xbf16>
    %73 = tpu.concatenate %64, %65, %66, %67, %68, %69, %70, %71, %72 in 2 : vector<16x16x32xbf16>, vector<16x16x32xbf16>, vector<16x16x32xbf16>, vector<16x16x32xbf16>, vector<16x16x32xbf16>, vector<16x16x32xbf16>, vector<16x16x32xbf16>, vector<16x16x32xbf16>, vector<16x16x32xbf16> -> vector<16x16x288xbf16>
    %74 = vector.shape_cast %73 : vector<16x16x288xbf16> to vector<256x288xbf16>
    %c0_133 = arith.constant 0 : index
    %c0_134 = arith.constant 0 : index
    %75 = vector.load %arg8[%c0_133, %c0_134] : memref<288x32xbf16, #tpu.memory_space<vmem>>, vector<288x32xbf16>
    %cst_135 = arith.constant dense<0.000000e+00> : vector<256x32xf32>
    %76 = tpu.matmul %74, %75, %cst_135 {dimension_numbers = #tpu.dot_dimension_numbers<[1], [0], [0], [1], [0, 0, 1, 1], [], []>} : vector<256x288xbf16>, vector<288x32xbf16>, vector<256x32xf32> -> vector<256x32xf32>
    %c0_136 = arith.constant 0 : index
    %c0_137 = arith.constant 0 : index
    %77 = vector.load %arg9[%c0_136, %c0_137] : memref<1x32xf32, #tpu.memory_space<vmem>>, vector<1x32xf32>
    %78 = vector.broadcast %77 : vector<1x32xf32> to vector<256x32xf32>
    %79 = arith.mulf %76, %78 : vector<256x32xf32>
    %c0_138 = arith.constant 0 : index
    %c0_139 = arith.constant 0 : index
    %80 = vector.load %arg10[%c0_138, %c0_139] : memref<1x32xf32, #tpu.memory_space<vmem>>, vector<1x32xf32>
    %81 = vector.broadcast %80 : vector<1x32xf32> to vector<256x32xf32>
    %82 = arith.addf %79, %81 : vector<256x32xf32>
    %cst_140 = arith.constant 0.000000e+00 : f32
    %83 = vector.broadcast %cst_140 : f32 to vector<256x32xf32>
    %84 = arith.maximumf %82, %83 : vector<256x32xf32>
    %85 = vector.shape_cast %84 : vector<256x32xf32> to vector<16x16x32xf32>
    %86 = vector.shape_cast %85 : vector<16x16x32xf32> to vector<8x2x16x32xf32>
    %c0_141 = arith.constant 0 : index
    %c0_142 = arith.constant 0 : index
    %c0_143 = arith.constant 0 : index
    %c0_144 = arith.constant 0 : index
    %87 = vector.load %arg15[%c0_141, %c0_142, %c0_143, %c0_144] : memref<8x2x16x32xf32, #tpu.memory_space<vmem>>, vector<8x2x16x32xf32>
    tpu.vector_store %arg15[%c0_141, %c0_142, %c0_143, %c0_144], %86 {strides = array<i32>} : memref<8x2x16x32xf32, #tpu.memory_space<vmem>>, vector<8x2x16x32xf32>,
    %c0_145 = arith.constant 0 : index
    %c0_146 = arith.constant 0 : index
    %c0_147 = arith.constant 0 : index
    %c0_148 = arith.constant 0 : index
    %88 = tpu.strided_load %arg15[%c0_145, %c0_146, %c0_147, %c0_148] {strides = array<i32: 1, 1, 2, 1>} : memref<8x2x16x32xf32, #tpu.memory_space<vmem>>, vector<8x1x8x32xf32>
    %89 = vector.shape_cast %88 : vector<8x1x8x32xf32> to vector<8x8x32xf32>
    %c0_149 = arith.constant 0 : index
    %c0_150 = arith.constant 0 : index
    %c1_151 = arith.constant 1 : index
    %c0_152 = arith.constant 0 : index
    %90 = tpu.strided_load %arg15[%c0_149, %c0_150, %c1_151, %c0_152] {strides = array<i32: 1, 1, 2, 1>} : memref<8x2x16x32xf32, #tpu.memory_space<vmem>>, vector<8x1x8x32xf32>
    %91 = vector.shape_cast %90 : vector<8x1x8x32xf32> to vector<8x8x32xf32>
    %c0_153 = arith.constant 0 : index
    %c1_154 = arith.constant 1 : index
    %c0_155 = arith.constant 0 : index
    %c0_156 = arith.constant 0 : index
    %92 = tpu.strided_load %arg15[%c0_153, %c1_154, %c0_155, %c0_156] {strides = array<i32: 1, 1, 2, 1>} : memref<8x2x16x32xf32, #tpu.memory_space<vmem>>, vector<8x1x8x32xf32>
    %93 = vector.shape_cast %92 : vector<8x1x8x32xf32> to vector<8x8x32xf32>
    %c0_157 = arith.constant 0 : index
    %c1_158 = arith.constant 1 : index
    %c1_159 = arith.constant 1 : index
    %c0_160 = arith.constant 0 : index
    %94 = tpu.strided_load %arg15[%c0_157, %c1_158, %c1_159, %c0_160] {strides = array<i32: 1, 1, 2, 1>} : memref<8x2x16x32xf32, #tpu.memory_space<vmem>>, vector<8x1x8x32xf32>
    %95 = vector.shape_cast %94 : vector<8x1x8x32xf32> to vector<8x8x32xf32>
    %96 = arith.maximumf %89, %91 : vector<8x8x32xf32>
    %97 = arith.maximumf %93, %95 : vector<8x8x32xf32>
    %98 = arith.maximumf %96, %97 : vector<8x8x32xf32>
    %99 = tpu.iota {dimensions = array<i32: 0>} : vector<8x8x1xi32>
    %100 = tpu.iota {dimensions = array<i32: 1>} : vector<8x8x1xi32>
    %c2_i32 = arith.constant 2 : i32
    %101 = vector.broadcast %c2_i32 : i32 to vector<8x8x1xi32>
    %102 = arith.muli %101, %99 : vector<8x8x1xi32>
    %c16_i32 = arith.constant 16 : i32
    %103 = vector.broadcast %c16_i32 : i32 to vector<8x8x1xi32>
    %104 = arith.muli %102, %103 : vector<8x8x1xi32>
    %c2_i32_161 = arith.constant 2 : i32
    %105 = vector.broadcast %c2_i32_161 : i32 to vector<8x8x1xi32>
    %106 = arith.muli %105, %100 : vector<8x8x1xi32>
    %107 = arith.addi %104, %106 : vector<8x8x1xi32>
    %108 = arith.cmpf oeq, %89, %98 : vector<8x8x32xf32>
    %109 = arith.cmpf oeq, %91, %98 : vector<8x8x32xf32>
    %c1_i32 = arith.constant 1 : i32
    %110 = vector.broadcast %c1_i32 : i32 to vector<8x8x1xi32>
    %111 = arith.addi %107, %110 : vector<8x8x1xi32>
    %112 = arith.cmpf oeq, %93, %98 : vector<8x8x32xf32>
    %c16_i32_162 = arith.constant 16 : i32
    %113 = vector.broadcast %c16_i32_162 : i32 to vector<8x8x1xi32>
    %114 = arith.addi %107, %113 : vector<8x8x1xi32>
    %c16_i32_163 = arith.constant 16 : i32
    %115 = vector.broadcast %c16_i32_163 : i32 to vector<8x8x1xi32>
    %116 = arith.addi %107, %115 : vector<8x8x1xi32>
    %c1_i32_164 = arith.constant 1 : i32
    %117 = vector.broadcast %c1_i32_164 : i32 to vector<8x8x1xi32>
    %118 = arith.addi %116, %117 : vector<8x8x1xi32>
    %119 = vector.shape_cast %114 : vector<8x8x1xi32> to vector<8x8x1xi32>
    %120 = vector.broadcast %119 : vector<8x8x1xi32> to vector<8x8x32xi32>
    %121 = vector.shape_cast %118 : vector<8x8x1xi32> to vector<8x8x1xi32>
    %122 = vector.broadcast %121 : vector<8x8x1xi32> to vector<8x8x32xi32>
    %123 = arith.select %112, %120, %122 : vector<8x8x32xi1>, vector<8x8x32xi32>
    %124 = vector.shape_cast %111 : vector<8x8x1xi32> to vector<8x8x1xi32>
    %125 = vector.broadcast %124 : vector<8x8x1xi32> to vector<8x8x32xi32>
    %126 = arith.select %109, %125, %123 : vector<8x8x32xi1>, vector<8x8x32xi32>
    %127 = vector.shape_cast %107 : vector<8x8x1xi32> to vector<8x8x1xi32>
    %128 = vector.broadcast %127 : vector<8x8x1xi32> to vector<8x8x32xi32>
    %129 = arith.select %108, %128, %126 : vector<8x8x32xi1>, vector<8x8x32xi32>
    %c0_165 = arith.constant 0 : index
    %c0_166 = arith.constant 0 : index
    %c0_167 = arith.constant 0 : index
    %c0_168 = arith.constant 0 : index
    %130 = vector.load %arg11[%c0_165, %c0_166, %c0_167, %c0_168] : memref<1x8x8x32xf32, #tpu.memory_space<vmem>>, vector<1x8x8x32xf32>
    %131 = vector.shape_cast %130 : vector<1x8x8x32xf32> to vector<8x8x32xf32>
    %132 = vector.shape_cast %98 : vector<8x8x32xf32> to vector<1x8x8x32xf32>
    tpu.vector_store %arg11[%c0_165, %c0_166, %c0_167, %c0_168], %132 {strides = array<i32>} : memref<1x8x8x32xf32, #tpu.memory_space<vmem>>, vector<1x8x8x32xf32>,
    %c0_169 = arith.constant 0 : index
    %c0_170 = arith.constant 0 : index
    %c0_171 = arith.constant 0 : index
    %c0_172 = arith.constant 0 : index
    %133 = vector.load %arg12[%c0_169, %c0_170, %c0_171, %c0_172] : memref<1x8x8x32xi32, #tpu.memory_space<vmem>>, vector<1x8x8x32xi32>
    %134 = vector.shape_cast %133 : vector<1x8x8x32xi32> to vector<8x8x32xi32>
    %135 = vector.shape_cast %129 : vector<8x8x32xi32> to vector<1x8x8x32xi32>
    tpu.vector_store %arg12[%c0_169, %c0_170, %c0_171, %c0_172], %135 {strides = array<i32>} : memref<1x8x8x32xi32, #tpu.memory_space<vmem>>, vector<1x8x8x32xi32>,
    return
  }
  func.func @transform_0(%arg0: i32) -> (i32, i32, i32, i32) {
    %c0_i32 = arith.constant 0 : i32
    %c0_i32_0 = arith.constant 0 : i32
    %c0_i32_1 = arith.constant 0 : i32
    %c0_i32_2 = arith.constant 0 : i32
    return %arg0, %c0_i32, %c0_i32_0, %c0_i32_1 : i32, i32, i32, i32
  }
  func.func @transform_1(%arg0: i32) -> (i32, i32) {
    %c0_i32 = arith.constant 0 : i32
    %c0_i32_0 = arith.constant 0 : i32
    %c0_i32_1 = arith.constant 0 : i32
    return %c0_i32, %c0_i32_0 : i32, i32
  }
  func.func @transform_2(%arg0: i32) -> (i32, i32) {
    %c0_i32 = arith.constant 0 : i32
    %c0_i32_0 = arith.constant 0 : i32
    %c0_i32_1 = arith.constant 0 : i32
    return %c0_i32, %c0_i32_0 : i32, i32
  }
  func.func @transform_3(%arg0: i32) -> (i32, i32) {
    %c0_i32 = arith.constant 0 : i32
    %c0_i32_0 = arith.constant 0 : i32
    %c0_i32_1 = arith.constant 0 : i32
    return %c0_i32, %c0_i32_0 : i32, i32
  }
  func.func @transform_4(%arg0: i32) -> (i32, i32) {
    %c0_i32 = arith.constant 0 : i32
    %c0_i32_0 = arith.constant 0 : i32
    %c0_i32_1 = arith.constant 0 : i32
    return %c0_i32, %c0_i32_0 : i32, i32
  }
  func.func @transform_5(%arg0: i32) -> (i32, i32) {
    %c0_i32 = arith.constant 0 : i32
    %c0_i32_0 = arith.constant 0 : i32
    %c0_i32_1 = arith.constant 0 : i32
    return %c0_i32, %c0_i32_0 : i32, i32
  }
  func.func @transform_6(%arg0: i32) -> (i32, i32) {
    %c0_i32 = arith.constant 0 : i32
    %c0_i32_0 = arith.constant 0 : i32
    %c0_i32_1 = arith.constant 0 : i32
    return %c0_i32, %c0_i32_0 : i32, i32
  }
  func.func @transform_7(%arg0: i32) -> (i32, i32) {
    %c0_i32 = arith.constant 0 : i32
    %c0_i32_0 = arith.constant 0 : i32
    %c0_i32_1 = arith.constant 0 : i32
    return %c0_i32, %c0_i32_0 : i32, i32
  }
  func.func @transform_8(%arg0: i32) -> (i32, i32) {
    %c0_i32 = arith.constant 0 : i32
    %c0_i32_0 = arith.constant 0 : i32
    %c0_i32_1 = arith.constant 0 : i32
    return %c0_i32, %c0_i32_0 : i32, i32
  }
  func.func @transform_9(%arg0: i32) -> (i32, i32) {
    %c0_i32 = arith.constant 0 : i32
    %c0_i32_0 = arith.constant 0 : i32
    %c0_i32_1 = arith.constant 0 : i32
    return %c0_i32, %c0_i32_0 : i32, i32
  }
  func.func @transform_10(%arg0: i32) -> (i32, i32, i32, i32) {
    %c0_i32 = arith.constant 0 : i32
    %c0_i32_0 = arith.constant 0 : i32
    %c0_i32_1 = arith.constant 0 : i32
    %c0_i32_2 = arith.constant 0 : i32
    return %arg0, %c0_i32, %c0_i32_0, %c0_i32_1 : i32, i32, i32, i32
  }
  func.func @transform_11(%arg0: i32) -> (i32, i32, i32, i32) {
    %c0_i32 = arith.constant 0 : i32
    %c0_i32_0 = arith.constant 0 : i32
    %c0_i32_1 = arith.constant 0 : i32
    %c0_i32_2 = arith.constant 0 : i32
    return %arg0, %c0_i32, %c0_i32_0, %c0_i32_1 : i32, i32, i32, i32
  }
}

</mosaic_0001>

<llo_original>
// kernel: tpu_custom_call.1
$region0: #{tpu_custom_call.1}
  #allocation0 [shape = 'u32[]', space=smem, size = 0x4, offset = 0x4, fixed_abs, tag = 'smem constant byte address 0x4 - core index']
  #allocation1 [shape = 'u32[144,128]{1,0:T(1,128)}', space=vmem, size = 0x12000, scoped, tag = 'internal scratch']
  #allocation2 [shape = 'bf16[18,18,16]{2,1,0:T(8,128)(2,1)}', space=vmem, size = 0x1b000, scoped, tag = 'scratch operand']
  #allocation3 [shape = 'bf16[18,18,32]{2,1,0:T(8,128)(2,1)}', space=vmem, size = 0x1b000, scoped, tag = 'scratch operand']
  #allocation4 [shape = 'f32[8,2,16,32]{3,2,1,0:T(8,128)}', space=vmem, size = 0x20000, scoped, tag = 'scratch operand']
  %s0 = inlined_call_operand.hbm [shape: f32[2,16,16,16], index: 0, kind: input, shape index: {}]
  %s1 = inlined_call_operand.vmem [shape: bf16[144,32], index: 1, kind: input, shape index: {}]
  %s2 = inlined_call_operand.vmem [shape: f32[1,32], index: 2, kind: input, shape index: {}]
  %s3 = inlined_call_operand.vmem [shape: f32[1,32], index: 3, kind: input, shape index: {}]
  %s4 = inlined_call_operand.vmem [shape: bf16[288,32], index: 4, kind: input, shape index: {}]
  %s5 = inlined_call_operand.vmem [shape: f32[1,32], index: 5, kind: input, shape index: {}]
  %s6 = inlined_call_operand.vmem [shape: f32[1,32], index: 6, kind: input, shape index: {}]
  %s7 = inlined_call_operand.vmem [shape: bf16[288,32], index: 7, kind: input, shape index: {}]
  %s8 = inlined_call_operand.vmem [shape: f32[1,32], index: 8, kind: input, shape index: {}]
  %s9 = inlined_call_operand.vmem [shape: f32[1,32], index: 9, kind: input, shape index: {}]
  %s10 = inlined_call_operand.hbm [shape: f32[2,8,8,32], index: 10, kind: output, shape index: {0}]
  %s11 = inlined_call_operand.hbm [shape: s32[2,8,8,32], index: 11, kind: output, shape index: {1}]
  %12 = xla_tuple %s10, %s11
  %s13 = sld [smem:[#allocation0]]
  $region85: #{tpu_custom_call.1} parent=0
    _
  %s15 = ssub.s32 1, %s13
  %s16 = scalar_select 0, %s15, %s13
  $region1: #{tpu_custom_call.1} parent=0
    #allocation5 [shape = 'u8[262144]{0}', space=vmem, size = 0x40000, scoped, tag = 'input window, operand 0']
    #allocation6 [shape = 's32[2]{0}', space=sflag, size = 0x8, scoped, tag = 'scoped memory for tpu_custom_call.1']
    #allocation7 [shape = 's32[2]{0}', space=sflag, size = 0x8, scoped, tag = 'scoped memory for tpu_custom_call.1']
    #allocation8 [shape = 'u8[65536]{0}', space=vmem, size = 0x10000, scoped, tag = 'output window, operand 0']
    #allocation9 [shape = 'u8[65536]{0}', space=vmem, size = 0x10000, scoped, tag = 'output window, operand 1']
    #allocation10 [shape = 's32[2]{0}', space=sflag, size = 0x8, scoped, tag = 'scoped memory for tpu_custom_call.1']
    %17 = vsyncpa [#allocation6], 0
    %s18 = scalar_lea.sflag [#allocation6], 1
    %19 = vsyncpa %s18, 0
    %20 = vsyncpa [#allocation7], 0
    %s21 = scalar_lea.sflag [#allocation7], 1
    %22 = vsyncpa %s21, 0
    %23 = vsyncpa [#allocation10], 0
    %s24 = scalar_lea.sflag [#allocation10], 1
    %25 = vsyncpa %s24, 0
    loop: start=0, step=1, limit=4
    $region2: #{tpu_custom_call.1} parent=1 // loop_pre_header
      _
    $region3: #{tpu_custom_call.1} parent=1 // loop_header
      %s27 = sphi 0, %s31
      %p28 = scmp.ge.s32.totalorder %s27, 4
      %s37 = sphi 0, %s39
      %s40 = sphi 0, %s37
      %s41 = sphi 0, %s40
      %s57 = sphi 0, %s41
      %s61 = sphi 0, %s61
      %s63 = sphi 0, %s61
      %s64 = sphi 0, %s63
      %s78 = sphi 0, %s64
      %s82 = sphi 0, %s82
      %s84 = sphi 0, %s82
      %s85 = sphi 0, %s84
      %s99 = sphi 0, %s85
      %s103 = sphi 0, %s103
      %s105 = sphi 0, %s103
      %s106 = sphi 0, %s105
      %s120 = sphi 0, %s106
      %s124 = sphi 0, %s124
      %s126 = sphi 0, %s124
      %s127 = sphi 0, %s126
      %s141 = sphi 0, %s127
      %s145 = sphi 0, %s145
      %s147 = sphi 0, %s145
      %s148 = sphi 0, %s147
      %s162 = sphi 0, %s148
      %s166 = sphi 0, %s166
      %s168 = sphi 0, %s166
      %s169 = sphi 0, %s168
      %s183 = sphi 0, %s169
      %s187 = sphi 0, %s187
      %s189 = sphi 0, %s187
      %s190 = sphi 0, %s189
      %s204 = sphi 0, %s190
      %s208 = sphi 0, %s208
      %s210 = sphi 0, %s208
      %s211 = sphi 0, %s210
      %s225 = sphi 0, %s211
      %s229 = sphi 0, %s229
      %s231 = sphi 0, %s229
      %s232 = sphi 0, %s231
      %s246 = sphi 0, %s232
      %s252 = sphi 0, %s254
      %s255 = sphi 0, %s252
      %s256 = sphi 0, %s255
      %s272 = sphi 0, %s256
      %s278 = sphi 0, %s280
      %s281 = sphi 0, %s278
      %s282 = sphi 0, %s281
      %s298 = sphi 0, %s282
    $region4: #{tpu_custom_call.1} parent=1 // loop_header_branch
      %30 = sbr.rel (%p28) target = $region8
    $region5: #{tpu_custom_call.1} parent=1 // loop_body
      %s32 = ssub.s32 %s27, 1
      %s33 = ssub.s32 %s27, 2
      %s34 = sadd.s32 %s27, 1
      %s35 = ssub.s32 %s27, %s34
      %p36 = scmp.eq.s32.totalorder %s35, 0
      %s38 = sadd.s32 %s37, 1
      %s39 = scalar_select %p36, %s37, %s38
      %p42 = pneg %p36
      %p43 = scmp.eq.s32.totalorder %s27, 1
      %p44 = por %p42, %p43
      %p45 = scmp.ne.s32.totalorder %s37, %s40
      %p46 = scmp.eq.s32.totalorder %s27, 0
      %p47 = por %p45, %p46
      %p48 = scmp.ne.s32.totalorder %s37, %s40
      %p49 = scmp.eq.s32.totalorder %s32, 1
      %p50 = por %p48, %p49
      %p51 = scmp.ne.s32.totalorder %s40, %s41
      %p52 = scmp.eq.s32.totalorder %s32, 0
      %p53 = por %p51, %p52
      %p54 = scmp.ne.s32.totalorder %s40, %s41
      %p55 = scmp.eq.s32.totalorder %s33, 1
      %p56 = por %p54, %p55
      %p58 = scmp.ne.s32.totalorder %s41, %s57
      %p59 = scmp.eq.s32.totalorder %s33, 0
      %p60 = por %p58, %p59
      %s62 = sadd.s32 %s61, 1
      %p65 = scmp.eq.s32.totalorder %s27, 1
      %p66 = scmp.ne.s32.totalorder %s61, %s63
      %p67 = scmp.eq.s32.totalorder %s27, 0
      %p68 = por %p66, %p67
      %p69 = scmp.ne.s32.totalorder %s61, %s63
      %p70 = scmp.eq.s32.totalorder %s32, 1
      %p71 = por %p69, %p70
      %p72 = scmp.ne.s32.totalorder %s63, %s64
      %p73 = scmp.eq.s32.totalorder %s32, 0
      %p74 = por %p72, %p73
      %p75 = scmp.ne.s32.totalorder %s63, %s64
      %p76 = scmp.eq.s32.totalorder %s33, 1
      %p77 = por %p75, %p76
      %p79 = scmp.ne.s32.totalorder %s64, %s78
      %p80 = scmp.eq.s32.totalorder %s33, 0
      %p81 = por %p79, %p80
      %s83 = sadd.s32 %s82, 1
      %p86 = scmp.eq.s32.totalorder %s27, 1
      %p87 = scmp.ne.s32.totalorder %s82, %s84
      %p88 = scmp.eq.s32.totalorder %s27, 0
      %p89 = por %p87, %p88
      %p90 = scmp.ne.s32.totalorder %s82, %s84
      %p91 = scmp.eq.s32.totalorder %s32, 1
      %p92 = por %p90, %p91
      %p93 = scmp.ne.s32.totalorder %s84, %s85
      %p94 = scmp.eq.s32.totalorder %s32, 0
      %p95 = por %p93, %p94
      %p96 = scmp.ne.s32.totalorder %s84, %s85
      %p97 = scmp.eq.s32.totalorder %s33, 1
      %p98 = por %p96, %p97
      %p100 = scmp.ne.s32.totalorder %s85, %s99
      %p101 = scmp.eq.s32.totalorder %s33, 0
      %p102 = por %p100, %p101
      %s104 = sadd.s32 %s103, 1
      %p107 = scmp.eq.s32.totalorder %s27, 1
      %p108 = scmp.ne.s32.totalorder %s103, %s105
      %p109 = scmp.eq.s32.totalorder %s27, 0
      %p110 = por %p108, %p109
      %p111 = scmp.ne.s32.totalorder %s103, %s105
      %p112 = scmp.eq.s32.totalorder %s32, 1
      %p113 = por %p111, %p112
      %p114 = scmp.ne.s32.totalorder %s105, %s106
      %p115 = scmp.eq.s32.totalorder %s32, 0
      %p116 = por %p114, %p115
      %p117 = scmp.ne.s32.totalorder %s105, %s106
      %p118 = scmp.eq.s32.totalorder %s33, 1
      %p119 = por %p117, %p118
      %p121 = scmp.ne.s32.totalorder %s106, %s120
      %p122 = scmp.eq.s32.totalorder %s33, 0
      %p123 = por %p121, %p122
      %s125 = sadd.s32 %s124, 1
      %p128 = scmp.eq.s32.totalorder %s27, 1
      %p129 = scmp.ne.s32.totalorder %s124, %s126
      %p130 = scmp.eq.s32.totalorder %s27, 0
      %p131 = por %p129, %p130
      %p132 = scmp.ne.s32.totalorder %s124, %s126
      %p133 = scmp.eq.s32.totalorder %s32, 1
      %p134 = por %p132, %p133
      %p135 = scmp.ne.s32.totalorder %s126, %s127
      %p136 = scmp.eq.s32.totalorder %s32, 0
      %p137 = por %p135, %p136
      %p138 = scmp.ne.s32.totalorder %s126, %s127
      %p139 = scmp.eq.s32.totalorder %s33, 1
      %p140 = por %p138, %p139
      %p142 = scmp.ne.s32.totalorder %s127, %s141
      %p143 = scmp.eq.s32.totalorder %s33, 0
      %p144 = por %p142, %p143
      %s146 = sadd.s32 %s145, 1
      %p149 = scmp.eq.s32.totalorder %s27, 1
      %p150 = scmp.ne.s32.totalorder %s145, %s147
      %p151 = scmp.eq.s32.totalorder %s27, 0
      %p152 = por %p150, %p151
      %p153 = scmp.ne.s32.totalorder %s145, %s147
      %p154 = scmp.eq.s32.totalorder %s32, 1
      %p155 = por %p153, %p154
      %p156 = scmp.ne.s32.totalorder %s147, %s148
      %p157 = scmp.eq.s32.totalorder %s32, 0
      %p158 = por %p156, %p157
      %p159 = scmp.ne.s32.totalorder %s147, %s148
      %p160 = scmp.eq.s32.totalorder %s33, 1
      %p161 = por %p159, %p160
      %p163 = scmp.ne.s32.totalorder %s148, %s162
      %p164 = scmp.eq.s32.totalorder %s33, 0
      %p165 = por %p163, %p164
      %s167 = sadd.s32 %s166, 1
      %p170 = scmp.eq.s32.totalorder %s27, 1
      %p171 = scmp.ne.s32.totalorder %s166, %s168
      %p172 = scmp.eq.s32.totalorder %s27, 0
      %p173 = por %p171, %p172
      %p174 = scmp.ne.s32.totalorder %s166, %s168
      %p175 = scmp.eq.s32.totalorder %s32, 1
      %p176 = por %p174, %p175
      %p177 = scmp.ne.s32.totalorder %s168, %s169
      %p178 = scmp.eq.s32.totalorder %s32, 0
      %p179 = por %p177, %p178
      %p180 = scmp.ne.s32.totalorder %s168, %s169
      %p181 = scmp.eq.s32.totalorder %s33, 1
      %p182 = por %p180, %p181
      %p184 = scmp.ne.s32.totalorder %s169, %s183
      %p185 = scmp.eq.s32.totalorder %s33, 0
      %p186 = por %p184, %p185
      %s188 = sadd.s32 %s187, 1
      %p191 = scmp.eq.s32.totalorder %s27, 1
      %p192 = scmp.ne.s32.totalorder %s187, %s189
      %p193 = scmp.eq.s32.totalorder %s27, 0
      %p194 = por %p192, %p193
      %p195 = scmp.ne.s32.totalorder %s187, %s189
      %p196 = scmp.eq.s32.totalorder %s32, 1
      %p197 = por %p195, %p196
      %p198 = scmp.ne.s32.totalorder %s189, %s190
      %p199 = scmp.eq.s32.totalorder %s32, 0
      %p200 = por %p198, %p199
      %p201 = scmp.ne.s32.totalorder %s189, %s190
      %p202 = scmp.eq.s32.totalorder %s33, 1
      %p203 = por %p201, %p202
      %p205 = scmp.ne.s32.totalorder %s190, %s204
      %p206 = scmp.eq.s32.totalorder %s33, 0
      %p207 = por %p205, %p206
      %s209 = sadd.s32 %s208, 1
      %p212 = scmp.eq.s32.totalorder %s27, 1
      %p213 = scmp.ne.s32.totalorder %s208, %s210
      %p214 = scmp.eq.s32.totalorder %s27, 0
      %p215 = por %p213, %p214
      %p216 = scmp.ne.s32.totalorder %s208, %s210
      %p217 = scmp.eq.s32.totalorder %s32, 1
      %p218 = por %p216, %p217
      %p219 = scmp.ne.s32.totalorder %s210, %s211
      %p220 = scmp.eq.s32.totalorder %s32, 0
      %p221 = por %p219, %p220
      %p222 = scmp.ne.s32.totalorder %s210, %s211
      %p223 = scmp.eq.s32.totalorder %s33, 1
      %p224 = por %p222, %p223
      %p226 = scmp.ne.s32.totalorder %s211, %s225
      %p227 = scmp.eq.s32.totalorder %s33, 0
      %p228 = por %p226, %p227
      %s230 = sadd.s32 %s229, 1
      %p233 = scmp.eq.s32.totalorder %s27, 1
      %p234 = scmp.ne.s32.totalorder %s229, %s231
      %p235 = scmp.eq.s32.totalorder %s27, 0
      %p236 = por %p234, %p235
      %p237 = scmp.ne.s32.totalorder %s229, %s231
      %p238 = scmp.eq.s32.totalorder %s32, 1
      %p239 = por %p237, %p238
      %p240 = scmp.ne.s32.totalorder %s231, %s232
      %p241 = scmp.eq.s32.totalorder %s32, 0
      %p242 = por %p240, %p241
      %p243 = scmp.ne.s32.totalorder %s231, %s232
      %p244 = scmp.eq.s32.totalorder %s33, 1
      %p245 = por %p243, %p244
      %p247 = scmp.ne.s32.totalorder %s232, %s246
      %p248 = scmp.eq.s32.totalorder %s33, 0
      %p249 = por %p247, %p248
      %s250 = ssub.s32 %s27, %s34
      %p251 = scmp.eq.s32.totalorder %s250, 0
      %s253 = sadd.s32 %s252, 1
      %s254 = scalar_select %p251, %s252, %s253
      %p257 = pneg %p251
      %p258 = scmp.eq.s32.totalorder %s27, 1
      %p259 = por %p257, %p258
      %p260 = scmp.ne.s32.totalorder %s252, %s255
      %p261 = scmp.eq.s32.totalorder %s27, 0
      %p262 = por %p260, %p261
      %p263 = scmp.ne.s32.totalorder %s252, %s255
      %p264 = scmp.eq.s32.totalorder %s32, 1
      %p265 = por %p263, %p264
      %p266 = scmp.ne.s32.totalorder %s255, %s256
      %p267 = scmp.eq.s32.totalorder %s32, 0
      %p268 = por %p266, %p267
      %p269 = scmp.ne.s32.totalorder %s255, %s256
      %p270 = scmp.eq.s32.totalorder %s33, 1
      %p271 = por %p269, %p270
      %p273 = scmp.ne.s32.totalorder %s256, %s272
      %p274 = scmp.eq.s32.totalorder %s33, 0
      %p275 = por %p273, %p274
      %s276 = ssub.s32 %s27, %s34
      %p277 = scmp.eq.s32.totalorder %s276, 0
      %s279 = sadd.s32 %s278, 1
      %s280 = scalar_select %p277, %s278, %s279
      %p283 = pneg %p277
      %p284 = scmp.eq.s32.totalorder %s27, 1
      %p285 = por %p283, %p284
      %p286 = scmp.ne.s32.totalorder %s278, %s281
      %p287 = scmp.eq.s32.totalorder %s27, 0
      %p288 = por %p286, %p287
      %p289 = scmp.ne.s32.totalorder %s278, %s281
      %p290 = scmp.eq.s32.totalorder %s32, 1
      %p291 = por %p289, %p290
      %p292 = scmp.ne.s32.totalorder %s281, %s282
      %p293 = scmp.eq.s32.totalorder %s32, 0
      %p294 = por %p292, %p293
      %p295 = scmp.ne.s32.totalorder %s281, %s282
      %p296 = scmp.eq.s32.totalorder %s33, 1
      %p297 = por %p295, %p296
      %p299 = scmp.ne.s32.totalorder %s282, %s298
      %p300 = scmp.eq.s32.totalorder %s33, 0
      %p301 = por %p299, %p300
      %p302 = scmp.le.s32.totalorder 1, %s27
      %p303 = scmp.lt.s32.totalorder %s27, 3
      %p304 = pnand %p302, %p303
      %p305 = pneg %p304
      // Predicated region
      $region9: #{tpu_custom_call.1} parent=5 // pred_check
        _
      $region10: #{tpu_custom_call.1} parent=5 // pred_check_branch
        %307 = sbr.rel (%p304) target = $region12
      $region11: #{tpu_custom_call.1} parent=5 // pred_region
        %s308 = ssub.s32 %s27, 1
        // Predicated region
        $region13: #{tpu_custom_call.1} parent=11 // pred_check
          %p309 = pneg %p74
        $region14: #{tpu_custom_call.1} parent=11 // pred_check_branch
          %311 = sbr.rel (%p309) target = $region16
        $region15: #{tpu_custom_call.1} parent=11 // pred_region
          _
        $region16: #{tpu_custom_call.1} parent=11 // pred_fallthru
          _
        // Predicated region
        $region17: #{tpu_custom_call.1} parent=11 // pred_check
          %p312 = pneg %p95
        $region18: #{tpu_custom_call.1} parent=11 // pred_check_branch
          %314 = sbr.rel (%p312) target = $region20
        $region19: #{tpu_custom_call.1} parent=11 // pred_region
          _
        $region20: #{tpu_custom_call.1} parent=11 // pred_fallthru
          _
        // Predicated region
        $region21: #{tpu_custom_call.1} parent=11 // pred_check
          %p315 = pneg %p116
        $region22: #{tpu_custom_call.1} parent=11 // pred_check_branch
          %317 = sbr.rel (%p315) target = $region24
        $region23: #{tpu_custom_call.1} parent=11 // pred_region
          _
        $region24: #{tpu_custom_call.1} parent=11 // pred_fallthru
          _
        // Predicated region
        $region25: #{tpu_custom_call.1} parent=11 // pred_check
          %p318 = pneg %p137
        $region26: #{tpu_custom_call.1} parent=11 // pred_check_branch
          %320 = sbr.rel (%p318) target = $region28
        $region27: #{tpu_custom_call.1} parent=11 // pred_region
          _
        $region28: #{tpu_custom_call.1} parent=11 // pred_fallthru
          _
        // Predicated region
        $region29: #{tpu_custom_call.1} parent=11 // pred_check
          %p321 = pneg %p158
        $region30: #{tpu_custom_call.1} parent=11 // pred_check_branch
          %323 = sbr.rel (%p321) target = $region32
        $region31: #{tpu_custom_call.1} parent=11 // pred_region
          _
        $region32: #{tpu_custom_call.1} parent=11 // pred_fallthru
          _
        // Predicated region
        $region33: #{tpu_custom_call.1} parent=11 // pred_check
          %p324 = pneg %p179
        $region34: #{tpu_custom_call.1} parent=11 // pred_check_branch
          %326 = sbr.rel (%p324) target = $region36
        $region35: #{tpu_custom_call.1} parent=11 // pred_region
          _
        $region36: #{tpu_custom_call.1} parent=11 // pred_fallthru
          _
        // Predicated region
        $region37: #{tpu_custom_call.1} parent=11 // pred_check
          %p327 = pneg %p200
        $region38: #{tpu_custom_call.1} parent=11 // pred_check_branch
          %329 = sbr.rel (%p327) target = $region40
        $region39: #{tpu_custom_call.1} parent=11 // pred_region
          _
        $region40: #{tpu_custom_call.1} parent=11 // pred_fallthru
          _
        // Predicated region
        $region41: #{tpu_custom_call.1} parent=11 // pred_check
          %p330 = pneg %p221
        $region42: #{tpu_custom_call.1} parent=11 // pred_check_branch
          %332 = sbr.rel (%p330) target = $region44
        $region43: #{tpu_custom_call.1} parent=11 // pred_region
          _
        $region44: #{tpu_custom_call.1} parent=11 // pred_fallthru
          _
        // Predicated region
        $region45: #{tpu_custom_call.1} parent=11 // pred_check
          %p333 = pneg %p242
        $region46: #{tpu_custom_call.1} parent=11 // pred_check_branch
          %335 = sbr.rel (%p333) target = $region48
        $region47: #{tpu_custom_call.1} parent=11 // pred_region
          _
        $region48: #{tpu_custom_call.1} parent=11 // pred_fallthru
          _
      $region12: #{tpu_custom_call.1} parent=5 // pred_fallthru
        _
      %p336 = scmp.lt.s32.totalorder %s27, 2
      // Predicated region
      $region49: #{tpu_custom_call.1} parent=5 // pred_check
        %p337 = pneg %p336
      $region50: #{tpu_custom_call.1} parent=5 // pred_check_branch
        %339 = sbr.rel (%p337) target = $region52
      $region51: #{tpu_custom_call.1} parent=5 // pred_region
        // Predicated region
        $region53: #{tpu_custom_call.1} parent=51 // pred_check
          %p340 = pneg %p47
        $region54: #{tpu_custom_call.1} parent=51 // pred_check_branch
          %342 = sbr.rel (%p340) target = $region56
        $region55: #{tpu_custom_call.1} parent=51 // pred_region
          %s343 = sand.u32 %s37, 1
          %s344 = scalar_lea.sflag [#allocation6], %s343
          %s345 = sand.u32 %s37, 1
          %s346 = smul.addr %s345, 256
          %s347 = scalar_lea.vmem [#allocation5], %s346
          %s349 = ssub.s32 4096, 4096
          %350 = vsyncadd %s344, %s349
          %s351 = smul.addr %s27, 32
          %s352 = smul.addr %s351, 128
          %s353 = scalar_lea.hbm %s0, %s352
          %s354 = sshll.u32 %s347, 4
          %s355 = int_to_ptr.vmem [resolvable:$true] %s354
          %360 = dma.hbm_to_vmem [thread:$0]  %s353, 4096, %s355, %s344, 128, 128, 8
        $region56: #{tpu_custom_call.1} parent=51 // pred_fallthru
          _
      $region52: #{tpu_custom_call.1} parent=5 // pred_fallthru
        _
      %p361 = scmp.le.s32.totalorder 1, %s27
      %p362 = scmp.lt.s32.totalorder %s27, 3
      %p363 = pnand %p361, %p362
      %p364 = pneg %p363
      // Predicated region
      $region57: #{tpu_custom_call.1} parent=5 // pred_check
        _
      $region58: #{tpu_custom_call.1} parent=5 // pred_check_branch
        %366 = sbr.rel (%p363) target = $region60
      $region59: #{tpu_custom_call.1} parent=5 // pred_region
        %s367 = ssub.s32 %s27, 1
        %s368 = sand.u32 %s40, 1
        %s369 = scalar_lea.sflag [#allocation6], %s368
        %s370 = sand.u32 %s40, 1
        %s371 = smul.addr %s370, 256
        %s372 = scalar_lea.vmem [#allocation5], %s371
        // Predicated region
        $region61: #{tpu_custom_call.1} parent=59 // pred_check
          %p373 = pneg %p53
        $region62: #{tpu_custom_call.1} parent=59 // pred_check_branch
          %375 = sbr.rel (%p373) target = $region64
        $region63: #{tpu_custom_call.1} parent=59 // pred_region
          %376 = dma.done %s369, 4096
        $region64: #{tpu_custom_call.1} parent=59 // pred_fallthru
          _
        %s377 = sand.u32 %s40, 1
        %s378 = scalar_lea.sflag [#allocation6], %s377
        %s379 = sand.u32 %s40, 1
        %s380 = smul.addr %s379, 256
        %s381 = scalar_lea.vmem [#allocation5], %s380
        %p382 = pneg %p53
        %p383 = pneg %p50
        %p384 = pneg %p74
        %p385 = pneg %p71
        %p386 = pneg %p95
        %p387 = pneg %p92
        %p388 = pneg %p116
        %p389 = pneg %p113
        %p390 = pneg %p137
        %p391 = pneg %p134
        %p392 = pneg %p158
        %p393 = pneg %p155
        %p394 = pneg %p179
        %p395 = pneg %p176
        %p396 = pneg %p200
        %p397 = pneg %p197
        %p398 = pneg %p221
        %p399 = pneg %p218
        %p400 = pneg %p242
        %p401 = pneg %p239
        %p402 = pneg %p268
        %p403 = pneg %p265
        %s404 = sand.u32 %s255, 1
        %s405 = scalar_lea.sflag [#allocation7], %s404
        %s406 = sand.u32 %s255, 1
        %s407 = smul.addr %s406, 64
        %s408 = scalar_lea.vmem [#allocation8], %s407
        %p409 = pneg %p294
        %p410 = pneg %p291
        %s411 = sand.u32 %s281, 1
        %s412 = scalar_lea.sflag [#allocation10], %s411
        %s413 = sand.u32 %s281, 1
        %s414 = smul.addr %s413, 64
        %s415 = scalar_lea.vmem [#allocation9], %s414
        %v417 = vld [vmem:[%s372] sm:$0xff]
        %v418 = vld [vmem:[%s372 + $0x8] sm:$0xff]
        %v419 = vld [vmem:[%s372 + $0x10] sm:$0xff]
        %v420 = vld [vmem:[%s372 + $0x18] sm:$0xff]
        %v421 = vld [vmem:[%s372 + $0x20] sm:$0xff]
        %v422 = vld [vmem:[%s372 + $0x28] sm:$0xff]
        %v423 = vld [vmem:[%s372 + $0x30] sm:$0xff]
        %v424 = vld [vmem:[%s372 + $0x38] sm:$0xff]
        %v425 = vld [vmem:[%s372 + $0x40] sm:$0xff]
        %v426 = vld [vmem:[%s372 + $0x48] sm:$0xff]
        %v427 = vld [vmem:[%s372 + $0x50] sm:$0xff]
        %v428 = vld [vmem:[%s372 + $0x58] sm:$0xff]
        %v429 = vld [vmem:[%s372 + $0x60] sm:$0xff]
        %v430 = vld [vmem:[%s372 + $0x68] sm:$0xff]
        %v431 = vld [vmem:[%s372 + $0x70] sm:$0xff]
        %v432 = vld [vmem:[%s372 + $0x78] sm:$0xff]
        %v433 = vld [vmem:[%s372 + $0x80] sm:$0xff]
        %v434 = vld [vmem:[%s372 + $0x88] sm:$0xff]
        %v435 = vld [vmem:[%s372 + $0x90] sm:$0xff]
        %v436 = vld [vmem:[%s372 + $0x98] sm:$0xff]
        %v437 = vld [vmem:[%s372 + $0xa0] sm:$0xff]
        %v438 = vld [vmem:[%s372 + $0xa8] sm:$0xff]
        %v439 = vld [vmem:[%s372 + $0xb0] sm:$0xff]
        %v440 = vld [vmem:[%s372 + $0xb8] sm:$0xff]
        %v441 = vld [vmem:[%s372 + $0xc0] sm:$0xff]
        %v442 = vld [vmem:[%s372 + $0xc8] sm:$0xff]
        %v443 = vld [vmem:[%s372 + $0xd0] sm:$0xff]
        %v444 = vld [vmem:[%s372 + $0xd8] sm:$0xff]
        %v445 = vld [vmem:[%s372 + $0xe0] sm:$0xff]
        %v446 = vld [vmem:[%s372 + $0xe8] sm:$0xff]
        %v447 = vld [vmem:[%s372 + $0xf0] sm:$0xff]
        %v448 = vld [vmem:[%s372 + $0xf8] sm:$0xff]
        %vm449 = vcmask 125952
        %450 = vst.msk [vmem:[#allocation2] sm:$0xf] %vm449, 0
        %451 = vst.msk [vmem:[#allocation2 + $0x4] sm:$0xf] %vm449, 0
        %vm452 = vcmask 122880
        %453 = vst.msk [vmem:[#allocation2 + $0x8] sm:$0x1] %vm452, 0
        %s454 = scalar_lea.vmem [#allocation2], 204
        %455 = vst.msk [vmem:[%s454] sm:$0xf] %vm449, 0
        %456 = vst.msk [vmem:[%s454 + $0x4] sm:$0xf] %vm449, 0
        %457 = vst.msk [vmem:[%s454 + $0x8] sm:$0x1] %vm452, 0
        %vm458 = vcmask 122880
        %vm459 = vsmask.f32 256
        %vm460 = vmand %vm458, %vm459
        %v461 = vld [vmem:[#allocation2] sm:$0x1]
        %v462 = vsel %vm460, 0, %v461
        %463 = vst [vmem:[#allocation2] sm:$0x1] %v462
        %v464 = vld [vmem:[#allocation2 + $0xc] sm:$0x1]
        %v465 = vsel %vm460, 0, %v464
        %466 = vst [vmem:[#allocation2 + $0xc] sm:$0x1] %v465
        %v467 = vld [vmem:[#allocation2 + $0x18] sm:$0x1]
        %v468 = vsel %vm460, 0, %v467
        %469 = vst [vmem:[#allocation2 + $0x18] sm:$0x1] %v468
        %v470 = vld [vmem:[#allocation2 + $0x24] sm:$0x1]
        %v471 = vsel %vm460, 0, %v470
        %472 = vst [vmem:[#allocation2 + $0x24] sm:$0x1] %v471
        %v473 = vld [vmem:[#allocation2 + $0x30] sm:$0x1]
        %v474 = vsel %vm460, 0, %v473
        %475 = vst [vmem:[#allocation2 + $0x30] sm:$0x1] %v474
        %v476 = vld [vmem:[#allocation2 + $0x3c] sm:$0x1]
        %v477 = vsel %vm460, 0, %v476
        %478 = vst [vmem:[#allocation2 + $0x3c] sm:$0x1] %v477
        %v479 = vld [vmem:[#allocation2 + $0x48] sm:$0x1]
        %v480 = vsel %vm460, 0, %v479
        %481 = vst [vmem:[#allocation2 + $0x48] sm:$0x1] %v480
        %v482 = vld [vmem:[#allocation2 + $0x54] sm:$0x1]
        %v483 = vsel %vm460, 0, %v482
        %484 = vst [vmem:[#allocation2 + $0x54] sm:$0x1] %v483
        %v485 = vld [vmem:[#allocation2 + $0x60] sm:$0x1]
        %v486 = vsel %vm460, 0, %v485
        %487 = vst [vmem:[#allocation2 + $0x60] sm:$0x1] %v486
        %v488 = vld [vmem:[#allocation2 + $0x6c] sm:$0x1]
        %v489 = vsel %vm460, 0, %v488
        %490 = vst [vmem:[#allocation2 + $0x6c] sm:$0x1] %v489
        %v491 = vld [vmem:[#allocation2 + $0x78] sm:$0x1]
        %v492 = vsel %vm460, 0, %v491
        %493 = vst [vmem:[#allocation2 + $0x78] sm:$0x1] %v492
        %v494 = vld [vmem:[#allocation2 + $0x84] sm:$0x1]
        %v495 = vsel %vm460, 0, %v494
        %496 = vst [vmem:[#allocation2 + $0x84] sm:$0x1] %v495
        %v497 = vld [vmem:[#allocation2 + $0x90] sm:$0x1]
        %v498 = vsel %vm460, 0, %v497
        %499 = vst [vmem:[#allocation2 + $0x90] sm:$0x1] %v498
        %v500 = vld [vmem:[#allocation2 + $0x9c] sm:$0x1]
        %v501 = vsel %vm460, 0, %v500
        %502 = vst [vmem:[#allocation2 + $0x9c] sm:$0x1] %v501
        %v503 = vld [vmem:[#allocation2 + $0xa8] sm:$0x1]
        %v504 = vsel %vm460, 0, %v503
        %505 = vst [vmem:[#allocation2 + $0xa8] sm:$0x1] %v504
        %v506 = vld [vmem:[#allocation2 + $0xb4] sm:$0x1]
        %v507 = vsel %vm460, 0, %v506
        %508 = vst [vmem:[#allocation2 + $0xb4] sm:$0x1] %v507
        %v509 = vld [vmem:[#allocation2 + $0xc0] sm:$0x1]
        %v510 = vsel %vm460, 0, %v509
        %511 = vst [vmem:[#allocation2 + $0xc0] sm:$0x1] %v510
        %v512 = vld [vmem:[#allocation2 + $0xcc] sm:$0x1]
        %v513 = vsel %vm460, 0, %v512
        %514 = vst [vmem:[#allocation2 + $0xcc] sm:$0x1] %v513
        %vm515 = vsmask.f32 7938
        %vm516 = vmand %vm458, %vm515
        %v517 = vld [vmem:[#allocation2 + $0x8] sm:$0x1]
        %v518 = vsel %vm516, 0, %v517
        %519 = vst [vmem:[#allocation2 + $0x8] sm:$0x1] %v518
        %v520 = vld [vmem:[#allocation2 + $0x14] sm:$0x1]
        %v521 = vsel %vm516, 0, %v520
        %522 = vst [vmem:[#allocation2 + $0x14] sm:$0x1] %v521
        %v523 = vld [vmem:[#allocation2 + $0x20] sm:$0x1]
        %v524 = vsel %vm516, 0, %v523
        %525 = vst [vmem:[#allocation2 + $0x20] sm:$0x1] %v524
        %v526 = vld [vmem:[#allocation2 + $0x2c] sm:$0x1]
        %v527 = vsel %vm516, 0, %v526
        %528 = vst [vmem:[#allocation2 + $0x2c] sm:$0x1] %v527
        %v529 = vld [vmem:[#allocation2 + $0x38] sm:$0x1]
        %v530 = vsel %vm516, 0, %v529
        %531 = vst [vmem:[#allocation2 + $0x38] sm:$0x1] %v530
        %v532 = vld [vmem:[#allocation2 + $0x44] sm:$0x1]
        %v533 = vsel %vm516, 0, %v532
        %534 = vst [vmem:[#allocation2 + $0x44] sm:$0x1] %v533
        %v535 = vld [vmem:[#allocation2 + $0x50] sm:$0x1]
        %v536 = vsel %vm516, 0, %v535
        %537 = vst [vmem:[#allocation2 + $0x50] sm:$0x1] %v536
        %v538 = vld [vmem:[#allocation2 + $0x5c] sm:$0x1]
        %v539 = vsel %vm516, 0, %v538
        %540 = vst [vmem:[#allocation2 + $0x5c] sm:$0x1] %v539
        %v541 = vld [vmem:[#allocation2 + $0x68] sm:$0x1]
        %v542 = vsel %vm516, 0, %v541
        %543 = vst [vmem:[#allocation2 + $0x68] sm:$0x1] %v542
        %v544 = vld [vmem:[#allocation2 + $0x74] sm:$0x1]
        %v545 = vsel %vm516, 0, %v544
        %546 = vst [vmem:[#allocation2 + $0x74] sm:$0x1] %v545
        %v547 = vld [vmem:[#allocation2 + $0x80] sm:$0x1]
        %v548 = vsel %vm516, 0, %v547
        %549 = vst [vmem:[#allocation2 + $0x80] sm:$0x1] %v548
        %v550 = vld [vmem:[#allocation2 + $0x8c] sm:$0x1]
        %v551 = vsel %vm516, 0, %v550
        %552 = vst [vmem:[#allocation2 + $0x8c] sm:$0x1] %v551
        %v553 = vld [vmem:[#allocation2 + $0x98] sm:$0x1]
        %v554 = vsel %vm516, 0, %v553
        %555 = vst [vmem:[#allocation2 + $0x98] sm:$0x1] %v554
        %v556 = vld [vmem:[#allocation2 + $0xa4] sm:$0x1]
        %v557 = vsel %vm516, 0, %v556
        %558 = vst [vmem:[#allocation2 + $0xa4] sm:$0x1] %v557
        %v559 = vld [vmem:[#allocation2 + $0xb0] sm:$0x1]
        %v560 = vsel %vm516, 0, %v559
        %561 = vst [vmem:[#allocation2 + $0xb0] sm:$0x1] %v560
        %v562 = vld [vmem:[#allocation2 + $0xbc] sm:$0x1]
        %v563 = vsel %vm516, 0, %v562
        %564 = vst [vmem:[#allocation2 + $0xbc] sm:$0x1] %v563
        %v565 = vld [vmem:[#allocation2 + $0xc8] sm:$0x1]
        %v566 = vsel %vm516, 0, %v565
        %567 = vst [vmem:[#allocation2 + $0xc8] sm:$0x1] %v566
        %v568 = vld [vmem:[#allocation2 + $0xd4] sm:$0x1]
        %v569 = vsel %vm516, 0, %v568
        %570 = vst [vmem:[#allocation2 + $0xd4] sm:$0x1] %v569
        %v571 = vpack.c.bf16 %v418, %v417
        %v572 = vpack.c.bf16 %v420, %v419
        %v573 = vpack.c.bf16 %v422, %v421
        %v574 = vpack.c.bf16 %v424, %v423
        %v575 = vpack.c.bf16 %v426, %v425
        %v576 = vpack.c.bf16 %v428, %v427
        %v577 = vpack.c.bf16 %v430, %v429
        %v578 = vpack.c.bf16 %v432, %v431
        %v579 = vpack.c.bf16 %v434, %v433
        %v580 = vpack.c.bf16 %v436, %v435
        %v581 = vpack.c.bf16 %v438, %v437
        %v582 = vpack.c.bf16 %v440, %v439
        %v583 = vpack.c.bf16 %v442, %v441
        %v584 = vpack.c.bf16 %v444, %v443
        %v585 = vpack.c.bf16 %v446, %v445
        %v586 = vpack.c.bf16 %v448, %v447
        %v603 = vunpack.c.l.b16 %v571
        %v604 = vunpack.c.h.b16 %v571
        %v605 = vunpack.c.l.b16 %v572
        %v606 = vunpack.c.h.b16 %v572
        %v607 = vunpack.c.l.b16 %v573
        %v608 = vunpack.c.h.b16 %v573
        %v609 = vunpack.c.l.b16 %v574
        %v610 = vunpack.c.h.b16 %v574
        %v611 = vunpack.c.l.b16 %v575
        %v612 = vunpack.c.h.b16 %v575
        %v613 = vunpack.c.l.b16 %v576
        %v614 = vunpack.c.h.b16 %v576
        %v615 = vunpack.c.l.b16 %v577
        %v616 = vunpack.c.h.b16 %v577
        %v617 = vunpack.c.l.b16 %v578
        %v618 = vunpack.c.h.b16 %v578
        %v619 = vunpack.c.l.b16 %v579
        %v620 = vunpack.c.h.b16 %v579
        %v621 = vunpack.c.l.b16 %v580
        %v622 = vunpack.c.h.b16 %v580
        %v623 = vunpack.c.l.b16 %v581
        %v624 = vunpack.c.h.b16 %v581
        %v625 = vunpack.c.l.b16 %v582
        %v626 = vunpack.c.h.b16 %v582
        %v627 = vunpack.c.l.b16 %v583
        %v628 = vunpack.c.h.b16 %v583
        %v629 = vunpack.c.l.b16 %v584
        %v630 = vunpack.c.h.b16 %v584
        %v631 = vunpack.c.l.b16 %v585
        %v632 = vunpack.c.h.b16 %v585
        %v633 = vunpack.c.l.b16 %v586
        %v634 = vunpack.c.h.b16 %v586
        %v635 = vpack.c.b16 %v603, %v603
        %v636 = vpack.c.b16 %v604, %v604
        %v637 = vpack.c.b16 %v605, %v605
        %v638 = vpack.c.b16 %v606, %v606
        %v639 = vpack.c.b16 %v607, %v607
        %v640 = vpack.c.b16 %v608, %v608
        %v641 = vpack.c.b16 %v609, %v609
        %v642 = vpack.c.b16 %v610, %v610
        %v643 = vpack.c.b16 %v611, %v611
        %v644 = vpack.c.b16 %v612, %v612
        %v645 = vpack.c.b16 %v613, %v613
        %v646 = vpack.c.b16 %v614, %v614
        %v647 = vpack.c.b16 %v615, %v615
        %v648 = vpack.c.b16 %v616, %v616
        %v649 = vpack.c.b16 %v617, %v617
        %v650 = vpack.c.b16 %v618, %v618
        %v651 = vpack.c.b16 %v619, %v619
        %v652 = vpack.c.b16 %v620, %v620
        %v653 = vpack.c.b16 %v621, %v621
        %v654 = vpack.c.b16 %v622, %v622
        %v655 = vpack.c.b16 %v623, %v623
        %v656 = vpack.c.b16 %v624, %v624
        %v657 = vpack.c.b16 %v625, %v625
        %v658 = vpack.c.b16 %v626, %v626
        %v659 = vpack.c.b16 %v627, %v627
        %v660 = vpack.c.b16 %v628, %v628
        %v661 = vpack.c.b16 %v629, %v629
        %v662 = vpack.c.b16 %v630, %v630
        %v663 = vpack.c.b16 %v631, %v631
        %v664 = vpack.c.b16 %v632, %v632
        %v665 = vpack.c.b16 %v633, %v633
        %v666 = vpack.c.b16 %v634, %v634
        %vm667 = vsmask.f32 4368
        %vm668 = vmor %vm459, %vm667
        %v670 = vshrl.u32 %v635, 16
        %v672 = vrot.slane %v670, 7
        %v673 = vshll.u32 %v635, 16
        %v675 = vor.u32 %v672, %v673
        %v676 = vrot.slane %v672, 4
        %v678 = vshrl.u32 %v636, 16
        %v680 = vrot.slane %v678, 7
        %v681 = vshll.u32 %v636, 16
        %v683 = vor.u32 %v680, %v681
        %v684 = vsel %vm668, %v676, %v683
        %v685 = vrot.slane %v680, 4
        %v687 = vshrl.u32 %v637, 16
        %v689 = vrot.slane %v687, 7
        %v690 = vshll.u32 %v637, 16
        %v692 = vor.u32 %v689, %v690
        %v693 = vrot.slane %v689, 4
        %v695 = vshrl.u32 %v638, 16
        %v697 = vrot.slane %v695, 7
        %v698 = vshll.u32 %v638, 16
        %v700 = vor.u32 %v697, %v698
        %v701 = vsel %vm668, %v693, %v700
        %v702 = vrot.slane %v697, 4
        %v704 = vshrl.u32 %v639, 16
        %v706 = vrot.slane %v704, 7
        %v707 = vshll.u32 %v639, 16
        %v709 = vor.u32 %v706, %v707
        %v710 = vrot.slane %v706, 4
        %v712 = vshrl.u32 %v640, 16
        %v714 = vrot.slane %v712, 7
        %v715 = vshll.u32 %v640, 16
        %v717 = vor.u32 %v714, %v715
        %v718 = vsel %vm668, %v710, %v717
        %v719 = vrot.slane %v714, 4
        %v721 = vshrl.u32 %v641, 16
        %v723 = vrot.slane %v721, 7
        %v724 = vshll.u32 %v641, 16
        %v726 = vor.u32 %v723, %v724
        %v727 = vrot.slane %v723, 4
        %v729 = vshrl.u32 %v642, 16
        %v731 = vrot.slane %v729, 7
        %v732 = vshll.u32 %v642, 16
        %v734 = vor.u32 %v731, %v732
        %v735 = vsel %vm668, %v727, %v734
        %v736 = vrot.slane %v731, 4
        %v738 = vshrl.u32 %v643, 16
        %v740 = vrot.slane %v738, 7
        %v741 = vshll.u32 %v643, 16
        %v743 = vor.u32 %v740, %v741
        %v744 = vrot.slane %v740, 4
        %v746 = vshrl.u32 %v644, 16
        %v748 = vrot.slane %v746, 7
        %v749 = vshll.u32 %v644, 16
        %v751 = vor.u32 %v748, %v749
        %v752 = vsel %vm668, %v744, %v751
        %v753 = vrot.slane %v748, 4
        %v755 = vshrl.u32 %v645, 16
        %v757 = vrot.slane %v755, 7
        %v758 = vshll.u32 %v645, 16
        %v760 = vor.u32 %v757, %v758
        %v761 = vrot.slane %v757, 4
        %v763 = vshrl.u32 %v646, 16
        %v765 = vrot.slane %v763, 7
        %v766 = vshll.u32 %v646, 16
        %v768 = vor.u32 %v765, %v766
        %v769 = vsel %vm668, %v761, %v768
        %v770 = vrot.slane %v765, 4
        %v772 = vshrl.u32 %v647, 16
        %v774 = vrot.slane %v772, 7
        %v775 = vshll.u32 %v647, 16
        %v777 = vor.u32 %v774, %v775
        %v778 = vrot.slane %v774, 4
        %v780 = vshrl.u32 %v648, 16
        %v782 = vrot.slane %v780, 7
        %v783 = vshll.u32 %v648, 16
        %v785 = vor.u32 %v782, %v783
        %v786 = vsel %vm668, %v778, %v785
        %v787 = vrot.slane %v782, 4
        %v789 = vshrl.u32 %v649, 16
        %v791 = vrot.slane %v789, 7
        %v792 = vshll.u32 %v649, 16
        %v794 = vor.u32 %v791, %v792
        %v795 = vrot.slane %v791, 4
        %v797 = vshrl.u32 %v650, 16
        %v799 = vrot.slane %v797, 7
        %v800 = vshll.u32 %v650, 16
        %v802 = vor.u32 %v799, %v800
        %v803 = vsel %vm668, %v795, %v802
        %v804 = vrot.slane %v799, 4
        %v806 = vshrl.u32 %v651, 16
        %v808 = vrot.slane %v806, 7
        %v809 = vshll.u32 %v651, 16
        %v811 = vor.u32 %v808, %v809
        %v812 = vrot.slane %v808, 4
        %v814 = vshrl.u32 %v652, 16
        %v816 = vrot.slane %v814, 7
        %v817 = vshll.u32 %v652, 16
        %v819 = vor.u32 %v816, %v817
        %v820 = vsel %vm668, %v812, %v819
        %v821 = vrot.slane %v816, 4
        %v823 = vshrl.u32 %v653, 16
        %v825 = vrot.slane %v823, 7
        %v826 = vshll.u32 %v653, 16
        %v828 = vor.u32 %v825, %v826
        %v829 = vrot.slane %v825, 4
        %v831 = vshrl.u32 %v654, 16
        %v833 = vrot.slane %v831, 7
        %v834 = vshll.u32 %v654, 16
        %v836 = vor.u32 %v833, %v834
        %v837 = vsel %vm668, %v829, %v836
        %v838 = vrot.slane %v833, 4
        %v840 = vshrl.u32 %v655, 16
        %v842 = vrot.slane %v840, 7
        %v843 = vshll.u32 %v655, 16
        %v845 = vor.u32 %v842, %v843
        %v846 = vrot.slane %v842, 4
        %v848 = vshrl.u32 %v656, 16
        %v850 = vrot.slane %v848, 7
        %v851 = vshll.u32 %v656, 16
        %v853 = vor.u32 %v850, %v851
        %v854 = vsel %vm668, %v846, %v853
        %v855 = vrot.slane %v850, 4
        %v857 = vshrl.u32 %v657, 16
        %v859 = vrot.slane %v857, 7
        %v860 = vshll.u32 %v657, 16
        %v862 = vor.u32 %v859, %v860
        %v863 = vrot.slane %v859, 4
        %v865 = vshrl.u32 %v658, 16
        %v867 = vrot.slane %v865, 7
        %v868 = vshll.u32 %v658, 16
        %v870 = vor.u32 %v867, %v868
        %v871 = vsel %vm668, %v863, %v870
        %v872 = vrot.slane %v867, 4
        %v874 = vshrl.u32 %v659, 16
        %v876 = vrot.slane %v874, 7
        %v877 = vshll.u32 %v659, 16
        %v879 = vor.u32 %v876, %v877
        %v880 = vrot.slane %v876, 4
        %v882 = vshrl.u32 %v660, 16
        %v884 = vrot.slane %v882, 7
        %v885 = vshll.u32 %v660, 16
        %v887 = vor.u32 %v884, %v885
        %v888 = vsel %vm668, %v880, %v887
        %v889 = vrot.slane %v884, 4
        %v891 = vshrl.u32 %v661, 16
        %v893 = vrot.slane %v891, 7
        %v894 = vshll.u32 %v661, 16
        %v896 = vor.u32 %v893, %v894
        %v897 = vrot.slane %v893, 4
        %v899 = vshrl.u32 %v662, 16
        %v901 = vrot.slane %v899, 7
        %v902 = vshll.u32 %v662, 16
        %v904 = vor.u32 %v901, %v902
        %v905 = vsel %vm668, %v897, %v904
        %v906 = vrot.slane %v901, 4
        %v908 = vshrl.u32 %v663, 16
        %v910 = vrot.slane %v908, 7
        %v911 = vshll.u32 %v663, 16
        %v913 = vor.u32 %v910, %v911
        %v914 = vrot.slane %v910, 4
        %v916 = vshrl.u32 %v664, 16
        %v918 = vrot.slane %v916, 7
        %v919 = vshll.u32 %v664, 16
        %v921 = vor.u32 %v918, %v919
        %v922 = vsel %vm668, %v914, %v921
        %v923 = vrot.slane %v918, 4
        %v925 = vshrl.u32 %v665, 16
        %v927 = vrot.slane %v925, 7
        %v928 = vshll.u32 %v665, 16
        %v930 = vor.u32 %v927, %v928
        %v931 = vrot.slane %v927, 4
        %v933 = vshrl.u32 %v666, 16
        %v935 = vrot.slane %v933, 7
        %v936 = vshll.u32 %v666, 16
        %v938 = vor.u32 %v935, %v936
        %v939 = vsel %vm668, %v931, %v938
        %v940 = vrot.slane %v935, 4
        %s989 = scalar_lea.vmem [#allocation2], 12
        %vm990 = vcmask 125952
        %vm991 = vmand %vm990, %vm515
        %v992 = vld [vmem:[%s989] sm:$0xf]
        %v993 = vsel %vm991, %v675, %v992
        %994 = vst [vmem:[%s989] sm:$0xf] %v993
        %995 = vst.msk [vmem:[%s989 + $0x4] sm:$0xf] %vm449, %v684
        %v996 = vld [vmem:[%s989 + $0x8] sm:$0x1]
        %v997 = vsel %vm460, %v685, %v996
        %998 = vst [vmem:[%s989 + $0x8] sm:$0x1] %v997
        %v999 = vld [vmem:[%s989 + $0xc] sm:$0xf]
        %v1000 = vsel %vm991, %v692, %v999
        %1001 = vst [vmem:[%s989 + $0xc] sm:$0xf] %v1000
        %1002 = vst.msk [vmem:[%s989 + $0x10] sm:$0xf] %vm449, %v701
        %v1003 = vld [vmem:[%s989 + $0x14] sm:$0x1]
        %v1004 = vsel %vm460, %v702, %v1003
        %1005 = vst [vmem:[%s989 + $0x14] sm:$0x1] %v1004
        %v1006 = vld [vmem:[%s989 + $0x18] sm:$0xf]
        %v1007 = vsel %vm991, %v709, %v1006
        %1008 = vst [vmem:[%s989 + $0x18] sm:$0xf] %v1007
        %1009 = vst.msk [vmem:[%s989 + $0x1c] sm:$0xf] %vm449, %v718
        %v1010 = vld [vmem:[%s989 + $0x20] sm:$0x1]
        %v1011 = vsel %vm460, %v719, %v1010
        %1012 = vst [vmem:[%s989 + $0x20] sm:$0x1] %v1011
        %v1013 = vld [vmem:[%s989 + $0x24] sm:$0xf]
        %v1014 = vsel %vm991, %v726, %v1013
        %1015 = vst [vmem:[%s989 + $0x24] sm:$0xf] %v1014
        %1016 = vst.msk [vmem:[%s989 + $0x28] sm:$0xf] %vm449, %v735
        %v1017 = vld [vmem:[%s989 + $0x2c] sm:$0x1]
        %v1018 = vsel %vm460, %v736, %v1017
        %1019 = vst [vmem:[%s989 + $0x2c] sm:$0x1] %v1018
        %v1020 = vld [vmem:[%s989 + $0x30] sm:$0xf]
        %v1021 = vsel %vm991, %v743, %v1020
        %1022 = vst [vmem:[%s989 + $0x30] sm:$0xf] %v1021
        %1023 = vst.msk [vmem:[%s989 + $0x34] sm:$0xf] %vm449, %v752
        %v1024 = vld [vmem:[%s989 + $0x38] sm:$0x1]
        %v1025 = vsel %vm460, %v753, %v1024
        %1026 = vst [vmem:[%s989 + $0x38] sm:$0x1] %v1025
        %v1027 = vld [vmem:[%s989 + $0x3c] sm:$0xf]
        %v1028 = vsel %vm991, %v760, %v1027
        %1029 = vst [vmem:[%s989 + $0x3c] sm:$0xf] %v1028
        %1030 = vst.msk [vmem:[%s989 + $0x40] sm:$0xf] %vm449, %v769
        %v1031 = vld [vmem:[%s989 + $0x44] sm:$0x1]
        %v1032 = vsel %vm460, %v770, %v1031
        %1033 = vst [vmem:[%s989 + $0x44] sm:$0x1] %v1032
        %v1034 = vld [vmem:[%s989 + $0x48] sm:$0xf]
        %v1035 = vsel %vm991, %v777, %v1034
        %1036 = vst [vmem:[%s989 + $0x48] sm:$0xf] %v1035
        %1037 = vst.msk [vmem:[%s989 + $0x4c] sm:$0xf] %vm449, %v786
        %v1038 = vld [vmem:[%s989 + $0x50] sm:$0x1]
        %v1039 = vsel %vm460, %v787, %v1038
        %1040 = vst [vmem:[%s989 + $0x50] sm:$0x1] %v1039
        %v1041 = vld [vmem:[%s989 + $0x54] sm:$0xf]
        %v1042 = vsel %vm991, %v794, %v1041
        %1043 = vst [vmem:[%s989 + $0x54] sm:$0xf] %v1042
        %1044 = vst.msk [vmem:[%s989 + $0x58] sm:$0xf] %vm449, %v803
        %v1045 = vld [vmem:[%s989 + $0x5c] sm:$0x1]
        %v1046 = vsel %vm460, %v804, %v1045
        %1047 = vst [vmem:[%s989 + $0x5c] sm:$0x1] %v1046
        %v1048 = vld [vmem:[%s989 + $0x60] sm:$0xf]
        %v1049 = vsel %vm991, %v811, %v1048
        %1050 = vst [vmem:[%s989 + $0x60] sm:$0xf] %v1049
        %1051 = vst.msk [vmem:[%s989 + $0x64] sm:$0xf] %vm449, %v820
        %v1052 = vld [vmem:[%s989 + $0x68] sm:$0x1]
        %v1053 = vsel %vm460, %v821, %v1052
        %1054 = vst [vmem:[%s989 + $0x68] sm:$0x1] %v1053
        %v1055 = vld [vmem:[%s989 + $0x6c] sm:$0xf]
        %v1056 = vsel %vm991, %v828, %v1055
        %1057 = vst [vmem:[%s989 + $0x6c] sm:$0xf] %v1056
        %1058 = vst.msk [vmem:[%s989 + $0x70] sm:$0xf] %vm449, %v837
        %v1059 = vld [vmem:[%s989 + $0x74] sm:$0x1]
        %v1060 = vsel %vm460, %v838, %v1059
        %1061 = vst [vmem:[%s989 + $0x74] sm:$0x1] %v1060
        %v1062 = vld [vmem:[%s989 + $0x78] sm:$0xf]
        %v1063 = vsel %vm991, %v845, %v1062
        %1064 = vst [vmem:[%s989 + $0x78] sm:$0xf] %v1063
        %1065 = vst.msk [vmem:[%s989 + $0x7c] sm:$0xf] %vm449, %v854
        %v1066 = vld [vmem:[%s989 + $0x80] sm:$0x1]
        %v1067 = vsel %vm460, %v855, %v1066
        %1068 = vst [vmem:[%s989 + $0x80] sm:$0x1] %v1067
        %v1069 = vld [vmem:[%s989 + $0x84] sm:$0xf]
        %v1070 = vsel %vm991, %v862, %v1069
        %1071 = vst [vmem:[%s989 + $0x84] sm:$0xf] %v1070
        %1072 = vst.msk [vmem:[%s989 + $0x88] sm:$0xf] %vm449, %v871
        %v1073 = vld [vmem:[%s989 + $0x8c] sm:$0x1]
        %v1074 = vsel %vm460, %v872, %v1073
        %1075 = vst [vmem:[%s989 + $0x8c] sm:$0x1] %v1074
        %v1076 = vld [vmem:[%s989 + $0x90] sm:$0xf]
        %v1077 = vsel %vm991, %v879, %v1076
        %1078 = vst [vmem:[%s989 + $0x90] sm:$0xf] %v1077
        %1079 = vst.msk [vmem:[%s989 + $0x94] sm:$0xf] %vm449, %v888
        %v1080 = vld [vmem:[%s989 + $0x98] sm:$0x1]
        %v1081 = vsel %vm460, %v889, %v1080
        %1082 = vst [vmem:[%s989 + $0x98] sm:$0x1] %v1081
        %v1083 = vld [vmem:[%s989 + $0x9c] sm:$0xf]
        %v1084 = vsel %vm991, %v896, %v1083
        %1085 = vst [vmem:[%s989 + $0x9c] sm:$0xf] %v1084
        %1086 = vst.msk [vmem:[%s989 + $0xa0] sm:$0xf] %vm449, %v905
        %v1087 = vld [vmem:[%s989 + $0xa4] sm:$0x1]
        %v1088 = vsel %vm460, %v906, %v1087
        %1089 = vst [vmem:[%s989 + $0xa4] sm:$0x1] %v1088
        %v1090 = vld [vmem:[%s989 + $0xa8] sm:$0xf]
        %v1091 = vsel %vm991, %v913, %v1090
        %1092 = vst [vmem:[%s989 + $0xa8] sm:$0xf] %v1091
        %1093 = vst.msk [vmem:[%s989 + $0xac] sm:$0xf] %vm449, %v922
        %v1094 = vld [vmem:[%s989 + $0xb0] sm:$0x1]
        %v1095 = vsel %vm460, %v923, %v1094
        %1096 = vst [vmem:[%s989 + $0xb0] sm:$0x1] %v1095
        %v1097 = vld [vmem:[%s989 + $0xb4] sm:$0xf]
        %v1098 = vsel %vm991, %v930, %v1097
        %1099 = vst [vmem:[%s989 + $0xb4] sm:$0xf] %v1098
        %1100 = vst.msk [vmem:[%s989 + $0xb8] sm:$0xf] %vm449, %v939
        %v1101 = vld [vmem:[%s989 + $0xbc] sm:$0x1]
        %v1102 = vsel %vm460, %v940, %v1101
        %1103 = vst [vmem:[%s989 + $0xbc] sm:$0x1] %v1102
        %v1104 = vld [vmem:[#allocation2] sm:$0xf]
        %v1105 = vld [vmem:[#allocation2 + $0x4] sm:$0xf]
        %v1106 = vld [vmem:[#allocation2 + $0xc] sm:$0xf]
        %v1107 = vld [vmem:[#allocation2 + $0x10] sm:$0xf]
        %v1108 = vld [vmem:[#allocation2 + $0x18] sm:$0xf]
        %v1109 = vld [vmem:[#allocation2 + $0x1c] sm:$0xf]
        %v1110 = vld [vmem:[#allocation2 + $0x24] sm:$0xf]
        %v1111 = vld [vmem:[#allocation2 + $0x28] sm:$0xf]
        %v1112 = vld [vmem:[#allocation2 + $0x30] sm:$0xf]
        %v1113 = vld [vmem:[#allocation2 + $0x34] sm:$0xf]
        %v1114 = vld [vmem:[#allocation2 + $0x3c] sm:$0xf]
        %v1115 = vld [vmem:[#allocation2 + $0x40] sm:$0xf]
        %v1116 = vld [vmem:[#allocation2 + $0x48] sm:$0xf]
        %v1117 = vld [vmem:[#allocation2 + $0x4c] sm:$0xf]
        %v1118 = vld [vmem:[#allocation2 + $0x54] sm:$0xf]
        %v1119 = vld [vmem:[#allocation2 + $0x58] sm:$0xf]
        %v1120 = vld [vmem:[#allocation2 + $0x60] sm:$0xf]
        %v1121 = vld [vmem:[#allocation2 + $0x64] sm:$0xf]
        %v1122 = vld [vmem:[#allocation2 + $0x6c] sm:$0xf]
        %v1123 = vld [vmem:[#allocation2 + $0x70] sm:$0xf]
        %v1124 = vld [vmem:[#allocation2 + $0x78] sm:$0xf]
        %v1125 = vld [vmem:[#allocation2 + $0x7c] sm:$0xf]
        %v1126 = vld [vmem:[#allocation2 + $0x84] sm:$0xf]
        %v1127 = vld [vmem:[#allocation2 + $0x88] sm:$0xf]
        %v1128 = vld [vmem:[#allocation2 + $0x90] sm:$0xf]
        %v1129 = vld [vmem:[#allocation2 + $0x94] sm:$0xf]
        %v1130 = vld [vmem:[#allocation2 + $0x9c] sm:$0xf]
        %v1131 = vld [vmem:[#allocation2 + $0xa0] sm:$0xf]
        %v1132 = vld [vmem:[#allocation2 + $0xa8] sm:$0xf]
        %v1133 = vld [vmem:[#allocation2 + $0xac] sm:$0xf]
        %v1134 = vld [vmem:[#allocation2 + $0xb4] sm:$0xf]
        %v1135 = vld [vmem:[#allocation2 + $0xb8] sm:$0xf]
        %v1136 = vld [vmem:[#allocation2 + $0x8] sm:$0x1]
        %v1137 = vld [vmem:[#allocation2 + $0x14] sm:$0x1]
        %v1138 = vld [vmem:[#allocation2 + $0x20] sm:$0x1]
        %v1139 = vld [vmem:[#allocation2 + $0x2c] sm:$0x1]
        %v1140 = vld [vmem:[#allocation2 + $0x38] sm:$0x1]
        %v1141 = vld [vmem:[#allocation2 + $0x44] sm:$0x1]
        %v1142 = vld [vmem:[#allocation2 + $0x50] sm:$0x1]
        %v1143 = vld [vmem:[#allocation2 + $0x5c] sm:$0x1]
        %v1144 = vld [vmem:[#allocation2 + $0x68] sm:$0x1]
        %v1145 = vld [vmem:[#allocation2 + $0x74] sm:$0x1]
        %v1146 = vld [vmem:[#allocation2 + $0x80] sm:$0x1]
        %v1147 = vld [vmem:[#allocation2 + $0x8c] sm:$0x1]
        %v1148 = vld [vmem:[#allocation2 + $0x98] sm:$0x1]
        %v1149 = vld [vmem:[#allocation2 + $0xa4] sm:$0x1]
        %v1150 = vld [vmem:[#allocation2 + $0xb0] sm:$0x1]
        %v1151 = vld [vmem:[#allocation2 + $0xbc] sm:$0x1]
        %v1152 = vld [vmem:[#allocation2] sm:$0xe]
        %v1153 = vld [vmem:[#allocation2 + $0xc] sm:$0xe]
        %v1154 = vld [vmem:[#allocation2 + $0x18] sm:$0xe]
        %v1155 = vld [vmem:[#allocation2 + $0x24] sm:$0xe]
        %v1156 = vld [vmem:[#allocation2 + $0x30] sm:$0xe]
        %v1157 = vld [vmem:[#allocation2 + $0x3c] sm:$0xe]
        %v1158 = vld [vmem:[#allocation2 + $0x48] sm:$0xe]
        %v1159 = vld [vmem:[#allocation2 + $0x54] sm:$0xe]
        %v1160 = vld [vmem:[#allocation2 + $0x60] sm:$0xe]
        %v1161 = vld [vmem:[#allocation2 + $0x6c] sm:$0xe]
        %v1162 = vld [vmem:[#allocation2 + $0x78] sm:$0xe]
        %v1163 = vld [vmem:[#allocation2 + $0x84] sm:$0xe]
        %v1164 = vld [vmem:[#allocation2 + $0x90] sm:$0xe]
        %v1165 = vld [vmem:[#allocation2 + $0x9c] sm:$0xe]
        %v1166 = vld [vmem:[#allocation2 + $0xa8] sm:$0xe]
        %v1167 = vld [vmem:[#allocation2 + $0xb4] sm:$0xe]
        %v1168 = vld [vmem:[%s989] sm:$0xf]
        %v1169 = vld [vmem:[%s989 + $0x4] sm:$0xf]
        %v1170 = vld [vmem:[%s989 + $0xc] sm:$0xf]
        %v1171 = vld [vmem:[%s989 + $0x10] sm:$0xf]
        %v1172 = vld [vmem:[%s989 + $0x18] sm:$0xf]
        %v1173 = vld [vmem:[%s989 + $0x1c] sm:$0xf]
        %v1174 = vld [vmem:[%s989 + $0x24] sm:$0xf]
        %v1175 = vld [vmem:[%s989 + $0x28] sm:$0xf]
        %v1176 = vld [vmem:[%s989 + $0x30] sm:$0xf]
        %v1177 = vld [vmem:[%s989 + $0x34] sm:$0xf]
        %v1178 = vld [vmem:[%s989 + $0x3c] sm:$0xf]
        %v1179 = vld [vmem:[%s989 + $0x40] sm:$0xf]
        %v1180 = vld [vmem:[%s989 + $0x48] sm:$0xf]
        %v1181 = vld [vmem:[%s989 + $0x4c] sm:$0xf]
        %v1182 = vld [vmem:[%s989 + $0x54] sm:$0xf]
        %v1183 = vld [vmem:[%s989 + $0x58] sm:$0xf]
        %v1184 = vld [vmem:[%s989 + $0x60] sm:$0xf]
        %v1185 = vld [vmem:[%s989 + $0x64] sm:$0xf]
        %v1186 = vld [vmem:[%s989 + $0x6c] sm:$0xf]
        %v1187 = vld [vmem:[%s989 + $0x70] sm:$0xf]
        %v1188 = vld [vmem:[%s989 + $0x78] sm:$0xf]
        %v1189 = vld [vmem:[%s989 + $0x7c] sm:$0xf]
        %v1190 = vld [vmem:[%s989 + $0x84] sm:$0xf]
        %v1191 = vld [vmem:[%s989 + $0x88] sm:$0xf]
        %v1192 = vld [vmem:[%s989 + $0x90] sm:$0xf]
        %v1193 = vld [vmem:[%s989 + $0x94] sm:$0xf]
        %v1194 = vld [vmem:[%s989 + $0x9c] sm:$0xf]
        %v1195 = vld [vmem:[%s989 + $0xa0] sm:$0xf]
        %v1196 = vld [vmem:[%s989 + $0xa8] sm:$0xf]
        %v1197 = vld [vmem:[%s989 + $0xac] sm:$0xf]
        %v1198 = vld [vmem:[%s989 + $0xb4] sm:$0xf]
        %v1199 = vld [vmem:[%s989 + $0xb8] sm:$0xf]
        %v1200 = vld [vmem:[%s989 + $0x8] sm:$0x1]
        %v1201 = vld [vmem:[%s989 + $0x14] sm:$0x1]
        %v1202 = vld [vmem:[%s989 + $0x20] sm:$0x1]
        %v1203 = vld [vmem:[%s989 + $0x2c] sm:$0x1]
        %v1204 = vld [vmem:[%s989 + $0x38] sm:$0x1]
        %v1205 = vld [vmem:[%s989 + $0x44] sm:$0x1]
        %v1206 = vld [vmem:[%s989 + $0x50] sm:$0x1]
        %v1207 = vld [vmem:[%s989 + $0x5c] sm:$0x1]
        %v1208 = vld [vmem:[%s989 + $0x68] sm:$0x1]
        %v1209 = vld [vmem:[%s989 + $0x74] sm:$0x1]
        %v1210 = vld [vmem:[%s989 + $0x80] sm:$0x1]
        %v1211 = vld [vmem:[%s989 + $0x8c] sm:$0x1]
        %v1212 = vld [vmem:[%s989 + $0x98] sm:$0x1]
        %v1213 = vld [vmem:[%s989 + $0xa4] sm:$0x1]
        %v1214 = vld [vmem:[%s989 + $0xb0] sm:$0x1]
        %v1215 = vld [vmem:[%s989 + $0xbc] sm:$0x1]
        %v1216 = vld [vmem:[%s989] sm:$0xe]
        %v1217 = vld [vmem:[%s989 + $0xc] sm:$0xe]
        %v1218 = vld [vmem:[%s989 + $0x18] sm:$0xe]
        %v1219 = vld [vmem:[%s989 + $0x24] sm:$0xe]
        %v1220 = vld [vmem:[%s989 + $0x30] sm:$0xe]
        %v1221 = vld [vmem:[%s989 + $0x3c] sm:$0xe]
        %v1222 = vld [vmem:[%s989 + $0x48] sm:$0xe]
        %v1223 = vld [vmem:[%s989 + $0x54] sm:$0xe]
        %v1224 = vld [vmem:[%s989 + $0x60] sm:$0xe]
        %v1225 = vld [vmem:[%s989 + $0x6c] sm:$0xe]
        %v1226 = vld [vmem:[%s989 + $0x78] sm:$0xe]
        %v1227 = vld [vmem:[%s989 + $0x84] sm:$0xe]
        %v1228 = vld [vmem:[%s989 + $0x90] sm:$0xe]
        %v1229 = vld [vmem:[%s989 + $0x9c] sm:$0xe]
        %v1230 = vld [vmem:[%s989 + $0xa8] sm:$0xe]
        %v1231 = vld [vmem:[%s989 + $0xb4] sm:$0xe]
        %s1232 = scalar_lea.vmem [#allocation2], 24
        %v1233 = vld [vmem:[%s1232] sm:$0xf]
        %v1234 = vld [vmem:[%s1232 + $0x4] sm:$0xf]
        %v1235 = vld [vmem:[%s1232 + $0xc] sm:$0xf]
        %v1236 = vld [vmem:[%s1232 + $0x10] sm:$0xf]
        %v1237 = vld [vmem:[%s1232 + $0x18] sm:$0xf]
        %v1238 = vld [vmem:[%s1232 + $0x1c] sm:$0xf]
        %v1239 = vld [vmem:[%s1232 + $0x24] sm:$0xf]
        %v1240 = vld [vmem:[%s1232 + $0x28] sm:$0xf]
        %v1241 = vld [vmem:[%s1232 + $0x30] sm:$0xf]
        %v1242 = vld [vmem:[%s1232 + $0x34] sm:$0xf]
        %v1243 = vld [vmem:[%s1232 + $0x3c] sm:$0xf]
        %v1244 = vld [vmem:[%s1232 + $0x40] sm:$0xf]
        %v1245 = vld [vmem:[%s1232 + $0x48] sm:$0xf]
        %v1246 = vld [vmem:[%s1232 + $0x4c] sm:$0xf]
        %v1247 = vld [vmem:[%s1232 + $0x54] sm:$0xf]
        %v1248 = vld [vmem:[%s1232 + $0x58] sm:$0xf]
        %v1249 = vld [vmem:[%s1232 + $0x60] sm:$0xf]
        %v1250 = vld [vmem:[%s1232 + $0x64] sm:$0xf]
        %v1251 = vld [vmem:[%s1232 + $0x6c] sm:$0xf]
        %v1252 = vld [vmem:[%s1232 + $0x70] sm:$0xf]
        %v1253 = vld [vmem:[%s1232 + $0x78] sm:$0xf]
        %v1254 = vld [vmem:[%s1232 + $0x7c] sm:$0xf]
        %v1255 = vld [vmem:[%s1232 + $0x84] sm:$0xf]
        %v1256 = vld [vmem:[%s1232 + $0x88] sm:$0xf]
        %v1257 = vld [vmem:[%s1232 + $0x90] sm:$0xf]
        %v1258 = vld [vmem:[%s1232 + $0x94] sm:$0xf]
        %v1259 = vld [vmem:[%s1232 + $0x9c] sm:$0xf]
        %v1260 = vld [vmem:[%s1232 + $0xa0] sm:$0xf]
        %v1261 = vld [vmem:[%s1232 + $0xa8] sm:$0xf]
        %v1262 = vld [vmem:[%s1232 + $0xac] sm:$0xf]
        %v1263 = vld [vmem:[%s1232 + $0xb4] sm:$0xf]
        %v1264 = vld [vmem:[%s1232 + $0xb8] sm:$0xf]
        %v1265 = vld [vmem:[%s1232 + $0x8] sm:$0x1]
        %v1266 = vld [vmem:[%s1232 + $0x14] sm:$0x1]
        %v1267 = vld [vmem:[%s1232 + $0x20] sm:$0x1]
        %v1268 = vld [vmem:[%s1232 + $0x2c] sm:$0x1]
        %v1269 = vld [vmem:[%s1232 + $0x38] sm:$0x1]
        %v1270 = vld [vmem:[%s1232 + $0x44] sm:$0x1]
        %v1271 = vld [vmem:[%s1232 + $0x50] sm:$0x1]
        %v1272 = vld [vmem:[%s1232 + $0x5c] sm:$0x1]
        %v1273 = vld [vmem:[%s1232 + $0x68] sm:$0x1]
        %v1274 = vld [vmem:[%s1232 + $0x74] sm:$0x1]
        %v1275 = vld [vmem:[%s1232 + $0x80] sm:$0x1]
        %v1276 = vld [vmem:[%s1232 + $0x8c] sm:$0x1]
        %v1277 = vld [vmem:[%s1232 + $0x98] sm:$0x1]
        %v1278 = vld [vmem:[%s1232 + $0xa4] sm:$0x1]
        %v1279 = vld [vmem:[%s1232 + $0xb0] sm:$0x1]
        %v1280 = vld [vmem:[%s1232 + $0xbc] sm:$0x1]
        %v1281 = vld [vmem:[%s1232] sm:$0xe]
        %v1282 = vld [vmem:[%s1232 + $0xc] sm:$0xe]
        %v1283 = vld [vmem:[%s1232 + $0x18] sm:$0xe]
        %v1284 = vld [vmem:[%s1232 + $0x24] sm:$0xe]
        %v1285 = vld [vmem:[%s1232 + $0x30] sm:$0xe]
        %v1286 = vld [vmem:[%s1232 + $0x3c] sm:$0xe]
        %v1287 = vld [vmem:[%s1232 + $0x48] sm:$0xe]
        %v1288 = vld [vmem:[%s1232 + $0x54] sm:$0xe]
        %v1289 = vld [vmem:[%s1232 + $0x60] sm:$0xe]
        %v1290 = vld [vmem:[%s1232 + $0x6c] sm:$0xe]
        %v1291 = vld [vmem:[%s1232 + $0x78] sm:$0xe]
        %v1292 = vld [vmem:[%s1232 + $0x84] sm:$0xe]
        %v1293 = vld [vmem:[%s1232 + $0x90] sm:$0xe]
        %v1294 = vld [vmem:[%s1232 + $0x9c] sm:$0xe]
        %v1295 = vld [vmem:[%s1232 + $0xa8] sm:$0xe]
        %v1296 = vld [vmem:[%s1232 + $0xb4] sm:$0xe]
        %v1329 = vunpack.c.l.b16 %v1104
        %v1330 = vunpack.c.l.b16 %v1105
        %v1331 = vunpack.c.l.b16 %v1106
        %v1332 = vunpack.c.l.b16 %v1107
        %v1333 = vunpack.c.l.b16 %v1108
        %v1334 = vunpack.c.l.b16 %v1109
        %v1335 = vunpack.c.l.b16 %v1110
        %v1336 = vunpack.c.l.b16 %v1111
        %v1337 = vunpack.c.l.b16 %v1112
        %v1338 = vunpack.c.l.b16 %v1113
        %v1339 = vunpack.c.l.b16 %v1114
        %v1340 = vunpack.c.l.b16 %v1115
        %v1341 = vunpack.c.l.b16 %v1116
        %v1342 = vunpack.c.l.b16 %v1117
        %v1343 = vunpack.c.l.b16 %v1118
        %v1344 = vunpack.c.l.b16 %v1119
        %v1345 = vunpack.c.l.b16 %v1120
        %v1346 = vunpack.c.l.b16 %v1121
        %v1347 = vunpack.c.l.b16 %v1122
        %v1348 = vunpack.c.l.b16 %v1123
        %v1349 = vunpack.c.l.b16 %v1124
        %v1350 = vunpack.c.l.b16 %v1125
        %v1351 = vunpack.c.l.b16 %v1126
        %v1352 = vunpack.c.l.b16 %v1127
        %v1353 = vunpack.c.l.b16 %v1128
        %v1354 = vunpack.c.l.b16 %v1129
        %v1355 = vunpack.c.l.b16 %v1130
        %v1356 = vunpack.c.l.b16 %v1131
        %v1357 = vunpack.c.l.b16 %v1132
        %v1358 = vunpack.c.l.b16 %v1133
        %v1359 = vunpack.c.l.b16 %v1134
        %v1360 = vunpack.c.l.b16 %v1135
        %v1361 = vpack.c.b16 %v1330, %v1329
        %v1362 = vpack.c.b16 %v1332, %v1331
        %v1363 = vpack.c.b16 %v1334, %v1333
        %v1364 = vpack.c.b16 %v1336, %v1335
        %v1365 = vpack.c.b16 %v1338, %v1337
        %v1366 = vpack.c.b16 %v1340, %v1339
        %v1367 = vpack.c.b16 %v1342, %v1341
        %v1368 = vpack.c.b16 %v1344, %v1343
        %v1369 = vpack.c.b16 %v1346, %v1345
        %v1370 = vpack.c.b16 %v1348, %v1347
        %v1371 = vpack.c.b16 %v1350, %v1349
        %v1372 = vpack.c.b16 %v1352, %v1351
        %v1373 = vpack.c.b16 %v1354, %v1353
        %v1374 = vpack.c.b16 %v1356, %v1355
        %v1375 = vpack.c.b16 %v1358, %v1357
        %v1376 = vpack.c.b16 %v1360, %v1359
        %v1393 = vunpack.c.l.b16 %v1136
        %v1394 = vunpack.c.l.b16 %v1137
        %v1395 = vunpack.c.l.b16 %v1138
        %v1396 = vunpack.c.l.b16 %v1139
        %v1397 = vunpack.c.l.b16 %v1140
        %v1398 = vunpack.c.l.b16 %v1141
        %v1399 = vunpack.c.l.b16 %v1142
        %v1400 = vunpack.c.l.b16 %v1143
        %v1401 = vunpack.c.l.b16 %v1144
        %v1402 = vunpack.c.l.b16 %v1145
        %v1403 = vunpack.c.l.b16 %v1146
        %v1404 = vunpack.c.l.b16 %v1147
        %v1405 = vunpack.c.l.b16 %v1148
        %v1406 = vunpack.c.l.b16 %v1149
        %v1407 = vunpack.c.l.b16 %v1150
        %v1408 = vunpack.c.l.b16 %v1151
        %v1409 = vpack.c.b16 %v1393, %v1393
        %v1410 = vpack.c.b16 %v1394, %v1394
        %v1411 = vpack.c.b16 %v1395, %v1395
        %v1412 = vpack.c.b16 %v1396, %v1396
        %v1413 = vpack.c.b16 %v1397, %v1397
        %v1414 = vpack.c.b16 %v1398, %v1398
        %v1415 = vpack.c.b16 %v1399, %v1399
        %v1416 = vpack.c.b16 %v1400, %v1400
        %v1417 = vpack.c.b16 %v1401, %v1401
        %v1418 = vpack.c.b16 %v1402, %v1402
        %v1419 = vpack.c.b16 %v1403, %v1403
        %v1420 = vpack.c.b16 %v1404, %v1404
        %v1421 = vpack.c.b16 %v1405, %v1405
        %v1422 = vpack.c.b16 %v1406, %v1406
        %v1423 = vpack.c.b16 %v1407, %v1407
        %v1424 = vpack.c.b16 %v1408, %v1408
        %vm1425 = vsmask.f32 7424
        %v1427 = vshrl.u32 %v1361, 16
        %v1429 = vshll.u32 %v1361, 16
        %v1431 = vrot.slane %v1429, 1
        %v1432 = vor.u32 %v1427, %v1431
        %v1434 = vshll.u32 %v1409, 16
        %v1436 = vrot.slane %v1434, 1
        %v1437 = vsel %vm1425, %v1432, %v1436
        %v1439 = vshrl.u32 %v1362, 16
        %v1441 = vshll.u32 %v1362, 16
        %v1443 = vrot.slane %v1441, 1
        %v1444 = vor.u32 %v1439, %v1443
        %v1446 = vshll.u32 %v1410, 16
        %v1448 = vrot.slane %v1446, 1
        %v1449 = vsel %vm1425, %v1444, %v1448
        %v1451 = vshrl.u32 %v1363, 16
        %v1453 = vshll.u32 %v1363, 16
        %v1455 = vrot.slane %v1453, 1
        %v1456 = vor.u32 %v1451, %v1455
        %v1458 = vshll.u32 %v1411, 16
        %v1460 = vrot.slane %v1458, 1
        %v1461 = vsel %vm1425, %v1456, %v1460
        %v1463 = vshrl.u32 %v1364, 16
        %v1465 = vshll.u32 %v1364, 16
        %v1467 = vrot.slane %v1465, 1
        %v1468 = vor.u32 %v1463, %v1467
        %v1470 = vshll.u32 %v1412, 16
        %v1472 = vrot.slane %v1470, 1
        %v1473 = vsel %vm1425, %v1468, %v1472
        %v1475 = vshrl.u32 %v1365, 16
        %v1477 = vshll.u32 %v1365, 16
        %v1479 = vrot.slane %v1477, 1
        %v1480 = vor.u32 %v1475, %v1479
        %v1482 = vshll.u32 %v1413, 16
        %v1484 = vrot.slane %v1482, 1
        %v1485 = vsel %vm1425, %v1480, %v1484
        %v1487 = vshrl.u32 %v1366, 16
        %v1489 = vshll.u32 %v1366, 16
        %v1491 = vrot.slane %v1489, 1
        %v1492 = vor.u32 %v1487, %v1491
        %v1494 = vshll.u32 %v1414, 16
        %v1496 = vrot.slane %v1494, 1
        %v1497 = vsel %vm1425, %v1492, %v1496
        %v1499 = vshrl.u32 %v1367, 16
        %v1501 = vshll.u32 %v1367, 16
        %v1503 = vrot.slane %v1501, 1
        %v1504 = vor.u32 %v1499, %v1503
        %v1506 = vshll.u32 %v1415, 16
        %v1508 = vrot.slane %v1506, 1
        %v1509 = vsel %vm1425, %v1504, %v1508
        %v1511 = vshrl.u32 %v1368, 16
        %v1513 = vshll.u32 %v1368, 16
        %v1515 = vrot.slane %v1513, 1
        %v1516 = vor.u32 %v1511, %v1515
        %v1518 = vshll.u32 %v1416, 16
        %v1520 = vrot.slane %v1518, 1
        %v1521 = vsel %vm1425, %v1516, %v1520
        %v1523 = vshrl.u32 %v1369, 16
        %v1525 = vshll.u32 %v1369, 16
        %v1527 = vrot.slane %v1525, 1
        %v1528 = vor.u32 %v1523, %v1527
        %v1530 = vshll.u32 %v1417, 16
        %v1532 = vrot.slane %v1530, 1
        %v1533 = vsel %vm1425, %v1528, %v1532
        %v1535 = vshrl.u32 %v1370, 16
        %v1537 = vshll.u32 %v1370, 16
        %v1539 = vrot.slane %v1537, 1
        %v1540 = vor.u32 %v1535, %v1539
        %v1542 = vshll.u32 %v1418, 16
        %v1544 = vrot.slane %v1542, 1
        %v1545 = vsel %vm1425, %v1540, %v1544
        %v1547 = vshrl.u32 %v1371, 16
        %v1549 = vshll.u32 %v1371, 16
        %v1551 = vrot.slane %v1549, 1
        %v1552 = vor.u32 %v1547, %v1551
        %v1554 = vshll.u32 %v1419, 16
        %v1556 = vrot.slane %v1554, 1
        %v1557 = vsel %vm1425, %v1552, %v1556
        %v1559 = vshrl.u32 %v1372, 16
        %v1561 = vshll.u32 %v1372, 16
        %v1563 = vrot.slane %v1561, 1
        %v1564 = vor.u32 %v1559, %v1563
        %v1566 = vshll.u32 %v1420, 16
        %v1568 = vrot.slane %v1566, 1
        %v1569 = vsel %vm1425, %v1564, %v1568
        %v1571 = vshrl.u32 %v1373, 16
        %v1573 = vshll.u32 %v1373, 16
        %v1575 = vrot.slane %v1573, 1
        %v1576 = vor.u32 %v1571, %v1575
        %v1578 = vshll.u32 %v1421, 16
        %v1580 = vrot.slane %v1578, 1
        %v1581 = vsel %vm1425, %v1576, %v1580
        %v1583 = vshrl.u32 %v1374, 16
        %v1585 = vshll.u32 %v1374, 16
        %v1587 = vrot.slane %v1585, 1
        %v1588 = vor.u32 %v1583, %v1587
        %v1590 = vshll.u32 %v1422, 16
        %v1592 = vrot.slane %v1590, 1
        %v1593 = vsel %vm1425, %v1588, %v1592
        %v1595 = vshrl.u32 %v1375, 16
        %v1597 = vshll.u32 %v1375, 16
        %v1599 = vrot.slane %v1597, 1
        %v1600 = vor.u32 %v1595, %v1599
        %v1602 = vshll.u32 %v1423, 16
        %v1604 = vrot.slane %v1602, 1
        %v1605 = vsel %vm1425, %v1600, %v1604
        %v1607 = vshrl.u32 %v1376, 16
        %v1609 = vshll.u32 %v1376, 16
        %v1611 = vrot.slane %v1609, 1
        %v1612 = vor.u32 %v1607, %v1611
        %v1614 = vshll.u32 %v1424, 16
        %v1616 = vrot.slane %v1614, 1
        %v1617 = vsel %vm1425, %v1612, %v1616
        %1618 = vrot.lane.b32.xlu0 %v1437, 16
        %v1619 = vpop.permute.xlu0 %1618
        %1620 = vrot.lane.b32.xlu0 %v1449, 16
        %v1621 = vpop.permute.xlu0 %1620
        %1622 = vrot.lane.b32.xlu0 %v1461, 16
        %v1623 = vpop.permute.xlu0 %1622
        %1624 = vrot.lane.b32.xlu0 %v1473, 16
        %v1625 = vpop.permute.xlu0 %1624
        %1626 = vrot.lane.b32.xlu0 %v1485, 16
        %v1627 = vpop.permute.xlu0 %1626
        %1628 = vrot.lane.b32.xlu0 %v1497, 16
        %v1629 = vpop.permute.xlu0 %1628
        %1630 = vrot.lane.b32.xlu0 %v1509, 16
        %v1631 = vpop.permute.xlu0 %1630
        %1632 = vrot.lane.b32.xlu0 %v1521, 16
        %v1633 = vpop.permute.xlu0 %1632
        %1634 = vrot.lane.b32.xlu0 %v1533, 16
        %v1635 = vpop.permute.xlu0 %1634
        %1636 = vrot.lane.b32.xlu0 %v1545, 16
        %v1637 = vpop.permute.xlu0 %1636
        %1638 = vrot.lane.b32.xlu0 %v1557, 16
        %v1639 = vpop.permute.xlu0 %1638
        %1640 = vrot.lane.b32.xlu0 %v1569, 16
        %v1641 = vpop.permute.xlu0 %1640
        %1642 = vrot.lane.b32.xlu0 %v1581, 16
        %v1643 = vpop.permute.xlu0 %1642
        %1644 = vrot.lane.b32.xlu0 %v1593, 16
        %v1645 = vpop.permute.xlu0 %1644
        %1646 = vrot.lane.b32.xlu0 %v1605, 16
        %v1647 = vpop.permute.xlu0 %1646
        %1648 = vrot.lane.b32.xlu0 %v1617, 16
        %v1649 = vpop.permute.xlu0 %1648
        %v1666 = vunpack.c.l.b16 %v1152
        %v1667 = vunpack.c.l.b16 %v1153
        %v1668 = vunpack.c.l.b16 %v1154
        %v1669 = vunpack.c.l.b16 %v1155
        %v1670 = vunpack.c.l.b16 %v1156
        %v1671 = vunpack.c.l.b16 %v1157
        %v1672 = vunpack.c.l.b16 %v1158
        %v1673 = vunpack.c.l.b16 %v1159
        %v1674 = vunpack.c.l.b16 %v1160
        %v1675 = vunpack.c.l.b16 %v1161
        %v1676 = vunpack.c.l.b16 %v1162
        %v1677 = vunpack.c.l.b16 %v1163
        %v1678 = vunpack.c.l.b16 %v1164
        %v1679 = vunpack.c.l.b16 %v1165
        %v1680 = vunpack.c.l.b16 %v1166
        %v1681 = vunpack.c.l.b16 %v1167
        %v1682 = vpack.c.b16 %v1330, %v1666
        %v1683 = vpack.c.b16 %v1332, %v1667
        %v1684 = vpack.c.b16 %v1334, %v1668
        %v1685 = vpack.c.b16 %v1336, %v1669
        %v1686 = vpack.c.b16 %v1338, %v1670
        %v1687 = vpack.c.b16 %v1340, %v1671
        %v1688 = vpack.c.b16 %v1342, %v1672
        %v1689 = vpack.c.b16 %v1344, %v1673
        %v1690 = vpack.c.b16 %v1346, %v1674
        %v1691 = vpack.c.b16 %v1348, %v1675
        %v1692 = vpack.c.b16 %v1350, %v1676
        %v1693 = vpack.c.b16 %v1352, %v1677
        %v1694 = vpack.c.b16 %v1354, %v1678
        %v1695 = vpack.c.b16 %v1356, %v1679
        %v1696 = vpack.c.b16 %v1358, %v1680
        %v1697 = vpack.c.b16 %v1360, %v1681
        %vm1698 = vcmask 1046528
        %v1699 = vrot.slane %v1682, 1
        %v1700 = vrot.slane %v1409, 1
        %v1701 = vsel %vm1698, %v1699, %v1700
        %v1702 = vrot.slane %v1683, 1
        %v1703 = vrot.slane %v1410, 1
        %v1704 = vsel %vm1698, %v1702, %v1703
        %v1705 = vrot.slane %v1684, 1
        %v1706 = vrot.slane %v1411, 1
        %v1707 = vsel %vm1698, %v1705, %v1706
        %v1708 = vrot.slane %v1685, 1
        %v1709 = vrot.slane %v1412, 1
        %v1710 = vsel %vm1698, %v1708, %v1709
        %v1711 = vrot.slane %v1686, 1
        %v1712 = vrot.slane %v1413, 1
        %v1713 = vsel %vm1698, %v1711, %v1712
        %v1714 = vrot.slane %v1687, 1
        %v1715 = vrot.slane %v1414, 1
        %v1716 = vsel %vm1698, %v1714, %v1715
        %v1717 = vrot.slane %v1688, 1
        %v1718 = vrot.slane %v1415, 1
        %v1719 = vsel %vm1698, %v1717, %v1718
        %v1720 = vrot.slane %v1689, 1
        %v1721 = vrot.slane %v1416, 1
        %v1722 = vsel %vm1698, %v1720, %v1721
        %v1723 = vrot.slane %v1690, 1
        %v1724 = vrot.slane %v1417, 1
        %v1725 = vsel %vm1698, %v1723, %v1724
        %v1726 = vrot.slane %v1691, 1
        %v1727 = vrot.slane %v1418, 1
        %v1728 = vsel %vm1698, %v1726, %v1727
        %v1729 = vrot.slane %v1692, 1
        %v1730 = vrot.slane %v1419, 1
        %v1731 = vsel %vm1698, %v1729, %v1730
        %v1732 = vrot.slane %v1693, 1
        %v1733 = vrot.slane %v1420, 1
        %v1734 = vsel %vm1698, %v1732, %v1733
        %v1735 = vrot.slane %v1694, 1
        %v1736 = vrot.slane %v1421, 1
        %v1737 = vsel %vm1698, %v1735, %v1736
        %v1738 = vrot.slane %v1695, 1
        %v1739 = vrot.slane %v1422, 1
        %v1740 = vsel %vm1698, %v1738, %v1739
        %v1741 = vrot.slane %v1696, 1
        %v1742 = vrot.slane %v1423, 1
        %v1743 = vsel %vm1698, %v1741, %v1742
        %v1744 = vrot.slane %v1697, 1
        %v1745 = vrot.slane %v1424, 1
        %v1746 = vsel %vm1698, %v1744, %v1745
        %1747 = vrot.lane.b32.xlu0 %v1701, 32
        %v1748 = vpop.permute.xlu0 %1747
        %1749 = vrot.lane.b32.xlu0 %v1704, 32
        %v1750 = vpop.permute.xlu0 %1749
        %1751 = vrot.lane.b32.xlu0 %v1707, 32
        %v1752 = vpop.permute.xlu0 %1751
        %1753 = vrot.lane.b32.xlu0 %v1710, 32
        %v1754 = vpop.permute.xlu0 %1753
        %1755 = vrot.lane.b32.xlu0 %v1713, 32
        %v1756 = vpop.permute.xlu0 %1755
        %1757 = vrot.lane.b32.xlu0 %v1716, 32
        %v1758 = vpop.permute.xlu0 %1757
        %1759 = vrot.lane.b32.xlu0 %v1719, 32
        %v1760 = vpop.permute.xlu0 %1759
        %1761 = vrot.lane.b32.xlu0 %v1722, 32
        %v1762 = vpop.permute.xlu0 %1761
        %1763 = vrot.lane.b32.xlu0 %v1725, 32
        %v1764 = vpop.permute.xlu0 %1763
        %1765 = vrot.lane.b32.xlu0 %v1728, 32
        %v1766 = vpop.permute.xlu0 %1765
        %1767 = vrot.lane.b32.xlu0 %v1731, 32
        %v1768 = vpop.permute.xlu0 %1767
        %1769 = vrot.lane.b32.xlu0 %v1734, 32
        %v1770 = vpop.permute.xlu0 %1769
        %1771 = vrot.lane.b32.xlu0 %v1737, 32
        %v1772 = vpop.permute.xlu0 %1771
        %1773 = vrot.lane.b32.xlu0 %v1740, 32
        %v1774 = vpop.permute.xlu0 %1773
        %1775 = vrot.lane.b32.xlu0 %v1743, 32
        %v1776 = vpop.permute.xlu0 %1775
        %1777 = vrot.lane.b32.xlu0 %v1746, 32
        %v1778 = vpop.permute.xlu0 %1777
        %v1811 = vunpack.c.l.b16 %v1168
        %v1812 = vunpack.c.l.b16 %v1169
        %v1813 = vunpack.c.l.b16 %v1170
        %v1814 = vunpack.c.l.b16 %v1171
        %v1815 = vunpack.c.l.b16 %v1172
        %v1816 = vunpack.c.l.b16 %v1173
        %v1817 = vunpack.c.l.b16 %v1174
        %v1818 = vunpack.c.l.b16 %v1175
        %v1819 = vunpack.c.l.b16 %v1176
        %v1820 = vunpack.c.l.b16 %v1177
        %v1821 = vunpack.c.l.b16 %v1178
        %v1822 = vunpack.c.l.b16 %v1179
        %v1823 = vunpack.c.l.b16 %v1180
        %v1824 = vunpack.c.l.b16 %v1181
        %v1825 = vunpack.c.l.b16 %v1182
        %v1826 = vunpack.c.l.b16 %v1183
        %v1827 = vunpack.c.l.b16 %v1184
        %v1828 = vunpack.c.l.b16 %v1185
        %v1829 = vunpack.c.l.b16 %v1186
        %v1830 = vunpack.c.l.b16 %v1187
        %v1831 = vunpack.c.l.b16 %v1188
        %v1832 = vunpack.c.l.b16 %v1189
        %v1833 = vunpack.c.l.b16 %v1190
        %v1834 = vunpack.c.l.b16 %v1191
        %v1835 = vunpack.c.l.b16 %v1192
        %v1836 = vunpack.c.l.b16 %v1193
        %v1837 = vunpack.c.l.b16 %v1194
        %v1838 = vunpack.c.l.b16 %v1195
        %v1839 = vunpack.c.l.b16 %v1196
        %v1840 = vunpack.c.l.b16 %v1197
        %v1841 = vunpack.c.l.b16 %v1198
        %v1842 = vunpack.c.l.b16 %v1199
        %v1843 = vpack.c.b16 %v1812, %v1811
        %v1844 = vpack.c.b16 %v1814, %v1813
        %v1845 = vpack.c.b16 %v1816, %v1815
        %v1846 = vpack.c.b16 %v1818, %v1817
        %v1847 = vpack.c.b16 %v1820, %v1819
        %v1848 = vpack.c.b16 %v1822, %v1821
        %v1849 = vpack.c.b16 %v1824, %v1823
        %v1850 = vpack.c.b16 %v1826, %v1825
        %v1851 = vpack.c.b16 %v1828, %v1827
        %v1852 = vpack.c.b16 %v1830, %v1829
        %v1853 = vpack.c.b16 %v1832, %v1831
        %v1854 = vpack.c.b16 %v1834, %v1833
        %v1855 = vpack.c.b16 %v1836, %v1835
        %v1856 = vpack.c.b16 %v1838, %v1837
        %v1857 = vpack.c.b16 %v1840, %v1839
        %v1858 = vpack.c.b16 %v1842, %v1841
        %1859 = vrot.lane.b32.xlu0 %v1843, 48
        %v1860 = vpop.permute.xlu0 %1859
        %1861 = vrot.lane.b32.xlu0 %v1844, 48
        %v1862 = vpop.permute.xlu0 %1861
        %1863 = vrot.lane.b32.xlu0 %v1845, 48
        %v1864 = vpop.permute.xlu0 %1863
        %1865 = vrot.lane.b32.xlu0 %v1846, 48
        %v1866 = vpop.permute.xlu0 %1865
        %1867 = vrot.lane.b32.xlu0 %v1847, 48
        %v1868 = vpop.permute.xlu0 %1867
        %1869 = vrot.lane.b32.xlu0 %v1848, 48
        %v1870 = vpop.permute.xlu0 %1869
        %1871 = vrot.lane.b32.xlu0 %v1849, 48
        %v1872 = vpop.permute.xlu0 %1871
        %1873 = vrot.lane.b32.xlu0 %v1850, 48
        %v1874 = vpop.permute.xlu0 %1873
        %1875 = vrot.lane.b32.xlu0 %v1851, 48
        %v1876 = vpop.permute.xlu0 %1875
        %1877 = vrot.lane.b32.xlu0 %v1852, 48
        %v1878 = vpop.permute.xlu0 %1877
        %1879 = vrot.lane.b32.xlu0 %v1853, 48
        %v1880 = vpop.permute.xlu0 %1879
        %1881 = vrot.lane.b32.xlu0 %v1854, 48
        %v1882 = vpop.permute.xlu0 %1881
        %1883 = vrot.lane.b32.xlu0 %v1855, 48
        %v1884 = vpop.permute.xlu0 %1883
        %1885 = vrot.lane.b32.xlu0 %v1856, 48
        %v1886 = vpop.permute.xlu0 %1885
        %1887 = vrot.lane.b32.xlu0 %v1857, 48
        %v1888 = vpop.permute.xlu0 %1887
        %1889 = vrot.lane.b32.xlu0 %v1858, 48
        %v1890 = vpop.permute.xlu0 %1889
        %v1907 = vunpack.c.l.b16 %v1200
        %v1908 = vunpack.c.l.b16 %v1201
        %v1909 = vunpack.c.l.b16 %v1202
        %v1910 = vunpack.c.l.b16 %v1203
        %v1911 = vunpack.c.l.b16 %v1204
        %v1912 = vunpack.c.l.b16 %v1205
        %v1913 = vunpack.c.l.b16 %v1206
        %v1914 = vunpack.c.l.b16 %v1207
        %v1915 = vunpack.c.l.b16 %v1208
        %v1916 = vunpack.c.l.b16 %v1209
        %v1917 = vunpack.c.l.b16 %v1210
        %v1918 = vunpack.c.l.b16 %v1211
        %v1919 = vunpack.c.l.b16 %v1212
        %v1920 = vunpack.c.l.b16 %v1213
        %v1921 = vunpack.c.l.b16 %v1214
        %v1922 = vunpack.c.l.b16 %v1215
        %v1923 = vpack.c.b16 %v1907, %v1907
        %v1924 = vpack.c.b16 %v1908, %v1908
        %v1925 = vpack.c.b16 %v1909, %v1909
        %v1926 = vpack.c.b16 %v1910, %v1910
        %v1927 = vpack.c.b16 %v1911, %v1911
        %v1928 = vpack.c.b16 %v1912, %v1912
        %v1929 = vpack.c.b16 %v1913, %v1913
        %v1930 = vpack.c.b16 %v1914, %v1914
        %v1931 = vpack.c.b16 %v1915, %v1915
        %v1932 = vpack.c.b16 %v1916, %v1916
        %v1933 = vpack.c.b16 %v1917, %v1917
        %v1934 = vpack.c.b16 %v1918, %v1918
        %v1935 = vpack.c.b16 %v1919, %v1919
        %v1936 = vpack.c.b16 %v1920, %v1920
        %v1937 = vpack.c.b16 %v1921, %v1921
        %v1938 = vpack.c.b16 %v1922, %v1922
        %v1940 = vshrl.u32 %v1843, 16
        %v1942 = vshll.u32 %v1843, 16
        %v1944 = vrot.slane %v1942, 1
        %v1945 = vor.u32 %v1940, %v1944
        %v1947 = vshll.u32 %v1923, 16
        %v1949 = vrot.slane %v1947, 1
        %v1950 = vsel %vm1425, %v1945, %v1949
        %v1952 = vshrl.u32 %v1844, 16
        %v1954 = vshll.u32 %v1844, 16
        %v1956 = vrot.slane %v1954, 1
        %v1957 = vor.u32 %v1952, %v1956
        %v1959 = vshll.u32 %v1924, 16
        %v1961 = vrot.slane %v1959, 1
        %v1962 = vsel %vm1425, %v1957, %v1961
        %v1964 = vshrl.u32 %v1845, 16
        %v1966 = vshll.u32 %v1845, 16
        %v1968 = vrot.slane %v1966, 1
        %v1969 = vor.u32 %v1964, %v1968
        %v1971 = vshll.u32 %v1925, 16
        %v1973 = vrot.slane %v1971, 1
        %v1974 = vsel %vm1425, %v1969, %v1973
        %v1976 = vshrl.u32 %v1846, 16
        %v1978 = vshll.u32 %v1846, 16
        %v1980 = vrot.slane %v1978, 1
        %v1981 = vor.u32 %v1976, %v1980
        %v1983 = vshll.u32 %v1926, 16
        %v1985 = vrot.slane %v1983, 1
        %v1986 = vsel %vm1425, %v1981, %v1985
        %v1988 = vshrl.u32 %v1847, 16
        %v1990 = vshll.u32 %v1847, 16
        %v1992 = vrot.slane %v1990, 1
        %v1993 = vor.u32 %v1988, %v1992
        %v1995 = vshll.u32 %v1927, 16
        %v1997 = vrot.slane %v1995, 1
        %v1998 = vsel %vm1425, %v1993, %v1997
        %v2000 = vshrl.u32 %v1848, 16
        %v2002 = vshll.u32 %v1848, 16
        %v2004 = vrot.slane %v2002, 1
        %v2005 = vor.u32 %v2000, %v2004
        %v2007 = vshll.u32 %v1928, 16
        %v2009 = vrot.slane %v2007, 1
        %v2010 = vsel %vm1425, %v2005, %v2009
        %v2012 = vshrl.u32 %v1849, 16
        %v2014 = vshll.u32 %v1849, 16
        %v2016 = vrot.slane %v2014, 1
        %v2017 = vor.u32 %v2012, %v2016
        %v2019 = vshll.u32 %v1929, 16
        %v2021 = vrot.slane %v2019, 1
        %v2022 = vsel %vm1425, %v2017, %v2021
        %v2024 = vshrl.u32 %v1850, 16
        %v2026 = vshll.u32 %v1850, 16
        %v2028 = vrot.slane %v2026, 1
        %v2029 = vor.u32 %v2024, %v2028
        %v2031 = vshll.u32 %v1930, 16
        %v2033 = vrot.slane %v2031, 1
        %v2034 = vsel %vm1425, %v2029, %v2033
        %v2036 = vshrl.u32 %v1851, 16
        %v2038 = vshll.u32 %v1851, 16
        %v2040 = vrot.slane %v2038, 1
        %v2041 = vor.u32 %v2036, %v2040
        %v2043 = vshll.u32 %v1931, 16
        %v2045 = vrot.slane %v2043, 1
        %v2046 = vsel %vm1425, %v2041, %v2045
        %v2048 = vshrl.u32 %v1852, 16
        %v2050 = vshll.u32 %v1852, 16
        %v2052 = vrot.slane %v2050, 1
        %v2053 = vor.u32 %v2048, %v2052
        %v2055 = vshll.u32 %v1932, 16
        %v2057 = vrot.slane %v2055, 1
        %v2058 = vsel %vm1425, %v2053, %v2057
        %v2060 = vshrl.u32 %v1853, 16
        %v2062 = vshll.u32 %v1853, 16
        %v2064 = vrot.slane %v2062, 1
        %v2065 = vor.u32 %v2060, %v2064
        %v2067 = vshll.u32 %v1933, 16
        %v2069 = vrot.slane %v2067, 1
        %v2070 = vsel %vm1425, %v2065, %v2069
        %v2072 = vshrl.u32 %v1854, 16
        %v2074 = vshll.u32 %v1854, 16
        %v2076 = vrot.slane %v2074, 1
        %v2077 = vor.u32 %v2072, %v2076
        %v2079 = vshll.u32 %v1934, 16
        %v2081 = vrot.slane %v2079, 1
        %v2082 = vsel %vm1425, %v2077, %v2081
        %v2084 = vshrl.u32 %v1855, 16
        %v2086 = vshll.u32 %v1855, 16
        %v2088 = vrot.slane %v2086, 1
        %v2089 = vor.u32 %v2084, %v2088
        %v2091 = vshll.u32 %v1935, 16
        %v2093 = vrot.slane %v2091, 1
        %v2094 = vsel %vm1425, %v2089, %v2093
        %v2096 = vshrl.u32 %v1856, 16
        %v2098 = vshll.u32 %v1856, 16
        %v2100 = vrot.slane %v2098, 1
        %v2101 = vor.u32 %v2096, %v2100
        %v2103 = vshll.u32 %v1936, 16
        %v2105 = vrot.slane %v2103, 1
        %v2106 = vsel %vm1425, %v2101, %v2105
        %v2108 = vshrl.u32 %v1857, 16
        %v2110 = vshll.u32 %v1857, 16
        %v2112 = vrot.slane %v2110, 1
        %v2113 = vor.u32 %v2108, %v2112
        %v2115 = vshll.u32 %v1937, 16
        %v2117 = vrot.slane %v2115, 1
        %v2118 = vsel %vm1425, %v2113, %v2117
        %v2120 = vshrl.u32 %v1858, 16
        %v2122 = vshll.u32 %v1858, 16
        %v2124 = vrot.slane %v2122, 1
        %v2125 = vor.u32 %v2120, %v2124
        %v2127 = vshll.u32 %v1938, 16
        %v2129 = vrot.slane %v2127, 1
        %v2130 = vsel %vm1425, %v2125, %v2129
        %2131 = vrot.lane.b32.xlu0 %v1950, 64
        %v2132 = vpop.permute.xlu0 %2131
        %2133 = vrot.lane.b32.xlu0 %v1962, 64
        %v2134 = vpop.permute.xlu0 %2133
        %2135 = vrot.lane.b32.xlu0 %v1974, 64
        %v2136 = vpop.permute.xlu0 %2135
        %2137 = vrot.lane.b32.xlu0 %v1986, 64
        %v2138 = vpop.permute.xlu0 %2137
        %2139 = vrot.lane.b32.xlu0 %v1998, 64
        %v2140 = vpop.permute.xlu0 %2139
        %2141 = vrot.lane.b32.xlu0 %v2010, 64
        %v2142 = vpop.permute.xlu0 %2141
        %2143 = vrot.lane.b32.xlu0 %v2022, 64
        %v2144 = vpop.permute.xlu0 %2143
        %2145 = vrot.lane.b32.xlu0 %v2034, 64
        %v2146 = vpop.permute.xlu0 %2145
        %2147 = vrot.lane.b32.xlu0 %v2046, 64
        %v2148 = vpop.permute.xlu0 %2147
        %2149 = vrot.lane.b32.xlu0 %v2058, 64
        %v2150 = vpop.permute.xlu0 %2149
        %2151 = vrot.lane.b32.xlu0 %v2070, 64
        %v2152 = vpop.permute.xlu0 %2151
        %2153 = vrot.lane.b32.xlu0 %v2082, 64
        %v2154 = vpop.permute.xlu0 %2153
        %2155 = vrot.lane.b32.xlu0 %v2094, 64
        %v2156 = vpop.permute.xlu0 %2155
        %2157 = vrot.lane.b32.xlu0 %v2106, 64
        %v2158 = vpop.permute.xlu0 %2157
        %2159 = vrot.lane.b32.xlu0 %v2118, 64
        %v2160 = vpop.permute.xlu0 %2159
        %2161 = vrot.lane.b32.xlu0 %v2130, 64
        %v2162 = vpop.permute.xlu0 %2161
        %v2179 = vunpack.c.l.b16 %v1216
        %v2180 = vunpack.c.l.b16 %v1217
        %v2181 = vunpack.c.l.b16 %v1218
        %v2182 = vunpack.c.l.b16 %v1219
        %v2183 = vunpack.c.l.b16 %v1220
        %v2184 = vunpack.c.l.b16 %v1221
        %v2185 = vunpack.c.l.b16 %v1222
        %v2186 = vunpack.c.l.b16 %v1223
        %v2187 = vunpack.c.l.b16 %v1224
        %v2188 = vunpack.c.l.b16 %v1225
        %v2189 = vunpack.c.l.b16 %v1226
        %v2190 = vunpack.c.l.b16 %v1227
        %v2191 = vunpack.c.l.b16 %v1228
        %v2192 = vunpack.c.l.b16 %v1229
        %v2193 = vunpack.c.l.b16 %v1230
        %v2194 = vunpack.c.l.b16 %v1231
        %v2195 = vpack.c.b16 %v1812, %v2179
        %v2196 = vpack.c.b16 %v1814, %v2180
        %v2197 = vpack.c.b16 %v1816, %v2181
        %v2198 = vpack.c.b16 %v1818, %v2182
        %v2199 = vpack.c.b16 %v1820, %v2183
        %v2200 = vpack.c.b16 %v1822, %v2184
        %v2201 = vpack.c.b16 %v1824, %v2185
        %v2202 = vpack.c.b16 %v1826, %v2186
        %v2203 = vpack.c.b16 %v1828, %v2187
        %v2204 = vpack.c.b16 %v1830, %v2188
        %v2205 = vpack.c.b16 %v1832, %v2189
        %v2206 = vpack.c.b16 %v1834, %v2190
        %v2207 = vpack.c.b16 %v1836, %v2191
        %v2208 = vpack.c.b16 %v1838, %v2192
        %v2209 = vpack.c.b16 %v1840, %v2193
        %v2210 = vpack.c.b16 %v1842, %v2194
        %v2211 = vrot.slane %v2195, 1
        %v2212 = vrot.slane %v1923, 1
        %v2213 = vsel %vm1698, %v2211, %v2212
        %v2214 = vrot.slane %v2196, 1
        %v2215 = vrot.slane %v1924, 1
        %v2216 = vsel %vm1698, %v2214, %v2215
        %v2217 = vrot.slane %v2197, 1
        %v2218 = vrot.slane %v1925, 1
        %v2219 = vsel %vm1698, %v2217, %v2218
        %v2220 = vrot.slane %v2198, 1
        %v2221 = vrot.slane %v1926, 1
        %v2222 = vsel %vm1698, %v2220, %v2221
        %v2223 = vrot.slane %v2199, 1
        %v2224 = vrot.slane %v1927, 1
        %v2225 = vsel %vm1698, %v2223, %v2224
        %v2226 = vrot.slane %v2200, 1
        %v2227 = vrot.slane %v1928, 1
        %v2228 = vsel %vm1698, %v2226, %v2227
        %v2229 = vrot.slane %v2201, 1
        %v2230 = vrot.slane %v1929, 1
        %v2231 = vsel %vm1698, %v2229, %v2230
        %v2232 = vrot.slane %v2202, 1
        %v2233 = vrot.slane %v1930, 1
        %v2234 = vsel %vm1698, %v2232, %v2233
        %v2235 = vrot.slane %v2203, 1
        %v2236 = vrot.slane %v1931, 1
        %v2237 = vsel %vm1698, %v2235, %v2236
        %v2238 = vrot.slane %v2204, 1
        %v2239 = vrot.slane %v1932, 1
        %v2240 = vsel %vm1698, %v2238, %v2239
        %v2241 = vrot.slane %v2205, 1
        %v2242 = vrot.slane %v1933, 1
        %v2243 = vsel %vm1698, %v2241, %v2242
        %v2244 = vrot.slane %v2206, 1
        %v2245 = vrot.slane %v1934, 1
        %v2246 = vsel %vm1698, %v2244, %v2245
        %v2247 = vrot.slane %v2207, 1
        %v2248 = vrot.slane %v1935, 1
        %v2249 = vsel %vm1698, %v2247, %v2248
        %v2250 = vrot.slane %v2208, 1
        %v2251 = vrot.slane %v1936, 1
        %v2252 = vsel %vm1698, %v2250, %v2251
        %v2253 = vrot.slane %v2209, 1
        %v2254 = vrot.slane %v1937, 1
        %v2255 = vsel %vm1698, %v2253, %v2254
        %v2256 = vrot.slane %v2210, 1
        %v2257 = vrot.slane %v1938, 1
        %v2258 = vsel %vm1698, %v2256, %v2257
        %2259 = vrot.lane.b32.xlu0 %v2213, 80
        %v2260 = vpop.permute.xlu0 %2259
        %2261 = vrot.lane.b32.xlu0 %v2216, 80
        %v2262 = vpop.permute.xlu0 %2261
        %2263 = vrot.lane.b32.xlu0 %v2219, 80
        %v2264 = vpop.permute.xlu0 %2263
        %2265 = vrot.lane.b32.xlu0 %v2222, 80
        %v2266 = vpop.permute.xlu0 %2265
        %2267 = vrot.lane.b32.xlu0 %v2225, 80
        %v2268 = vpop.permute.xlu0 %2267
        %2269 = vrot.lane.b32.xlu0 %v2228, 80
        %v2270 = vpop.permute.xlu0 %2269
        %2271 = vrot.lane.b32.xlu0 %v2231, 80
        %v2272 = vpop.permute.xlu0 %2271
        %2273 = vrot.lane.b32.xlu0 %v2234, 80
        %v2274 = vpop.permute.xlu0 %2273
        %2275 = vrot.lane.b32.xlu0 %v2237, 80
        %v2276 = vpop.permute.xlu0 %2275
        %2277 = vrot.lane.b32.xlu0 %v2240, 80
        %v2278 = vpop.permute.xlu0 %2277
        %2279 = vrot.lane.b32.xlu0 %v2243, 80
        %v2280 = vpop.permute.xlu0 %2279
        %2281 = vrot.lane.b32.xlu0 %v2246, 80
        %v2282 = vpop.permute.xlu0 %2281
        %2283 = vrot.lane.b32.xlu0 %v2249, 80
        %v2284 = vpop.permute.xlu0 %2283
        %2285 = vrot.lane.b32.xlu0 %v2252, 80
        %v2286 = vpop.permute.xlu0 %2285
        %2287 = vrot.lane.b32.xlu0 %v2255, 80
        %v2288 = vpop.permute.xlu0 %2287
        %2289 = vrot.lane.b32.xlu0 %v2258, 80
        %v2290 = vpop.permute.xlu0 %2289
        %v2323 = vunpack.c.l.b16 %v1233
        %v2324 = vunpack.c.l.b16 %v1234
        %v2325 = vunpack.c.l.b16 %v1235
        %v2326 = vunpack.c.l.b16 %v1236
        %v2327 = vunpack.c.l.b16 %v1237
        %v2328 = vunpack.c.l.b16 %v1238
        %v2329 = vunpack.c.l.b16 %v1239
        %v2330 = vunpack.c.l.b16 %v1240
        %v2331 = vunpack.c.l.b16 %v1241
        %v2332 = vunpack.c.l.b16 %v1242
        %v2333 = vunpack.c.l.b16 %v1243
        %v2334 = vunpack.c.l.b16 %v1244
        %v2335 = vunpack.c.l.b16 %v1245
        %v2336 = vunpack.c.l.b16 %v1246
        %v2337 = vunpack.c.l.b16 %v1247
        %v2338 = vunpack.c.l.b16 %v1248
        %v2339 = vunpack.c.l.b16 %v1249
        %v2340 = vunpack.c.l.b16 %v1250
        %v2341 = vunpack.c.l.b16 %v1251
        %v2342 = vunpack.c.l.b16 %v1252
        %v2343 = vunpack.c.l.b16 %v1253
        %v2344 = vunpack.c.l.b16 %v1254
        %v2345 = vunpack.c.l.b16 %v1255
        %v2346 = vunpack.c.l.b16 %v1256
        %v2347 = vunpack.c.l.b16 %v1257
        %v2348 = vunpack.c.l.b16 %v1258
        %v2349 = vunpack.c.l.b16 %v1259
        %v2350 = vunpack.c.l.b16 %v1260
        %v2351 = vunpack.c.l.b16 %v1261
        %v2352 = vunpack.c.l.b16 %v1262
        %v2353 = vunpack.c.l.b16 %v1263
        %v2354 = vunpack.c.l.b16 %v1264
        %v2355 = vpack.c.b16 %v2324, %v2323
        %v2356 = vpack.c.b16 %v2326, %v2325
        %v2357 = vpack.c.b16 %v2328, %v2327
        %v2358 = vpack.c.b16 %v2330, %v2329
        %v2359 = vpack.c.b16 %v2332, %v2331
        %v2360 = vpack.c.b16 %v2334, %v2333
        %v2361 = vpack.c.b16 %v2336, %v2335
        %v2362 = vpack.c.b16 %v2338, %v2337
        %v2363 = vpack.c.b16 %v2340, %v2339
        %v2364 = vpack.c.b16 %v2342, %v2341
        %v2365 = vpack.c.b16 %v2344, %v2343
        %v2366 = vpack.c.b16 %v2346, %v2345
        %v2367 = vpack.c.b16 %v2348, %v2347
        %v2368 = vpack.c.b16 %v2350, %v2349
        %v2369 = vpack.c.b16 %v2352, %v2351
        %v2370 = vpack.c.b16 %v2354, %v2353
        %2371 = vrot.lane.b32.xlu0 %v2355, 96
        %v2372 = vpop.permute.xlu0 %2371
        %2373 = vrot.lane.b32.xlu0 %v2356, 96
        %v2374 = vpop.permute.xlu0 %2373
        %2375 = vrot.lane.b32.xlu0 %v2357, 96
        %v2376 = vpop.permute.xlu0 %2375
        %2377 = vrot.lane.b32.xlu0 %v2358, 96
        %v2378 = vpop.permute.xlu0 %2377
        %2379 = vrot.lane.b32.xlu0 %v2359, 96
        %v2380 = vpop.permute.xlu0 %2379
        %2381 = vrot.lane.b32.xlu0 %v2360, 96
        %v2382 = vpop.permute.xlu0 %2381
        %2383 = vrot.lane.b32.xlu0 %v2361, 96
        %v2384 = vpop.permute.xlu0 %2383
        %2385 = vrot.lane.b32.xlu0 %v2362, 96
        %v2386 = vpop.permute.xlu0 %2385
        %2387 = vrot.lane.b32.xlu0 %v2363, 96
        %v2388 = vpop.permute.xlu0 %2387
        %2389 = vrot.lane.b32.xlu0 %v2364, 96
        %v2390 = vpop.permute.xlu0 %2389
        %2391 = vrot.lane.b32.xlu0 %v2365, 96
        %v2392 = vpop.permute.xlu0 %2391
        %2393 = vrot.lane.b32.xlu0 %v2366, 96
        %v2394 = vpop.permute.xlu0 %2393
        %2395 = vrot.lane.b32.xlu0 %v2367, 96
        %v2396 = vpop.permute.xlu0 %2395
        %2397 = vrot.lane.b32.xlu0 %v2368, 96
        %v2398 = vpop.permute.xlu0 %2397
        %2399 = vrot.lane.b32.xlu0 %v2369, 96
        %v2400 = vpop.permute.xlu0 %2399
        %2401 = vrot.lane.b32.xlu0 %v2370, 96
        %v2402 = vpop.permute.xlu0 %2401
        %v2419 = vunpack.c.l.b16 %v1265
        %v2420 = vunpack.c.l.b16 %v1266
        %v2421 = vunpack.c.l.b16 %v1267
        %v2422 = vunpack.c.l.b16 %v1268
        %v2423 = vunpack.c.l.b16 %v1269
        %v2424 = vunpack.c.l.b16 %v1270
        %v2425 = vunpack.c.l.b16 %v1271
        %v2426 = vunpack.c.l.b16 %v1272
        %v2427 = vunpack.c.l.b16 %v1273
        %v2428 = vunpack.c.l.b16 %v1274
        %v2429 = vunpack.c.l.b16 %v1275
        %v2430 = vunpack.c.l.b16 %v1276
        %v2431 = vunpack.c.l.b16 %v1277
        %v2432 = vunpack.c.l.b16 %v1278
        %v2433 = vunpack.c.l.b16 %v1279
        %v2434 = vunpack.c.l.b16 %v1280
        %v2435 = vpack.c.b16 %v2419, %v2419
        %v2436 = vpack.c.b16 %v2420, %v2420
        %v2437 = vpack.c.b16 %v2421, %v2421
        %v2438 = vpack.c.b16 %v2422, %v2422
        %v2439 = vpack.c.b16 %v2423, %v2423
        %v2440 = vpack.c.b16 %v2424, %v2424
        %v2441 = vpack.c.b16 %v2425, %v2425
        %v2442 = vpack.c.b16 %v2426, %v2426
        %v2443 = vpack.c.b16 %v2427, %v2427
        %v2444 = vpack.c.b16 %v2428, %v2428
        %v2445 = vpack.c.b16 %v2429, %v2429
        %v2446 = vpack.c.b16 %v2430, %v2430
        %v2447 = vpack.c.b16 %v2431, %v2431
        %v2448 = vpack.c.b16 %v2432, %v2432
        %v2449 = vpack.c.b16 %v2433, %v2433
        %v2450 = vpack.c.b16 %v2434, %v2434
        %v2452 = vshrl.u32 %v2355, 16
        %v2454 = vshll.u32 %v2355, 16
        %v2456 = vrot.slane %v2454, 1
        %v2457 = vor.u32 %v2452, %v2456
        %v2459 = vshll.u32 %v2435, 16
        %v2461 = vrot.slane %v2459, 1
        %v2462 = vsel %vm1425, %v2457, %v2461
        %v2464 = vshrl.u32 %v2356, 16
        %v2466 = vshll.u32 %v2356, 16
        %v2468 = vrot.slane %v2466, 1
        %v2469 = vor.u32 %v2464, %v2468
        %v2471 = vshll.u32 %v2436, 16
        %v2473 = vrot.slane %v2471, 1
        %v2474 = vsel %vm1425, %v2469, %v2473
        %v2476 = vshrl.u32 %v2357, 16
        %v2478 = vshll.u32 %v2357, 16
        %v2480 = vrot.slane %v2478, 1
        %v2481 = vor.u32 %v2476, %v2480
        %v2483 = vshll.u32 %v2437, 16
        %v2485 = vrot.slane %v2483, 1
        %v2486 = vsel %vm1425, %v2481, %v2485
        %v2488 = vshrl.u32 %v2358, 16
        %v2490 = vshll.u32 %v2358, 16
        %v2492 = vrot.slane %v2490, 1
        %v2493 = vor.u32 %v2488, %v2492
        %v2495 = vshll.u32 %v2438, 16
        %v2497 = vrot.slane %v2495, 1
        %v2498 = vsel %vm1425, %v2493, %v2497
        %v2500 = vshrl.u32 %v2359, 16
        %v2502 = vshll.u32 %v2359, 16
        %v2504 = vrot.slane %v2502, 1
        %v2505 = vor.u32 %v2500, %v2504
        %v2507 = vshll.u32 %v2439, 16
        %v2509 = vrot.slane %v2507, 1
        %v2510 = vsel %vm1425, %v2505, %v2509
        %v2512 = vshrl.u32 %v2360, 16
        %v2514 = vshll.u32 %v2360, 16
        %v2516 = vrot.slane %v2514, 1
        %v2517 = vor.u32 %v2512, %v2516
        %v2519 = vshll.u32 %v2440, 16
        %v2521 = vrot.slane %v2519, 1
        %v2522 = vsel %vm1425, %v2517, %v2521
        %v2524 = vshrl.u32 %v2361, 16
        %v2526 = vshll.u32 %v2361, 16
        %v2528 = vrot.slane %v2526, 1
        %v2529 = vor.u32 %v2524, %v2528
        %v2531 = vshll.u32 %v2441, 16
        %v2533 = vrot.slane %v2531, 1
        %v2534 = vsel %vm1425, %v2529, %v2533
        %v2536 = vshrl.u32 %v2362, 16
        %v2538 = vshll.u32 %v2362, 16
        %v2540 = vrot.slane %v2538, 1
        %v2541 = vor.u32 %v2536, %v2540
        %v2543 = vshll.u32 %v2442, 16
        %v2545 = vrot.slane %v2543, 1
        %v2546 = vsel %vm1425, %v2541, %v2545
        %v2548 = vshrl.u32 %v2363, 16
        %v2550 = vshll.u32 %v2363, 16
        %v2552 = vrot.slane %v2550, 1
        %v2553 = vor.u32 %v2548, %v2552
        %v2555 = vshll.u32 %v2443, 16
        %v2557 = vrot.slane %v2555, 1
        %v2558 = vsel %vm1425, %v2553, %v2557
        %v2560 = vshrl.u32 %v2364, 16
        %v2562 = vshll.u32 %v2364, 16
        %v2564 = vrot.slane %v2562, 1
        %v2565 = vor.u32 %v2560, %v2564
        %v2567 = vshll.u32 %v2444, 16
        %v2569 = vrot.slane %v2567, 1
        %v2570 = vsel %vm1425, %v2565, %v2569
        %v2572 = vshrl.u32 %v2365, 16
        %v2574 = vshll.u32 %v2365, 16
        %v2576 = vrot.slane %v2574, 1
        %v2577 = vor.u32 %v2572, %v2576
        %v2579 = vshll.u32 %v2445, 16
        %v2581 = vrot.slane %v2579, 1
        %v2582 = vsel %vm1425, %v2577, %v2581
        %v2584 = vshrl.u32 %v2366, 16
        %v2586 = vshll.u32 %v2366, 16
        %v2588 = vrot.slane %v2586, 1
        %v2589 = vor.u32 %v2584, %v2588
        %v2591 = vshll.u32 %v2446, 16
        %v2593 = vrot.slane %v2591, 1
        %v2594 = vsel %vm1425, %v2589, %v2593
        %v2596 = vshrl.u32 %v2367, 16
        %v2598 = vshll.u32 %v2367, 16
        %v2600 = vrot.slane %v2598, 1
        %v2601 = vor.u32 %v2596, %v2600
        %v2603 = vshll.u32 %v2447, 16
        %v2605 = vrot.slane %v2603, 1
        %v2606 = vsel %vm1425, %v2601, %v2605
        %v2608 = vshrl.u32 %v2368, 16
        %v2610 = vshll.u32 %v2368, 16
        %v2612 = vrot.slane %v2610, 1
        %v2613 = vor.u32 %v2608, %v2612
        %v2615 = vshll.u32 %v2448, 16
        %v2617 = vrot.slane %v2615, 1
        %v2618 = vsel %vm1425, %v2613, %v2617
        %v2620 = vshrl.u32 %v2369, 16
        %v2622 = vshll.u32 %v2369, 16
        %v2624 = vrot.slane %v2622, 1
        %v2625 = vor.u32 %v2620, %v2624
        %v2627 = vshll.u32 %v2449, 16
        %v2629 = vrot.slane %v2627, 1
        %v2630 = vsel %vm1425, %v2625, %v2629
        %v2632 = vshrl.u32 %v2370, 16
        %v2634 = vshll.u32 %v2370, 16
        %v2636 = vrot.slane %v2634, 1
        %v2637 = vor.u32 %v2632, %v2636
        %v2639 = vshll.u32 %v2450, 16
        %v2641 = vrot.slane %v2639, 1
        %v2642 = vsel %vm1425, %v2637, %v2641
        %2643 = vrot.lane.b32.xlu0 %v2462, 112
        %v2644 = vpop.permute.xlu0 %2643
        %2645 = vrot.lane.b32.xlu0 %v2474, 112
        %v2646 = vpop.permute.xlu0 %2645
        %2647 = vrot.lane.b32.xlu0 %v2486, 112
        %v2648 = vpop.permute.xlu0 %2647
        %2649 = vrot.lane.b32.xlu0 %v2498, 112
        %v2650 = vpop.permute.xlu0 %2649
        %2651 = vrot.lane.b32.xlu0 %v2510, 112
        %v2652 = vpop.permute.xlu0 %2651
        %2653 = vrot.lane.b32.xlu0 %v2522, 112
        %v2654 = vpop.permute.xlu0 %2653
        %2655 = vrot.lane.b32.xlu0 %v2534, 112
        %v2656 = vpop.permute.xlu0 %2655
        %2657 = vrot.lane.b32.xlu0 %v2546, 112
        %v2658 = vpop.permute.xlu0 %2657
        %2659 = vrot.lane.b32.xlu0 %v2558, 112
        %v2660 = vpop.permute.xlu0 %2659
        %2661 = vrot.lane.b32.xlu0 %v2570, 112
        %v2662 = vpop.permute.xlu0 %2661
        %2663 = vrot.lane.b32.xlu0 %v2582, 112
        %v2664 = vpop.permute.xlu0 %2663
        %2665 = vrot.lane.b32.xlu0 %v2594, 112
        %v2666 = vpop.permute.xlu0 %2665
        %2667 = vrot.lane.b32.xlu0 %v2606, 112
        %v2668 = vpop.permute.xlu0 %2667
        %2669 = vrot.lane.b32.xlu0 %v2618, 112
        %v2670 = vpop.permute.xlu0 %2669
        %2671 = vrot.lane.b32.xlu0 %v2630, 112
        %v2672 = vpop.permute.xlu0 %2671
        %2673 = vrot.lane.b32.xlu0 %v2642, 112
        %v2674 = vpop.permute.xlu0 %2673
        %v2691 = vunpack.c.l.b16 %v1281
        %v2692 = vunpack.c.l.b16 %v1282
        %v2693 = vunpack.c.l.b16 %v1283
        %v2694 = vunpack.c.l.b16 %v1284
        %v2695 = vunpack.c.l.b16 %v1285
        %v2696 = vunpack.c.l.b16 %v1286
        %v2697 = vunpack.c.l.b16 %v1287
        %v2698 = vunpack.c.l.b16 %v1288
        %v2699 = vunpack.c.l.b16 %v1289
        %v2700 = vunpack.c.l.b16 %v1290
        %v2701 = vunpack.c.l.b16 %v1291
        %v2702 = vunpack.c.l.b16 %v1292
        %v2703 = vunpack.c.l.b16 %v1293
        %v2704 = vunpack.c.l.b16 %v1294
        %v2705 = vunpack.c.l.b16 %v1295
        %v2706 = vunpack.c.l.b16 %v1296
        %v2707 = vpack.c.b16 %v2324, %v2691
        %v2708 = vpack.c.b16 %v2326, %v2692
        %v2709 = vpack.c.b16 %v2328, %v2693
        %v2710 = vpack.c.b16 %v2330, %v2694
        %v2711 = vpack.c.b16 %v2332, %v2695
        %v2712 = vpack.c.b16 %v2334, %v2696
        %v2713 = vpack.c.b16 %v2336, %v2697
        %v2714 = vpack.c.b16 %v2338, %v2698
        %v2715 = vpack.c.b16 %v2340, %v2699
        %v2716 = vpack.c.b16 %v2342, %v2700
        %v2717 = vpack.c.b16 %v2344, %v2701
        %v2718 = vpack.c.b16 %v2346, %v2702
        %v2719 = vpack.c.b16 %v2348, %v2703
        %v2720 = vpack.c.b16 %v2350, %v2704
        %v2721 = vpack.c.b16 %v2352, %v2705
        %v2722 = vpack.c.b16 %v2354, %v2706
        %v2723 = vrot.slane %v2707, 1
        %v2724 = vrot.slane %v2435, 1
        %v2725 = vsel %vm1698, %v2723, %v2724
        %v2726 = vrot.slane %v2708, 1
        %v2727 = vrot.slane %v2436, 1
        %v2728 = vsel %vm1698, %v2726, %v2727
        %v2729 = vrot.slane %v2709, 1
        %v2730 = vrot.slane %v2437, 1
        %v2731 = vsel %vm1698, %v2729, %v2730
        %v2732 = vrot.slane %v2710, 1
        %v2733 = vrot.slane %v2438, 1
        %v2734 = vsel %vm1698, %v2732, %v2733
        %v2735 = vrot.slane %v2711, 1
        %v2736 = vrot.slane %v2439, 1
        %v2737 = vsel %vm1698, %v2735, %v2736
        %v2738 = vrot.slane %v2712, 1
        %v2739 = vrot.slane %v2440, 1
        %v2740 = vsel %vm1698, %v2738, %v2739
        %v2741 = vrot.slane %v2713, 1
        %v2742 = vrot.slane %v2441, 1
        %v2743 = vsel %vm1698, %v2741, %v2742
        %v2744 = vrot.slane %v2714, 1
        %v2745 = vrot.slane %v2442, 1
        %v2746 = vsel %vm1698, %v2744, %v2745
        %v2747 = vrot.slane %v2715, 1
        %v2748 = vrot.slane %v2443, 1
        %v2749 = vsel %vm1698, %v2747, %v2748
        %v2750 = vrot.slane %v2716, 1
        %v2751 = vrot.slane %v2444, 1
        %v2752 = vsel %vm1698, %v2750, %v2751
        %v2753 = vrot.slane %v2717, 1
        %v2754 = vrot.slane %v2445, 1
        %v2755 = vsel %vm1698, %v2753, %v2754
        %v2756 = vrot.slane %v2718, 1
        %v2757 = vrot.slane %v2446, 1
        %v2758 = vsel %vm1698, %v2756, %v2757
        %v2759 = vrot.slane %v2719, 1
        %v2760 = vrot.slane %v2447, 1
        %v2761 = vsel %vm1698, %v2759, %v2760
        %v2762 = vrot.slane %v2720, 1
        %v2763 = vrot.slane %v2448, 1
        %v2764 = vsel %vm1698, %v2762, %v2763
        %v2765 = vrot.slane %v2721, 1
        %v2766 = vrot.slane %v2449, 1
        %v2767 = vsel %vm1698, %v2765, %v2766
        %v2768 = vrot.slane %v2722, 1
        %v2769 = vrot.slane %v2450, 1
        %v2770 = vsel %vm1698, %v2768, %v2769
        %vm2771 = vcmask 130048
        %v2773 = vsel %vm2771, %v1361, %v1619
        %v2775 = vsel %vm2771, %v1362, %v1621
        %v2777 = vsel %vm2771, %v1363, %v1623
        %v2779 = vsel %vm2771, %v1364, %v1625
        %v2781 = vsel %vm2771, %v1365, %v1627
        %v2783 = vsel %vm2771, %v1366, %v1629
        %v2785 = vsel %vm2771, %v1367, %v1631
        %v2787 = vsel %vm2771, %v1368, %v1633
        %v2789 = vsel %vm2771, %v1369, %v1635
        %v2791 = vsel %vm2771, %v1370, %v1637
        %v2793 = vsel %vm2771, %v1371, %v1639
        %v2795 = vsel %vm2771, %v1372, %v1641
        %v2797 = vsel %vm2771, %v1373, %v1643
        %v2799 = vsel %vm2771, %v1374, %v1645
        %v2801 = vsel %vm2771, %v1375, %v1647
        %v2803 = vsel %vm2771, %v1376, %v1649
        %vm2804 = vcmask 261120
        %v2806 = vsel %vm2804, %v2773, %v1748
        %v2808 = vsel %vm2804, %v2775, %v1750
        %v2810 = vsel %vm2804, %v2777, %v1752
        %v2812 = vsel %vm2804, %v2779, %v1754
        %v2814 = vsel %vm2804, %v2781, %v1756
        %v2816 = vsel %vm2804, %v2783, %v1758
        %v2818 = vsel %vm2804, %v2785, %v1760
        %v2820 = vsel %vm2804, %v2787, %v1762
        %v2822 = vsel %vm2804, %v2789, %v1764
        %v2824 = vsel %vm2804, %v2791, %v1766
        %v2826 = vsel %vm2804, %v2793, %v1768
        %v2828 = vsel %vm2804, %v2795, %v1770
        %v2830 = vsel %vm2804, %v2797, %v1772
        %v2832 = vsel %vm2804, %v2799, %v1774
        %v2834 = vsel %vm2804, %v2801, %v1776
        %v2836 = vsel %vm2804, %v2803, %v1778
        %vm2837 = vcmask 392192
        %v2839 = vsel %vm2837, %v2806, %v1860
        %v2841 = vsel %vm2837, %v2808, %v1862
        %v2843 = vsel %vm2837, %v2810, %v1864
        %v2845 = vsel %vm2837, %v2812, %v1866
        %v2847 = vsel %vm2837, %v2814, %v1868
        %v2849 = vsel %vm2837, %v2816, %v1870
        %v2851 = vsel %vm2837, %v2818, %v1872
        %v2853 = vsel %vm2837, %v2820, %v1874
        %v2855 = vsel %vm2837, %v2822, %v1876
        %v2857 = vsel %vm2837, %v2824, %v1878
        %v2859 = vsel %vm2837, %v2826, %v1880
        %v2861 = vsel %vm2837, %v2828, %v1882
        %v2863 = vsel %vm2837, %v2830, %v1884
        %v2865 = vsel %vm2837, %v2832, %v1886
        %v2867 = vsel %vm2837, %v2834, %v1888
        %v2869 = vsel %vm2837, %v2836, %v1890
        %vm2870 = vcmask 523264
        %v2872 = vsel %vm2870, %v2839, %v2132
        %v2874 = vsel %vm2870, %v2841, %v2134
        %v2876 = vsel %vm2870, %v2843, %v2136
        %v2878 = vsel %vm2870, %v2845, %v2138
        %v2880 = vsel %vm2870, %v2847, %v2140
        %v2882 = vsel %vm2870, %v2849, %v2142
        %v2884 = vsel %vm2870, %v2851, %v2144
        %v2886 = vsel %vm2870, %v2853, %v2146
        %v2888 = vsel %vm2870, %v2855, %v2148
        %v2890 = vsel %vm2870, %v2857, %v2150
        %v2892 = vsel %vm2870, %v2859, %v2152
        %v2894 = vsel %vm2870, %v2861, %v2154
        %v2896 = vsel %vm2870, %v2863, %v2156
        %v2898 = vsel %vm2870, %v2865, %v2158
        %v2900 = vsel %vm2870, %v2867, %v2160
        %v2902 = vsel %vm2870, %v2869, %v2162
        %vm2903 = vcmask 654336
        %v2905 = vsel %vm2903, %v2872, %v2260
        %v2907 = vsel %vm2903, %v2874, %v2262
        %v2909 = vsel %vm2903, %v2876, %v2264
        %v2911 = vsel %vm2903, %v2878, %v2266
        %v2913 = vsel %vm2903, %v2880, %v2268
        %v2915 = vsel %vm2903, %v2882, %v2270
        %v2917 = vsel %vm2903, %v2884, %v2272
        %v2919 = vsel %vm2903, %v2886, %v2274
        %v2921 = vsel %vm2903, %v2888, %v2276
        %v2923 = vsel %vm2903, %v2890, %v2278
        %v2925 = vsel %vm2903, %v2892, %v2280
        %v2927 = vsel %vm2903, %v2894, %v2282
        %v2929 = vsel %vm2903, %v2896, %v2284
        %v2931 = vsel %vm2903, %v2898, %v2286
        %v2933 = vsel %vm2903, %v2900, %v2288
        %v2935 = vsel %vm2903, %v2902, %v2290
        %vm2936 = vcmask 785408
        %v2938 = vsel %vm2936, %v2905, %v2372
        %v2940 = vsel %vm2936, %v2907, %v2374
        %v2942 = vsel %vm2936, %v2909, %v2376
        %v2944 = vsel %vm2936, %v2911, %v2378
        %v2946 = vsel %vm2936, %v2913, %v2380
        %v2948 = vsel %vm2936, %v2915, %v2382
        %v2950 = vsel %vm2936, %v2917, %v2384
        %v2952 = vsel %vm2936, %v2919, %v2386
        %v2954 = vsel %vm2936, %v2921, %v2388
        %v2956 = vsel %vm2936, %v2923, %v2390
        %v2958 = vsel %vm2936, %v2925, %v2392
        %v2960 = vsel %vm2936, %v2927, %v2394
        %v2962 = vsel %vm2936, %v2929, %v2396
        %v2964 = vsel %vm2936, %v2931, %v2398
        %v2966 = vsel %vm2936, %v2933, %v2400
        %v2968 = vsel %vm2936, %v2935, %v2402
        %vm2969 = vcmask 916480
        %v2971 = vsel %vm2969, %v2938, %v2644
        %v2974 = vsel %vm2969, %v2940, %v2646
        %v2977 = vsel %vm2969, %v2942, %v2648
        %v2980 = vsel %vm2969, %v2944, %v2650
        %v2983 = vsel %vm2969, %v2946, %v2652
        %v2986 = vsel %vm2969, %v2948, %v2654
        %v2989 = vsel %vm2969, %v2950, %v2656
        %v2992 = vsel %vm2969, %v2952, %v2658
        %v2995 = vsel %vm2969, %v2954, %v2660
        %v2998 = vsel %vm2969, %v2956, %v2662
        %v3001 = vsel %vm2969, %v2958, %v2664
        %v3004 = vsel %vm2969, %v2960, %v2666
        %v3007 = vsel %vm2969, %v2962, %v2668
        %v3010 = vsel %vm2969, %v2964, %v2670
        %v3013 = vsel %vm2969, %v2966, %v2672
        %v3016 = vsel %vm2969, %v2968, %v2674
        %v3018 = vld [vmem:[%s1] sm:$0xf]
        %v3019 = vld [vmem:[%s1 + $0x4] sm:$0xf]
        %v3020 = vld [vmem:[%s1 + $0x8] sm:$0xf]
        %v3021 = vld [vmem:[%s1 + $0xc] sm:$0xf]
        %v3022 = vld [vmem:[%s1 + $0x10] sm:$0xf]
        %v3023 = vld [vmem:[%s1 + $0x14] sm:$0xf]
        %v3024 = vld [vmem:[%s1 + $0x18] sm:$0xf]
        %v3025 = vld [vmem:[%s1 + $0x1c] sm:$0xf]
        %v3026 = vld [vmem:[%s1 + $0x20] sm:$0xf]
        %v3027 = vld [vmem:[%s1 + $0x24] sm:$0xf]
        %v3028 = vld [vmem:[%s1 + $0x28] sm:$0xf]
        %v3029 = vld [vmem:[%s1 + $0x2c] sm:$0xf]
        %v3030 = vld [vmem:[%s1 + $0x30] sm:$0xf]
        %v3031 = vld [vmem:[%s1 + $0x34] sm:$0xf]
        %v3032 = vld [vmem:[%s1 + $0x38] sm:$0xf]
        %v3033 = vld [vmem:[%s1 + $0x3c] sm:$0xf]
        %v3034 = vld [vmem:[%s1 + $0x40] sm:$0xf]
        %v3035 = vld [vmem:[%s1 + $0x44] sm:$0xf]
        %v3054 = vunpack.c.l.b16 %v3018
        %v3055 = vunpack.c.l.b16 %v3019
        %v3056 = vunpack.c.l.b16 %v3020
        %v3057 = vunpack.c.l.b16 %v3021
        %v3058 = vunpack.c.l.b16 %v3022
        %v3059 = vunpack.c.l.b16 %v3023
        %v3060 = vunpack.c.l.b16 %v3024
        %v3061 = vunpack.c.l.b16 %v3025
        %v3062 = vunpack.c.l.b16 %v3026
        %v3063 = vunpack.c.l.b16 %v3027
        %v3064 = vunpack.c.l.b16 %v3028
        %v3065 = vunpack.c.l.b16 %v3029
        %v3066 = vunpack.c.l.b16 %v3030
        %v3067 = vunpack.c.l.b16 %v3031
        %v3068 = vunpack.c.l.b16 %v3032
        %v3069 = vunpack.c.l.b16 %v3033
        %v3070 = vunpack.c.l.b16 %v3034
        %v3071 = vunpack.c.l.b16 %v3035
        %v3072 = vpack.c.b16 %v3055, %v3054
        %v3073 = vpack.c.b16 %v3057, %v3056
        %v3074 = vpack.c.b16 %v3059, %v3058
        %v3075 = vpack.c.b16 %v3061, %v3060
        %v3076 = vpack.c.b16 %v3063, %v3062
        %v3077 = vpack.c.b16 %v3065, %v3064
        %v3078 = vpack.c.b16 %v3067, %v3066
        %v3079 = vpack.c.b16 %v3069, %v3068
        %v3080 = vpack.c.b16 %v3071, %v3070
        %v3091 = vsel %vm2771, %v2725, 0
        %v3094 = vsel %vm2771, %v2728, 0
        %v3097 = vsel %vm2771, %v2731, 0
        %v3100 = vsel %vm2771, %v2734, 0
        %v3103 = vsel %vm2771, %v2737, 0
        %v3106 = vsel %vm2771, %v2740, 0
        %v3109 = vsel %vm2771, %v2743, 0
        %v3112 = vsel %vm2771, %v2746, 0
        %v3115 = vsel %vm2771, %v2749, 0
        %v3118 = vsel %vm2771, %v2752, 0
        %v3121 = vsel %vm2771, %v2755, 0
        %v3124 = vsel %vm2771, %v2758, 0
        %v3127 = vsel %vm2771, %v2761, 0
        %v3130 = vsel %vm2771, %v2764, 0
        %v3133 = vsel %vm2771, %v2767, 0
        %v3136 = vsel %vm2771, %v2770, 0
        %3138 = vmatprep.subr.bf16.mxu0 0
        %3139 = vmatpush1.bf16.msra.mxu0 %v3072
        %3140 = vmatprep.subr.bf16.mxu0 0
        %3141 = vmatpush1.bf16.msra.mxu0 %v3073
        %3142 = vmatprep.subr.bf16.mxu0 0
        %3143 = vmatpush1.bf16.msra.mxu0 %v3074
        %3144 = vmatprep.subr.bf16.mxu0 0
        %3145 = vmatpush1.bf16.msra.mxu0 %v3075
        %3146 = vmatprep.subr.bf16.mxu0 0
        %3147 = vmatpush1.bf16.msra.mxu0 %v3076
        %3148 = vmatprep.subr.bf16.mxu0 0
        %3149 = vmatpush1.bf16.msra.mxu0 %v3077
        %3150 = vmatprep.subr.bf16.mxu0 0
        %3151 = vmatpush1.bf16.msra.mxu0 %v3078
        %3152 = vmatprep.subr.bf16.mxu0 0
        %3153 = vmatpush1.bf16.msra.mxu0 %v3079
        %3154 = vmatprep.subr.bf16.mxu0 0
        %3155 = vmatpush1.bf16.msra.mxu0 %v3080
        %3156 = vmatprep.subr.bf16.mxu0 0
        %3157 = vmatpush1.bf16.msra.mxu0 0
        %3158 = vmatprep.subr.bf16.mxu0 0
        %3159 = vmatpush1.bf16.msra.mxu0 0
        %3160 = vmatprep.subr.bf16.mxu0 0
        %3161 = vmatpush1.bf16.msra.mxu0 0
        %3162 = vmatprep.subr.bf16.mxu0 0
        %3163 = vmatpush1.bf16.msra.mxu0 0
        %3164 = vmatprep.subr.bf16.mxu0 0
        %3165 = vmatpush1.bf16.msra.mxu0 0
        %3166 = vmatprep.subr.bf16.mxu0 0
        %3167 = vmatpush1.bf16.msra.mxu0 0
        %3168 = vmatprep.subr.bf16.mxu0 0
        %3169 = vmatpush1.bf16.msra.mxu0 0
        %3170 = vmatprep.mubr.bf16.mxu0 %v3091
        %3171 = vmatmul.mubr.bf16.gmra.mrb[0].mxu0 %v2971
        %v3172 = vpop.f32.mrb[0].mxu0
        %v3173 = vadd.f32 0.0, %v3172
        %v3174 = vpop.f32.mrb[0].mxu0
        %v3175 = vpop.f32.mrb[0].mxu0
        %v3176 = vadd.f32 0.0, %v3175
        %v3177 = vpop.f32.mrb[0].mxu0
        %3178 = vmatprep.mubr.bf16.mxu0 %v3094
        %3179 = vmatmul.mubr.bf16.gmra.mrb[0].mxu0 %v2974
        %v3180 = vpop.f32.mrb[0].mxu0
        %v3181 = vadd.f32 0.0, %v3180
        %v3182 = vpop.f32.mrb[0].mxu0
        %v3183 = vpop.f32.mrb[0].mxu0
        %v3184 = vadd.f32 0.0, %v3183
        %v3185 = vpop.f32.mrb[0].mxu0
        %3186 = vmatprep.mubr.bf16.mxu0 %v3097
        %3187 = vmatmul.mubr.bf16.gmra.mrb[0].mxu0 %v2977
        %v3188 = vpop.f32.mrb[0].mxu0
        %v3189 = vadd.f32 0.0, %v3188
        %v3190 = vpop.f32.mrb[0].mxu0
        %v3191 = vpop.f32.mrb[0].mxu0
        %v3192 = vadd.f32 0.0, %v3191
        %v3193 = vpop.f32.mrb[0].mxu0
        %3194 = vmatprep.mubr.bf16.mxu0 %v3100
        %3195 = vmatmul.mubr.bf16.gmra.mrb[0].mxu0 %v2980
        %v3196 = vpop.f32.mrb[0].mxu0
        %v3197 = vadd.f32 0.0, %v3196
        %v3198 = vpop.f32.mrb[0].mxu0
        %v3199 = vpop.f32.mrb[0].mxu0
        %v3200 = vadd.f32 0.0, %v3199
        %v3201 = vpop.f32.mrb[0].mxu0
        %3202 = vmatprep.mubr.bf16.mxu0 %v3103
        %3203 = vmatmul.mubr.bf16.gmra.mrb[0].mxu0 %v2983
        %v3204 = vpop.f32.mrb[0].mxu0
        %v3205 = vadd.f32 0.0, %v3204
        %v3206 = vpop.f32.mrb[0].mxu0
        %v3207 = vpop.f32.mrb[0].mxu0
        %v3208 = vadd.f32 0.0, %v3207
        %v3209 = vpop.f32.mrb[0].mxu0
        %3210 = vmatprep.mubr.bf16.mxu0 %v3106
        %3211 = vmatmul.mubr.bf16.gmra.mrb[0].mxu0 %v2986
        %v3212 = vpop.f32.mrb[0].mxu0
        %v3213 = vadd.f32 0.0, %v3212
        %v3214 = vpop.f32.mrb[0].mxu0
        %v3215 = vpop.f32.mrb[0].mxu0
        %v3216 = vadd.f32 0.0, %v3215
        %v3217 = vpop.f32.mrb[0].mxu0
        %3218 = vmatprep.mubr.bf16.mxu0 %v3109
        %3219 = vmatmul.mubr.bf16.gmra.mrb[0].mxu0 %v2989
        %v3220 = vpop.f32.mrb[0].mxu0
        %v3221 = vadd.f32 0.0, %v3220
        %v3222 = vpop.f32.mrb[0].mxu0
        %v3223 = vpop.f32.mrb[0].mxu0
        %v3224 = vadd.f32 0.0, %v3223
        %v3225 = vpop.f32.mrb[0].mxu0
        %3226 = vmatprep.mubr.bf16.mxu0 %v3112
        %3227 = vmatmul.mubr.bf16.gmra.mrb[0].mxu0 %v2992
        %v3228 = vpop.f32.mrb[0].mxu0
        %v3229 = vadd.f32 0.0, %v3228
        %v3230 = vpop.f32.mrb[0].mxu0
        %v3231 = vpop.f32.mrb[0].mxu0
        %v3232 = vadd.f32 0.0, %v3231
        %v3233 = vpop.f32.mrb[0].mxu0
        %3234 = vmatprep.mubr.bf16.mxu0 %v3115
        %3235 = vmatmul.mubr.bf16.gmra.mrb[0].mxu0 %v2995
        %v3236 = vpop.f32.mrb[0].mxu0
        %v3237 = vadd.f32 0.0, %v3236
        %v3238 = vpop.f32.mrb[0].mxu0
        %v3239 = vpop.f32.mrb[0].mxu0
        %v3240 = vadd.f32 0.0, %v3239
        %v3241 = vpop.f32.mrb[0].mxu0
        %3242 = vmatprep.mubr.bf16.mxu0 %v3118
        %3243 = vmatmul.mubr.bf16.gmra.mrb[0].mxu0 %v2998
        %v3244 = vpop.f32.mrb[0].mxu0
        %v3245 = vadd.f32 0.0, %v3244
        %v3246 = vpop.f32.mrb[0].mxu0
        %v3247 = vpop.f32.mrb[0].mxu0
        %v3248 = vadd.f32 0.0, %v3247
        %v3249 = vpop.f32.mrb[0].mxu0
        %3250 = vmatprep.mubr.bf16.mxu0 %v3121
        %3251 = vmatmul.mubr.bf16.gmra.mrb[0].mxu0 %v3001
        %v3252 = vpop.f32.mrb[0].mxu0
        %v3253 = vadd.f32 0.0, %v3252
        %v3254 = vpop.f32.mrb[0].mxu0
        %v3255 = vpop.f32.mrb[0].mxu0
        %v3256 = vadd.f32 0.0, %v3255
        %v3257 = vpop.f32.mrb[0].mxu0
        %3258 = vmatprep.mubr.bf16.mxu0 %v3124
        %3259 = vmatmul.mubr.bf16.gmra.mrb[0].mxu0 %v3004
        %v3260 = vpop.f32.mrb[0].mxu0
        %v3261 = vadd.f32 0.0, %v3260
        %v3262 = vpop.f32.mrb[0].mxu0
        %v3263 = vpop.f32.mrb[0].mxu0
        %v3264 = vadd.f32 0.0, %v3263
        %v3265 = vpop.f32.mrb[0].mxu0
        %3266 = vmatprep.mubr.bf16.mxu0 %v3127
        %3267 = vmatmul.mubr.bf16.gmra.mrb[0].mxu0 %v3007
        %v3268 = vpop.f32.mrb[0].mxu0
        %v3269 = vadd.f32 0.0, %v3268
        %v3270 = vpop.f32.mrb[0].mxu0
        %v3271 = vpop.f32.mrb[0].mxu0
        %v3272 = vadd.f32 0.0, %v3271
        %v3273 = vpop.f32.mrb[0].mxu0
        %3274 = vmatprep.mubr.bf16.mxu0 %v3130
        %3275 = vmatmul.mubr.bf16.gmra.mrb[0].mxu0 %v3010
        %v3276 = vpop.f32.mrb[0].mxu0
        %v3277 = vadd.f32 0.0, %v3276
        %v3278 = vpop.f32.mrb[0].mxu0
        %v3279 = vpop.f32.mrb[0].mxu0
        %v3280 = vadd.f32 0.0, %v3279
        %v3281 = vpop.f32.mrb[0].mxu0
        %3282 = vmatprep.mubr.bf16.mxu0 %v3133
        %3283 = vmatmul.mubr.bf16.gmra.mrb[0].mxu0 %v3013
        %v3284 = vpop.f32.mrb[0].mxu0
        %v3285 = vadd.f32 0.0, %v3284
        %v3286 = vpop.f32.mrb[0].mxu0
        %v3287 = vpop.f32.mrb[0].mxu0
        %v3288 = vadd.f32 0.0, %v3287
        %v3289 = vpop.f32.mrb[0].mxu0
        %3290 = vmatprep.mubr.bf16.mxu0 %v3136
        %3291 = vmatmul.mubr.bf16.gmra.mrb[0].mxu0 %v3016
        %v3292 = vpop.f32.mrb[0].mxu0
        %v3293 = vadd.f32 0.0, %v3292
        %v3294 = vpop.f32.mrb[0].mxu0
        %v3295 = vpop.f32.mrb[0].mxu0
        %v3296 = vadd.f32 0.0, %v3295
        %v3297 = vpop.f32.mrb[0].mxu0
        %3298 = vdwg.mxu0
        %v3299 = vld [vmem:[%s2] sm:$0x1]
        %v3301 = vlaneseq
        %v3302 = vshrl.u32 %v3301, 7
        %v3303 = vsub.s32 0, %v3302
        %v3304 = vrot.slane %v3299, %v3303
        %v3306 = vmul.f32 %v3173, %v3304
        %v3307 = vmul.f32 %v3176, %v3304
        %v3308 = vmul.f32 %v3181, %v3304
        %v3309 = vmul.f32 %v3184, %v3304
        %v3310 = vmul.f32 %v3189, %v3304
        %v3311 = vmul.f32 %v3192, %v3304
        %v3312 = vmul.f32 %v3197, %v3304
        %v3313 = vmul.f32 %v3200, %v3304
        %v3314 = vmul.f32 %v3205, %v3304
        %v3315 = vmul.f32 %v3208, %v3304
        %v3316 = vmul.f32 %v3213, %v3304
        %v3317 = vmul.f32 %v3216, %v3304
        %v3318 = vmul.f32 %v3221, %v3304
        %v3319 = vmul.f32 %v3224, %v3304
        %v3320 = vmul.f32 %v3229, %v3304
        %v3321 = vmul.f32 %v3232, %v3304
        %v3322 = vmul.f32 %v3237, %v3304
        %v3323 = vmul.f32 %v3240, %v3304
        %v3324 = vmul.f32 %v3245, %v3304
        %v3325 = vmul.f32 %v3248, %v3304
        %v3326 = vmul.f32 %v3253, %v3304
        %v3327 = vmul.f32 %v3256, %v3304
        %v3328 = vmul.f32 %v3261, %v3304
        %v3329 = vmul.f32 %v3264, %v3304
        %v3330 = vmul.f32 %v3269, %v3304
        %v3331 = vmul.f32 %v3272, %v3304
        %v3332 = vmul.f32 %v3277, %v3304
        %v3333 = vmul.f32 %v3280, %v3304
        %v3334 = vmul.f32 %v3285, %v3304
        %v3335 = vmul.f32 %v3288, %v3304
        %v3336 = vmul.f32 %v3293, %v3304
        %v3337 = vmul.f32 %v3296, %v3304
        %v3338 = vld [vmem:[%s3] sm:$0x1]
        %v3340 = vlaneseq
        %v3341 = vshrl.u32 %v3340, 7
        %v3342 = vsub.s32 0, %v3341
        %v3343 = vrot.slane %v3338, %v3342
        %v3345 = vadd.f32 %v3306, %v3343
        %v3346 = vadd.f32 %v3307, %v3343
        %v3347 = vadd.f32 %v3308, %v3343
        %v3348 = vadd.f32 %v3309, %v3343
        %v3349 = vadd.f32 %v3310, %v3343
        %v3350 = vadd.f32 %v3311, %v3343
        %v3351 = vadd.f32 %v3312, %v3343
        %v3352 = vadd.f32 %v3313, %v3343
        %v3353 = vadd.f32 %v3314, %v3343
        %v3354 = vadd.f32 %v3315, %v3343
        %v3355 = vadd.f32 %v3316, %v3343
        %v3356 = vadd.f32 %v3317, %v3343
        %v3357 = vadd.f32 %v3318, %v3343
        %v3358 = vadd.f32 %v3319, %v3343
        %v3359 = vadd.f32 %v3320, %v3343
        %v3360 = vadd.f32 %v3321, %v3343
        %v3361 = vadd.f32 %v3322, %v3343
        %v3362 = vadd.f32 %v3323, %v3343
        %v3363 = vadd.f32 %v3324, %v3343
        %v3364 = vadd.f32 %v3325, %v3343
        %v3365 = vadd.f32 %v3326, %v3343
        %v3366 = vadd.f32 %v3327, %v3343
        %v3367 = vadd.f32 %v3328, %v3343
        %v3368 = vadd.f32 %v3329, %v3343
        %v3369 = vadd.f32 %v3330, %v3343
        %v3370 = vadd.f32 %v3331, %v3343
        %v3371 = vadd.f32 %v3332, %v3343
        %v3372 = vadd.f32 %v3333, %v3343
        %v3373 = vadd.f32 %v3334, %v3343
        %v3374 = vadd.f32 %v3335, %v3343
        %v3375 = vadd.f32 %v3336, %v3343
        %v3376 = vadd.f32 %v3337, %v3343
        %v3377 = vmax.f32 %v3345, 0.0
        %v3378 = vmax.f32 %v3346, 0.0
        %v3379 = vmax.f32 %v3347, 0.0
        %v3380 = vmax.f32 %v3348, 0.0
        %v3381 = vmax.f32 %v3349, 0.0
        %v3382 = vmax.f32 %v3350, 0.0
        %v3383 = vmax.f32 %v3351, 0.0
        %v3384 = vmax.f32 %v3352, 0.0
        %v3385 = vmax.f32 %v3353, 0.0
        %v3386 = vmax.f32 %v3354, 0.0
        %v3387 = vmax.f32 %v3355, 0.0
        %v3388 = vmax.f32 %v3356, 0.0
        %v3389 = vmax.f32 %v3357, 0.0
        %v3390 = vmax.f32 %v3358, 0.0
        %v3391 = vmax.f32 %v3359, 0.0
        %v3392 = vmax.f32 %v3360, 0.0
        %v3393 = vmax.f32 %v3361, 0.0
        %v3394 = vmax.f32 %v3362, 0.0
        %v3395 = vmax.f32 %v3363, 0.0
        %v3396 = vmax.f32 %v3364, 0.0
        %v3397 = vmax.f32 %v3365, 0.0
        %v3398 = vmax.f32 %v3366, 0.0
        %v3399 = vmax.f32 %v3367, 0.0
        %v3400 = vmax.f32 %v3368, 0.0
        %v3401 = vmax.f32 %v3369, 0.0
        %v3402 = vmax.f32 %v3370, 0.0
        %v3403 = vmax.f32 %v3371, 0.0
        %v3404 = vmax.f32 %v3372, 0.0
        %v3405 = vmax.f32 %v3373, 0.0
        %v3406 = vmax.f32 %v3374, 0.0
        %v3407 = vmax.f32 %v3375, 0.0
        %v3408 = vmax.f32 %v3376, 0.0
        %vm3409 = vcmask 257024
        %3410 = vst.msk [vmem:[#allocation3] sm:$0xf] %vm3409, 0
        %3411 = vst.msk [vmem:[#allocation3 + $0x4] sm:$0xf] %vm3409, 0
        %vm3412 = vcmask 253952
        %3413 = vst.msk [vmem:[#allocation3 + $0x8] sm:$0x1] %vm3412, 0
        %s3414 = scalar_lea.vmem [#allocation3], 204
        %3415 = vst.msk [vmem:[%s3414] sm:$0xf] %vm3409, 0
        %3416 = vst.msk [vmem:[%s3414 + $0x4] sm:$0xf] %vm3409, 0
        %3417 = vst.msk [vmem:[%s3414 + $0x8] sm:$0x1] %vm3412, 0
        %vm3418 = vcmask 253952
        %vm3419 = vmand %vm3418, %vm459
        %v3420 = vld [vmem:[#allocation3] sm:$0x1]
        %v3421 = vsel %vm3419, 0, %v3420
        %3422 = vst [vmem:[#allocation3] sm:$0x1] %v3421
        %v3423 = vld [vmem:[#allocation3 + $0xc] sm:$0x1]
        %v3424 = vsel %vm3419, 0, %v3423
        %3425 = vst [vmem:[#allocation3 + $0xc] sm:$0x1] %v3424
        %v3426 = vld [vmem:[#allocation3 + $0x18] sm:$0x1]
        %v3427 = vsel %vm3419, 0, %v3426
        %3428 = vst [vmem:[#allocation3 + $0x18] sm:$0x1] %v3427
        %v3429 = vld [vmem:[#allocation3 + $0x24] sm:$0x1]
        %v3430 = vsel %vm3419, 0, %v3429
        %3431 = vst [vmem:[#allocation3 + $0x24] sm:$0x1] %v3430
        %v3432 = vld [vmem:[#allocation3 + $0x30] sm:$0x1]
        %v3433 = vsel %vm3419, 0, %v3432
        %3434 = vst [vmem:[#allocation3 + $0x30] sm:$0x1] %v3433
        %v3435 = vld [vmem:[#allocation3 + $0x3c] sm:$0x1]
        %v3436 = vsel %vm3419, 0, %v3435
        %3437 = vst [vmem:[#allocation3 + $0x3c] sm:$0x1] %v3436
        %v3438 = vld [vmem:[#allocation3 + $0x48] sm:$0x1]
        %v3439 = vsel %vm3419, 0, %v3438
        %3440 = vst [vmem:[#allocation3 + $0x48] sm:$0x1] %v3439
        %v3441 = vld [vmem:[#allocation3 + $0x54] sm:$0x1]
        %v3442 = vsel %vm3419, 0, %v3441
        %3443 = vst [vmem:[#allocation3 + $0x54] sm:$0x1] %v3442
        %v3444 = vld [vmem:[#allocation3 + $0x60] sm:$0x1]
        %v3445 = vsel %vm3419, 0, %v3444
        %3446 = vst [vmem:[#allocation3 + $0x60] sm:$0x1] %v3445
        %v3447 = vld [vmem:[#allocation3 + $0x6c] sm:$0x1]
        %v3448 = vsel %vm3419, 0, %v3447
        %3449 = vst [vmem:[#allocation3 + $0x6c] sm:$0x1] %v3448
        %v3450 = vld [vmem:[#allocation3 + $0x78] sm:$0x1]
        %v3451 = vsel %vm3419, 0, %v3450
        %3452 = vst [vmem:[#allocation3 + $0x78] sm:$0x1] %v3451
        %v3453 = vld [vmem:[#allocation3 + $0x84] sm:$0x1]
        %v3454 = vsel %vm3419, 0, %v3453
        %3455 = vst [vmem:[#allocation3 + $0x84] sm:$0x1] %v3454
        %v3456 = vld [vmem:[#allocation3 + $0x90] sm:$0x1]
        %v3457 = vsel %vm3419, 0, %v3456
        %3458 = vst [vmem:[#allocation3 + $0x90] sm:$0x1] %v3457
        %v3459 = vld [vmem:[#allocation3 + $0x9c] sm:$0x1]
        %v3460 = vsel %vm3419, 0, %v3459
        %3461 = vst [vmem:[#allocation3 + $0x9c] sm:$0x1] %v3460
        %v3462 = vld [vmem:[#allocation3 + $0xa8] sm:$0x1]
        %v3463 = vsel %vm3419, 0, %v3462
        %3464 = vst [vmem:[#allocation3 + $0xa8] sm:$0x1] %v3463
        %v3465 = vld [vmem:[#allocation3 + $0xb4] sm:$0x1]
        %v3466 = vsel %vm3419, 0, %v3465
        %3467 = vst [vmem:[#allocation3 + $0xb4] sm:$0x1] %v3466
        %v3468 = vld [vmem:[#allocation3 + $0xc0] sm:$0x1]
        %v3469 = vsel %vm3419, 0, %v3468
        %3470 = vst [vmem:[#allocation3 + $0xc0] sm:$0x1] %v3469
        %v3471 = vld [vmem:[#allocation3 + $0xcc] sm:$0x1]
        %v3472 = vsel %vm3419, 0, %v3471
        %3473 = vst [vmem:[#allocation3 + $0xcc] sm:$0x1] %v3472
        %vm3474 = vmand %vm3418, %vm515
        %v3475 = vld [vmem:[#allocation3 + $0x8] sm:$0x1]
        %v3476 = vsel %vm3474, 0, %v3475
        %3477 = vst [vmem:[#allocation3 + $0x8] sm:$0x1] %v3476
        %v3478 = vld [vmem:[#allocation3 + $0x14] sm:$0x1]
        %v3479 = vsel %vm3474, 0, %v3478
        %3480 = vst [vmem:[#allocation3 + $0x14] sm:$0x1] %v3479
        %v3481 = vld [vmem:[#allocation3 + $0x20] sm:$0x1]
        %v3482 = vsel %vm3474, 0, %v3481
        %3483 = vst [vmem:[#allocation3 + $0x20] sm:$0x1] %v3482
        %v3484 = vld [vmem:[#allocation3 + $0x2c] sm:$0x1]
        %v3485 = vsel %vm3474, 0, %v3484
        %3486 = vst [vmem:[#allocation3 + $0x2c] sm:$0x1] %v3485
        %v3487 = vld [vmem:[#allocation3 + $0x38] sm:$0x1]
        %v3488 = vsel %vm3474, 0, %v3487
        %3489 = vst [vmem:[#allocation3 + $0x38] sm:$0x1] %v3488
        %v3490 = vld [vmem:[#allocation3 + $0x44] sm:$0x1]
        %v3491 = vsel %vm3474, 0, %v3490
        %3492 = vst [vmem:[#allocation3 + $0x44] sm:$0x1] %v3491
        %v3493 = vld [vmem:[#allocation3 + $0x50] sm:$0x1]
        %v3494 = vsel %vm3474, 0, %v3493
        %3495 = vst [vmem:[#allocation3 + $0x50] sm:$0x1] %v3494
        %v3496 = vld [vmem:[#allocation3 + $0x5c] sm:$0x1]
        %v3497 = vsel %vm3474, 0, %v3496
        %3498 = vst [vmem:[#allocation3 + $0x5c] sm:$0x1] %v3497
        %v3499 = vld [vmem:[#allocation3 + $0x68] sm:$0x1]
        %v3500 = vsel %vm3474, 0, %v3499
        %3501 = vst [vmem:[#allocation3 + $0x68] sm:$0x1] %v3500
        %v3502 = vld [vmem:[#allocation3 + $0x74] sm:$0x1]
        %v3503 = vsel %vm3474, 0, %v3502
        %3504 = vst [vmem:[#allocation3 + $0x74] sm:$0x1] %v3503
        %v3505 = vld [vmem:[#allocation3 + $0x80] sm:$0x1]
        %v3506 = vsel %vm3474, 0, %v3505
        %3507 = vst [vmem:[#allocation3 + $0x80] sm:$0x1] %v3506
        %v3508 = vld [vmem:[#allocation3 + $0x8c] sm:$0x1]
        %v3509 = vsel %vm3474, 0, %v3508
        %3510 = vst [vmem:[#allocation3 + $0x8c] sm:$0x1] %v3509
        %v3511 = vld [vmem:[#allocation3 + $0x98] sm:$0x1]
        %v3512 = vsel %vm3474, 0, %v3511
        %3513 = vst [vmem:[#allocation3 + $0x98] sm:$0x1] %v3512
        %v3514 = vld [vmem:[#allocation3 + $0xa4] sm:$0x1]
        %v3515 = vsel %vm3474, 0, %v3514
        %3516 = vst [vmem:[#allocation3 + $0xa4] sm:$0x1] %v3515
        %v3517 = vld [vmem:[#allocation3 + $0xb0] sm:$0x1]
        %v3518 = vsel %vm3474, 0, %v3517
        %3519 = vst [vmem:[#allocation3 + $0xb0] sm:$0x1] %v3518
        %v3520 = vld [vmem:[#allocation3 + $0xbc] sm:$0x1]
        %v3521 = vsel %vm3474, 0, %v3520
        %3522 = vst [vmem:[#allocation3 + $0xbc] sm:$0x1] %v3521
        %v3523 = vld [vmem:[#allocation3 + $0xc8] sm:$0x1]
        %v3524 = vsel %vm3474, 0, %v3523
        %3525 = vst [vmem:[#allocation3 + $0xc8] sm:$0x1] %v3524
        %v3526 = vld [vmem:[#allocation3 + $0xd4] sm:$0x1]
        %v3527 = vsel %vm3474, 0, %v3526
        %3528 = vst [vmem:[#allocation3 + $0xd4] sm:$0x1] %v3527
        %v3529 = vpack.c.bf16 %v3378, %v3377
        %v3530 = vpack.c.bf16 %v3380, %v3379
        %v3531 = vpack.c.bf16 %v3382, %v3381
        %v3532 = vpack.c.bf16 %v3384, %v3383
        %v3533 = vpack.c.bf16 %v3386, %v3385
        %v3534 = vpack.c.bf16 %v3388, %v3387
        %v3535 = vpack.c.bf16 %v3390, %v3389
        %v3536 = vpack.c.bf16 %v3392, %v3391
        %v3537 = vpack.c.bf16 %v3394, %v3393
        %v3538 = vpack.c.bf16 %v3396, %v3395
        %v3539 = vpack.c.bf16 %v3398, %v3397
        %v3540 = vpack.c.bf16 %v3400, %v3399
        %v3541 = vpack.c.bf16 %v3402, %v3401
        %v3542 = vpack.c.bf16 %v3404, %v3403
        %v3543 = vpack.c.bf16 %v3406, %v3405
        %v3544 = vpack.c.bf16 %v3408, %v3407
        %v3561 = vunpack.c.l.b16 %v3529
        %v3562 = vunpack.c.h.b16 %v3529
        %v3563 = vunpack.c.l.b16 %v3530
        %v3564 = vunpack.c.h.b16 %v3530
        %v3565 = vunpack.c.l.b16 %v3531
        %v3566 = vunpack.c.h.b16 %v3531
        %v3567 = vunpack.c.l.b16 %v3532
        %v3568 = vunpack.c.h.b16 %v3532
        %v3569 = vunpack.c.l.b16 %v3533
        %v3570 = vunpack.c.h.b16 %v3533
        %v3571 = vunpack.c.l.b16 %v3534
        %v3572 = vunpack.c.h.b16 %v3534
        %v3573 = vunpack.c.l.b16 %v3535
        %v3574 = vunpack.c.h.b16 %v3535
        %v3575 = vunpack.c.l.b16 %v3536
        %v3576 = vunpack.c.h.b16 %v3536
        %v3577 = vunpack.c.l.b16 %v3537
        %v3578 = vunpack.c.h.b16 %v3537
        %v3579 = vunpack.c.l.b16 %v3538
        %v3580 = vunpack.c.h.b16 %v3538
        %v3581 = vunpack.c.l.b16 %v3539
        %v3582 = vunpack.c.h.b16 %v3539
        %v3583 = vunpack.c.l.b16 %v3540
        %v3584 = vunpack.c.h.b16 %v3540
        %v3585 = vunpack.c.l.b16 %v3541
        %v3586 = vunpack.c.h.b16 %v3541
        %v3587 = vunpack.c.l.b16 %v3542
        %v3588 = vunpack.c.h.b16 %v3542
        %v3589 = vunpack.c.l.b16 %v3543
        %v3590 = vunpack.c.h.b16 %v3543
        %v3591 = vunpack.c.l.b16 %v3544
        %v3592 = vunpack.c.h.b16 %v3544
        %v3593 = vpack.c.b16 %v3561, %v3561
        %v3594 = vpack.c.b16 %v3562, %v3562
        %v3595 = vpack.c.b16 %v3563, %v3563
        %v3596 = vpack.c.b16 %v3564, %v3564
        %v3597 = vpack.c.b16 %v3565, %v3565
        %v3598 = vpack.c.b16 %v3566, %v3566
        %v3599 = vpack.c.b16 %v3567, %v3567
        %v3600 = vpack.c.b16 %v3568, %v3568
        %v3601 = vpack.c.b16 %v3569, %v3569
        %v3602 = vpack.c.b16 %v3570, %v3570
        %v3603 = vpack.c.b16 %v3571, %v3571
        %v3604 = vpack.c.b16 %v3572, %v3572
        %v3605 = vpack.c.b16 %v3573, %v3573
        %v3606 = vpack.c.b16 %v3574, %v3574
        %v3607 = vpack.c.b16 %v3575, %v3575
        %v3608 = vpack.c.b16 %v3576, %v3576
        %v3609 = vpack.c.b16 %v3577, %v3577
        %v3610 = vpack.c.b16 %v3578, %v3578
        %v3611 = vpack.c.b16 %v3579, %v3579
        %v3612 = vpack.c.b16 %v3580, %v3580
        %v3613 = vpack.c.b16 %v3581, %v3581
        %v3614 = vpack.c.b16 %v3582, %v3582
        %v3615 = vpack.c.b16 %v3583, %v3583
        %v3616 = vpack.c.b16 %v3584, %v3584
        %v3617 = vpack.c.b16 %v3585, %v3585
        %v3618 = vpack.c.b16 %v3586, %v3586
        %v3619 = vpack.c.b16 %v3587, %v3587
        %v3620 = vpack.c.b16 %v3588, %v3588
        %v3621 = vpack.c.b16 %v3589, %v3589
        %v3622 = vpack.c.b16 %v3590, %v3590
        %v3623 = vpack.c.b16 %v3591, %v3591
        %v3624 = vpack.c.b16 %v3592, %v3592
        %v3626 = vshrl.u32 %v3593, 16
        %v3628 = vrot.slane %v3626, 7
        %v3629 = vshll.u32 %v3593, 16
        %v3631 = vor.u32 %v3628, %v3629
        %v3632 = vrot.slane %v3628, 4
        %v3634 = vshrl.u32 %v3594, 16
        %v3636 = vrot.slane %v3634, 7
        %v3637 = vshll.u32 %v3594, 16
        %v3639 = vor.u32 %v3636, %v3637
        %v3640 = vsel %vm668, %v3632, %v3639
        %v3641 = vrot.slane %v3636, 4
        %v3643 = vshrl.u32 %v3595, 16
        %v3645 = vrot.slane %v3643, 7
        %v3646 = vshll.u32 %v3595, 16
        %v3648 = vor.u32 %v3645, %v3646
        %v3649 = vrot.slane %v3645, 4
        %v3651 = vshrl.u32 %v3596, 16
        %v3653 = vrot.slane %v3651, 7
        %v3654 = vshll.u32 %v3596, 16
        %v3656 = vor.u32 %v3653, %v3654
        %v3657 = vsel %vm668, %v3649, %v3656
        %v3658 = vrot.slane %v3653, 4
        %v3660 = vshrl.u32 %v3597, 16
        %v3662 = vrot.slane %v3660, 7
        %v3663 = vshll.u32 %v3597, 16
        %v3665 = vor.u32 %v3662, %v3663
        %v3666 = vrot.slane %v3662, 4
        %v3668 = vshrl.u32 %v3598, 16
        %v3670 = vrot.slane %v3668, 7
        %v3671 = vshll.u32 %v3598, 16
        %v3673 = vor.u32 %v3670, %v3671
        %v3674 = vsel %vm668, %v3666, %v3673
        %v3675 = vrot.slane %v3670, 4
        %v3677 = vshrl.u32 %v3599, 16
        %v3679 = vrot.slane %v3677, 7
        %v3680 = vshll.u32 %v3599, 16
        %v3682 = vor.u32 %v3679, %v3680
        %v3683 = vrot.slane %v3679, 4
        %v3685 = vshrl.u32 %v3600, 16
        %v3687 = vrot.slane %v3685, 7
        %v3688 = vshll.u32 %v3600, 16
        %v3690 = vor.u32 %v3687, %v3688
        %v3691 = vsel %vm668, %v3683, %v3690
        %v3692 = vrot.slane %v3687, 4
        %v3694 = vshrl.u32 %v3601, 16
        %v3696 = vrot.slane %v3694, 7
        %v3697 = vshll.u32 %v3601, 16
        %v3699 = vor.u32 %v3696, %v3697
        %v3700 = vrot.slane %v3696, 4
        %v3702 = vshrl.u32 %v3602, 16
        %v3704 = vrot.slane %v3702, 7
        %v3705 = vshll.u32 %v3602, 16
        %v3707 = vor.u32 %v3704, %v3705
        %v3708 = vsel %vm668, %v3700, %v3707
        %v3709 = vrot.slane %v3704, 4
        %v3711 = vshrl.u32 %v3603, 16
        %v3713 = vrot.slane %v3711, 7
        %v3714 = vshll.u32 %v3603, 16
        %v3716 = vor.u32 %v3713, %v3714
        %v3717 = vrot.slane %v3713, 4
        %v3719 = vshrl.u32 %v3604, 16
        %v3721 = vrot.slane %v3719, 7
        %v3722 = vshll.u32 %v3604, 16
        %v3724 = vor.u32 %v3721, %v3722
        %v3725 = vsel %vm668, %v3717, %v3724
        %v3726 = vrot.slane %v3721, 4
        %v3728 = vshrl.u32 %v3605, 16
        %v3730 = vrot.slane %v3728, 7
        %v3731 = vshll.u32 %v3605, 16
        %v3733 = vor.u32 %v3730, %v3731
        %v3734 = vrot.slane %v3730, 4
        %v3736 = vshrl.u32 %v3606, 16
        %v3738 = vrot.slane %v3736, 7
        %v3739 = vshll.u32 %v3606, 16
        %v3741 = vor.u32 %v3738, %v3739
        %v3742 = vsel %vm668, %v3734, %v3741
        %v3743 = vrot.slane %v3738, 4
        %v3745 = vshrl.u32 %v3607, 16
        %v3747 = vrot.slane %v3745, 7
        %v3748 = vshll.u32 %v3607, 16
        %v3750 = vor.u32 %v3747, %v3748
        %v3751 = vrot.slane %v3747, 4
        %v3753 = vshrl.u32 %v3608, 16
        %v3755 = vrot.slane %v3753, 7
        %v3756 = vshll.u32 %v3608, 16
        %v3758 = vor.u32 %v3755, %v3756
        %v3759 = vsel %vm668, %v3751, %v3758
        %v3760 = vrot.slane %v3755, 4
        %v3762 = vshrl.u32 %v3609, 16
        %v3764 = vrot.slane %v3762, 7
        %v3765 = vshll.u32 %v3609, 16
        %v3767 = vor.u32 %v3764, %v3765
        %v3768 = vrot.slane %v3764, 4
        %v3770 = vshrl.u32 %v3610, 16
        %v3772 = vrot.slane %v3770, 7
        %v3773 = vshll.u32 %v3610, 16
        %v3775 = vor.u32 %v3772, %v3773
        %v3776 = vsel %vm668, %v3768, %v3775
        %v3777 = vrot.slane %v3772, 4
        %v3779 = vshrl.u32 %v3611, 16
        %v3781 = vrot.slane %v3779, 7
        %v3782 = vshll.u32 %v3611, 16
        %v3784 = vor.u32 %v3781, %v3782
        %v3785 = vrot.slane %v3781, 4
        %v3787 = vshrl.u32 %v3612, 16
        %v3789 = vrot.slane %v3787, 7
        %v3790 = vshll.u32 %v3612, 16
        %v3792 = vor.u32 %v3789, %v3790
        %v3793 = vsel %vm668, %v3785, %v3792
        %v3794 = vrot.slane %v3789, 4
        %v3796 = vshrl.u32 %v3613, 16
        %v3798 = vrot.slane %v3796, 7
        %v3799 = vshll.u32 %v3613, 16
        %v3801 = vor.u32 %v3798, %v3799
        %v3802 = vrot.slane %v3798, 4
        %v3804 = vshrl.u32 %v3614, 16
        %v3806 = vrot.slane %v3804, 7
        %v3807 = vshll.u32 %v3614, 16
        %v3809 = vor.u32 %v3806, %v3807
        %v3810 = vsel %vm668, %v3802, %v3809
        %v3811 = vrot.slane %v3806, 4
        %v3813 = vshrl.u32 %v3615, 16
        %v3815 = vrot.slane %v3813, 7
        %v3816 = vshll.u32 %v3615, 16
        %v3818 = vor.u32 %v3815, %v3816
        %v3819 = vrot.slane %v3815, 4
        %v3821 = vshrl.u32 %v3616, 16
        %v3823 = vrot.slane %v3821, 7
        %v3824 = vshll.u32 %v3616, 16
        %v3826 = vor.u32 %v3823, %v3824
        %v3827 = vsel %vm668, %v3819, %v3826
        %v3828 = vrot.slane %v3823, 4
        %v3830 = vshrl.u32 %v3617, 16
        %v3832 = vrot.slane %v3830, 7
        %v3833 = vshll.u32 %v3617, 16
        %v3835 = vor.u32 %v3832, %v3833
        %v3836 = vrot.slane %v3832, 4
        %v3838 = vshrl.u32 %v3618, 16
        %v3840 = vrot.slane %v3838, 7
        %v3841 = vshll.u32 %v3618, 16
        %v3843 = vor.u32 %v3840, %v3841
        %v3844 = vsel %vm668, %v3836, %v3843
        %v3845 = vrot.slane %v3840, 4
        %v3847 = vshrl.u32 %v3619, 16
        %v3849 = vrot.slane %v3847, 7
        %v3850 = vshll.u32 %v3619, 16
        %v3852 = vor.u32 %v3849, %v3850
        %v3853 = vrot.slane %v3849, 4
        %v3855 = vshrl.u32 %v3620, 16
        %v3857 = vrot.slane %v3855, 7
        %v3858 = vshll.u32 %v3620, 16
        %v3860 = vor.u32 %v3857, %v3858
        %v3861 = vsel %vm668, %v3853, %v3860
        %v3862 = vrot.slane %v3857, 4
        %v3864 = vshrl.u32 %v3621, 16
        %v3866 = vrot.slane %v3864, 7
        %v3867 = vshll.u32 %v3621, 16
        %v3869 = vor.u32 %v3866, %v3867
        %v3870 = vrot.slane %v3866, 4
        %v3872 = vshrl.u32 %v3622, 16
        %v3874 = vrot.slane %v3872, 7
        %v3875 = vshll.u32 %v3622, 16
        %v3877 = vor.u32 %v3874, %v3875
        %v3878 = vsel %vm668, %v3870, %v3877
        %v3879 = vrot.slane %v3874, 4
        %v3881 = vshrl.u32 %v3623, 16
        %v3883 = vrot.slane %v3881, 7
        %v3884 = vshll.u32 %v3623, 16
        %v3886 = vor.u32 %v3883, %v3884
        %v3887 = vrot.slane %v3883, 4
        %v3889 = vshrl.u32 %v3624, 16
        %v3891 = vrot.slane %v3889, 7
        %v3892 = vshll.u32 %v3624, 16
        %v3894 = vor.u32 %v3891, %v3892
        %v3895 = vsel %vm668, %v3887, %v3894
        %v3896 = vrot.slane %v3891, 4
        %s3945 = scalar_lea.vmem [#allocation3], 12
        %vm3946 = vcmask 257024
        %vm3947 = vmand %vm3946, %vm515
        %v3948 = vld [vmem:[%s3945] sm:$0xf]
        %v3949 = vsel %vm3947, %v3631, %v3948
        %3950 = vst [vmem:[%s3945] sm:$0xf] %v3949
        %3951 = vst.msk [vmem:[%s3945 + $0x4] sm:$0xf] %vm3409, %v3640
        %v3952 = vld [vmem:[%s3945 + $0x8] sm:$0x1]
        %v3953 = vsel %vm3419, %v3641, %v3952
        %3954 = vst [vmem:[%s3945 + $0x8] sm:$0x1] %v3953
        %v3955 = vld [vmem:[%s3945 + $0xc] sm:$0xf]
        %v3956 = vsel %vm3947, %v3648, %v3955
        %3957 = vst [vmem:[%s3945 + $0xc] sm:$0xf] %v3956
        %3958 = vst.msk [vmem:[%s3945 + $0x10] sm:$0xf] %vm3409, %v3657
        %v3959 = vld [vmem:[%s3945 + $0x14] sm:$0x1]
        %v3960 = vsel %vm3419, %v3658, %v3959
        %3961 = vst [vmem:[%s3945 + $0x14] sm:$0x1] %v3960
        %v3962 = vld [vmem:[%s3945 + $0x18] sm:$0xf]
        %v3963 = vsel %vm3947, %v3665, %v3962
        %3964 = vst [vmem:[%s3945 + $0x18] sm:$0xf] %v3963
        %3965 = vst.msk [vmem:[%s3945 + $0x1c] sm:$0xf] %vm3409, %v3674
        %v3966 = vld [vmem:[%s3945 + $0x20] sm:$0x1]
        %v3967 = vsel %vm3419, %v3675, %v3966
        %3968 = vst [vmem:[%s3945 + $0x20] sm:$0x1] %v3967
        %v3969 = vld [vmem:[%s3945 + $0x24] sm:$0xf]
        %v3970 = vsel %vm3947, %v3682, %v3969
        %3971 = vst [vmem:[%s3945 + $0x24] sm:$0xf] %v3970
        %3972 = vst.msk [vmem:[%s3945 + $0x28] sm:$0xf] %vm3409, %v3691
        %v3973 = vld [vmem:[%s3945 + $0x2c] sm:$0x1]
        %v3974 = vsel %vm3419, %v3692, %v3973
        %3975 = vst [vmem:[%s3945 + $0x2c] sm:$0x1] %v3974
        %v3976 = vld [vmem:[%s3945 + $0x30] sm:$0xf]
        %v3977 = vsel %vm3947, %v3699, %v3976
        %3978 = vst [vmem:[%s3945 + $0x30] sm:$0xf] %v3977
        %3979 = vst.msk [vmem:[%s3945 + $0x34] sm:$0xf] %vm3409, %v3708
        %v3980 = vld [vmem:[%s3945 + $0x38] sm:$0x1]
        %v3981 = vsel %vm3419, %v3709, %v3980
        %3982 = vst [vmem:[%s3945 + $0x38] sm:$0x1] %v3981
        %v3983 = vld [vmem:[%s3945 + $0x3c] sm:$0xf]
        %v3984 = vsel %vm3947, %v3716, %v3983
        %3985 = vst [vmem:[%s3945 + $0x3c] sm:$0xf] %v3984
        %3986 = vst.msk [vmem:[%s3945 + $0x40] sm:$0xf] %vm3409, %v3725
        %v3987 = vld [vmem:[%s3945 + $0x44] sm:$0x1]
        %v3988 = vsel %vm3419, %v3726, %v3987
        %3989 = vst [vmem:[%s3945 + $0x44] sm:$0x1] %v3988
        %v3990 = vld [vmem:[%s3945 + $0x48] sm:$0xf]
        %v3991 = vsel %vm3947, %v3733, %v3990
        %3992 = vst [vmem:[%s3945 + $0x48] sm:$0xf] %v3991
        %3993 = vst.msk [vmem:[%s3945 + $0x4c] sm:$0xf] %vm3409, %v3742
        %v3994 = vld [vmem:[%s3945 + $0x50] sm:$0x1]
        %v3995 = vsel %vm3419, %v3743, %v3994
        %3996 = vst [vmem:[%s3945 + $0x50] sm:$0x1] %v3995
        %v3997 = vld [vmem:[%s3945 + $0x54] sm:$0xf]
        %v3998 = vsel %vm3947, %v3750, %v3997
        %3999 = vst [vmem:[%s3945 + $0x54] sm:$0xf] %v3998
        %4000 = vst.msk [vmem:[%s3945 + $0x58] sm:$0xf] %vm3409, %v3759
        %v4001 = vld [vmem:[%s3945 + $0x5c] sm:$0x1]
        %v4002 = vsel %vm3419, %v3760, %v4001
        %4003 = vst [vmem:[%s3945 + $0x5c] sm:$0x1] %v4002
        %v4004 = vld [vmem:[%s3945 + $0x60] sm:$0xf]
        %v4005 = vsel %vm3947, %v3767, %v4004
        %4006 = vst [vmem:[%s3945 + $0x60] sm:$0xf] %v4005
        %4007 = vst.msk [vmem:[%s3945 + $0x64] sm:$0xf] %vm3409, %v3776
        %v4008 = vld [vmem:[%s3945 + $0x68] sm:$0x1]
        %v4009 = vsel %vm3419, %v3777, %v4008
        %4010 = vst [vmem:[%s3945 + $0x68] sm:$0x1] %v4009
        %v4011 = vld [vmem:[%s3945 + $0x6c] sm:$0xf]
        %v4012 = vsel %vm3947, %v3784, %v4011
        %4013 = vst [vmem:[%s3945 + $0x6c] sm:$0xf] %v4012
        %4014 = vst.msk [vmem:[%s3945 + $0x70] sm:$0xf] %vm3409, %v3793
        %v4015 = vld [vmem:[%s3945 + $0x74] sm:$0x1]
        %v4016 = vsel %vm3419, %v3794, %v4015
        %4017 = vst [vmem:[%s3945 + $0x74] sm:$0x1] %v4016
        %v4018 = vld [vmem:[%s3945 + $0x78] sm:$0xf]
        %v4019 = vsel %vm3947, %v3801, %v4018
        %4020 = vst [vmem:[%s3945 + $0x78] sm:$0xf] %v4019
        %4021 = vst.msk [vmem:[%s3945 + $0x7c] sm:$0xf] %vm3409, %v3810
        %v4022 = vld [vmem:[%s3945 + $0x80] sm:$0x1]
        %v4023 = vsel %vm3419, %v3811, %v4022
        %4024 = vst [vmem:[%s3945 + $0x80] sm:$0x1] %v4023
        %v4025 = vld [vmem:[%s3945 + $0x84] sm:$0xf]
        %v4026 = vsel %vm3947, %v3818, %v4025
        %4027 = vst [vmem:[%s3945 + $0x84] sm:$0xf] %v4026
        %4028 = vst.msk [vmem:[%s3945 + $0x88] sm:$0xf] %vm3409, %v3827
        %v4029 = vld [vmem:[%s3945 + $0x8c] sm:$0x1]
        %v4030 = vsel %vm3419, %v3828, %v4029
        %4031 = vst [vmem:[%s3945 + $0x8c] sm:$0x1] %v4030
        %v4032 = vld [vmem:[%s3945 + $0x90] sm:$0xf]
        %v4033 = vsel %vm3947, %v3835, %v4032
        %4034 = vst [vmem:[%s3945 + $0x90] sm:$0xf] %v4033
        %4035 = vst.msk [vmem:[%s3945 + $0x94] sm:$0xf] %vm3409, %v3844
        %v4036 = vld [vmem:[%s3945 + $0x98] sm:$0x1]
        %v4037 = vsel %vm3419, %v3845, %v4036
        %4038 = vst [vmem:[%s3945 + $0x98] sm:$0x1] %v4037
        %v4039 = vld [vmem:[%s3945 + $0x9c] sm:$0xf]
        %v4040 = vsel %vm3947, %v3852, %v4039
        %4041 = vst [vmem:[%s3945 + $0x9c] sm:$0xf] %v4040
        %4042 = vst.msk [vmem:[%s3945 + $0xa0] sm:$0xf] %vm3409, %v3861
        %v4043 = vld [vmem:[%s3945 + $0xa4] sm:$0x1]
        %v4044 = vsel %vm3419, %v3862, %v4043
        %4045 = vst [vmem:[%s3945 + $0xa4] sm:$0x1] %v4044
        %v4046 = vld [vmem:[%s3945 + $0xa8] sm:$0xf]
        %v4047 = vsel %vm3947, %v3869, %v4046
        %4048 = vst [vmem:[%s3945 + $0xa8] sm:$0xf] %v4047
        %4049 = vst.msk [vmem:[%s3945 + $0xac] sm:$0xf] %vm3409, %v3878
        %v4050 = vld [vmem:[%s3945 + $0xb0] sm:$0x1]
        %v4051 = vsel %vm3419, %v3879, %v4050
        %4052 = vst [vmem:[%s3945 + $0xb0] sm:$0x1] %v4051
        %v4053 = vld [vmem:[%s3945 + $0xb4] sm:$0xf]
        %v4054 = vsel %vm3947, %v3886, %v4053
        %4055 = vst [vmem:[%s3945 + $0xb4] sm:$0xf] %v4054
        %4056 = vst.msk [vmem:[%s3945 + $0xb8] sm:$0xf] %vm3409, %v3895
        %v4057 = vld [vmem:[%s3945 + $0xbc] sm:$0x1]
        %v4058 = vsel %vm3419, %v3896, %v4057
        %4059 = vst [vmem:[%s3945 + $0xbc] sm:$0x1] %v4058
        %v4060 = vld [vmem:[#allocation3] sm:$0xf]
        %v4061 = vld [vmem:[#allocation3 + $0x4] sm:$0xf]
        %v4062 = vld [vmem:[#allocation3 + $0xc] sm:$0xf]
        %v4063 = vld [vmem:[#allocation3 + $0x10] sm:$0xf]
        %v4064 = vld [vmem:[#allocation3 + $0x18] sm:$0xf]
        %v4065 = vld [vmem:[#allocation3 + $0x1c] sm:$0xf]
        %v4066 = vld [vmem:[#allocation3 + $0x24] sm:$0xf]
        %v4067 = vld [vmem:[#allocation3 + $0x28] sm:$0xf]
        %v4068 = vld [vmem:[#allocation3 + $0x30] sm:$0xf]
        %v4069 = vld [vmem:[#allocation3 + $0x34] sm:$0xf]
        %v4070 = vld [vmem:[#allocation3 + $0x3c] sm:$0xf]
        %v4071 = vld [vmem:[#allocation3 + $0x40] sm:$0xf]
        %v4072 = vld [vmem:[#allocation3 + $0x48] sm:$0xf]
        %v4073 = vld [vmem:[#allocation3 + $0x4c] sm:$0xf]
        %v4074 = vld [vmem:[#allocation3 + $0x54] sm:$0xf]
        %v4075 = vld [vmem:[#allocation3 + $0x58] sm:$0xf]
        %v4076 = vld [vmem:[#allocation3 + $0x60] sm:$0xf]
        %v4077 = vld [vmem:[#allocation3 + $0x64] sm:$0xf]
        %v4078 = vld [vmem:[#allocation3 + $0x6c] sm:$0xf]
        %v4079 = vld [vmem:[#allocation3 + $0x70] sm:$0xf]
        %v4080 = vld [vmem:[#allocation3 + $0x78] sm:$0xf]
        %v4081 = vld [vmem:[#allocation3 + $0x7c] sm:$0xf]
        %v4082 = vld [vmem:[#allocation3 + $0x84] sm:$0xf]
        %v4083 = vld [vmem:[#allocation3 + $0x88] sm:$0xf]
        %v4084 = vld [vmem:[#allocation3 + $0x90] sm:$0xf]
        %v4085 = vld [vmem:[#allocation3 + $0x94] sm:$0xf]
        %v4086 = vld [vmem:[#allocation3 + $0x9c] sm:$0xf]
        %v4087 = vld [vmem:[#allocation3 + $0xa0] sm:$0xf]
        %v4088 = vld [vmem:[#allocation3 + $0xa8] sm:$0xf]
        %v4089 = vld [vmem:[#allocation3 + $0xac] sm:$0xf]
        %v4090 = vld [vmem:[#allocation3 + $0xb4] sm:$0xf]
        %v4091 = vld [vmem:[#allocation3 + $0xb8] sm:$0xf]
        %v4092 = vld [vmem:[#allocation3 + $0x8] sm:$0x1]
        %v4093 = vld [vmem:[#allocation3 + $0x14] sm:$0x1]
        %v4094 = vld [vmem:[#allocation3 + $0x20] sm:$0x1]
        %v4095 = vld [vmem:[#allocation3 + $0x2c] sm:$0x1]
        %v4096 = vld [vmem:[#allocation3 + $0x38] sm:$0x1]
        %v4097 = vld [vmem:[#allocation3 + $0x44] sm:$0x1]
        %v4098 = vld [vmem:[#allocation3 + $0x50] sm:$0x1]
        %v4099 = vld [vmem:[#allocation3 + $0x5c] sm:$0x1]
        %v4100 = vld [vmem:[#allocation3 + $0x68] sm:$0x1]
        %v4101 = vld [vmem:[#allocation3 + $0x74] sm:$0x1]
        %v4102 = vld [vmem:[#allocation3 + $0x80] sm:$0x1]
        %v4103 = vld [vmem:[#allocation3 + $0x8c] sm:$0x1]
        %v4104 = vld [vmem:[#allocation3 + $0x98] sm:$0x1]
        %v4105 = vld [vmem:[#allocation3 + $0xa4] sm:$0x1]
        %v4106 = vld [vmem:[#allocation3 + $0xb0] sm:$0x1]
        %v4107 = vld [vmem:[#allocation3 + $0xbc] sm:$0x1]
        %v4108 = vld [vmem:[#allocation3] sm:$0xe]
        %v4109 = vld [vmem:[#allocation3 + $0xc] sm:$0xe]
        %v4110 = vld [vmem:[#allocation3 + $0x18] sm:$0xe]
        %v4111 = vld [vmem:[#allocation3 + $0x24] sm:$0xe]
        %v4112 = vld [vmem:[#allocation3 + $0x30] sm:$0xe]
        %v4113 = vld [vmem:[#allocation3 + $0x3c] sm:$0xe]
        %v4114 = vld [vmem:[#allocation3 + $0x48] sm:$0xe]
        %v4115 = vld [vmem:[#allocation3 + $0x54] sm:$0xe]
        %v4116 = vld [vmem:[#allocation3 + $0x60] sm:$0xe]
        %v4117 = vld [vmem:[#allocation3 + $0x6c] sm:$0xe]
        %v4118 = vld [vmem:[#allocation3 + $0x78] sm:$0xe]
        %v4119 = vld [vmem:[#allocation3 + $0x84] sm:$0xe]
        %v4120 = vld [vmem:[#allocation3 + $0x90] sm:$0xe]
        %v4121 = vld [vmem:[#allocation3 + $0x9c] sm:$0xe]
        %v4122 = vld [vmem:[#allocation3 + $0xa8] sm:$0xe]
        %v4123 = vld [vmem:[#allocation3 + $0xb4] sm:$0xe]
        %v4124 = vld [vmem:[%s3945] sm:$0xf]
        %v4125 = vld [vmem:[%s3945 + $0x4] sm:$0xf]
        %v4126 = vld [vmem:[%s3945 + $0xc] sm:$0xf]
        %v4127 = vld [vmem:[%s3945 + $0x10] sm:$0xf]
        %v4128 = vld [vmem:[%s3945 + $0x18] sm:$0xf]
        %v4129 = vld [vmem:[%s3945 + $0x1c] sm:$0xf]
        %v4130 = vld [vmem:[%s3945 + $0x24] sm:$0xf]
        %v4131 = vld [vmem:[%s3945 + $0x28] sm:$0xf]
        %v4132 = vld [vmem:[%s3945 + $0x30] sm:$0xf]
        %v4133 = vld [vmem:[%s3945 + $0x34] sm:$0xf]
        %v4134 = vld [vmem:[%s3945 + $0x3c] sm:$0xf]
        %v4135 = vld [vmem:[%s3945 + $0x40] sm:$0xf]
        %v4136 = vld [vmem:[%s3945 + $0x48] sm:$0xf]
        %v4137 = vld [vmem:[%s3945 + $0x4c] sm:$0xf]
        %v4138 = vld [vmem:[%s3945 + $0x54] sm:$0xf]
        %v4139 = vld [vmem:[%s3945 + $0x58] sm:$0xf]
        %v4140 = vld [vmem:[%s3945 + $0x60] sm:$0xf]
        %v4141 = vld [vmem:[%s3945 + $0x64] sm:$0xf]
        %v4142 = vld [vmem:[%s3945 + $0x6c] sm:$0xf]
        %v4143 = vld [vmem:[%s3945 + $0x70] sm:$0xf]
        %v4144 = vld [vmem:[%s3945 + $0x78] sm:$0xf]
        %v4145 = vld [vmem:[%s3945 + $0x7c] sm:$0xf]
        %v4146 = vld [vmem:[%s3945 + $0x84] sm:$0xf]
        %v4147 = vld [vmem:[%s3945 + $0x88] sm:$0xf]
        %v4148 = vld [vmem:[%s3945 + $0x90] sm:$0xf]
        %v4149 = vld [vmem:[%s3945 + $0x94] sm:$0xf]
        %v4150 = vld [vmem:[%s3945 + $0x9c] sm:$0xf]
        %v4151 = vld [vmem:[%s3945 + $0xa0] sm:$0xf]
        %v4152 = vld [vmem:[%s3945 + $0xa8] sm:$0xf]
        %v4153 = vld [vmem:[%s3945 + $0xac] sm:$0xf]
        %v4154 = vld [vmem:[%s3945 + $0xb4] sm:$0xf]
        %v4155 = vld [vmem:[%s3945 + $0xb8] sm:$0xf]
        %v4156 = vld [vmem:[%s3945 + $0x8] sm:$0x1]
        %v4157 = vld [vmem:[%s3945 + $0x14] sm:$0x1]
        %v4158 = vld [vmem:[%s3945 + $0x20] sm:$0x1]
        %v4159 = vld [vmem:[%s3945 + $0x2c] sm:$0x1]
        %v4160 = vld [vmem:[%s3945 + $0x38] sm:$0x1]
        %v4161 = vld [vmem:[%s3945 + $0x44] sm:$0x1]
        %v4162 = vld [vmem:[%s3945 + $0x50] sm:$0x1]
        %v4163 = vld [vmem:[%s3945 + $0x5c] sm:$0x1]
        %v4164 = vld [vmem:[%s3945 + $0x68] sm:$0x1]
        %v4165 = vld [vmem:[%s3945 + $0x74] sm:$0x1]
        %v4166 = vld [vmem:[%s3945 + $0x80] sm:$0x1]
        %v4167 = vld [vmem:[%s3945 + $0x8c] sm:$0x1]
        %v4168 = vld [vmem:[%s3945 + $0x98] sm:$0x1]
        %v4169 = vld [vmem:[%s3945 + $0xa4] sm:$0x1]
        %v4170 = vld [vmem:[%s3945 + $0xb0] sm:$0x1]
        %v4171 = vld [vmem:[%s3945 + $0xbc] sm:$0x1]
        %v4172 = vld [vmem:[%s3945] sm:$0xe]
        %v4173 = vld [vmem:[%s3945 + $0xc] sm:$0xe]
        %v4174 = vld [vmem:[%s3945 + $0x18] sm:$0xe]
        %v4175 = vld [vmem:[%s3945 + $0x24] sm:$0xe]
        %v4176 = vld [vmem:[%s3945 + $0x30] sm:$0xe]
        %v4177 = vld [vmem:[%s3945 + $0x3c] sm:$0xe]
        %v4178 = vld [vmem:[%s3945 + $0x48] sm:$0xe]
        %v4179 = vld [vmem:[%s3945 + $0x54] sm:$0xe]
        %v4180 = vld [vmem:[%s3945 + $0x60] sm:$0xe]
        %v4181 = vld [vmem:[%s3945 + $0x6c] sm:$0xe]
        %v4182 = vld [vmem:[%s3945 + $0x78] sm:$0xe]
        %v4183 = vld [vmem:[%s3945 + $0x84] sm:$0xe]
        %v4184 = vld [vmem:[%s3945 + $0x90] sm:$0xe]
        %v4185 = vld [vmem:[%s3945 + $0x9c] sm:$0xe]
        %v4186 = vld [vmem:[%s3945 + $0xa8] sm:$0xe]
        %v4187 = vld [vmem:[%s3945 + $0xb4] sm:$0xe]
        %s4188 = scalar_lea.vmem [#allocation3], 24
        %v4189 = vld [vmem:[%s4188] sm:$0xf]
        %v4190 = vld [vmem:[%s4188 + $0x4] sm:$0xf]
        %v4191 = vld [vmem:[%s4188 + $0xc] sm:$0xf]
        %v4192 = vld [vmem:[%s4188 + $0x10] sm:$0xf]
        %v4193 = vld [vmem:[%s4188 + $0x18] sm:$0xf]
        %v4194 = vld [vmem:[%s4188 + $0x1c] sm:$0xf]
        %v4195 = vld [vmem:[%s4188 + $0x24] sm:$0xf]
        %v4196 = vld [vmem:[%s4188 + $0x28] sm:$0xf]
        %v4197 = vld [vmem:[%s4188 + $0x30] sm:$0xf]
        %v4198 = vld [vmem:[%s4188 + $0x34] sm:$0xf]
        %v4199 = vld [vmem:[%s4188 + $0x3c] sm:$0xf]
        %v4200 = vld [vmem:[%s4188 + $0x40] sm:$0xf]
        %v4201 = vld [vmem:[%s4188 + $0x48] sm:$0xf]
        %v4202 = vld [vmem:[%s4188 + $0x4c] sm:$0xf]
        %v4203 = vld [vmem:[%s4188 + $0x54] sm:$0xf]
        %v4204 = vld [vmem:[%s4188 + $0x58] sm:$0xf]
        %v4205 = vld [vmem:[%s4188 + $0x60] sm:$0xf]
        %v4206 = vld [vmem:[%s4188 + $0x64] sm:$0xf]
        %v4207 = vld [vmem:[%s4188 + $0x6c] sm:$0xf]
        %v4208 = vld [vmem:[%s4188 + $0x70] sm:$0xf]
        %v4209 = vld [vmem:[%s4188 + $0x78] sm:$0xf]
        %v4210 = vld [vmem:[%s4188 + $0x7c] sm:$0xf]
        %v4211 = vld [vmem:[%s4188 + $0x84] sm:$0xf]
        %v4212 = vld [vmem:[%s4188 + $0x88] sm:$0xf]
        %v4213 = vld [vmem:[%s4188 + $0x90] sm:$0xf]
        %v4214 = vld [vmem:[%s4188 + $0x94] sm:$0xf]
        %v4215 = vld [vmem:[%s4188 + $0x9c] sm:$0xf]
        %v4216 = vld [vmem:[%s4188 + $0xa0] sm:$0xf]
        %v4217 = vld [vmem:[%s4188 + $0xa8] sm:$0xf]
        %v4218 = vld [vmem:[%s4188 + $0xac] sm:$0xf]
        %v4219 = vld [vmem:[%s4188 + $0xb4] sm:$0xf]
        %v4220 = vld [vmem:[%s4188 + $0xb8] sm:$0xf]
        %v4221 = vld [vmem:[%s4188 + $0x8] sm:$0x1]
        %v4222 = vld [vmem:[%s4188 + $0x14] sm:$0x1]
        %v4223 = vld [vmem:[%s4188 + $0x20] sm:$0x1]
        %v4224 = vld [vmem:[%s4188 + $0x2c] sm:$0x1]
        %v4225 = vld [vmem:[%s4188 + $0x38] sm:$0x1]
        %v4226 = vld [vmem:[%s4188 + $0x44] sm:$0x1]
        %v4227 = vld [vmem:[%s4188 + $0x50] sm:$0x1]
        %v4228 = vld [vmem:[%s4188 + $0x5c] sm:$0x1]
        %v4229 = vld [vmem:[%s4188 + $0x68] sm:$0x1]
        %v4230 = vld [vmem:[%s4188 + $0x74] sm:$0x1]
        %v4231 = vld [vmem:[%s4188 + $0x80] sm:$0x1]
        %v4232 = vld [vmem:[%s4188 + $0x8c] sm:$0x1]
        %v4233 = vld [vmem:[%s4188 + $0x98] sm:$0x1]
        %v4234 = vld [vmem:[%s4188 + $0xa4] sm:$0x1]
        %v4235 = vld [vmem:[%s4188 + $0xb0] sm:$0x1]
        %v4236 = vld [vmem:[%s4188 + $0xbc] sm:$0x1]
        %v4237 = vld [vmem:[%s4188] sm:$0xe]
        %v4238 = vld [vmem:[%s4188 + $0xc] sm:$0xe]
        %v4239 = vld [vmem:[%s4188 + $0x18] sm:$0xe]
        %v4240 = vld [vmem:[%s4188 + $0x24] sm:$0xe]
        %v4241 = vld [vmem:[%s4188 + $0x30] sm:$0xe]
        %v4242 = vld [vmem:[%s4188 + $0x3c] sm:$0xe]
        %v4243 = vld [vmem:[%s4188 + $0x48] sm:$0xe]
        %v4244 = vld [vmem:[%s4188 + $0x54] sm:$0xe]
        %v4245 = vld [vmem:[%s4188 + $0x60] sm:$0xe]
        %v4246 = vld [vmem:[%s4188 + $0x6c] sm:$0xe]
        %v4247 = vld [vmem:[%s4188 + $0x78] sm:$0xe]
        %v4248 = vld [vmem:[%s4188 + $0x84] sm:$0xe]
        %v4249 = vld [vmem:[%s4188 + $0x90] sm:$0xe]
        %v4250 = vld [vmem:[%s4188 + $0x9c] sm:$0xe]
        %v4251 = vld [vmem:[%s4188 + $0xa8] sm:$0xe]
        %v4252 = vld [vmem:[%s4188 + $0xb4] sm:$0xe]
        %v4285 = vunpack.c.l.b16 %v4060
        %v4286 = vunpack.c.l.b16 %v4061
        %v4287 = vunpack.c.l.b16 %v4062
        %v4288 = vunpack.c.l.b16 %v4063
        %v4289 = vunpack.c.l.b16 %v4064
        %v4290 = vunpack.c.l.b16 %v4065
        %v4291 = vunpack.c.l.b16 %v4066
        %v4292 = vunpack.c.l.b16 %v4067
        %v4293 = vunpack.c.l.b16 %v4068
        %v4294 = vunpack.c.l.b16 %v4069
        %v4295 = vunpack.c.l.b16 %v4070
        %v4296 = vunpack.c.l.b16 %v4071
        %v4297 = vunpack.c.l.b16 %v4072
        %v4298 = vunpack.c.l.b16 %v4073
        %v4299 = vunpack.c.l.b16 %v4074
        %v4300 = vunpack.c.l.b16 %v4075
        %v4301 = vunpack.c.l.b16 %v4076
        %v4302 = vunpack.c.l.b16 %v4077
        %v4303 = vunpack.c.l.b16 %v4078
        %v4304 = vunpack.c.l.b16 %v4079
        %v4305 = vunpack.c.l.b16 %v4080
        %v4306 = vunpack.c.l.b16 %v4081
        %v4307 = vunpack.c.l.b16 %v4082
        %v4308 = vunpack.c.l.b16 %v4083
        %v4309 = vunpack.c.l.b16 %v4084
        %v4310 = vunpack.c.l.b16 %v4085
        %v4311 = vunpack.c.l.b16 %v4086
        %v4312 = vunpack.c.l.b16 %v4087
        %v4313 = vunpack.c.l.b16 %v4088
        %v4314 = vunpack.c.l.b16 %v4089
        %v4315 = vunpack.c.l.b16 %v4090
        %v4316 = vunpack.c.l.b16 %v4091
        %v4317 = vpack.c.b16 %v4286, %v4285
        %v4318 = vpack.c.b16 %v4288, %v4287
        %v4319 = vpack.c.b16 %v4290, %v4289
        %v4320 = vpack.c.b16 %v4292, %v4291
        %v4321 = vpack.c.b16 %v4294, %v4293
        %v4322 = vpack.c.b16 %v4296, %v4295
        %v4323 = vpack.c.b16 %v4298, %v4297
        %v4324 = vpack.c.b16 %v4300, %v4299
        %v4325 = vpack.c.b16 %v4302, %v4301
        %v4326 = vpack.c.b16 %v4304, %v4303
        %v4327 = vpack.c.b16 %v4306, %v4305
        %v4328 = vpack.c.b16 %v4308, %v4307
        %v4329 = vpack.c.b16 %v4310, %v4309
        %v4330 = vpack.c.b16 %v4312, %v4311
        %v4331 = vpack.c.b16 %v4314, %v4313
        %v4332 = vpack.c.b16 %v4316, %v4315
        %v4349 = vunpack.c.l.b16 %v4092
        %v4350 = vunpack.c.l.b16 %v4093
        %v4351 = vunpack.c.l.b16 %v4094
        %v4352 = vunpack.c.l.b16 %v4095
        %v4353 = vunpack.c.l.b16 %v4096
        %v4354 = vunpack.c.l.b16 %v4097
        %v4355 = vunpack.c.l.b16 %v4098
        %v4356 = vunpack.c.l.b16 %v4099
        %v4357 = vunpack.c.l.b16 %v4100
        %v4358 = vunpack.c.l.b16 %v4101
        %v4359 = vunpack.c.l.b16 %v4102
        %v4360 = vunpack.c.l.b16 %v4103
        %v4361 = vunpack.c.l.b16 %v4104
        %v4362 = vunpack.c.l.b16 %v4105
        %v4363 = vunpack.c.l.b16 %v4106
        %v4364 = vunpack.c.l.b16 %v4107
        %v4365 = vpack.c.b16 %v4349, %v4349
        %v4366 = vpack.c.b16 %v4350, %v4350
        %v4367 = vpack.c.b16 %v4351, %v4351
        %v4368 = vpack.c.b16 %v4352, %v4352
        %v4369 = vpack.c.b16 %v4353, %v4353
        %v4370 = vpack.c.b16 %v4354, %v4354
        %v4371 = vpack.c.b16 %v4355, %v4355
        %v4372 = vpack.c.b16 %v4356, %v4356
        %v4373 = vpack.c.b16 %v4357, %v4357
        %v4374 = vpack.c.b16 %v4358, %v4358
        %v4375 = vpack.c.b16 %v4359, %v4359
        %v4376 = vpack.c.b16 %v4360, %v4360
        %v4377 = vpack.c.b16 %v4361, %v4361
        %v4378 = vpack.c.b16 %v4362, %v4362
        %v4379 = vpack.c.b16 %v4363, %v4363
        %v4380 = vpack.c.b16 %v4364, %v4364
        %v4382 = vshrl.u32 %v4317, 16
        %v4384 = vshll.u32 %v4317, 16
        %v4386 = vrot.slane %v4384, 1
        %v4387 = vor.u32 %v4382, %v4386
        %v4389 = vshll.u32 %v4365, 16
        %v4391 = vrot.slane %v4389, 1
        %v4392 = vsel %vm1425, %v4387, %v4391
        %v4394 = vshrl.u32 %v4318, 16
        %v4396 = vshll.u32 %v4318, 16
        %v4398 = vrot.slane %v4396, 1
        %v4399 = vor.u32 %v4394, %v4398
        %v4401 = vshll.u32 %v4366, 16
        %v4403 = vrot.slane %v4401, 1
        %v4404 = vsel %vm1425, %v4399, %v4403
        %v4406 = vshrl.u32 %v4319, 16
        %v4408 = vshll.u32 %v4319, 16
        %v4410 = vrot.slane %v4408, 1
        %v4411 = vor.u32 %v4406, %v4410
        %v4413 = vshll.u32 %v4367, 16
        %v4415 = vrot.slane %v4413, 1
        %v4416 = vsel %vm1425, %v4411, %v4415
        %v4418 = vshrl.u32 %v4320, 16
        %v4420 = vshll.u32 %v4320, 16
        %v4422 = vrot.slane %v4420, 1
        %v4423 = vor.u32 %v4418, %v4422
        %v4425 = vshll.u32 %v4368, 16
        %v4427 = vrot.slane %v4425, 1
        %v4428 = vsel %vm1425, %v4423, %v4427
        %v4430 = vshrl.u32 %v4321, 16
        %v4432 = vshll.u32 %v4321, 16
        %v4434 = vrot.slane %v4432, 1
        %v4435 = vor.u32 %v4430, %v4434
        %v4437 = vshll.u32 %v4369, 16
        %v4439 = vrot.slane %v4437, 1
        %v4440 = vsel %vm1425, %v4435, %v4439
        %v4442 = vshrl.u32 %v4322, 16
        %v4444 = vshll.u32 %v4322, 16
        %v4446 = vrot.slane %v4444, 1
        %v4447 = vor.u32 %v4442, %v4446
        %v4449 = vshll.u32 %v4370, 16
        %v4451 = vrot.slane %v4449, 1
        %v4452 = vsel %vm1425, %v4447, %v4451
        %v4454 = vshrl.u32 %v4323, 16
        %v4456 = vshll.u32 %v4323, 16
        %v4458 = vrot.slane %v4456, 1
        %v4459 = vor.u32 %v4454, %v4458
        %v4461 = vshll.u32 %v4371, 16
        %v4463 = vrot.slane %v4461, 1
        %v4464 = vsel %vm1425, %v4459, %v4463
        %v4466 = vshrl.u32 %v4324, 16
        %v4468 = vshll.u32 %v4324, 16
        %v4470 = vrot.slane %v4468, 1
        %v4471 = vor.u32 %v4466, %v4470
        %v4473 = vshll.u32 %v4372, 16
        %v4475 = vrot.slane %v4473, 1
        %v4476 = vsel %vm1425, %v4471, %v4475
        %v4478 = vshrl.u32 %v4325, 16
        %v4480 = vshll.u32 %v4325, 16
        %v4482 = vrot.slane %v4480, 1
        %v4483 = vor.u32 %v4478, %v4482
        %v4485 = vshll.u32 %v4373, 16
        %v4487 = vrot.slane %v4485, 1
        %v4488 = vsel %vm1425, %v4483, %v4487
        %v4490 = vshrl.u32 %v4326, 16
        %v4492 = vshll.u32 %v4326, 16
        %v4494 = vrot.slane %v4492, 1
        %v4495 = vor.u32 %v4490, %v4494
        %v4497 = vshll.u32 %v4374, 16
        %v4499 = vrot.slane %v4497, 1
        %v4500 = vsel %vm1425, %v4495, %v4499
        %v4502 = vshrl.u32 %v4327, 16
        %v4504 = vshll.u32 %v4327, 16
        %v4506 = vrot.slane %v4504, 1
        %v4507 = vor.u32 %v4502, %v4506
        %v4509 = vshll.u32 %v4375, 16
        %v4511 = vrot.slane %v4509, 1
        %v4512 = vsel %vm1425, %v4507, %v4511
        %v4514 = vshrl.u32 %v4328, 16
        %v4516 = vshll.u32 %v4328, 16
        %v4518 = vrot.slane %v4516, 1
        %v4519 = vor.u32 %v4514, %v4518
        %v4521 = vshll.u32 %v4376, 16
        %v4523 = vrot.slane %v4521, 1
        %v4524 = vsel %vm1425, %v4519, %v4523
        %v4526 = vshrl.u32 %v4329, 16
        %v4528 = vshll.u32 %v4329, 16
        %v4530 = vrot.slane %v4528, 1
        %v4531 = vor.u32 %v4526, %v4530
        %v4533 = vshll.u32 %v4377, 16
        %v4535 = vrot.slane %v4533, 1
        %v4536 = vsel %vm1425, %v4531, %v4535
        %v4538 = vshrl.u32 %v4330, 16
        %v4540 = vshll.u32 %v4330, 16
        %v4542 = vrot.slane %v4540, 1
        %v4543 = vor.u32 %v4538, %v4542
        %v4545 = vshll.u32 %v4378, 16
        %v4547 = vrot.slane %v4545, 1
        %v4548 = vsel %vm1425, %v4543, %v4547
        %v4550 = vshrl.u32 %v4331, 16
        %v4552 = vshll.u32 %v4331, 16
        %v4554 = vrot.slane %v4552, 1
        %v4555 = vor.u32 %v4550, %v4554
        %v4557 = vshll.u32 %v4379, 16
        %v4559 = vrot.slane %v4557, 1
        %v4560 = vsel %vm1425, %v4555, %v4559
        %v4562 = vshrl.u32 %v4332, 16
        %v4564 = vshll.u32 %v4332, 16
        %v4566 = vrot.slane %v4564, 1
        %v4567 = vor.u32 %v4562, %v4566
        %v4569 = vshll.u32 %v4380, 16
        %v4571 = vrot.slane %v4569, 1
        %v4572 = vsel %vm1425, %v4567, %v4571
        %4573 = vrot.lane.b32.xlu0 %v4392, 32
        %v4574 = vpop.permute.xlu0 %4573
        %4575 = vrot.lane.b32.xlu0 %v4404, 32
        %v4576 = vpop.permute.xlu0 %4575
        %4577 = vrot.lane.b32.xlu0 %v4416, 32
        %v4578 = vpop.permute.xlu0 %4577
        %4579 = vrot.lane.b32.xlu0 %v4428, 32
        %v4580 = vpop.permute.xlu0 %4579
        %4581 = vrot.lane.b32.xlu0 %v4440, 32
        %v4582 = vpop.permute.xlu0 %4581
        %4583 = vrot.lane.b32.xlu0 %v4452, 32
        %v4584 = vpop.permute.xlu0 %4583
        %4585 = vrot.lane.b32.xlu0 %v4464, 32
        %v4586 = vpop.permute.xlu0 %4585
        %4587 = vrot.lane.b32.xlu0 %v4476, 32
        %v4588 = vpop.permute.xlu0 %4587
        %4589 = vrot.lane.b32.xlu0 %v4488, 32
        %v4590 = vpop.permute.xlu0 %4589
        %4591 = vrot.lane.b32.xlu0 %v4500, 32
        %v4592 = vpop.permute.xlu0 %4591
        %4593 = vrot.lane.b32.xlu0 %v4512, 32
        %v4594 = vpop.permute.xlu0 %4593
        %4595 = vrot.lane.b32.xlu0 %v4524, 32
        %v4596 = vpop.permute.xlu0 %4595
        %4597 = vrot.lane.b32.xlu0 %v4536, 32
        %v4598 = vpop.permute.xlu0 %4597
        %4599 = vrot.lane.b32.xlu0 %v4548, 32
        %v4600 = vpop.permute.xlu0 %4599
        %4601 = vrot.lane.b32.xlu0 %v4560, 32
        %v4602 = vpop.permute.xlu0 %4601
        %4603 = vrot.lane.b32.xlu0 %v4572, 32
        %v4604 = vpop.permute.xlu0 %4603
        %v4621 = vunpack.c.l.b16 %v4108
        %v4622 = vunpack.c.l.b16 %v4109
        %v4623 = vunpack.c.l.b16 %v4110
        %v4624 = vunpack.c.l.b16 %v4111
        %v4625 = vunpack.c.l.b16 %v4112
        %v4626 = vunpack.c.l.b16 %v4113
        %v4627 = vunpack.c.l.b16 %v4114
        %v4628 = vunpack.c.l.b16 %v4115
        %v4629 = vunpack.c.l.b16 %v4116
        %v4630 = vunpack.c.l.b16 %v4117
        %v4631 = vunpack.c.l.b16 %v4118
        %v4632 = vunpack.c.l.b16 %v4119
        %v4633 = vunpack.c.l.b16 %v4120
        %v4634 = vunpack.c.l.b16 %v4121
        %v4635 = vunpack.c.l.b16 %v4122
        %v4636 = vunpack.c.l.b16 %v4123
        %v4637 = vpack.c.b16 %v4286, %v4621
        %v4638 = vpack.c.b16 %v4288, %v4622
        %v4639 = vpack.c.b16 %v4290, %v4623
        %v4640 = vpack.c.b16 %v4292, %v4624
        %v4641 = vpack.c.b16 %v4294, %v4625
        %v4642 = vpack.c.b16 %v4296, %v4626
        %v4643 = vpack.c.b16 %v4298, %v4627
        %v4644 = vpack.c.b16 %v4300, %v4628
        %v4645 = vpack.c.b16 %v4302, %v4629
        %v4646 = vpack.c.b16 %v4304, %v4630
        %v4647 = vpack.c.b16 %v4306, %v4631
        %v4648 = vpack.c.b16 %v4308, %v4632
        %v4649 = vpack.c.b16 %v4310, %v4633
        %v4650 = vpack.c.b16 %v4312, %v4634
        %v4651 = vpack.c.b16 %v4314, %v4635
        %v4652 = vpack.c.b16 %v4316, %v4636
        %v4653 = vrot.slane %v4637, 1
        %v4654 = vrot.slane %v4365, 1
        %v4655 = vsel %vm1698, %v4653, %v4654
        %v4656 = vrot.slane %v4638, 1
        %v4657 = vrot.slane %v4366, 1
        %v4658 = vsel %vm1698, %v4656, %v4657
        %v4659 = vrot.slane %v4639, 1
        %v4660 = vrot.slane %v4367, 1
        %v4661 = vsel %vm1698, %v4659, %v4660
        %v4662 = vrot.slane %v4640, 1
        %v4663 = vrot.slane %v4368, 1
        %v4664 = vsel %vm1698, %v4662, %v4663
        %v4665 = vrot.slane %v4641, 1
        %v4666 = vrot.slane %v4369, 1
        %v4667 = vsel %vm1698, %v4665, %v4666
        %v4668 = vrot.slane %v4642, 1
        %v4669 = vrot.slane %v4370, 1
        %v4670 = vsel %vm1698, %v4668, %v4669
        %v4671 = vrot.slane %v4643, 1
        %v4672 = vrot.slane %v4371, 1
        %v4673 = vsel %vm1698, %v4671, %v4672
        %v4674 = vrot.slane %v4644, 1
        %v4675 = vrot.slane %v4372, 1
        %v4676 = vsel %vm1698, %v4674, %v4675
        %v4677 = vrot.slane %v4645, 1
        %v4678 = vrot.slane %v4373, 1
        %v4679 = vsel %vm1698, %v4677, %v4678
        %v4680 = vrot.slane %v4646, 1
        %v4681 = vrot.slane %v4374, 1
        %v4682 = vsel %vm1698, %v4680, %v4681
        %v4683 = vrot.slane %v4647, 1
        %v4684 = vrot.slane %v4375, 1
        %v4685 = vsel %vm1698, %v4683, %v4684
        %v4686 = vrot.slane %v4648, 1
        %v4687 = vrot.slane %v4376, 1
        %v4688 = vsel %vm1698, %v4686, %v4687
        %v4689 = vrot.slane %v4649, 1
        %v4690 = vrot.slane %v4377, 1
        %v4691 = vsel %vm1698, %v4689, %v4690
        %v4692 = vrot.slane %v4650, 1
        %v4693 = vrot.slane %v4378, 1
        %v4694 = vsel %vm1698, %v4692, %v4693
        %v4695 = vrot.slane %v4651, 1
        %v4696 = vrot.slane %v4379, 1
        %v4697 = vsel %vm1698, %v4695, %v4696
        %v4698 = vrot.slane %v4652, 1
        %v4699 = vrot.slane %v4380, 1
        %v4700 = vsel %vm1698, %v4698, %v4699
        %4701 = vrot.lane.b32.xlu0 %v4655, 64
        %v4702 = vpop.permute.xlu0 %4701
        %4703 = vrot.lane.b32.xlu0 %v4658, 64
        %v4704 = vpop.permute.xlu0 %4703
        %4705 = vrot.lane.b32.xlu0 %v4661, 64
        %v4706 = vpop.permute.xlu0 %4705
        %4707 = vrot.lane.b32.xlu0 %v4664, 64
        %v4708 = vpop.permute.xlu0 %4707
        %4709 = vrot.lane.b32.xlu0 %v4667, 64
        %v4710 = vpop.permute.xlu0 %4709
        %4711 = vrot.lane.b32.xlu0 %v4670, 64
        %v4712 = vpop.permute.xlu0 %4711
        %4713 = vrot.lane.b32.xlu0 %v4673, 64
        %v4714 = vpop.permute.xlu0 %4713
        %4715 = vrot.lane.b32.xlu0 %v4676, 64
        %v4716 = vpop.permute.xlu0 %4715
        %4717 = vrot.lane.b32.xlu0 %v4679, 64
        %v4718 = vpop.permute.xlu0 %4717
        %4719 = vrot.lane.b32.xlu0 %v4682, 64
        %v4720 = vpop.permute.xlu0 %4719
        %4721 = vrot.lane.b32.xlu0 %v4685, 64
        %v4722 = vpop.permute.xlu0 %4721
        %4723 = vrot.lane.b32.xlu0 %v4688, 64
        %v4724 = vpop.permute.xlu0 %4723
        %4725 = vrot.lane.b32.xlu0 %v4691, 64
        %v4726 = vpop.permute.xlu0 %4725
        %4727 = vrot.lane.b32.xlu0 %v4694, 64
        %v4728 = vpop.permute.xlu0 %4727
        %4729 = vrot.lane.b32.xlu0 %v4697, 64
        %v4730 = vpop.permute.xlu0 %4729
        %4731 = vrot.lane.b32.xlu0 %v4700, 64
        %v4732 = vpop.permute.xlu0 %4731
        %v4765 = vunpack.c.l.b16 %v4124
        %v4766 = vunpack.c.l.b16 %v4125
        %v4767 = vunpack.c.l.b16 %v4126
        %v4768 = vunpack.c.l.b16 %v4127
        %v4769 = vunpack.c.l.b16 %v4128
        %v4770 = vunpack.c.l.b16 %v4129
        %v4771 = vunpack.c.l.b16 %v4130
        %v4772 = vunpack.c.l.b16 %v4131
        %v4773 = vunpack.c.l.b16 %v4132
        %v4774 = vunpack.c.l.b16 %v4133
        %v4775 = vunpack.c.l.b16 %v4134
        %v4776 = vunpack.c.l.b16 %v4135
        %v4777 = vunpack.c.l.b16 %v4136
        %v4778 = vunpack.c.l.b16 %v4137
        %v4779 = vunpack.c.l.b16 %v4138
        %v4780 = vunpack.c.l.b16 %v4139
        %v4781 = vunpack.c.l.b16 %v4140
        %v4782 = vunpack.c.l.b16 %v4141
        %v4783 = vunpack.c.l.b16 %v4142
        %v4784 = vunpack.c.l.b16 %v4143
        %v4785 = vunpack.c.l.b16 %v4144
        %v4786 = vunpack.c.l.b16 %v4145
        %v4787 = vunpack.c.l.b16 %v4146
        %v4788 = vunpack.c.l.b16 %v4147
        %v4789 = vunpack.c.l.b16 %v4148
        %v4790 = vunpack.c.l.b16 %v4149
        %v4791 = vunpack.c.l.b16 %v4150
        %v4792 = vunpack.c.l.b16 %v4151
        %v4793 = vunpack.c.l.b16 %v4152
        %v4794 = vunpack.c.l.b16 %v4153
        %v4795 = vunpack.c.l.b16 %v4154
        %v4796 = vunpack.c.l.b16 %v4155
        %v4797 = vpack.c.b16 %v4766, %v4765
        %v4798 = vpack.c.b16 %v4768, %v4767
        %v4799 = vpack.c.b16 %v4770, %v4769
        %v4800 = vpack.c.b16 %v4772, %v4771
        %v4801 = vpack.c.b16 %v4774, %v4773
        %v4802 = vpack.c.b16 %v4776, %v4775
        %v4803 = vpack.c.b16 %v4778, %v4777
        %v4804 = vpack.c.b16 %v4780, %v4779
        %v4805 = vpack.c.b16 %v4782, %v4781
        %v4806 = vpack.c.b16 %v4784, %v4783
        %v4807 = vpack.c.b16 %v4786, %v4785
        %v4808 = vpack.c.b16 %v4788, %v4787
        %v4809 = vpack.c.b16 %v4790, %v4789
        %v4810 = vpack.c.b16 %v4792, %v4791
        %v4811 = vpack.c.b16 %v4794, %v4793
        %v4812 = vpack.c.b16 %v4796, %v4795
        %4813 = vrot.lane.b32.xlu0 %v4797, 96
        %v4814 = vpop.permute.xlu0 %4813
        %4815 = vrot.lane.b32.xlu0 %v4798, 96
        %v4816 = vpop.permute.xlu0 %4815
        %4817 = vrot.lane.b32.xlu0 %v4799, 96
        %v4818 = vpop.permute.xlu0 %4817
        %4819 = vrot.lane.b32.xlu0 %v4800, 96
        %v4820 = vpop.permute.xlu0 %4819
        %4821 = vrot.lane.b32.xlu0 %v4801, 96
        %v4822 = vpop.permute.xlu0 %4821
        %4823 = vrot.lane.b32.xlu0 %v4802, 96
        %v4824 = vpop.permute.xlu0 %4823
        %4825 = vrot.lane.b32.xlu0 %v4803, 96
        %v4826 = vpop.permute.xlu0 %4825
        %4827 = vrot.lane.b32.xlu0 %v4804, 96
        %v4828 = vpop.permute.xlu0 %4827
        %4829 = vrot.lane.b32.xlu0 %v4805, 96
        %v4830 = vpop.permute.xlu0 %4829
        %4831 = vrot.lane.b32.xlu0 %v4806, 96
        %v4832 = vpop.permute.xlu0 %4831
        %4833 = vrot.lane.b32.xlu0 %v4807, 96
        %v4834 = vpop.permute.xlu0 %4833
        %4835 = vrot.lane.b32.xlu0 %v4808, 96
        %v4836 = vpop.permute.xlu0 %4835
        %4837 = vrot.lane.b32.xlu0 %v4809, 96
        %v4838 = vpop.permute.xlu0 %4837
        %4839 = vrot.lane.b32.xlu0 %v4810, 96
        %v4840 = vpop.permute.xlu0 %4839
        %4841 = vrot.lane.b32.xlu0 %v4811, 96
        %v4842 = vpop.permute.xlu0 %4841
        %4843 = vrot.lane.b32.xlu0 %v4812, 96
        %v4844 = vpop.permute.xlu0 %4843
        %v4861 = vunpack.c.l.b16 %v4156
        %v4862 = vunpack.c.l.b16 %v4157
        %v4863 = vunpack.c.l.b16 %v4158
        %v4864 = vunpack.c.l.b16 %v4159
        %v4865 = vunpack.c.l.b16 %v4160
        %v4866 = vunpack.c.l.b16 %v4161
        %v4867 = vunpack.c.l.b16 %v4162
        %v4868 = vunpack.c.l.b16 %v4163
        %v4869 = vunpack.c.l.b16 %v4164
        %v4870 = vunpack.c.l.b16 %v4165
        %v4871 = vunpack.c.l.b16 %v4166
        %v4872 = vunpack.c.l.b16 %v4167
        %v4873 = vunpack.c.l.b16 %v4168
        %v4874 = vunpack.c.l.b16 %v4169
        %v4875 = vunpack.c.l.b16 %v4170
        %v4876 = vunpack.c.l.b16 %v4171
        %v4877 = vpack.c.b16 %v4861, %v4861
        %v4878 = vpack.c.b16 %v4862, %v4862
        %v4879 = vpack.c.b16 %v4863, %v4863
        %v4880 = vpack.c.b16 %v4864, %v4864
        %v4881 = vpack.c.b16 %v4865, %v4865
        %v4882 = vpack.c.b16 %v4866, %v4866
        %v4883 = vpack.c.b16 %v4867, %v4867
        %v4884 = vpack.c.b16 %v4868, %v4868
        %v4885 = vpack.c.b16 %v4869, %v4869
        %v4886 = vpack.c.b16 %v4870, %v4870
        %v4887 = vpack.c.b16 %v4871, %v4871
        %v4888 = vpack.c.b16 %v4872, %v4872
        %v4889 = vpack.c.b16 %v4873, %v4873
        %v4890 = vpack.c.b16 %v4874, %v4874
        %v4891 = vpack.c.b16 %v4875, %v4875
        %v4892 = vpack.c.b16 %v4876, %v4876
        %v4894 = vshrl.u32 %v4797, 16
        %v4896 = vshll.u32 %v4797, 16
        %v4898 = vrot.slane %v4896, 1
        %v4899 = vor.u32 %v4894, %v4898
        %v4901 = vshll.u32 %v4877, 16
        %v4903 = vrot.slane %v4901, 1
        %v4904 = vsel %vm1425, %v4899, %v4903
        %v4906 = vshrl.u32 %v4798, 16
        %v4908 = vshll.u32 %v4798, 16
        %v4910 = vrot.slane %v4908, 1
        %v4911 = vor.u32 %v4906, %v4910
        %v4913 = vshll.u32 %v4878, 16
        %v4915 = vrot.slane %v4913, 1
        %v4916 = vsel %vm1425, %v4911, %v4915
        %v4918 = vshrl.u32 %v4799, 16
        %v4920 = vshll.u32 %v4799, 16
        %v4922 = vrot.slane %v4920, 1
        %v4923 = vor.u32 %v4918, %v4922
        %v4925 = vshll.u32 %v4879, 16
        %v4927 = vrot.slane %v4925, 1
        %v4928 = vsel %vm1425, %v4923, %v4927
        %v4930 = vshrl.u32 %v4800, 16
        %v4932 = vshll.u32 %v4800, 16
        %v4934 = vrot.slane %v4932, 1
        %v4935 = vor.u32 %v4930, %v4934
        %v4937 = vshll.u32 %v4880, 16
        %v4939 = vrot.slane %v4937, 1
        %v4940 = vsel %vm1425, %v4935, %v4939
        %v4942 = vshrl.u32 %v4801, 16
        %v4944 = vshll.u32 %v4801, 16
        %v4946 = vrot.slane %v4944, 1
        %v4947 = vor.u32 %v4942, %v4946
        %v4949 = vshll.u32 %v4881, 16
        %v4951 = vrot.slane %v4949, 1
        %v4952 = vsel %vm1425, %v4947, %v4951
        %v4954 = vshrl.u32 %v4802, 16
        %v4956 = vshll.u32 %v4802, 16
        %v4958 = vrot.slane %v4956, 1
        %v4959 = vor.u32 %v4954, %v4958
        %v4961 = vshll.u32 %v4882, 16
        %v4963 = vrot.slane %v4961, 1
        %v4964 = vsel %vm1425, %v4959, %v4963
        %v4966 = vshrl.u32 %v4803, 16
        %v4968 = vshll.u32 %v4803, 16
        %v4970 = vrot.slane %v4968, 1
        %v4971 = vor.u32 %v4966, %v4970
        %v4973 = vshll.u32 %v4883, 16
        %v4975 = vrot.slane %v4973, 1
        %v4976 = vsel %vm1425, %v4971, %v4975
        %v4978 = vshrl.u32 %v4804, 16
        %v4980 = vshll.u32 %v4804, 16
        %v4982 = vrot.slane %v4980, 1
        %v4983 = vor.u32 %v4978, %v4982
        %v4985 = vshll.u32 %v4884, 16
        %v4987 = vrot.slane %v4985, 1
        %v4988 = vsel %vm1425, %v4983, %v4987
        %v4990 = vshrl.u32 %v4805, 16
        %v4992 = vshll.u32 %v4805, 16
        %v4994 = vrot.slane %v4992, 1
        %v4995 = vor.u32 %v4990, %v4994
        %v4997 = vshll.u32 %v4885, 16
        %v4999 = vrot.slane %v4997, 1
        %v5000 = vsel %vm1425, %v4995, %v4999
        %v5002 = vshrl.u32 %v4806, 16
        %v5004 = vshll.u32 %v4806, 16
        %v5006 = vrot.slane %v5004, 1
        %v5007 = vor.u32 %v5002, %v5006
        %v5009 = vshll.u32 %v4886, 16
        %v5011 = vrot.slane %v5009, 1
        %v5012 = vsel %vm1425, %v5007, %v5011
        %v5014 = vshrl.u32 %v4807, 16
        %v5016 = vshll.u32 %v4807, 16
        %v5018 = vrot.slane %v5016, 1
        %v5019 = vor.u32 %v5014, %v5018
        %v5021 = vshll.u32 %v4887, 16
        %v5023 = vrot.slane %v5021, 1
        %v5024 = vsel %vm1425, %v5019, %v5023
        %v5026 = vshrl.u32 %v4808, 16
        %v5028 = vshll.u32 %v4808, 16
        %v5030 = vrot.slane %v5028, 1
        %v5031 = vor.u32 %v5026, %v5030
        %v5033 = vshll.u32 %v4888, 16
        %v5035 = vrot.slane %v5033, 1
        %v5036 = vsel %vm1425, %v5031, %v5035
        %v5038 = vshrl.u32 %v4809, 16
        %v5040 = vshll.u32 %v4809, 16
        %v5042 = vrot.slane %v5040, 1
        %v5043 = vor.u32 %v5038, %v5042
        %v5045 = vshll.u32 %v4889, 16
        %v5047 = vrot.slane %v5045, 1
        %v5048 = vsel %vm1425, %v5043, %v5047
        %v5050 = vshrl.u32 %v4810, 16
        %v5052 = vshll.u32 %v4810, 16
        %v5054 = vrot.slane %v5052, 1
        %v5055 = vor.u32 %v5050, %v5054
        %v5057 = vshll.u32 %v4890, 16
        %v5059 = vrot.slane %v5057, 1
        %v5060 = vsel %vm1425, %v5055, %v5059
        %v5062 = vshrl.u32 %v4811, 16
        %v5064 = vshll.u32 %v4811, 16
        %v5066 = vrot.slane %v5064, 1
        %v5067 = vor.u32 %v5062, %v5066
        %v5069 = vshll.u32 %v4891, 16
        %v5071 = vrot.slane %v5069, 1
        %v5072 = vsel %vm1425, %v5067, %v5071
        %v5074 = vshrl.u32 %v4812, 16
        %v5076 = vshll.u32 %v4812, 16
        %v5078 = vrot.slane %v5076, 1
        %v5079 = vor.u32 %v5074, %v5078
        %v5081 = vshll.u32 %v4892, 16
        %v5083 = vrot.slane %v5081, 1
        %v5084 = vsel %vm1425, %v5079, %v5083
        %v5101 = vunpack.c.l.b16 %v4172
        %v5102 = vunpack.c.l.b16 %v4173
        %v5103 = vunpack.c.l.b16 %v4174
        %v5104 = vunpack.c.l.b16 %v4175
        %v5105 = vunpack.c.l.b16 %v4176
        %v5106 = vunpack.c.l.b16 %v4177
        %v5107 = vunpack.c.l.b16 %v4178
        %v5108 = vunpack.c.l.b16 %v4179
        %v5109 = vunpack.c.l.b16 %v4180
        %v5110 = vunpack.c.l.b16 %v4181
        %v5111 = vunpack.c.l.b16 %v4182
        %v5112 = vunpack.c.l.b16 %v4183
        %v5113 = vunpack.c.l.b16 %v4184
        %v5114 = vunpack.c.l.b16 %v4185
        %v5115 = vunpack.c.l.b16 %v4186
        %v5116 = vunpack.c.l.b16 %v4187
        %v5117 = vpack.c.b16 %v4766, %v5101
        %v5118 = vpack.c.b16 %v4768, %v5102
        %v5119 = vpack.c.b16 %v4770, %v5103
        %v5120 = vpack.c.b16 %v4772, %v5104
        %v5121 = vpack.c.b16 %v4774, %v5105
        %v5122 = vpack.c.b16 %v4776, %v5106
        %v5123 = vpack.c.b16 %v4778, %v5107
        %v5124 = vpack.c.b16 %v4780, %v5108
        %v5125 = vpack.c.b16 %v4782, %v5109
        %v5126 = vpack.c.b16 %v4784, %v5110
        %v5127 = vpack.c.b16 %v4786, %v5111
        %v5128 = vpack.c.b16 %v4788, %v5112
        %v5129 = vpack.c.b16 %v4790, %v5113
        %v5130 = vpack.c.b16 %v4792, %v5114
        %v5131 = vpack.c.b16 %v4794, %v5115
        %v5132 = vpack.c.b16 %v4796, %v5116
        %v5133 = vrot.slane %v5117, 1
        %v5134 = vrot.slane %v4877, 1
        %v5135 = vsel %vm1698, %v5133, %v5134
        %v5136 = vrot.slane %v5118, 1
        %v5137 = vrot.slane %v4878, 1
        %v5138 = vsel %vm1698, %v5136, %v5137
        %v5139 = vrot.slane %v5119, 1
        %v5140 = vrot.slane %v4879, 1
        %v5141 = vsel %vm1698, %v5139, %v5140
        %v5142 = vrot.slane %v5120, 1
        %v5143 = vrot.slane %v4880, 1
        %v5144 = vsel %vm1698, %v5142, %v5143
        %v5145 = vrot.slane %v5121, 1
        %v5146 = vrot.slane %v4881, 1
        %v5147 = vsel %vm1698, %v5145, %v5146
        %v5148 = vrot.slane %v5122, 1
        %v5149 = vrot.slane %v4882, 1
        %v5150 = vsel %vm1698, %v5148, %v5149
        %v5151 = vrot.slane %v5123, 1
        %v5152 = vrot.slane %v4883, 1
        %v5153 = vsel %vm1698, %v5151, %v5152
        %v5154 = vrot.slane %v5124, 1
        %v5155 = vrot.slane %v4884, 1
        %v5156 = vsel %vm1698, %v5154, %v5155
        %v5157 = vrot.slane %v5125, 1
        %v5158 = vrot.slane %v4885, 1
        %v5159 = vsel %vm1698, %v5157, %v5158
        %v5160 = vrot.slane %v5126, 1
        %v5161 = vrot.slane %v4886, 1
        %v5162 = vsel %vm1698, %v5160, %v5161
        %v5163 = vrot.slane %v5127, 1
        %v5164 = vrot.slane %v4887, 1
        %v5165 = vsel %vm1698, %v5163, %v5164
        %v5166 = vrot.slane %v5128, 1
        %v5167 = vrot.slane %v4888, 1
        %v5168 = vsel %vm1698, %v5166, %v5167
        %v5169 = vrot.slane %v5129, 1
        %v5170 = vrot.slane %v4889, 1
        %v5171 = vsel %vm1698, %v5169, %v5170
        %v5172 = vrot.slane %v5130, 1
        %v5173 = vrot.slane %v4890, 1
        %v5174 = vsel %vm1698, %v5172, %v5173
        %v5175 = vrot.slane %v5131, 1
        %v5176 = vrot.slane %v4891, 1
        %v5177 = vsel %vm1698, %v5175, %v5176
        %v5178 = vrot.slane %v5132, 1
        %v5179 = vrot.slane %v4892, 1
        %v5180 = vsel %vm1698, %v5178, %v5179
        %5181 = vrot.lane.b32.xlu0 %v5135, 32
        %v5182 = vpop.permute.xlu0 %5181
        %5183 = vrot.lane.b32.xlu0 %v5138, 32
        %v5184 = vpop.permute.xlu0 %5183
        %5185 = vrot.lane.b32.xlu0 %v5141, 32
        %v5186 = vpop.permute.xlu0 %5185
        %5187 = vrot.lane.b32.xlu0 %v5144, 32
        %v5188 = vpop.permute.xlu0 %5187
        %5189 = vrot.lane.b32.xlu0 %v5147, 32
        %v5190 = vpop.permute.xlu0 %5189
        %5191 = vrot.lane.b32.xlu0 %v5150, 32
        %v5192 = vpop.permute.xlu0 %5191
        %5193 = vrot.lane.b32.xlu0 %v5153, 32
        %v5194 = vpop.permute.xlu0 %5193
        %5195 = vrot.lane.b32.xlu0 %v5156, 32
        %v5196 = vpop.permute.xlu0 %5195
        %5197 = vrot.lane.b32.xlu0 %v5159, 32
        %v5198 = vpop.permute.xlu0 %5197
        %5199 = vrot.lane.b32.xlu0 %v5162, 32
        %v5200 = vpop.permute.xlu0 %5199
        %5201 = vrot.lane.b32.xlu0 %v5165, 32
        %v5202 = vpop.permute.xlu0 %5201
        %5203 = vrot.lane.b32.xlu0 %v5168, 32
        %v5204 = vpop.permute.xlu0 %5203
        %5205 = vrot.lane.b32.xlu0 %v5171, 32
        %v5206 = vpop.permute.xlu0 %5205
        %5207 = vrot.lane.b32.xlu0 %v5174, 32
        %v5208 = vpop.permute.xlu0 %5207
        %5209 = vrot.lane.b32.xlu0 %v5177, 32
        %v5210 = vpop.permute.xlu0 %5209
        %5211 = vrot.lane.b32.xlu0 %v5180, 32
        %v5212 = vpop.permute.xlu0 %5211
        %v5245 = vunpack.c.l.b16 %v4189
        %v5246 = vunpack.c.l.b16 %v4190
        %v5247 = vunpack.c.l.b16 %v4191
        %v5248 = vunpack.c.l.b16 %v4192
        %v5249 = vunpack.c.l.b16 %v4193
        %v5250 = vunpack.c.l.b16 %v4194
        %v5251 = vunpack.c.l.b16 %v4195
        %v5252 = vunpack.c.l.b16 %v4196
        %v5253 = vunpack.c.l.b16 %v4197
        %v5254 = vunpack.c.l.b16 %v4198
        %v5255 = vunpack.c.l.b16 %v4199
        %v5256 = vunpack.c.l.b16 %v4200
        %v5257 = vunpack.c.l.b16 %v4201
        %v5258 = vunpack.c.l.b16 %v4202
        %v5259 = vunpack.c.l.b16 %v4203
        %v5260 = vunpack.c.l.b16 %v4204
        %v5261 = vunpack.c.l.b16 %v4205
        %v5262 = vunpack.c.l.b16 %v4206
        %v5263 = vunpack.c.l.b16 %v4207
        %v5264 = vunpack.c.l.b16 %v4208
        %v5265 = vunpack.c.l.b16 %v4209
        %v5266 = vunpack.c.l.b16 %v4210
        %v5267 = vunpack.c.l.b16 %v4211
        %v5268 = vunpack.c.l.b16 %v4212
        %v5269 = vunpack.c.l.b16 %v4213
        %v5270 = vunpack.c.l.b16 %v4214
        %v5271 = vunpack.c.l.b16 %v4215
        %v5272 = vunpack.c.l.b16 %v4216
        %v5273 = vunpack.c.l.b16 %v4217
        %v5274 = vunpack.c.l.b16 %v4218
        %v5275 = vunpack.c.l.b16 %v4219
        %v5276 = vunpack.c.l.b16 %v4220
        %v5277 = vpack.c.b16 %v5246, %v5245
        %v5278 = vpack.c.b16 %v5248, %v5247
        %v5279 = vpack.c.b16 %v5250, %v5249
        %v5280 = vpack.c.b16 %v5252, %v5251
        %v5281 = vpack.c.b16 %v5254, %v5253
        %v5282 = vpack.c.b16 %v5256, %v5255
        %v5283 = vpack.c.b16 %v5258, %v5257
        %v5284 = vpack.c.b16 %v5260, %v5259
        %v5285 = vpack.c.b16 %v5262, %v5261
        %v5286 = vpack.c.b16 %v5264, %v5263
        %v5287 = vpack.c.b16 %v5266, %v5265
        %v5288 = vpack.c.b16 %v5268, %v5267
        %v5289 = vpack.c.b16 %v5270, %v5269
        %v5290 = vpack.c.b16 %v5272, %v5271
        %v5291 = vpack.c.b16 %v5274, %v5273
        %v5292 = vpack.c.b16 %v5276, %v5275
        %5293 = vrot.lane.b32.xlu0 %v5277, 64
        %v5294 = vpop.permute.xlu0 %5293
        %5295 = vrot.lane.b32.xlu0 %v5278, 64
        %v5296 = vpop.permute.xlu0 %5295
        %5297 = vrot.lane.b32.xlu0 %v5279, 64
        %v5298 = vpop.permute.xlu0 %5297
        %5299 = vrot.lane.b32.xlu0 %v5280, 64
        %v5300 = vpop.permute.xlu0 %5299
        %5301 = vrot.lane.b32.xlu0 %v5281, 64
        %v5302 = vpop.permute.xlu0 %5301
        %5303 = vrot.lane.b32.xlu0 %v5282, 64
        %v5304 = vpop.permute.xlu0 %5303
        %5305 = vrot.lane.b32.xlu0 %v5283, 64
        %v5306 = vpop.permute.xlu0 %5305
        %5307 = vrot.lane.b32.xlu0 %v5284, 64
        %v5308 = vpop.permute.xlu0 %5307
        %5309 = vrot.lane.b32.xlu0 %v5285, 64
        %v5310 = vpop.permute.xlu0 %5309
        %5311 = vrot.lane.b32.xlu0 %v5286, 64
        %v5312 = vpop.permute.xlu0 %5311
        %5313 = vrot.lane.b32.xlu0 %v5287, 64
        %v5314 = vpop.permute.xlu0 %5313
        %5315 = vrot.lane.b32.xlu0 %v5288, 64
        %v5316 = vpop.permute.xlu0 %5315
        %5317 = vrot.lane.b32.xlu0 %v5289, 64
        %v5318 = vpop.permute.xlu0 %5317
        %5319 = vrot.lane.b32.xlu0 %v5290, 64
        %v5320 = vpop.permute.xlu0 %5319
        %5321 = vrot.lane.b32.xlu0 %v5291, 64
        %v5322 = vpop.permute.xlu0 %5321
        %5323 = vrot.lane.b32.xlu0 %v5292, 64
        %v5324 = vpop.permute.xlu0 %5323
        %v5341 = vunpack.c.l.b16 %v4221
        %v5342 = vunpack.c.l.b16 %v4222
        %v5343 = vunpack.c.l.b16 %v4223
        %v5344 = vunpack.c.l.b16 %v4224
        %v5345 = vunpack.c.l.b16 %v4225
        %v5346 = vunpack.c.l.b16 %v4226
        %v5347 = vunpack.c.l.b16 %v4227
        %v5348 = vunpack.c.l.b16 %v4228
        %v5349 = vunpack.c.l.b16 %v4229
        %v5350 = vunpack.c.l.b16 %v4230
        %v5351 = vunpack.c.l.b16 %v4231
        %v5352 = vunpack.c.l.b16 %v4232
        %v5353 = vunpack.c.l.b16 %v4233
        %v5354 = vunpack.c.l.b16 %v4234
        %v5355 = vunpack.c.l.b16 %v4235
        %v5356 = vunpack.c.l.b16 %v4236
        %v5357 = vpack.c.b16 %v5341, %v5341
        %v5358 = vpack.c.b16 %v5342, %v5342
        %v5359 = vpack.c.b16 %v5343, %v5343
        %v5360 = vpack.c.b16 %v5344, %v5344
        %v5361 = vpack.c.b16 %v5345, %v5345
        %v5362 = vpack.c.b16 %v5346, %v5346
        %v5363 = vpack.c.b16 %v5347, %v5347
        %v5364 = vpack.c.b16 %v5348, %v5348
        %v5365 = vpack.c.b16 %v5349, %v5349
        %v5366 = vpack.c.b16 %v5350, %v5350
        %v5367 = vpack.c.b16 %v5351, %v5351
        %v5368 = vpack.c.b16 %v5352, %v5352
        %v5369 = vpack.c.b16 %v5353, %v5353
        %v5370 = vpack.c.b16 %v5354, %v5354
        %v5371 = vpack.c.b16 %v5355, %v5355
        %v5372 = vpack.c.b16 %v5356, %v5356
        %v5374 = vshrl.u32 %v5277, 16
        %v5376 = vshll.u32 %v5277, 16
        %v5378 = vrot.slane %v5376, 1
        %v5379 = vor.u32 %v5374, %v5378
        %v5381 = vshll.u32 %v5357, 16
        %v5383 = vrot.slane %v5381, 1
        %v5384 = vsel %vm1425, %v5379, %v5383
        %v5386 = vshrl.u32 %v5278, 16
        %v5388 = vshll.u32 %v5278, 16
        %v5390 = vrot.slane %v5388, 1
        %v5391 = vor.u32 %v5386, %v5390
        %v5393 = vshll.u32 %v5358, 16
        %v5395 = vrot.slane %v5393, 1
        %v5396 = vsel %vm1425, %v5391, %v5395
        %v5398 = vshrl.u32 %v5279, 16
        %v5400 = vshll.u32 %v5279, 16
        %v5402 = vrot.slane %v5400, 1
        %v5403 = vor.u32 %v5398, %v5402
        %v5405 = vshll.u32 %v5359, 16
        %v5407 = vrot.slane %v5405, 1
        %v5408 = vsel %vm1425, %v5403, %v5407
        %v5410 = vshrl.u32 %v5280, 16
        %v5412 = vshll.u32 %v5280, 16
        %v5414 = vrot.slane %v5412, 1
        %v5415 = vor.u32 %v5410, %v5414
        %v5417 = vshll.u32 %v5360, 16
        %v5419 = vrot.slane %v5417, 1
        %v5420 = vsel %vm1425, %v5415, %v5419
        %v5422 = vshrl.u32 %v5281, 16
        %v5424 = vshll.u32 %v5281, 16
        %v5426 = vrot.slane %v5424, 1
        %v5427 = vor.u32 %v5422, %v5426
        %v5429 = vshll.u32 %v5361, 16
        %v5431 = vrot.slane %v5429, 1
        %v5432 = vsel %vm1425, %v5427, %v5431
        %v5434 = vshrl.u32 %v5282, 16
        %v5436 = vshll.u32 %v5282, 16
        %v5438 = vrot.slane %v5436, 1
        %v5439 = vor.u32 %v5434, %v5438
        %v5441 = vshll.u32 %v5362, 16
        %v5443 = vrot.slane %v5441, 1
        %v5444 = vsel %vm1425, %v5439, %v5443
        %v5446 = vshrl.u32 %v5283, 16
        %v5448 = vshll.u32 %v5283, 16
        %v5450 = vrot.slane %v5448, 1
        %v5451 = vor.u32 %v5446, %v5450
        %v5453 = vshll.u32 %v5363, 16
        %v5455 = vrot.slane %v5453, 1
        %v5456 = vsel %vm1425, %v5451, %v5455
        %v5458 = vshrl.u32 %v5284, 16
        %v5460 = vshll.u32 %v5284, 16
        %v5462 = vrot.slane %v5460, 1
        %v5463 = vor.u32 %v5458, %v5462
        %v5465 = vshll.u32 %v5364, 16
        %v5467 = vrot.slane %v5465, 1
        %v5468 = vsel %vm1425, %v5463, %v5467
        %v5470 = vshrl.u32 %v5285, 16
        %v5472 = vshll.u32 %v5285, 16
        %v5474 = vrot.slane %v5472, 1
        %v5475 = vor.u32 %v5470, %v5474
        %v5477 = vshll.u32 %v5365, 16
        %v5479 = vrot.slane %v5477, 1
        %v5480 = vsel %vm1425, %v5475, %v5479
        %v5482 = vshrl.u32 %v5286, 16
        %v5484 = vshll.u32 %v5286, 16
        %v5486 = vrot.slane %v5484, 1
        %v5487 = vor.u32 %v5482, %v5486
        %v5489 = vshll.u32 %v5366, 16
        %v5491 = vrot.slane %v5489, 1
        %v5492 = vsel %vm1425, %v5487, %v5491
        %v5494 = vshrl.u32 %v5287, 16
        %v5496 = vshll.u32 %v5287, 16
        %v5498 = vrot.slane %v5496, 1
        %v5499 = vor.u32 %v5494, %v5498
        %v5501 = vshll.u32 %v5367, 16
        %v5503 = vrot.slane %v5501, 1
        %v5504 = vsel %vm1425, %v5499, %v5503
        %v5506 = vshrl.u32 %v5288, 16
        %v5508 = vshll.u32 %v5288, 16
        %v5510 = vrot.slane %v5508, 1
        %v5511 = vor.u32 %v5506, %v5510
        %v5513 = vshll.u32 %v5368, 16
        %v5515 = vrot.slane %v5513, 1
        %v5516 = vsel %vm1425, %v5511, %v5515
        %v5518 = vshrl.u32 %v5289, 16
        %v5520 = vshll.u32 %v5289, 16
        %v5522 = vrot.slane %v5520, 1
        %v5523 = vor.u32 %v5518, %v5522
        %v5525 = vshll.u32 %v5369, 16
        %v5527 = vrot.slane %v5525, 1
        %v5528 = vsel %vm1425, %v5523, %v5527
        %v5530 = vshrl.u32 %v5290, 16
        %v5532 = vshll.u32 %v5290, 16
        %v5534 = vrot.slane %v5532, 1
        %v5535 = vor.u32 %v5530, %v5534
        %v5537 = vshll.u32 %v5370, 16
        %v5539 = vrot.slane %v5537, 1
        %v5540 = vsel %vm1425, %v5535, %v5539
        %v5542 = vshrl.u32 %v5291, 16
        %v5544 = vshll.u32 %v5291, 16
        %v5546 = vrot.slane %v5544, 1
        %v5547 = vor.u32 %v5542, %v5546
        %v5549 = vshll.u32 %v5371, 16
        %v5551 = vrot.slane %v5549, 1
        %v5552 = vsel %vm1425, %v5547, %v5551
        %v5554 = vshrl.u32 %v5292, 16
        %v5556 = vshll.u32 %v5292, 16
        %v5558 = vrot.slane %v5556, 1
        %v5559 = vor.u32 %v5554, %v5558
        %v5561 = vshll.u32 %v5372, 16
        %v5563 = vrot.slane %v5561, 1
        %v5564 = vsel %vm1425, %v5559, %v5563
        %5565 = vrot.lane.b32.xlu0 %v5384, 96
        %v5566 = vpop.permute.xlu0 %5565
        %5567 = vrot.lane.b32.xlu0 %v5396, 96
        %v5568 = vpop.permute.xlu0 %5567
        %5569 = vrot.lane.b32.xlu0 %v5408, 96
        %v5570 = vpop.permute.xlu0 %5569
        %5571 = vrot.lane.b32.xlu0 %v5420, 96
        %v5572 = vpop.permute.xlu0 %5571
        %5573 = vrot.lane.b32.xlu0 %v5432, 96
        %v5574 = vpop.permute.xlu0 %5573
        %5575 = vrot.lane.b32.xlu0 %v5444, 96
        %v5576 = vpop.permute.xlu0 %5575
        %5577 = vrot.lane.b32.xlu0 %v5456, 96
        %v5578 = vpop.permute.xlu0 %5577
        %5579 = vrot.lane.b32.xlu0 %v5468, 96
        %v5580 = vpop.permute.xlu0 %5579
        %5581 = vrot.lane.b32.xlu0 %v5480, 96
        %v5582 = vpop.permute.xlu0 %5581
        %5583 = vrot.lane.b32.xlu0 %v5492, 96
        %v5584 = vpop.permute.xlu0 %5583
        %5585 = vrot.lane.b32.xlu0 %v5504, 96
        %v5586 = vpop.permute.xlu0 %5585
        %5587 = vrot.lane.b32.xlu0 %v5516, 96
        %v5588 = vpop.permute.xlu0 %5587
        %5589 = vrot.lane.b32.xlu0 %v5528, 96
        %v5590 = vpop.permute.xlu0 %5589
        %5591 = vrot.lane.b32.xlu0 %v5540, 96
        %v5592 = vpop.permute.xlu0 %5591
        %5593 = vrot.lane.b32.xlu0 %v5552, 96
        %v5594 = vpop.permute.xlu0 %5593
        %5595 = vrot.lane.b32.xlu0 %v5564, 96
        %v5596 = vpop.permute.xlu0 %5595
        %v5613 = vunpack.c.l.b16 %v4237
        %v5614 = vunpack.c.l.b16 %v4238
        %v5615 = vunpack.c.l.b16 %v4239
        %v5616 = vunpack.c.l.b16 %v4240
        %v5617 = vunpack.c.l.b16 %v4241
        %v5618 = vunpack.c.l.b16 %v4242
        %v5619 = vunpack.c.l.b16 %v4243
        %v5620 = vunpack.c.l.b16 %v4244
        %v5621 = vunpack.c.l.b16 %v4245
        %v5622 = vunpack.c.l.b16 %v4246
        %v5623 = vunpack.c.l.b16 %v4247
        %v5624 = vunpack.c.l.b16 %v4248
        %v5625 = vunpack.c.l.b16 %v4249
        %v5626 = vunpack.c.l.b16 %v4250
        %v5627 = vunpack.c.l.b16 %v4251
        %v5628 = vunpack.c.l.b16 %v4252
        %v5629 = vpack.c.b16 %v5246, %v5613
        %v5630 = vpack.c.b16 %v5248, %v5614
        %v5631 = vpack.c.b16 %v5250, %v5615
        %v5632 = vpack.c.b16 %v5252, %v5616
        %v5633 = vpack.c.b16 %v5254, %v5617
        %v5634 = vpack.c.b16 %v5256, %v5618
        %v5635 = vpack.c.b16 %v5258, %v5619
        %v5636 = vpack.c.b16 %v5260, %v5620
        %v5637 = vpack.c.b16 %v5262, %v5621
        %v5638 = vpack.c.b16 %v5264, %v5622
        %v5639 = vpack.c.b16 %v5266, %v5623
        %v5640 = vpack.c.b16 %v5268, %v5624
        %v5641 = vpack.c.b16 %v5270, %v5625
        %v5642 = vpack.c.b16 %v5272, %v5626
        %v5643 = vpack.c.b16 %v5274, %v5627
        %v5644 = vpack.c.b16 %v5276, %v5628
        %v5645 = vrot.slane %v5629, 1
        %v5646 = vrot.slane %v5357, 1
        %v5647 = vsel %vm1698, %v5645, %v5646
        %v5648 = vrot.slane %v5630, 1
        %v5649 = vrot.slane %v5358, 1
        %v5650 = vsel %vm1698, %v5648, %v5649
        %v5651 = vrot.slane %v5631, 1
        %v5652 = vrot.slane %v5359, 1
        %v5653 = vsel %vm1698, %v5651, %v5652
        %v5654 = vrot.slane %v5632, 1
        %v5655 = vrot.slane %v5360, 1
        %v5656 = vsel %vm1698, %v5654, %v5655
        %v5657 = vrot.slane %v5633, 1
        %v5658 = vrot.slane %v5361, 1
        %v5659 = vsel %vm1698, %v5657, %v5658
        %v5660 = vrot.slane %v5634, 1
        %v5661 = vrot.slane %v5362, 1
        %v5662 = vsel %vm1698, %v5660, %v5661
        %v5663 = vrot.slane %v5635, 1
        %v5664 = vrot.slane %v5363, 1
        %v5665 = vsel %vm1698, %v5663, %v5664
        %v5666 = vrot.slane %v5636, 1
        %v5667 = vrot.slane %v5364, 1
        %v5668 = vsel %vm1698, %v5666, %v5667
        %v5669 = vrot.slane %v5637, 1
        %v5670 = vrot.slane %v5365, 1
        %v5671 = vsel %vm1698, %v5669, %v5670
        %v5672 = vrot.slane %v5638, 1
        %v5673 = vrot.slane %v5366, 1
        %v5674 = vsel %vm1698, %v5672, %v5673
        %v5675 = vrot.slane %v5639, 1
        %v5676 = vrot.slane %v5367, 1
        %v5677 = vsel %vm1698, %v5675, %v5676
        %v5678 = vrot.slane %v5640, 1
        %v5679 = vrot.slane %v5368, 1
        %v5680 = vsel %vm1698, %v5678, %v5679
        %v5681 = vrot.slane %v5641, 1
        %v5682 = vrot.slane %v5369, 1
        %v5683 = vsel %vm1698, %v5681, %v5682
        %v5684 = vrot.slane %v5642, 1
        %v5685 = vrot.slane %v5370, 1
        %v5686 = vsel %vm1698, %v5684, %v5685
        %v5687 = vrot.slane %v5643, 1
        %v5688 = vrot.slane %v5371, 1
        %v5689 = vsel %vm1698, %v5687, %v5688
        %v5690 = vrot.slane %v5644, 1
        %v5691 = vrot.slane %v5372, 1
        %v5692 = vsel %vm1698, %v5690, %v5691
        %v5694 = vsel %vm2804, %v4317, %v4574
        %v5696 = vsel %vm2804, %v4318, %v4576
        %v5698 = vsel %vm2804, %v4319, %v4578
        %v5700 = vsel %vm2804, %v4320, %v4580
        %v5702 = vsel %vm2804, %v4321, %v4582
        %v5704 = vsel %vm2804, %v4322, %v4584
        %v5706 = vsel %vm2804, %v4323, %v4586
        %v5708 = vsel %vm2804, %v4324, %v4588
        %v5710 = vsel %vm2804, %v4325, %v4590
        %v5712 = vsel %vm2804, %v4326, %v4592
        %v5714 = vsel %vm2804, %v4327, %v4594
        %v5716 = vsel %vm2804, %v4328, %v4596
        %v5718 = vsel %vm2804, %v4329, %v4598
        %v5720 = vsel %vm2804, %v4330, %v4600
        %v5722 = vsel %vm2804, %v4331, %v4602
        %v5724 = vsel %vm2804, %v4332, %v4604
        %v5726 = vsel %vm2870, %v5694, %v4702
        %v5728 = vsel %vm2870, %v5696, %v4704
        %v5730 = vsel %vm2870, %v5698, %v4706
        %v5732 = vsel %vm2870, %v5700, %v4708
        %v5734 = vsel %vm2870, %v5702, %v4710
        %v5736 = vsel %vm2870, %v5704, %v4712
        %v5738 = vsel %vm2870, %v5706, %v4714
        %v5740 = vsel %vm2870, %v5708, %v4716
        %v5742 = vsel %vm2870, %v5710, %v4718
        %v5744 = vsel %vm2870, %v5712, %v4720
        %v5746 = vsel %vm2870, %v5714, %v4722
        %v5748 = vsel %vm2870, %v5716, %v4724
        %v5750 = vsel %vm2870, %v5718, %v4726
        %v5752 = vsel %vm2870, %v5720, %v4728
        %v5754 = vsel %vm2870, %v5722, %v4730
        %v5756 = vsel %vm2870, %v5724, %v4732
        %v5758 = vsel %vm2936, %v5726, %v4814
        %v5761 = vsel %vm2936, %v5728, %v4816
        %v5764 = vsel %vm2936, %v5730, %v4818
        %v5767 = vsel %vm2936, %v5732, %v4820
        %v5770 = vsel %vm2936, %v5734, %v4822
        %v5773 = vsel %vm2936, %v5736, %v4824
        %v5776 = vsel %vm2936, %v5738, %v4826
        %v5779 = vsel %vm2936, %v5740, %v4828
        %v5782 = vsel %vm2936, %v5742, %v4830
        %v5785 = vsel %vm2936, %v5744, %v4832
        %v5788 = vsel %vm2936, %v5746, %v4834
        %v5791 = vsel %vm2936, %v5748, %v4836
        %v5794 = vsel %vm2936, %v5750, %v4838
        %v5797 = vsel %vm2936, %v5752, %v4840
        %v5800 = vsel %vm2936, %v5754, %v4842
        %v5803 = vsel %vm2936, %v5756, %v4844
        %v5807 = vsel %vm2804, %v4904, %v5182
        %v5810 = vsel %vm2804, %v4916, %v5184
        %v5813 = vsel %vm2804, %v4928, %v5186
        %v5816 = vsel %vm2804, %v4940, %v5188
        %v5819 = vsel %vm2804, %v4952, %v5190
        %v5822 = vsel %vm2804, %v4964, %v5192
        %v5825 = vsel %vm2804, %v4976, %v5194
        %v5828 = vsel %vm2804, %v4988, %v5196
        %v5831 = vsel %vm2804, %v5000, %v5198
        %v5834 = vsel %vm2804, %v5012, %v5200
        %v5837 = vsel %vm2804, %v5024, %v5202
        %v5840 = vsel %vm2804, %v5036, %v5204
        %v5843 = vsel %vm2804, %v5048, %v5206
        %v5846 = vsel %vm2804, %v5060, %v5208
        %v5849 = vsel %vm2804, %v5072, %v5210
        %v5852 = vsel %vm2804, %v5084, %v5212
        %v5854 = vsel %vm2870, %v5807, %v5294
        %v5856 = vsel %vm2870, %v5810, %v5296
        %v5858 = vsel %vm2870, %v5813, %v5298
        %v5860 = vsel %vm2870, %v5816, %v5300
        %v5862 = vsel %vm2870, %v5819, %v5302
        %v5864 = vsel %vm2870, %v5822, %v5304
        %v5866 = vsel %vm2870, %v5825, %v5306
        %v5868 = vsel %vm2870, %v5828, %v5308
        %v5870 = vsel %vm2870, %v5831, %v5310
        %v5872 = vsel %vm2870, %v5834, %v5312
        %v5874 = vsel %vm2870, %v5837, %v5314
        %v5876 = vsel %vm2870, %v5840, %v5316
        %v5878 = vsel %vm2870, %v5843, %v5318
        %v5880 = vsel %vm2870, %v5846, %v5320
        %v5882 = vsel %vm2870, %v5849, %v5322
        %v5884 = vsel %vm2870, %v5852, %v5324
        %v5886 = vsel %vm2936, %v5854, %v5566
        %v5889 = vsel %vm2936, %v5856, %v5568
        %v5892 = vsel %vm2936, %v5858, %v5570
        %v5895 = vsel %vm2936, %v5860, %v5572
        %v5898 = vsel %vm2936, %v5862, %v5574
        %v5901 = vsel %vm2936, %v5864, %v5576
        %v5904 = vsel %vm2936, %v5866, %v5578
        %v5907 = vsel %vm2936, %v5868, %v5580
        %v5910 = vsel %vm2936, %v5870, %v5582
        %v5913 = vsel %vm2936, %v5872, %v5584
        %v5916 = vsel %vm2936, %v5874, %v5586
        %v5919 = vsel %vm2936, %v5876, %v5588
        %v5922 = vsel %vm2936, %v5878, %v5590
        %v5925 = vsel %vm2936, %v5880, %v5592
        %v5928 = vsel %vm2936, %v5882, %v5594
        %v5931 = vsel %vm2936, %v5884, %v5596
        %v5933 = vld [vmem:[%s4] sm:$0xf]
        %v5934 = vld [vmem:[%s4 + $0x4] sm:$0xf]
        %v5935 = vld [vmem:[%s4 + $0x8] sm:$0xf]
        %v5936 = vld [vmem:[%s4 + $0xc] sm:$0xf]
        %v5937 = vld [vmem:[%s4 + $0x10] sm:$0xf]
        %v5938 = vld [vmem:[%s4 + $0x14] sm:$0xf]
        %v5939 = vld [vmem:[%s4 + $0x18] sm:$0xf]
        %v5940 = vld [vmem:[%s4 + $0x1c] sm:$0xf]
        %v5941 = vld [vmem:[%s4 + $0x20] sm:$0xf]
        %v5942 = vld [vmem:[%s4 + $0x24] sm:$0xf]
        %v5943 = vld [vmem:[%s4 + $0x28] sm:$0xf]
        %v5944 = vld [vmem:[%s4 + $0x2c] sm:$0xf]
        %v5945 = vld [vmem:[%s4 + $0x30] sm:$0xf]
        %v5946 = vld [vmem:[%s4 + $0x34] sm:$0xf]
        %v5947 = vld [vmem:[%s4 + $0x38] sm:$0xf]
        %v5948 = vld [vmem:[%s4 + $0x3c] sm:$0xf]
        %v5949 = vld [vmem:[%s4 + $0x40] sm:$0xf]
        %v5950 = vld [vmem:[%s4 + $0x44] sm:$0xf]
        %v5951 = vld [vmem:[%s4 + $0x48] sm:$0xf]
        %v5952 = vld [vmem:[%s4 + $0x4c] sm:$0xf]
        %v5953 = vld [vmem:[%s4 + $0x50] sm:$0xf]
        %v5954 = vld [vmem:[%s4 + $0x54] sm:$0xf]
        %v5955 = vld [vmem:[%s4 + $0x58] sm:$0xf]
        %v5956 = vld [vmem:[%s4 + $0x5c] sm:$0xf]
        %v5957 = vld [vmem:[%s4 + $0x60] sm:$0xf]
        %v5958 = vld [vmem:[%s4 + $0x64] sm:$0xf]
        %v5959 = vld [vmem:[%s4 + $0x68] sm:$0xf]
        %v5960 = vld [vmem:[%s4 + $0x6c] sm:$0xf]
        %v5961 = vld [vmem:[%s4 + $0x70] sm:$0xf]
        %v5962 = vld [vmem:[%s4 + $0x74] sm:$0xf]
        %v5963 = vld [vmem:[%s4 + $0x78] sm:$0xf]
        %v5964 = vld [vmem:[%s4 + $0x7c] sm:$0xf]
        %v5965 = vld [vmem:[%s4 + $0x80] sm:$0xf]
        %v5966 = vld [vmem:[%s4 + $0x84] sm:$0xf]
        %v5967 = vld [vmem:[%s4 + $0x88] sm:$0xf]
        %v5968 = vld [vmem:[%s4 + $0x8c] sm:$0xf]
        %v6005 = vunpack.c.l.b16 %v5933
        %v6006 = vunpack.c.l.b16 %v5934
        %v6007 = vunpack.c.l.b16 %v5935
        %v6008 = vunpack.c.l.b16 %v5936
        %v6009 = vunpack.c.l.b16 %v5937
        %v6010 = vunpack.c.l.b16 %v5938
        %v6011 = vunpack.c.l.b16 %v5939
        %v6012 = vunpack.c.l.b16 %v5940
        %v6013 = vunpack.c.l.b16 %v5941
        %v6014 = vunpack.c.l.b16 %v5942
        %v6015 = vunpack.c.l.b16 %v5943
        %v6016 = vunpack.c.l.b16 %v5944
        %v6017 = vunpack.c.l.b16 %v5945
        %v6018 = vunpack.c.l.b16 %v5946
        %v6019 = vunpack.c.l.b16 %v5947
        %v6020 = vunpack.c.l.b16 %v5948
        %v6021 = vunpack.c.l.b16 %v5949
        %v6022 = vunpack.c.l.b16 %v5950
        %v6023 = vunpack.c.l.b16 %v5951
        %v6024 = vunpack.c.l.b16 %v5952
        %v6025 = vunpack.c.l.b16 %v5953
        %v6026 = vunpack.c.l.b16 %v5954
        %v6027 = vunpack.c.l.b16 %v5955
        %v6028 = vunpack.c.l.b16 %v5956
        %v6029 = vunpack.c.l.b16 %v5957
        %v6030 = vunpack.c.l.b16 %v5958
        %v6031 = vunpack.c.l.b16 %v5959
        %v6032 = vunpack.c.l.b16 %v5960
        %v6033 = vunpack.c.l.b16 %v5961
        %v6034 = vunpack.c.l.b16 %v5962
        %v6035 = vunpack.c.l.b16 %v5963
        %v6036 = vunpack.c.l.b16 %v5964
        %v6037 = vunpack.c.l.b16 %v5965
        %v6038 = vunpack.c.l.b16 %v5966
        %v6039 = vunpack.c.l.b16 %v5967
        %v6040 = vunpack.c.l.b16 %v5968
        %v6041 = vpack.c.b16 %v6006, %v6005
        %v6042 = vpack.c.b16 %v6008, %v6007
        %v6043 = vpack.c.b16 %v6010, %v6009
        %v6044 = vpack.c.b16 %v6012, %v6011
        %v6045 = vpack.c.b16 %v6014, %v6013
        %v6046 = vpack.c.b16 %v6016, %v6015
        %v6047 = vpack.c.b16 %v6018, %v6017
        %v6048 = vpack.c.b16 %v6020, %v6019
        %v6049 = vpack.c.b16 %v6022, %v6021
        %v6050 = vpack.c.b16 %v6024, %v6023
        %v6051 = vpack.c.b16 %v6026, %v6025
        %v6052 = vpack.c.b16 %v6028, %v6027
        %v6053 = vpack.c.b16 %v6030, %v6029
        %v6054 = vpack.c.b16 %v6032, %v6031
        %v6055 = vpack.c.b16 %v6034, %v6033
        %v6056 = vpack.c.b16 %v6036, %v6035
        %v6057 = vpack.c.b16 %v6038, %v6037
        %v6058 = vpack.c.b16 %v6040, %v6039
        %v6078 = vsel %vm2804, %v5647, 0
        %v6081 = vsel %vm2804, %v5650, 0
        %v6084 = vsel %vm2804, %v5653, 0
        %v6087 = vsel %vm2804, %v5656, 0
        %v6090 = vsel %vm2804, %v5659, 0
        %v6093 = vsel %vm2804, %v5662, 0
        %v6096 = vsel %vm2804, %v5665, 0
        %v6099 = vsel %vm2804, %v5668, 0
        %v6102 = vsel %vm2804, %v5671, 0
        %v6105 = vsel %vm2804, %v5674, 0
        %v6108 = vsel %vm2804, %v5677, 0
        %v6111 = vsel %vm2804, %v5680, 0
        %v6114 = vsel %vm2804, %v5683, 0
        %v6117 = vsel %vm2804, %v5686, 0
        %v6120 = vsel %vm2804, %v5689, 0
        %v6123 = vsel %vm2804, %v5692, 0
        %6125 = vmatprep.subr.bf16.mxu0 0
        %6126 = vmatpush1.bf16.msra.mxu0 %v6041
        %6127 = vmatprep.subr.bf16.mxu0 0
        %6128 = vmatpush1.bf16.msra.mxu0 %v6042
        %6129 = vmatprep.subr.bf16.mxu0 0
        %6130 = vmatpush1.bf16.msra.mxu0 %v6043
        %6131 = vmatprep.subr.bf16.mxu0 0
        %6132 = vmatpush1.bf16.msra.mxu0 %v6044
        %6133 = vmatprep.subr.bf16.mxu0 0
        %6134 = vmatpush1.bf16.msra.mxu0 %v6045
        %6135 = vmatprep.subr.bf16.mxu0 0
        %6136 = vmatpush1.bf16.msra.mxu0 %v6046
        %6137 = vmatprep.subr.bf16.mxu0 0
        %6138 = vmatpush1.bf16.msra.mxu0 %v6047
        %6139 = vmatprep.subr.bf16.mxu0 0
        %6140 = vmatpush1.bf16.msra.mxu0 %v6048
        %6141 = vmatprep.subr.bf16.mxu0 0
        %6142 = vmatpush1.bf16.msra.mxu0 %v6049
        %6143 = vmatprep.subr.bf16.mxu0 0
        %6144 = vmatpush1.bf16.msra.mxu0 %v6050
        %6145 = vmatprep.subr.bf16.mxu0 0
        %6146 = vmatpush1.bf16.msra.mxu0 %v6051
        %6147 = vmatprep.subr.bf16.mxu0 0
        %6148 = vmatpush1.bf16.msra.mxu0 %v6052
        %6149 = vmatprep.subr.bf16.mxu0 0
        %6150 = vmatpush1.bf16.msra.mxu0 %v6053
        %6151 = vmatprep.subr.bf16.mxu0 0
        %6152 = vmatpush1.bf16.msra.mxu0 %v6054
        %6153 = vmatprep.subr.bf16.mxu0 0
        %6154 = vmatpush1.bf16.msra.mxu0 %v6055
        %6155 = vmatprep.subr.bf16.mxu0 0
        %6156 = vmatpush1.bf16.msra.mxu0 %v6056
        %6157 = vmatprep.mubr.bf16.mxu0 %v5886
        %6158 = vmatmul.mubr.bf16.gmra.mrb[0].mxu0 %v5758
        %v6159 = vpop.f32.mrb[0].mxu0
        %v6160 = vadd.f32 0.0, %v6159
        %v6161 = vpop.f32.mrb[0].mxu0
        %v6162 = vpop.f32.mrb[0].mxu0
        %v6163 = vadd.f32 0.0, %v6162
        %v6164 = vpop.f32.mrb[0].mxu0
        %6165 = vmatprep.mubr.bf16.mxu0 %v5889
        %6166 = vmatmul.mubr.bf16.gmra.mrb[0].mxu0 %v5761
        %v6167 = vpop.f32.mrb[0].mxu0
        %v6168 = vadd.f32 0.0, %v6167
        %v6169 = vpop.f32.mrb[0].mxu0
        %v6170 = vpop.f32.mrb[0].mxu0
        %v6171 = vadd.f32 0.0, %v6170
        %v6172 = vpop.f32.mrb[0].mxu0
        %6173 = vmatprep.mubr.bf16.mxu0 %v5892
        %6174 = vmatmul.mubr.bf16.gmra.mrb[0].mxu0 %v5764
        %v6175 = vpop.f32.mrb[0].mxu0
        %v6176 = vadd.f32 0.0, %v6175
        %v6177 = vpop.f32.mrb[0].mxu0
        %v6178 = vpop.f32.mrb[0].mxu0
        %v6179 = vadd.f32 0.0, %v6178
        %v6180 = vpop.f32.mrb[0].mxu0
        %6181 = vmatprep.mubr.bf16.mxu0 %v5895
        %6182 = vmatmul.mubr.bf16.gmra.mrb[0].mxu0 %v5767
        %v6183 = vpop.f32.mrb[0].mxu0
        %v6184 = vadd.f32 0.0, %v6183
        %v6185 = vpop.f32.mrb[0].mxu0
        %v6186 = vpop.f32.mrb[0].mxu0
        %v6187 = vadd.f32 0.0, %v6186
        %v6188 = vpop.f32.mrb[0].mxu0
        %6189 = vmatprep.mubr.bf16.mxu0 %v5898
        %6190 = vmatmul.mubr.bf16.gmra.mrb[0].mxu0 %v5770
        %v6191 = vpop.f32.mrb[0].mxu0
        %v6192 = vadd.f32 0.0, %v6191
        %v6193 = vpop.f32.mrb[0].mxu0
        %v6194 = vpop.f32.mrb[0].mxu0
        %v6195 = vadd.f32 0.0, %v6194
        %v6196 = vpop.f32.mrb[0].mxu0
        %6197 = vmatprep.mubr.bf16.mxu0 %v5901
        %6198 = vmatmul.mubr.bf16.gmra.mrb[0].mxu0 %v5773
        %v6199 = vpop.f32.mrb[0].mxu0
        %v6200 = vadd.f32 0.0, %v6199
        %v6201 = vpop.f32.mrb[0].mxu0
        %v6202 = vpop.f32.mrb[0].mxu0
        %v6203 = vadd.f32 0.0, %v6202
        %v6204 = vpop.f32.mrb[0].mxu0
        %6205 = vmatprep.mubr.bf16.mxu0 %v5904
        %6206 = vmatmul.mubr.bf16.gmra.mrb[0].mxu0 %v5776
        %v6207 = vpop.f32.mrb[0].mxu0
        %v6208 = vadd.f32 0.0, %v6207
        %v6209 = vpop.f32.mrb[0].mxu0
        %v6210 = vpop.f32.mrb[0].mxu0
        %v6211 = vadd.f32 0.0, %v6210
        %v6212 = vpop.f32.mrb[0].mxu0
        %6213 = vmatprep.mubr.bf16.mxu0 %v5907
        %6214 = vmatmul.mubr.bf16.gmra.mrb[0].mxu0 %v5779
        %v6215 = vpop.f32.mrb[0].mxu0
        %v6216 = vadd.f32 0.0, %v6215
        %v6217 = vpop.f32.mrb[0].mxu0
        %v6218 = vpop.f32.mrb[0].mxu0
        %v6219 = vadd.f32 0.0, %v6218
        %v6220 = vpop.f32.mrb[0].mxu0
        %6221 = vmatprep.mubr.bf16.mxu0 %v5910
        %6222 = vmatmul.mubr.bf16.gmra.mrb[0].mxu0 %v5782
        %v6223 = vpop.f32.mrb[0].mxu0
        %v6224 = vadd.f32 0.0, %v6223
        %v6225 = vpop.f32.mrb[0].mxu0
        %v6226 = vpop.f32.mrb[0].mxu0
        %v6227 = vadd.f32 0.0, %v6226
        %v6228 = vpop.f32.mrb[0].mxu0
        %6229 = vmatprep.mubr.bf16.mxu0 %v5913
        %6230 = vmatmul.mubr.bf16.gmra.mrb[0].mxu0 %v5785
        %v6231 = vpop.f32.mrb[0].mxu0
        %v6232 = vadd.f32 0.0, %v6231
        %v6233 = vpop.f32.mrb[0].mxu0
        %v6234 = vpop.f32.mrb[0].mxu0
        %v6235 = vadd.f32 0.0, %v6234
        %v6236 = vpop.f32.mrb[0].mxu0
        %6237 = vmatprep.mubr.bf16.mxu0 %v5916
        %6238 = vmatmul.mubr.bf16.gmra.mrb[0].mxu0 %v5788
        %v6239 = vpop.f32.mrb[0].mxu0
        %v6240 = vadd.f32 0.0, %v6239
        %v6241 = vpop.f32.mrb[0].mxu0
        %v6242 = vpop.f32.mrb[0].mxu0
        %v6243 = vadd.f32 0.0, %v6242
        %v6244 = vpop.f32.mrb[0].mxu0
        %6245 = vmatprep.mubr.bf16.mxu0 %v5919
        %6246 = vmatmul.mubr.bf16.gmra.mrb[0].mxu0 %v5791
        %v6247 = vpop.f32.mrb[0].mxu0
        %v6248 = vadd.f32 0.0, %v6247
        %v6249 = vpop.f32.mrb[0].mxu0
        %v6250 = vpop.f32.mrb[0].mxu0
        %v6251 = vadd.f32 0.0, %v6250
        %v6252 = vpop.f32.mrb[0].mxu0
        %6253 = vmatprep.mubr.bf16.mxu0 %v5922
        %6254 = vmatmul.mubr.bf16.gmra.mrb[0].mxu0 %v5794
        %v6255 = vpop.f32.mrb[0].mxu0
        %v6256 = vadd.f32 0.0, %v6255
        %v6257 = vpop.f32.mrb[0].mxu0
        %v6258 = vpop.f32.mrb[0].mxu0
        %v6259 = vadd.f32 0.0, %v6258
        %v6260 = vpop.f32.mrb[0].mxu0
        %6261 = vmatprep.mubr.bf16.mxu0 %v5925
        %6262 = vmatmul.mubr.bf16.gmra.mrb[0].mxu0 %v5797
        %v6263 = vpop.f32.mrb[0].mxu0
        %v6264 = vadd.f32 0.0, %v6263
        %v6265 = vpop.f32.mrb[0].mxu0
        %v6266 = vpop.f32.mrb[0].mxu0
        %v6267 = vadd.f32 0.0, %v6266
        %v6268 = vpop.f32.mrb[0].mxu0
        %6269 = vmatprep.mubr.bf16.mxu0 %v5928
        %6270 = vmatmul.mubr.bf16.gmra.mrb[0].mxu0 %v5800
        %v6271 = vpop.f32.mrb[0].mxu0
        %v6272 = vadd.f32 0.0, %v6271
        %v6273 = vpop.f32.mrb[0].mxu0
        %v6274 = vpop.f32.mrb[0].mxu0
        %v6275 = vadd.f32 0.0, %v6274
        %v6276 = vpop.f32.mrb[0].mxu0
        %6277 = vmatprep.mubr.bf16.mxu0 %v5931
        %6278 = vmatmul.mubr.bf16.gmra.mrb[0].mxu0 %v5803
        %v6279 = vpop.f32.mrb[0].mxu0
        %v6280 = vadd.f32 0.0, %v6279
        %v6281 = vpop.f32.mrb[0].mxu0
        %v6282 = vpop.f32.mrb[0].mxu0
        %v6283 = vadd.f32 0.0, %v6282
        %v6284 = vpop.f32.mrb[0].mxu0
        %6285 = vdwg.mxu0
        %6286 = vmatprep.subr.bf16.mxu0 0
        %6287 = vmatpush1.bf16.msra.mxu0 %v6057
        %6288 = vmatprep.subr.bf16.mxu0 0
        %6289 = vmatpush1.bf16.msra.mxu0 %v6058
        %6290 = vmatprep.subr.bf16.mxu0 0
        %6291 = vmatpush1.bf16.msra.mxu0 0
        %6292 = vmatprep.subr.bf16.mxu0 0
        %6293 = vmatpush1.bf16.msra.mxu0 0
        %6294 = vmatprep.subr.bf16.mxu0 0
        %6295 = vmatpush1.bf16.msra.mxu0 0
        %6296 = vmatprep.subr.bf16.mxu0 0
        %6297 = vmatpush1.bf16.msra.mxu0 0
        %6298 = vmatprep.subr.bf16.mxu0 0
        %6299 = vmatpush1.bf16.msra.mxu0 0
        %6300 = vmatprep.subr.bf16.mxu0 0
        %6301 = vmatpush1.bf16.msra.mxu0 0
        %6302 = vmatprep.subr.bf16.mxu0 0
        %6303 = vmatpush1.bf16.msra.mxu0 0
        %6304 = vmatprep.subr.bf16.mxu0 0
        %6305 = vmatpush1.bf16.msra.mxu0 0
        %6306 = vmatprep.subr.bf16.mxu0 0
        %6307 = vmatpush1.bf16.msra.mxu0 0
        %6308 = vmatprep.subr.bf16.mxu0 0
        %6309 = vmatpush1.bf16.msra.mxu0 0
        %6310 = vmatprep.subr.bf16.mxu0 0
        %6311 = vmatpush1.bf16.msra.mxu0 0
        %6312 = vmatprep.subr.bf16.mxu0 0
        %6313 = vmatpush1.bf16.msra.mxu0 0
        %6314 = vmatprep.subr.bf16.mxu0 0
        %6315 = vmatpush1.bf16.msra.mxu0 0
        %6316 = vmatprep.subr.bf16.mxu0 0
        %6317 = vmatpush1.bf16.msra.mxu0 0
        %6318 = vmatprep.mubr.bf16.mxu0 0
        %6319 = vmatmul.mubr.bf16.gmra.mrb[0].mxu0 %v6078
        %v6320 = vpop.f32.mrb[0].mxu0
        %v6321 = vadd.f32 %v6160, %v6320
        %v6322 = vpop.f32.mrb[0].mxu0
        %v6323 = vpop.f32.mrb[0].mxu0
        %v6324 = vadd.f32 %v6163, %v6323
        %v6325 = vpop.f32.mrb[0].mxu0
        %6326 = vmatprep.mubr.bf16.mxu0 0
        %6327 = vmatmul.mubr.bf16.gmra.mrb[0].mxu0 %v6081
        %v6328 = vpop.f32.mrb[0].mxu0
        %v6329 = vadd.f32 %v6168, %v6328
        %v6330 = vpop.f32.mrb[0].mxu0
        %v6331 = vpop.f32.mrb[0].mxu0
        %v6332 = vadd.f32 %v6171, %v6331
        %v6333 = vpop.f32.mrb[0].mxu0
        %6334 = vmatprep.mubr.bf16.mxu0 0
        %6335 = vmatmul.mubr.bf16.gmra.mrb[0].mxu0 %v6084
        %v6336 = vpop.f32.mrb[0].mxu0
        %v6337 = vadd.f32 %v6176, %v6336
        %v6338 = vpop.f32.mrb[0].mxu0
        %v6339 = vpop.f32.mrb[0].mxu0
        %v6340 = vadd.f32 %v6179, %v6339
        %v6341 = vpop.f32.mrb[0].mxu0
        %6342 = vmatprep.mubr.bf16.mxu0 0
        %6343 = vmatmul.mubr.bf16.gmra.mrb[0].mxu0 %v6087
        %v6344 = vpop.f32.mrb[0].mxu0
        %v6345 = vadd.f32 %v6184, %v6344
        %v6346 = vpop.f32.mrb[0].mxu0
        %v6347 = vpop.f32.mrb[0].mxu0
        %v6348 = vadd.f32 %v6187, %v6347
        %v6349 = vpop.f32.mrb[0].mxu0
        %6350 = vmatprep.mubr.bf16.mxu0 0
        %6351 = vmatmul.mubr.bf16.gmra.mrb[0].mxu0 %v6090
        %v6352 = vpop.f32.mrb[0].mxu0
        %v6353 = vadd.f32 %v6192, %v6352
        %v6354 = vpop.f32.mrb[0].mxu0
        %v6355 = vpop.f32.mrb[0].mxu0
        %v6356 = vadd.f32 %v6195, %v6355
        %v6357 = vpop.f32.mrb[0].mxu0
        %6358 = vmatprep.mubr.bf16.mxu0 0
        %6359 = vmatmul.mubr.bf16.gmra.mrb[0].mxu0 %v6093
        %v6360 = vpop.f32.mrb[0].mxu0
        %v6361 = vadd.f32 %v6200, %v6360
        %v6362 = vpop.f32.mrb[0].mxu0
        %v6363 = vpop.f32.mrb[0].mxu0
        %v6364 = vadd.f32 %v6203, %v6363
        %v6365 = vpop.f32.mrb[0].mxu0
        %6366 = vmatprep.mubr.bf16.mxu0 0
        %6367 = vmatmul.mubr.bf16.gmra.mrb[0].mxu0 %v6096
        %v6368 = vpop.f32.mrb[0].mxu0
        %v6369 = vadd.f32 %v6208, %v6368
        %v6370 = vpop.f32.mrb[0].mxu0
        %v6371 = vpop.f32.mrb[0].mxu0
        %v6372 = vadd.f32 %v6211, %v6371
        %v6373 = vpop.f32.mrb[0].mxu0
        %6374 = vmatprep.mubr.bf16.mxu0 0
        %6375 = vmatmul.mubr.bf16.gmra.mrb[0].mxu0 %v6099
        %v6376 = vpop.f32.mrb[0].mxu0
        %v6377 = vadd.f32 %v6216, %v6376
        %v6378 = vpop.f32.mrb[0].mxu0
        %v6379 = vpop.f32.mrb[0].mxu0
        %v6380 = vadd.f32 %v6219, %v6379
        %v6381 = vpop.f32.mrb[0].mxu0
        %6382 = vmatprep.mubr.bf16.mxu0 0
        %6383 = vmatmul.mubr.bf16.gmra.mrb[0].mxu0 %v6102
        %v6384 = vpop.f32.mrb[0].mxu0
        %v6385 = vadd.f32 %v6224, %v6384
        %v6386 = vpop.f32.mrb[0].mxu0
        %v6387 = vpop.f32.mrb[0].mxu0
        %v6388 = vadd.f32 %v6227, %v6387
        %v6389 = vpop.f32.mrb[0].mxu0
        %6390 = vmatprep.mubr.bf16.mxu0 0
        %6391 = vmatmul.mubr.bf16.gmra.mrb[0].mxu0 %v6105
        %v6392 = vpop.f32.mrb[0].mxu0
        %v6393 = vadd.f32 %v6232, %v6392
        %v6394 = vpop.f32.mrb[0].mxu0
        %v6395 = vpop.f32.mrb[0].mxu0
        %v6396 = vadd.f32 %v6235, %v6395
        %v6397 = vpop.f32.mrb[0].mxu0
        %6398 = vmatprep.mubr.bf16.mxu0 0
        %6399 = vmatmul.mubr.bf16.gmra.mrb[0].mxu0 %v6108
        %v6400 = vpop.f32.mrb[0].mxu0
        %v6401 = vadd.f32 %v6240, %v6400
        %v6402 = vpop.f32.mrb[0].mxu0
        %v6403 = vpop.f32.mrb[0].mxu0
        %v6404 = vadd.f32 %v6243, %v6403
        %v6405 = vpop.f32.mrb[0].mxu0
        %6406 = vmatprep.mubr.bf16.mxu0 0
        %6407 = vmatmul.mubr.bf16.gmra.mrb[0].mxu0 %v6111
        %v6408 = vpop.f32.mrb[0].mxu0
        %v6409 = vadd.f32 %v6248, %v6408
        %v6410 = vpop.f32.mrb[0].mxu0
        %v6411 = vpop.f32.mrb[0].mxu0
        %v6412 = vadd.f32 %v6251, %v6411
        %v6413 = vpop.f32.mrb[0].mxu0
        %6414 = vmatprep.mubr.bf16.mxu0 0
        %6415 = vmatmul.mubr.bf16.gmra.mrb[0].mxu0 %v6114
        %v6416 = vpop.f32.mrb[0].mxu0
        %v6417 = vadd.f32 %v6256, %v6416
        %v6418 = vpop.f32.mrb[0].mxu0
        %v6419 = vpop.f32.mrb[0].mxu0
        %v6420 = vadd.f32 %v6259, %v6419
        %v6421 = vpop.f32.mrb[0].mxu0
        %6422 = vmatprep.mubr.bf16.mxu0 0
        %6423 = vmatmul.mubr.bf16.gmra.mrb[0].mxu0 %v6117
        %v6424 = vpop.f32.mrb[0].mxu0
        %v6425 = vadd.f32 %v6264, %v6424
        %v6426 = vpop.f32.mrb[0].mxu0
        %v6427 = vpop.f32.mrb[0].mxu0
        %v6428 = vadd.f32 %v6267, %v6427
        %v6429 = vpop.f32.mrb[0].mxu0
        %6430 = vmatprep.mubr.bf16.mxu0 0
        %6431 = vmatmul.mubr.bf16.gmra.mrb[0].mxu0 %v6120
        %v6432 = vpop.f32.mrb[0].mxu0
        %v6433 = vadd.f32 %v6272, %v6432
        %v6434 = vpop.f32.mrb[0].mxu0
        %v6435 = vpop.f32.mrb[0].mxu0
        %v6436 = vadd.f32 %v6275, %v6435
        %v6437 = vpop.f32.mrb[0].mxu0
        %6438 = vmatprep.mubr.bf16.mxu0 0
        %6439 = vmatmul.mubr.bf16.gmra.mrb[0].mxu0 %v6123
        %v6440 = vpop.f32.mrb[0].mxu0
        %v6441 = vadd.f32 %v6280, %v6440
        %v6442 = vpop.f32.mrb[0].mxu0
        %v6443 = vpop.f32.mrb[0].mxu0
        %v6444 = vadd.f32 %v6283, %v6443
        %v6445 = vpop.f32.mrb[0].mxu0
        %6446 = vdwg.mxu0
        %v6447 = vld [vmem:[%s5] sm:$0x1]
        %v6449 = vlaneseq
        %v6450 = vshrl.u32 %v6449, 7
        %v6451 = vsub.s32 0, %v6450
        %v6452 = vrot.slane %v6447, %v6451
        %v6454 = vmul.f32 %v6321, %v6452
        %v6455 = vmul.f32 %v6324, %v6452
        %v6456 = vmul.f32 %v6329, %v6452
        %v6457 = vmul.f32 %v6332, %v6452
        %v6458 = vmul.f32 %v6337, %v6452
        %v6459 = vmul.f32 %v6340, %v6452
        %v6460 = vmul.f32 %v6345, %v6452
        %v6461 = vmul.f32 %v6348, %v6452
        %v6462 = vmul.f32 %v6353, %v6452
        %v6463 = vmul.f32 %v6356, %v6452
        %v6464 = vmul.f32 %v6361, %v6452
        %v6465 = vmul.f32 %v6364, %v6452
        %v6466 = vmul.f32 %v6369, %v6452
        %v6467 = vmul.f32 %v6372, %v6452
        %v6468 = vmul.f32 %v6377, %v6452
        %v6469 = vmul.f32 %v6380, %v6452
        %v6470 = vmul.f32 %v6385, %v6452
        %v6471 = vmul.f32 %v6388, %v6452
        %v6472 = vmul.f32 %v6393, %v6452
        %v6473 = vmul.f32 %v6396, %v6452
        %v6474 = vmul.f32 %v6401, %v6452
        %v6475 = vmul.f32 %v6404, %v6452
        %v6476 = vmul.f32 %v6409, %v6452
        %v6477 = vmul.f32 %v6412, %v6452
        %v6478 = vmul.f32 %v6417, %v6452
        %v6479 = vmul.f32 %v6420, %v6452
        %v6480 = vmul.f32 %v6425, %v6452
        %v6481 = vmul.f32 %v6428, %v6452
        %v6482 = vmul.f32 %v6433, %v6452
        %v6483 = vmul.f32 %v6436, %v6452
        %v6484 = vmul.f32 %v6441, %v6452
        %v6485 = vmul.f32 %v6444, %v6452
        %v6486 = vld [vmem:[%s6] sm:$0x1]
        %v6488 = vlaneseq
        %v6489 = vshrl.u32 %v6488, 7
        %v6490 = vsub.s32 0, %v6489
        %v6491 = vrot.slane %v6486, %v6490
        %v6493 = vadd.f32 %v6454, %v6491
        %v6494 = vadd.f32 %v6455, %v6491
        %v6495 = vadd.f32 %v6456, %v6491
        %v6496 = vadd.f32 %v6457, %v6491
        %v6497 = vadd.f32 %v6458, %v6491
        %v6498 = vadd.f32 %v6459, %v6491
        %v6499 = vadd.f32 %v6460, %v6491
        %v6500 = vadd.f32 %v6461, %v6491
        %v6501 = vadd.f32 %v6462, %v6491
        %v6502 = vadd.f32 %v6463, %v6491
        %v6503 = vadd.f32 %v6464, %v6491
        %v6504 = vadd.f32 %v6465, %v6491
        %v6505 = vadd.f32 %v6466, %v6491
        %v6506 = vadd.f32 %v6467, %v6491
        %v6507 = vadd.f32 %v6468, %v6491
        %v6508 = vadd.f32 %v6469, %v6491
        %v6509 = vadd.f32 %v6470, %v6491
        %v6510 = vadd.f32 %v6471, %v6491
        %v6511 = vadd.f32 %v6472, %v6491
        %v6512 = vadd.f32 %v6473, %v6491
        %v6513 = vadd.f32 %v6474, %v6491
        %v6514 = vadd.f32 %v6475, %v6491
        %v6515 = vadd.f32 %v6476, %v6491
        %v6516 = vadd.f32 %v6477, %v6491
        %v6517 = vadd.f32 %v6478, %v6491
        %v6518 = vadd.f32 %v6479, %v6491
        %v6519 = vadd.f32 %v6480, %v6491
        %v6520 = vadd.f32 %v6481, %v6491
        %v6521 = vadd.f32 %v6482, %v6491
        %v6522 = vadd.f32 %v6483, %v6491
        %v6523 = vadd.f32 %v6484, %v6491
        %v6524 = vadd.f32 %v6485, %v6491
        %v6525 = vmax.f32 %v6493, 0.0
        %v6526 = vmax.f32 %v6494, 0.0
        %v6527 = vmax.f32 %v6495, 0.0
        %v6528 = vmax.f32 %v6496, 0.0
        %v6529 = vmax.f32 %v6497, 0.0
        %v6530 = vmax.f32 %v6498, 0.0
        %v6531 = vmax.f32 %v6499, 0.0
        %v6532 = vmax.f32 %v6500, 0.0
        %v6533 = vmax.f32 %v6501, 0.0
        %v6534 = vmax.f32 %v6502, 0.0
        %v6535 = vmax.f32 %v6503, 0.0
        %v6536 = vmax.f32 %v6504, 0.0
        %v6537 = vmax.f32 %v6505, 0.0
        %v6538 = vmax.f32 %v6506, 0.0
        %v6539 = vmax.f32 %v6507, 0.0
        %v6540 = vmax.f32 %v6508, 0.0
        %v6541 = vmax.f32 %v6509, 0.0
        %v6542 = vmax.f32 %v6510, 0.0
        %v6543 = vmax.f32 %v6511, 0.0
        %v6544 = vmax.f32 %v6512, 0.0
        %v6545 = vmax.f32 %v6513, 0.0
        %v6546 = vmax.f32 %v6514, 0.0
        %v6547 = vmax.f32 %v6515, 0.0
        %v6548 = vmax.f32 %v6516, 0.0
        %v6549 = vmax.f32 %v6517, 0.0
        %v6550 = vmax.f32 %v6518, 0.0
        %v6551 = vmax.f32 %v6519, 0.0
        %v6552 = vmax.f32 %v6520, 0.0
        %v6553 = vmax.f32 %v6521, 0.0
        %v6554 = vmax.f32 %v6522, 0.0
        %v6555 = vmax.f32 %v6523, 0.0
        %v6556 = vmax.f32 %v6524, 0.0
        %v6557 = vpack.c.bf16 %v6526, %v6525
        %v6558 = vpack.c.bf16 %v6528, %v6527
        %v6559 = vpack.c.bf16 %v6530, %v6529
        %v6560 = vpack.c.bf16 %v6532, %v6531
        %v6561 = vpack.c.bf16 %v6534, %v6533
        %v6562 = vpack.c.bf16 %v6536, %v6535
        %v6563 = vpack.c.bf16 %v6538, %v6537
        %v6564 = vpack.c.bf16 %v6540, %v6539
        %v6565 = vpack.c.bf16 %v6542, %v6541
        %v6566 = vpack.c.bf16 %v6544, %v6543
        %v6567 = vpack.c.bf16 %v6546, %v6545
        %v6568 = vpack.c.bf16 %v6548, %v6547
        %v6569 = vpack.c.bf16 %v6550, %v6549
        %v6570 = vpack.c.bf16 %v6552, %v6551
        %v6571 = vpack.c.bf16 %v6554, %v6553
        %v6572 = vpack.c.bf16 %v6556, %v6555
        %v6589 = vunpack.c.l.b16 %v6557
        %v6590 = vunpack.c.h.b16 %v6557
        %v6591 = vunpack.c.l.b16 %v6558
        %v6592 = vunpack.c.h.b16 %v6558
        %v6593 = vunpack.c.l.b16 %v6559
        %v6594 = vunpack.c.h.b16 %v6559
        %v6595 = vunpack.c.l.b16 %v6560
        %v6596 = vunpack.c.h.b16 %v6560
        %v6597 = vunpack.c.l.b16 %v6561
        %v6598 = vunpack.c.h.b16 %v6561
        %v6599 = vunpack.c.l.b16 %v6562
        %v6600 = vunpack.c.h.b16 %v6562
        %v6601 = vunpack.c.l.b16 %v6563
        %v6602 = vunpack.c.h.b16 %v6563
        %v6603 = vunpack.c.l.b16 %v6564
        %v6604 = vunpack.c.h.b16 %v6564
        %v6605 = vunpack.c.l.b16 %v6565
        %v6606 = vunpack.c.h.b16 %v6565
        %v6607 = vunpack.c.l.b16 %v6566
        %v6608 = vunpack.c.h.b16 %v6566
        %v6609 = vunpack.c.l.b16 %v6567
        %v6610 = vunpack.c.h.b16 %v6567
        %v6611 = vunpack.c.l.b16 %v6568
        %v6612 = vunpack.c.h.b16 %v6568
        %v6613 = vunpack.c.l.b16 %v6569
        %v6614 = vunpack.c.h.b16 %v6569
        %v6615 = vunpack.c.l.b16 %v6570
        %v6616 = vunpack.c.h.b16 %v6570
        %v6617 = vunpack.c.l.b16 %v6571
        %v6618 = vunpack.c.h.b16 %v6571
        %v6619 = vunpack.c.l.b16 %v6572
        %v6620 = vunpack.c.h.b16 %v6572
        %v6621 = vpack.c.b16 %v6589, %v6589
        %v6622 = vpack.c.b16 %v6590, %v6590
        %v6623 = vpack.c.b16 %v6591, %v6591
        %v6624 = vpack.c.b16 %v6592, %v6592
        %v6625 = vpack.c.b16 %v6593, %v6593
        %v6626 = vpack.c.b16 %v6594, %v6594
        %v6627 = vpack.c.b16 %v6595, %v6595
        %v6628 = vpack.c.b16 %v6596, %v6596
        %v6629 = vpack.c.b16 %v6597, %v6597
        %v6630 = vpack.c.b16 %v6598, %v6598
        %v6631 = vpack.c.b16 %v6599, %v6599
        %v6632 = vpack.c.b16 %v6600, %v6600
        %v6633 = vpack.c.b16 %v6601, %v6601
        %v6634 = vpack.c.b16 %v6602, %v6602
        %v6635 = vpack.c.b16 %v6603, %v6603
        %v6636 = vpack.c.b16 %v6604, %v6604
        %v6637 = vpack.c.b16 %v6605, %v6605
        %v6638 = vpack.c.b16 %v6606, %v6606
        %v6639 = vpack.c.b16 %v6607, %v6607
        %v6640 = vpack.c.b16 %v6608, %v6608
        %v6641 = vpack.c.b16 %v6609, %v6609
        %v6642 = vpack.c.b16 %v6610, %v6610
        %v6643 = vpack.c.b16 %v6611, %v6611
        %v6644 = vpack.c.b16 %v6612, %v6612
        %v6645 = vpack.c.b16 %v6613, %v6613
        %v6646 = vpack.c.b16 %v6614, %v6614
        %v6647 = vpack.c.b16 %v6615, %v6615
        %v6648 = vpack.c.b16 %v6616, %v6616
        %v6649 = vpack.c.b16 %v6617, %v6617
        %v6650 = vpack.c.b16 %v6618, %v6618
        %v6651 = vpack.c.b16 %v6619, %v6619
        %v6652 = vpack.c.b16 %v6620, %v6620
        %v6654 = vshrl.u32 %v6621, 16
        %v6656 = vrot.slane %v6654, 7
        %v6657 = vshll.u32 %v6621, 16
        %v6659 = vor.u32 %v6656, %v6657
        %v6660 = vrot.slane %v6656, 4
        %v6662 = vshrl.u32 %v6622, 16
        %v6664 = vrot.slane %v6662, 7
        %v6665 = vshll.u32 %v6622, 16
        %v6667 = vor.u32 %v6664, %v6665
        %v6668 = vsel %vm668, %v6660, %v6667
        %v6669 = vrot.slane %v6664, 4
        %v6671 = vshrl.u32 %v6623, 16
        %v6673 = vrot.slane %v6671, 7
        %v6674 = vshll.u32 %v6623, 16
        %v6676 = vor.u32 %v6673, %v6674
        %v6677 = vrot.slane %v6673, 4
        %v6679 = vshrl.u32 %v6624, 16
        %v6681 = vrot.slane %v6679, 7
        %v6682 = vshll.u32 %v6624, 16
        %v6684 = vor.u32 %v6681, %v6682
        %v6685 = vsel %vm668, %v6677, %v6684
        %v6686 = vrot.slane %v6681, 4
        %v6688 = vshrl.u32 %v6625, 16
        %v6690 = vrot.slane %v6688, 7
        %v6691 = vshll.u32 %v6625, 16
        %v6693 = vor.u32 %v6690, %v6691
        %v6694 = vrot.slane %v6690, 4
        %v6696 = vshrl.u32 %v6626, 16
        %v6698 = vrot.slane %v6696, 7
        %v6699 = vshll.u32 %v6626, 16
        %v6701 = vor.u32 %v6698, %v6699
        %v6702 = vsel %vm668, %v6694, %v6701
        %v6703 = vrot.slane %v6698, 4
        %v6705 = vshrl.u32 %v6627, 16
        %v6707 = vrot.slane %v6705, 7
        %v6708 = vshll.u32 %v6627, 16
        %v6710 = vor.u32 %v6707, %v6708
        %v6711 = vrot.slane %v6707, 4
        %v6713 = vshrl.u32 %v6628, 16
        %v6715 = vrot.slane %v6713, 7
        %v6716 = vshll.u32 %v6628, 16
        %v6718 = vor.u32 %v6715, %v6716
        %v6719 = vsel %vm668, %v6711, %v6718
        %v6720 = vrot.slane %v6715, 4
        %v6722 = vshrl.u32 %v6629, 16
        %v6724 = vrot.slane %v6722, 7
        %v6725 = vshll.u32 %v6629, 16
        %v6727 = vor.u32 %v6724, %v6725
        %v6728 = vrot.slane %v6724, 4
        %v6730 = vshrl.u32 %v6630, 16
        %v6732 = vrot.slane %v6730, 7
        %v6733 = vshll.u32 %v6630, 16
        %v6735 = vor.u32 %v6732, %v6733
        %v6736 = vsel %vm668, %v6728, %v6735
        %v6737 = vrot.slane %v6732, 4
        %v6739 = vshrl.u32 %v6631, 16
        %v6741 = vrot.slane %v6739, 7
        %v6742 = vshll.u32 %v6631, 16
        %v6744 = vor.u32 %v6741, %v6742
        %v6745 = vrot.slane %v6741, 4
        %v6747 = vshrl.u32 %v6632, 16
        %v6749 = vrot.slane %v6747, 7
        %v6750 = vshll.u32 %v6632, 16
        %v6752 = vor.u32 %v6749, %v6750
        %v6753 = vsel %vm668, %v6745, %v6752
        %v6754 = vrot.slane %v6749, 4
        %v6756 = vshrl.u32 %v6633, 16
        %v6758 = vrot.slane %v6756, 7
        %v6759 = vshll.u32 %v6633, 16
        %v6761 = vor.u32 %v6758, %v6759
        %v6762 = vrot.slane %v6758, 4
        %v6764 = vshrl.u32 %v6634, 16
        %v6766 = vrot.slane %v6764, 7
        %v6767 = vshll.u32 %v6634, 16
        %v6769 = vor.u32 %v6766, %v6767
        %v6770 = vsel %vm668, %v6762, %v6769
        %v6771 = vrot.slane %v6766, 4
        %v6773 = vshrl.u32 %v6635, 16
        %v6775 = vrot.slane %v6773, 7
        %v6776 = vshll.u32 %v6635, 16
        %v6778 = vor.u32 %v6775, %v6776
        %v6779 = vrot.slane %v6775, 4
        %v6781 = vshrl.u32 %v6636, 16
        %v6783 = vrot.slane %v6781, 7
        %v6784 = vshll.u32 %v6636, 16
        %v6786 = vor.u32 %v6783, %v6784
        %v6787 = vsel %vm668, %v6779, %v6786
        %v6788 = vrot.slane %v6783, 4
        %v6790 = vshrl.u32 %v6637, 16
        %v6792 = vrot.slane %v6790, 7
        %v6793 = vshll.u32 %v6637, 16
        %v6795 = vor.u32 %v6792, %v6793
        %v6796 = vrot.slane %v6792, 4
        %v6798 = vshrl.u32 %v6638, 16
        %v6800 = vrot.slane %v6798, 7
        %v6801 = vshll.u32 %v6638, 16
        %v6803 = vor.u32 %v6800, %v6801
        %v6804 = vsel %vm668, %v6796, %v6803
        %v6805 = vrot.slane %v6800, 4
        %v6807 = vshrl.u32 %v6639, 16
        %v6809 = vrot.slane %v6807, 7
        %v6810 = vshll.u32 %v6639, 16
        %v6812 = vor.u32 %v6809, %v6810
        %v6813 = vrot.slane %v6809, 4
        %v6815 = vshrl.u32 %v6640, 16
        %v6817 = vrot.slane %v6815, 7
        %v6818 = vshll.u32 %v6640, 16
        %v6820 = vor.u32 %v6817, %v6818
        %v6821 = vsel %vm668, %v6813, %v6820
        %v6822 = vrot.slane %v6817, 4
        %v6824 = vshrl.u32 %v6641, 16
        %v6826 = vrot.slane %v6824, 7
        %v6827 = vshll.u32 %v6641, 16
        %v6829 = vor.u32 %v6826, %v6827
        %v6830 = vrot.slane %v6826, 4
        %v6832 = vshrl.u32 %v6642, 16
        %v6834 = vrot.slane %v6832, 7
        %v6835 = vshll.u32 %v6642, 16
        %v6837 = vor.u32 %v6834, %v6835
        %v6838 = vsel %vm668, %v6830, %v6837
        %v6839 = vrot.slane %v6834, 4
        %v6841 = vshrl.u32 %v6643, 16
        %v6843 = vrot.slane %v6841, 7
        %v6844 = vshll.u32 %v6643, 16
        %v6846 = vor.u32 %v6843, %v6844
        %v6847 = vrot.slane %v6843, 4
        %v6849 = vshrl.u32 %v6644, 16
        %v6851 = vrot.slane %v6849, 7
        %v6852 = vshll.u32 %v6644, 16
        %v6854 = vor.u32 %v6851, %v6852
        %v6855 = vsel %vm668, %v6847, %v6854
        %v6856 = vrot.slane %v6851, 4
        %v6858 = vshrl.u32 %v6645, 16
        %v6860 = vrot.slane %v6858, 7
        %v6861 = vshll.u32 %v6645, 16
        %v6863 = vor.u32 %v6860, %v6861
        %v6864 = vrot.slane %v6860, 4
        %v6866 = vshrl.u32 %v6646, 16
        %v6868 = vrot.slane %v6866, 7
        %v6869 = vshll.u32 %v6646, 16
        %v6871 = vor.u32 %v6868, %v6869
        %v6872 = vsel %vm668, %v6864, %v6871
        %v6873 = vrot.slane %v6868, 4
        %v6875 = vshrl.u32 %v6647, 16
        %v6877 = vrot.slane %v6875, 7
        %v6878 = vshll.u32 %v6647, 16
        %v6880 = vor.u32 %v6877, %v6878
        %v6881 = vrot.slane %v6877, 4
        %v6883 = vshrl.u32 %v6648, 16
        %v6885 = vrot.slane %v6883, 7
        %v6886 = vshll.u32 %v6648, 16
        %v6888 = vor.u32 %v6885, %v6886
        %v6889 = vsel %vm668, %v6881, %v6888
        %v6890 = vrot.slane %v6885, 4
        %v6892 = vshrl.u32 %v6649, 16
        %v6894 = vrot.slane %v6892, 7
        %v6895 = vshll.u32 %v6649, 16
        %v6897 = vor.u32 %v6894, %v6895
        %v6898 = vrot.slane %v6894, 4
        %v6900 = vshrl.u32 %v6650, 16
        %v6902 = vrot.slane %v6900, 7
        %v6903 = vshll.u32 %v6650, 16
        %v6905 = vor.u32 %v6902, %v6903
        %v6906 = vsel %vm668, %v6898, %v6905
        %v6907 = vrot.slane %v6902, 4
        %v6909 = vshrl.u32 %v6651, 16
        %v6911 = vrot.slane %v6909, 7
        %v6912 = vshll.u32 %v6651, 16
        %v6914 = vor.u32 %v6911, %v6912
        %v6915 = vrot.slane %v6911, 4
        %v6917 = vshrl.u32 %v6652, 16
        %v6919 = vrot.slane %v6917, 7
        %v6920 = vshll.u32 %v6652, 16
        %v6922 = vor.u32 %v6919, %v6920
        %v6923 = vsel %vm668, %v6915, %v6922
        %v6924 = vrot.slane %v6919, 4
        %v6973 = vsel %vm3947, %v6659, %v4124
        %6974 = vst [vmem:[%s3945] sm:$0xf] %v6973
        %6975 = vst.msk [vmem:[%s3945 + $0x4] sm:$0xf] %vm3409, %v6668
        %v6976 = vld [vmem:[%s3945 + $0x8] sm:$0x1]
        %v6977 = vsel %vm3419, %v6669, %v6976
        %6978 = vst [vmem:[%s3945 + $0x8] sm:$0x1] %v6977
        %v6979 = vld [vmem:[%s3945 + $0xc] sm:$0xf]
        %v6980 = vsel %vm3947, %v6676, %v6979
        %6981 = vst [vmem:[%s3945 + $0xc] sm:$0xf] %v6980
        %6982 = vst.msk [vmem:[%s3945 + $0x10] sm:$0xf] %vm3409, %v6685
        %v6983 = vld [vmem:[%s3945 + $0x14] sm:$0x1]
        %v6984 = vsel %vm3419, %v6686, %v6983
        %6985 = vst [vmem:[%s3945 + $0x14] sm:$0x1] %v6984
        %v6986 = vld [vmem:[%s3945 + $0x18] sm:$0xf]
        %v6987 = vsel %vm3947, %v6693, %v6986
        %6988 = vst [vmem:[%s3945 + $0x18] sm:$0xf] %v6987
        %6989 = vst.msk [vmem:[%s3945 + $0x1c] sm:$0xf] %vm3409, %v6702
        %v6990 = vld [vmem:[%s3945 + $0x20] sm:$0x1]
        %v6991 = vsel %vm3419, %v6703, %v6990
        %6992 = vst [vmem:[%s3945 + $0x20] sm:$0x1] %v6991
        %v6993 = vld [vmem:[%s3945 + $0x24] sm:$0xf]
        %v6994 = vsel %vm3947, %v6710, %v6993
        %6995 = vst [vmem:[%s3945 + $0x24] sm:$0xf] %v6994
        %6996 = vst.msk [vmem:[%s3945 + $0x28] sm:$0xf] %vm3409, %v6719
        %v6997 = vld [vmem:[%s3945 + $0x2c] sm:$0x1]
        %v6998 = vsel %vm3419, %v6720, %v6997
        %6999 = vst [vmem:[%s3945 + $0x2c] sm:$0x1] %v6998
        %v7000 = vld [vmem:[%s3945 + $0x30] sm:$0xf]
        %v7001 = vsel %vm3947, %v6727, %v7000
        %7002 = vst [vmem:[%s3945 + $0x30] sm:$0xf] %v7001
        %7003 = vst.msk [vmem:[%s3945 + $0x34] sm:$0xf] %vm3409, %v6736
        %v7004 = vld [vmem:[%s3945 + $0x38] sm:$0x1]
        %v7005 = vsel %vm3419, %v6737, %v7004
        %7006 = vst [vmem:[%s3945 + $0x38] sm:$0x1] %v7005
        %v7007 = vld [vmem:[%s3945 + $0x3c] sm:$0xf]
        %v7008 = vsel %vm3947, %v6744, %v7007
        %7009 = vst [vmem:[%s3945 + $0x3c] sm:$0xf] %v7008
        %7010 = vst.msk [vmem:[%s3945 + $0x40] sm:$0xf] %vm3409, %v6753
        %v7011 = vld [vmem:[%s3945 + $0x44] sm:$0x1]
        %v7012 = vsel %vm3419, %v6754, %v7011
        %7013 = vst [vmem:[%s3945 + $0x44] sm:$0x1] %v7012
        %v7014 = vld [vmem:[%s3945 + $0x48] sm:$0xf]
        %v7015 = vsel %vm3947, %v6761, %v7014
        %7016 = vst [vmem:[%s3945 + $0x48] sm:$0xf] %v7015
        %7017 = vst.msk [vmem:[%s3945 + $0x4c] sm:$0xf] %vm3409, %v6770
        %v7018 = vld [vmem:[%s3945 + $0x50] sm:$0x1]
        %v7019 = vsel %vm3419, %v6771, %v7018
        %7020 = vst [vmem:[%s3945 + $0x50] sm:$0x1] %v7019
        %v7021 = vld [vmem:[%s3945 + $0x54] sm:$0xf]
        %v7022 = vsel %vm3947, %v6778, %v7021
        %7023 = vst [vmem:[%s3945 + $0x54] sm:$0xf] %v7022
        %7024 = vst.msk [vmem:[%s3945 + $0x58] sm:$0xf] %vm3409, %v6787
        %v7025 = vld [vmem:[%s3945 + $0x5c] sm:$0x1]
        %v7026 = vsel %vm3419, %v6788, %v7025
        %7027 = vst [vmem:[%s3945 + $0x5c] sm:$0x1] %v7026
        %v7028 = vld [vmem:[%s3945 + $0x60] sm:$0xf]
        %v7029 = vsel %vm3947, %v6795, %v7028
        %7030 = vst [vmem:[%s3945 + $0x60] sm:$0xf] %v7029
        %7031 = vst.msk [vmem:[%s3945 + $0x64] sm:$0xf] %vm3409, %v6804
        %v7032 = vld [vmem:[%s3945 + $0x68] sm:$0x1]
        %v7033 = vsel %vm3419, %v6805, %v7032
        %7034 = vst [vmem:[%s3945 + $0x68] sm:$0x1] %v7033
        %v7035 = vld [vmem:[%s3945 + $0x6c] sm:$0xf]
        %v7036 = vsel %vm3947, %v6812, %v7035
        %7037 = vst [vmem:[%s3945 + $0x6c] sm:$0xf] %v7036
        %7038 = vst.msk [vmem:[%s3945 + $0x70] sm:$0xf] %vm3409, %v6821
        %v7039 = vld [vmem:[%s3945 + $0x74] sm:$0x1]
        %v7040 = vsel %vm3419, %v6822, %v7039
        %7041 = vst [vmem:[%s3945 + $0x74] sm:$0x1] %v7040
        %v7042 = vld [vmem:[%s3945 + $0x78] sm:$0xf]
        %v7043 = vsel %vm3947, %v6829, %v7042
        %7044 = vst [vmem:[%s3945 + $0x78] sm:$0xf] %v7043
        %7045 = vst.msk [vmem:[%s3945 + $0x7c] sm:$0xf] %vm3409, %v6838
        %v7046 = vld [vmem:[%s3945 + $0x80] sm:$0x1]
        %v7047 = vsel %vm3419, %v6839, %v7046
        %7048 = vst [vmem:[%s3945 + $0x80] sm:$0x1] %v7047
        %v7049 = vld [vmem:[%s3945 + $0x84] sm:$0xf]
        %v7050 = vsel %vm3947, %v6846, %v7049
        %7051 = vst [vmem:[%s3945 + $0x84] sm:$0xf] %v7050
        %7052 = vst.msk [vmem:[%s3945 + $0x88] sm:$0xf] %vm3409, %v6855
        %v7053 = vld [vmem:[%s3945 + $0x8c] sm:$0x1]
        %v7054 = vsel %vm3419, %v6856, %v7053
        %7055 = vst [vmem:[%s3945 + $0x8c] sm:$0x1] %v7054
        %v7056 = vld [vmem:[%s3945 + $0x90] sm:$0xf]
        %v7057 = vsel %vm3947, %v6863, %v7056
        %7058 = vst [vmem:[%s3945 + $0x90] sm:$0xf] %v7057
        %7059 = vst.msk [vmem:[%s3945 + $0x94] sm:$0xf] %vm3409, %v6872
        %v7060 = vld [vmem:[%s3945 + $0x98] sm:$0x1]
        %v7061 = vsel %vm3419, %v6873, %v7060
        %7062 = vst [vmem:[%s3945 + $0x98] sm:$0x1] %v7061
        %v7063 = vld [vmem:[%s3945 + $0x9c] sm:$0xf]
        %v7064 = vsel %vm3947, %v6880, %v7063
        %7065 = vst [vmem:[%s3945 + $0x9c] sm:$0xf] %v7064
        %7066 = vst.msk [vmem:[%s3945 + $0xa0] sm:$0xf] %vm3409, %v6889
        %v7067 = vld [vmem:[%s3945 + $0xa4] sm:$0x1]
        %v7068 = vsel %vm3419, %v6890, %v7067
        %7069 = vst [vmem:[%s3945 + $0xa4] sm:$0x1] %v7068
        %v7070 = vld [vmem:[%s3945 + $0xa8] sm:$0xf]
        %v7071 = vsel %vm3947, %v6897, %v7070
        %7072 = vst [vmem:[%s3945 + $0xa8] sm:$0xf] %v7071
        %7073 = vst.msk [vmem:[%s3945 + $0xac] sm:$0xf] %vm3409, %v6906
        %v7074 = vld [vmem:[%s3945 + $0xb0] sm:$0x1]
        %v7075 = vsel %vm3419, %v6907, %v7074
        %7076 = vst [vmem:[%s3945 + $0xb0] sm:$0x1] %v7075
        %v7077 = vld [vmem:[%s3945 + $0xb4] sm:$0xf]
        %v7078 = vsel %vm3947, %v6914, %v7077
        %7079 = vst [vmem:[%s3945 + $0xb4] sm:$0xf] %v7078
        %7080 = vst.msk [vmem:[%s3945 + $0xb8] sm:$0xf] %vm3409, %v6923
        %v7081 = vld [vmem:[%s3945 + $0xbc] sm:$0x1]
        %v7082 = vsel %vm3419, %v6924, %v7081
        %7083 = vst [vmem:[%s3945 + $0xbc] sm:$0x1] %v7082
        %v7084 = vld [vmem:[#allocation3] sm:$0xf]
        %v7085 = vld [vmem:[#allocation3 + $0x4] sm:$0xf]
        %v7086 = vld [vmem:[#allocation3 + $0xc] sm:$0xf]
        %v7087 = vld [vmem:[#allocation3 + $0x10] sm:$0xf]
        %v7088 = vld [vmem:[#allocation3 + $0x18] sm:$0xf]
        %v7089 = vld [vmem:[#allocation3 + $0x1c] sm:$0xf]
        %v7090 = vld [vmem:[#allocation3 + $0x24] sm:$0xf]
        %v7091 = vld [vmem:[#allocation3 + $0x28] sm:$0xf]
        %v7092 = vld [vmem:[#allocation3 + $0x30] sm:$0xf]
        %v7093 = vld [vmem:[#allocation3 + $0x34] sm:$0xf]
        %v7094 = vld [vmem:[#allocation3 + $0x3c] sm:$0xf]
        %v7095 = vld [vmem:[#allocation3 + $0x40] sm:$0xf]
        %v7096 = vld [vmem:[#allocation3 + $0x48] sm:$0xf]
        %v7097 = vld [vmem:[#allocation3 + $0x4c] sm:$0xf]
        %v7098 = vld [vmem:[#allocation3 + $0x54] sm:$0xf]
        %v7099 = vld [vmem:[#allocation3 + $0x58] sm:$0xf]
        %v7100 = vld [vmem:[#allocation3 + $0x60] sm:$0xf]
        %v7101 = vld [vmem:[#allocation3 + $0x64] sm:$0xf]
        %v7102 = vld [vmem:[#allocation3 + $0x6c] sm:$0xf]
        %v7103 = vld [vmem:[#allocation3 + $0x70] sm:$0xf]
        %v7104 = vld [vmem:[#allocation3 + $0x78] sm:$0xf]
        %v7105 = vld [vmem:[#allocation3 + $0x7c] sm:$0xf]
        %v7106 = vld [vmem:[#allocation3 + $0x84] sm:$0xf]
        %v7107 = vld [vmem:[#allocation3 + $0x88] sm:$0xf]
        %v7108 = vld [vmem:[#allocation3 + $0x90] sm:$0xf]
        %v7109 = vld [vmem:[#allocation3 + $0x94] sm:$0xf]
        %v7110 = vld [vmem:[#allocation3 + $0x9c] sm:$0xf]
        %v7111 = vld [vmem:[#allocation3 + $0xa0] sm:$0xf]
        %v7112 = vld [vmem:[#allocation3 + $0xa8] sm:$0xf]
        %v7113 = vld [vmem:[#allocation3 + $0xac] sm:$0xf]
        %v7114 = vld [vmem:[#allocation3 + $0xb4] sm:$0xf]
        %v7115 = vld [vmem:[#allocation3 + $0xb8] sm:$0xf]
        %v7116 = vld [vmem:[#allocation3 + $0x8] sm:$0x1]
        %v7117 = vld [vmem:[#allocation3 + $0x14] sm:$0x1]
        %v7118 = vld [vmem:[#allocation3 + $0x20] sm:$0x1]
        %v7119 = vld [vmem:[#allocation3 + $0x2c] sm:$0x1]
        %v7120 = vld [vmem:[#allocation3 + $0x38] sm:$0x1]
        %v7121 = vld [vmem:[#allocation3 + $0x44] sm:$0x1]
        %v7122 = vld [vmem:[#allocation3 + $0x50] sm:$0x1]
        %v7123 = vld [vmem:[#allocation3 + $0x5c] sm:$0x1]
        %v7124 = vld [vmem:[#allocation3 + $0x68] sm:$0x1]
        %v7125 = vld [vmem:[#allocation3 + $0x74] sm:$0x1]
        %v7126 = vld [vmem:[#allocation3 + $0x80] sm:$0x1]
        %v7127 = vld [vmem:[#allocation3 + $0x8c] sm:$0x1]
        %v7128 = vld [vmem:[#allocation3 + $0x98] sm:$0x1]
        %v7129 = vld [vmem:[#allocation3 + $0xa4] sm:$0x1]
        %v7130 = vld [vmem:[#allocation3 + $0xb0] sm:$0x1]
        %v7131 = vld [vmem:[#allocation3 + $0xbc] sm:$0x1]
        %v7132 = vld [vmem:[#allocation3] sm:$0xe]
        %v7133 = vld [vmem:[#allocation3 + $0xc] sm:$0xe]
        %v7134 = vld [vmem:[#allocation3 + $0x18] sm:$0xe]
        %v7135 = vld [vmem:[#allocation3 + $0x24] sm:$0xe]
        %v7136 = vld [vmem:[#allocation3 + $0x30] sm:$0xe]
        %v7137 = vld [vmem:[#allocation3 + $0x3c] sm:$0xe]
        %v7138 = vld [vmem:[#allocation3 + $0x48] sm:$0xe]
        %v7139 = vld [vmem:[#allocation3 + $0x54] sm:$0xe]
        %v7140 = vld [vmem:[#allocation3 + $0x60] sm:$0xe]
        %v7141 = vld [vmem:[#allocation3 + $0x6c] sm:$0xe]
        %v7142 = vld [vmem:[#allocation3 + $0x78] sm:$0xe]
        %v7143 = vld [vmem:[#allocation3 + $0x84] sm:$0xe]
        %v7144 = vld [vmem:[#allocation3 + $0x90] sm:$0xe]
        %v7145 = vld [vmem:[#allocation3 + $0x9c] sm:$0xe]
        %v7146 = vld [vmem:[#allocation3 + $0xa8] sm:$0xe]
        %v7147 = vld [vmem:[#allocation3 + $0xb4] sm:$0xe]
        %v7148 = vld [vmem:[%s3945] sm:$0xf]
        %v7149 = vld [vmem:[%s3945 + $0x4] sm:$0xf]
        %v7150 = vld [vmem:[%s3945 + $0xc] sm:$0xf]
        %v7151 = vld [vmem:[%s3945 + $0x10] sm:$0xf]
        %v7152 = vld [vmem:[%s3945 + $0x18] sm:$0xf]
        %v7153 = vld [vmem:[%s3945 + $0x1c] sm:$0xf]
        %v7154 = vld [vmem:[%s3945 + $0x24] sm:$0xf]
        %v7155 = vld [vmem:[%s3945 + $0x28] sm:$0xf]
        %v7156 = vld [vmem:[%s3945 + $0x30] sm:$0xf]
        %v7157 = vld [vmem:[%s3945 + $0x34] sm:$0xf]
        %v7158 = vld [vmem:[%s3945 + $0x3c] sm:$0xf]
        %v7159 = vld [vmem:[%s3945 + $0x40] sm:$0xf]
        %v7160 = vld [vmem:[%s3945 + $0x48] sm:$0xf]
        %v7161 = vld [vmem:[%s3945 + $0x4c] sm:$0xf]
        %v7162 = vld [vmem:[%s3945 + $0x54] sm:$0xf]
        %v7163 = vld [vmem:[%s3945 + $0x58] sm:$0xf]
        %v7164 = vld [vmem:[%s3945 + $0x60] sm:$0xf]
        %v7165 = vld [vmem:[%s3945 + $0x64] sm:$0xf]
        %v7166 = vld [vmem:[%s3945 + $0x6c] sm:$0xf]
        %v7167 = vld [vmem:[%s3945 + $0x70] sm:$0xf]
        %v7168 = vld [vmem:[%s3945 + $0x78] sm:$0xf]
        %v7169 = vld [vmem:[%s3945 + $0x7c] sm:$0xf]
        %v7170 = vld [vmem:[%s3945 + $0x84] sm:$0xf]
        %v7171 = vld [vmem:[%s3945 + $0x88] sm:$0xf]
        %v7172 = vld [vmem:[%s3945 + $0x90] sm:$0xf]
        %v7173 = vld [vmem:[%s3945 + $0x94] sm:$0xf]
        %v7174 = vld [vmem:[%s3945 + $0x9c] sm:$0xf]
        %v7175 = vld [vmem:[%s3945 + $0xa0] sm:$0xf]
        %v7176 = vld [vmem:[%s3945 + $0xa8] sm:$0xf]
        %v7177 = vld [vmem:[%s3945 + $0xac] sm:$0xf]
        %v7178 = vld [vmem:[%s3945 + $0xb4] sm:$0xf]
        %v7179 = vld [vmem:[%s3945 + $0xb8] sm:$0xf]
        %v7180 = vld [vmem:[%s3945 + $0x8] sm:$0x1]
        %v7181 = vld [vmem:[%s3945 + $0x14] sm:$0x1]
        %v7182 = vld [vmem:[%s3945 + $0x20] sm:$0x1]
        %v7183 = vld [vmem:[%s3945 + $0x2c] sm:$0x1]
        %v7184 = vld [vmem:[%s3945 + $0x38] sm:$0x1]
        %v7185 = vld [vmem:[%s3945 + $0x44] sm:$0x1]
        %v7186 = vld [vmem:[%s3945 + $0x50] sm:$0x1]
        %v7187 = vld [vmem:[%s3945 + $0x5c] sm:$0x1]
        %v7188 = vld [vmem:[%s3945 + $0x68] sm:$0x1]
        %v7189 = vld [vmem:[%s3945 + $0x74] sm:$0x1]
        %v7190 = vld [vmem:[%s3945 + $0x80] sm:$0x1]
        %v7191 = vld [vmem:[%s3945 + $0x8c] sm:$0x1]
        %v7192 = vld [vmem:[%s3945 + $0x98] sm:$0x1]
        %v7193 = vld [vmem:[%s3945 + $0xa4] sm:$0x1]
        %v7194 = vld [vmem:[%s3945 + $0xb0] sm:$0x1]
        %v7195 = vld [vmem:[%s3945 + $0xbc] sm:$0x1]
        %v7196 = vld [vmem:[%s3945] sm:$0xe]
        %v7197 = vld [vmem:[%s3945 + $0xc] sm:$0xe]
        %v7198 = vld [vmem:[%s3945 + $0x18] sm:$0xe]
        %v7199 = vld [vmem:[%s3945 + $0x24] sm:$0xe]
        %v7200 = vld [vmem:[%s3945 + $0x30] sm:$0xe]
        %v7201 = vld [vmem:[%s3945 + $0x3c] sm:$0xe]
        %v7202 = vld [vmem:[%s3945 + $0x48] sm:$0xe]
        %v7203 = vld [vmem:[%s3945 + $0x54] sm:$0xe]
        %v7204 = vld [vmem:[%s3945 + $0x60] sm:$0xe]
        %v7205 = vld [vmem:[%s3945 + $0x6c] sm:$0xe]
        %v7206 = vld [vmem:[%s3945 + $0x78] sm:$0xe]
        %v7207 = vld [vmem:[%s3945 + $0x84] sm:$0xe]
        %v7208 = vld [vmem:[%s3945 + $0x90] sm:$0xe]
        %v7209 = vld [vmem:[%s3945 + $0x9c] sm:$0xe]
        %v7210 = vld [vmem:[%s3945 + $0xa8] sm:$0xe]
        %v7211 = vld [vmem:[%s3945 + $0xb4] sm:$0xe]
        %v7212 = vld [vmem:[%s4188] sm:$0xf]
        %v7213 = vld [vmem:[%s4188 + $0x4] sm:$0xf]
        %v7214 = vld [vmem:[%s4188 + $0xc] sm:$0xf]
        %v7215 = vld [vmem:[%s4188 + $0x10] sm:$0xf]
        %v7216 = vld [vmem:[%s4188 + $0x18] sm:$0xf]
        %v7217 = vld [vmem:[%s4188 + $0x1c] sm:$0xf]
        %v7218 = vld [vmem:[%s4188 + $0x24] sm:$0xf]
        %v7219 = vld [vmem:[%s4188 + $0x28] sm:$0xf]
        %v7220 = vld [vmem:[%s4188 + $0x30] sm:$0xf]
        %v7221 = vld [vmem:[%s4188 + $0x34] sm:$0xf]
        %v7222 = vld [vmem:[%s4188 + $0x3c] sm:$0xf]
        %v7223 = vld [vmem:[%s4188 + $0x40] sm:$0xf]
        %v7224 = vld [vmem:[%s4188 + $0x48] sm:$0xf]
        %v7225 = vld [vmem:[%s4188 + $0x4c] sm:$0xf]
        %v7226 = vld [vmem:[%s4188 + $0x54] sm:$0xf]
        %v7227 = vld [vmem:[%s4188 + $0x58] sm:$0xf]
        %v7228 = vld [vmem:[%s4188 + $0x60] sm:$0xf]
        %v7229 = vld [vmem:[%s4188 + $0x64] sm:$0xf]
        %v7230 = vld [vmem:[%s4188 + $0x6c] sm:$0xf]
        %v7231 = vld [vmem:[%s4188 + $0x70] sm:$0xf]
        %v7232 = vld [vmem:[%s4188 + $0x78] sm:$0xf]
        %v7233 = vld [vmem:[%s4188 + $0x7c] sm:$0xf]
        %v7234 = vld [vmem:[%s4188 + $0x84] sm:$0xf]
        %v7235 = vld [vmem:[%s4188 + $0x88] sm:$0xf]
        %v7236 = vld [vmem:[%s4188 + $0x90] sm:$0xf]
        %v7237 = vld [vmem:[%s4188 + $0x94] sm:$0xf]
        %v7238 = vld [vmem:[%s4188 + $0x9c] sm:$0xf]
        %v7239 = vld [vmem:[%s4188 + $0xa0] sm:$0xf]
        %v7240 = vld [vmem:[%s4188 + $0xa8] sm:$0xf]
        %v7241 = vld [vmem:[%s4188 + $0xac] sm:$0xf]
        %v7242 = vld [vmem:[%s4188 + $0xb4] sm:$0xf]
        %v7243 = vld [vmem:[%s4188 + $0xb8] sm:$0xf]
        %v7244 = vld [vmem:[%s4188 + $0x8] sm:$0x1]
        %v7245 = vld [vmem:[%s4188 + $0x14] sm:$0x1]
        %v7246 = vld [vmem:[%s4188 + $0x20] sm:$0x1]
        %v7247 = vld [vmem:[%s4188 + $0x2c] sm:$0x1]
        %v7248 = vld [vmem:[%s4188 + $0x38] sm:$0x1]
        %v7249 = vld [vmem:[%s4188 + $0x44] sm:$0x1]
        %v7250 = vld [vmem:[%s4188 + $0x50] sm:$0x1]
        %v7251 = vld [vmem:[%s4188 + $0x5c] sm:$0x1]
        %v7252 = vld [vmem:[%s4188 + $0x68] sm:$0x1]
        %v7253 = vld [vmem:[%s4188 + $0x74] sm:$0x1]
        %v7254 = vld [vmem:[%s4188 + $0x80] sm:$0x1]
        %v7255 = vld [vmem:[%s4188 + $0x8c] sm:$0x1]
        %v7256 = vld [vmem:[%s4188 + $0x98] sm:$0x1]
        %v7257 = vld [vmem:[%s4188 + $0xa4] sm:$0x1]
        %v7258 = vld [vmem:[%s4188 + $0xb0] sm:$0x1]
        %v7259 = vld [vmem:[%s4188 + $0xbc] sm:$0x1]
        %v7260 = vld [vmem:[%s4188] sm:$0xe]
        %v7261 = vld [vmem:[%s4188 + $0xc] sm:$0xe]
        %v7262 = vld [vmem:[%s4188 + $0x18] sm:$0xe]
        %v7263 = vld [vmem:[%s4188 + $0x24] sm:$0xe]
        %v7264 = vld [vmem:[%s4188 + $0x30] sm:$0xe]
        %v7265 = vld [vmem:[%s4188 + $0x3c] sm:$0xe]
        %v7266 = vld [vmem:[%s4188 + $0x48] sm:$0xe]
        %v7267 = vld [vmem:[%s4188 + $0x54] sm:$0xe]
        %v7268 = vld [vmem:[%s4188 + $0x60] sm:$0xe]
        %v7269 = vld [vmem:[%s4188 + $0x6c] sm:$0xe]
        %v7270 = vld [vmem:[%s4188 + $0x78] sm:$0xe]
        %v7271 = vld [vmem:[%s4188 + $0x84] sm:$0xe]
        %v7272 = vld [vmem:[%s4188 + $0x90] sm:$0xe]
        %v7273 = vld [vmem:[%s4188 + $0x9c] sm:$0xe]
        %v7274 = vld [vmem:[%s4188 + $0xa8] sm:$0xe]
        %v7275 = vld [vmem:[%s4188 + $0xb4] sm:$0xe]
        %v7308 = vunpack.c.l.b16 %v7084
        %v7309 = vunpack.c.l.b16 %v7085
        %v7310 = vunpack.c.l.b16 %v7086
        %v7311 = vunpack.c.l.b16 %v7087
        %v7312 = vunpack.c.l.b16 %v7088
        %v7313 = vunpack.c.l.b16 %v7089
        %v7314 = vunpack.c.l.b16 %v7090
        %v7315 = vunpack.c.l.b16 %v7091
        %v7316 = vunpack.c.l.b16 %v7092
        %v7317 = vunpack.c.l.b16 %v7093
        %v7318 = vunpack.c.l.b16 %v7094
        %v7319 = vunpack.c.l.b16 %v7095
        %v7320 = vunpack.c.l.b16 %v7096
        %v7321 = vunpack.c.l.b16 %v7097
        %v7322 = vunpack.c.l.b16 %v7098
        %v7323 = vunpack.c.l.b16 %v7099
        %v7324 = vunpack.c.l.b16 %v7100
        %v7325 = vunpack.c.l.b16 %v7101
        %v7326 = vunpack.c.l.b16 %v7102
        %v7327 = vunpack.c.l.b16 %v7103
        %v7328 = vunpack.c.l.b16 %v7104
        %v7329 = vunpack.c.l.b16 %v7105
        %v7330 = vunpack.c.l.b16 %v7106
        %v7331 = vunpack.c.l.b16 %v7107
        %v7332 = vunpack.c.l.b16 %v7108
        %v7333 = vunpack.c.l.b16 %v7109
        %v7334 = vunpack.c.l.b16 %v7110
        %v7335 = vunpack.c.l.b16 %v7111
        %v7336 = vunpack.c.l.b16 %v7112
        %v7337 = vunpack.c.l.b16 %v7113
        %v7338 = vunpack.c.l.b16 %v7114
        %v7339 = vunpack.c.l.b16 %v7115
        %v7340 = vpack.c.b16 %v7309, %v7308
        %v7341 = vpack.c.b16 %v7311, %v7310
        %v7342 = vpack.c.b16 %v7313, %v7312
        %v7343 = vpack.c.b16 %v7315, %v7314
        %v7344 = vpack.c.b16 %v7317, %v7316
        %v7345 = vpack.c.b16 %v7319, %v7318
        %v7346 = vpack.c.b16 %v7321, %v7320
        %v7347 = vpack.c.b16 %v7323, %v7322
        %v7348 = vpack.c.b16 %v7325, %v7324
        %v7349 = vpack.c.b16 %v7327, %v7326
        %v7350 = vpack.c.b16 %v7329, %v7328
        %v7351 = vpack.c.b16 %v7331, %v7330
        %v7352 = vpack.c.b16 %v7333, %v7332
        %v7353 = vpack.c.b16 %v7335, %v7334
        %v7354 = vpack.c.b16 %v7337, %v7336
        %v7355 = vpack.c.b16 %v7339, %v7338
        %v7372 = vunpack.c.l.b16 %v7116
        %v7373 = vunpack.c.l.b16 %v7117
        %v7374 = vunpack.c.l.b16 %v7118
        %v7375 = vunpack.c.l.b16 %v7119
        %v7376 = vunpack.c.l.b16 %v7120
        %v7377 = vunpack.c.l.b16 %v7121
        %v7378 = vunpack.c.l.b16 %v7122
        %v7379 = vunpack.c.l.b16 %v7123
        %v7380 = vunpack.c.l.b16 %v7124
        %v7381 = vunpack.c.l.b16 %v7125
        %v7382 = vunpack.c.l.b16 %v7126
        %v7383 = vunpack.c.l.b16 %v7127
        %v7384 = vunpack.c.l.b16 %v7128
        %v7385 = vunpack.c.l.b16 %v7129
        %v7386 = vunpack.c.l.b16 %v7130
        %v7387 = vunpack.c.l.b16 %v7131
        %v7388 = vpack.c.b16 %v7372, %v7372
        %v7389 = vpack.c.b16 %v7373, %v7373
        %v7390 = vpack.c.b16 %v7374, %v7374
        %v7391 = vpack.c.b16 %v7375, %v7375
        %v7392 = vpack.c.b16 %v7376, %v7376
        %v7393 = vpack.c.b16 %v7377, %v7377
        %v7394 = vpack.c.b16 %v7378, %v7378
        %v7395 = vpack.c.b16 %v7379, %v7379
        %v7396 = vpack.c.b16 %v7380, %v7380
        %v7397 = vpack.c.b16 %v7381, %v7381
        %v7398 = vpack.c.b16 %v7382, %v7382
        %v7399 = vpack.c.b16 %v7383, %v7383
        %v7400 = vpack.c.b16 %v7384, %v7384
        %v7401 = vpack.c.b16 %v7385, %v7385
        %v7402 = vpack.c.b16 %v7386, %v7386
        %v7403 = vpack.c.b16 %v7387, %v7387
        %v7405 = vshrl.u32 %v7340, 16
        %v7407 = vshll.u32 %v7340, 16
        %v7409 = vrot.slane %v7407, 1
        %v7410 = vor.u32 %v7405, %v7409
        %v7412 = vshll.u32 %v7388, 16
        %v7414 = vrot.slane %v7412, 1
        %v7415 = vsel %vm1425, %v7410, %v7414
        %v7417 = vshrl.u32 %v7341, 16
        %v7419 = vshll.u32 %v7341, 16
        %v7421 = vrot.slane %v7419, 1
        %v7422 = vor.u32 %v7417, %v7421
        %v7424 = vshll.u32 %v7389, 16
        %v7426 = vrot.slane %v7424, 1
        %v7427 = vsel %vm1425, %v7422, %v7426
        %v7429 = vshrl.u32 %v7342, 16
        %v7431 = vshll.u32 %v7342, 16
        %v7433 = vrot.slane %v7431, 1
        %v7434 = vor.u32 %v7429, %v7433
        %v7436 = vshll.u32 %v7390, 16
        %v7438 = vrot.slane %v7436, 1
        %v7439 = vsel %vm1425, %v7434, %v7438
        %v7441 = vshrl.u32 %v7343, 16
        %v7443 = vshll.u32 %v7343, 16
        %v7445 = vrot.slane %v7443, 1
        %v7446 = vor.u32 %v7441, %v7445
        %v7448 = vshll.u32 %v7391, 16
        %v7450 = vrot.slane %v7448, 1
        %v7451 = vsel %vm1425, %v7446, %v7450
        %v7453 = vshrl.u32 %v7344, 16
        %v7455 = vshll.u32 %v7344, 16
        %v7457 = vrot.slane %v7455, 1
        %v7458 = vor.u32 %v7453, %v7457
        %v7460 = vshll.u32 %v7392, 16
        %v7462 = vrot.slane %v7460, 1
        %v7463 = vsel %vm1425, %v7458, %v7462
        %v7465 = vshrl.u32 %v7345, 16
        %v7467 = vshll.u32 %v7345, 16
        %v7469 = vrot.slane %v7467, 1
        %v7470 = vor.u32 %v7465, %v7469
        %v7472 = vshll.u32 %v7393, 16
        %v7474 = vrot.slane %v7472, 1
        %v7475 = vsel %vm1425, %v7470, %v7474
        %v7477 = vshrl.u32 %v7346, 16
        %v7479 = vshll.u32 %v7346, 16
        %v7481 = vrot.slane %v7479, 1
        %v7482 = vor.u32 %v7477, %v7481
        %v7484 = vshll.u32 %v7394, 16
        %v7486 = vrot.slane %v7484, 1
        %v7487 = vsel %vm1425, %v7482, %v7486
        %v7489 = vshrl.u32 %v7347, 16
        %v7491 = vshll.u32 %v7347, 16
        %v7493 = vrot.slane %v7491, 1
        %v7494 = vor.u32 %v7489, %v7493
        %v7496 = vshll.u32 %v7395, 16
        %v7498 = vrot.slane %v7496, 1
        %v7499 = vsel %vm1425, %v7494, %v7498
        %v7501 = vshrl.u32 %v7348, 16
        %v7503 = vshll.u32 %v7348, 16
        %v7505 = vrot.slane %v7503, 1
        %v7506 = vor.u32 %v7501, %v7505
        %v7508 = vshll.u32 %v7396, 16
        %v7510 = vrot.slane %v7508, 1
        %v7511 = vsel %vm1425, %v7506, %v7510
        %v7513 = vshrl.u32 %v7349, 16
        %v7515 = vshll.u32 %v7349, 16
        %v7517 = vrot.slane %v7515, 1
        %v7518 = vor.u32 %v7513, %v7517
        %v7520 = vshll.u32 %v7397, 16
        %v7522 = vrot.slane %v7520, 1
        %v7523 = vsel %vm1425, %v7518, %v7522
        %v7525 = vshrl.u32 %v7350, 16
        %v7527 = vshll.u32 %v7350, 16
        %v7529 = vrot.slane %v7527, 1
        %v7530 = vor.u32 %v7525, %v7529
        %v7532 = vshll.u32 %v7398, 16
        %v7534 = vrot.slane %v7532, 1
        %v7535 = vsel %vm1425, %v7530, %v7534
        %v7537 = vshrl.u32 %v7351, 16
        %v7539 = vshll.u32 %v7351, 16
        %v7541 = vrot.slane %v7539, 1
        %v7542 = vor.u32 %v7537, %v7541
        %v7544 = vshll.u32 %v7399, 16
        %v7546 = vrot.slane %v7544, 1
        %v7547 = vsel %vm1425, %v7542, %v7546
        %v7549 = vshrl.u32 %v7352, 16
        %v7551 = vshll.u32 %v7352, 16
        %v7553 = vrot.slane %v7551, 1
        %v7554 = vor.u32 %v7549, %v7553
        %v7556 = vshll.u32 %v7400, 16
        %v7558 = vrot.slane %v7556, 1
        %v7559 = vsel %vm1425, %v7554, %v7558
        %v7561 = vshrl.u32 %v7353, 16
        %v7563 = vshll.u32 %v7353, 16
        %v7565 = vrot.slane %v7563, 1
        %v7566 = vor.u32 %v7561, %v7565
        %v7568 = vshll.u32 %v7401, 16
        %v7570 = vrot.slane %v7568, 1
        %v7571 = vsel %vm1425, %v7566, %v7570
        %v7573 = vshrl.u32 %v7354, 16
        %v7575 = vshll.u32 %v7354, 16
        %v7577 = vrot.slane %v7575, 1
        %v7578 = vor.u32 %v7573, %v7577
        %v7580 = vshll.u32 %v7402, 16
        %v7582 = vrot.slane %v7580, 1
        %v7583 = vsel %vm1425, %v7578, %v7582
        %v7585 = vshrl.u32 %v7355, 16
        %v7587 = vshll.u32 %v7355, 16
        %v7589 = vrot.slane %v7587, 1
        %v7590 = vor.u32 %v7585, %v7589
        %v7592 = vshll.u32 %v7403, 16
        %v7594 = vrot.slane %v7592, 1
        %v7595 = vsel %vm1425, %v7590, %v7594
        %7596 = vrot.lane.b32.xlu0 %v7415, 32
        %v7597 = vpop.permute.xlu0 %7596
        %7598 = vrot.lane.b32.xlu0 %v7427, 32
        %v7599 = vpop.permute.xlu0 %7598
        %7600 = vrot.lane.b32.xlu0 %v7439, 32
        %v7601 = vpop.permute.xlu0 %7600
        %7602 = vrot.lane.b32.xlu0 %v7451, 32
        %v7603 = vpop.permute.xlu0 %7602
        %7604 = vrot.lane.b32.xlu0 %v7463, 32
        %v7605 = vpop.permute.xlu0 %7604
        %7606 = vrot.lane.b32.xlu0 %v7475, 32
        %v7607 = vpop.permute.xlu0 %7606
        %7608 = vrot.lane.b32.xlu0 %v7487, 32
        %v7609 = vpop.permute.xlu0 %7608
        %7610 = vrot.lane.b32.xlu0 %v7499, 32
        %v7611 = vpop.permute.xlu0 %7610
        %7612 = vrot.lane.b32.xlu0 %v7511, 32
        %v7613 = vpop.permute.xlu0 %7612
        %7614 = vrot.lane.b32.xlu0 %v7523, 32
        %v7615 = vpop.permute.xlu0 %7614
        %7616 = vrot.lane.b32.xlu0 %v7535, 32
        %v7617 = vpop.permute.xlu0 %7616
        %7618 = vrot.lane.b32.xlu0 %v7547, 32
        %v7619 = vpop.permute.xlu0 %7618
        %7620 = vrot.lane.b32.xlu0 %v7559, 32
        %v7621 = vpop.permute.xlu0 %7620
        %7622 = vrot.lane.b32.xlu0 %v7571, 32
        %v7623 = vpop.permute.xlu0 %7622
        %7624 = vrot.lane.b32.xlu0 %v7583, 32
        %v7625 = vpop.permute.xlu0 %7624
        %7626 = vrot.lane.b32.xlu0 %v7595, 32
        %v7627 = vpop.permute.xlu0 %7626
        %v7644 = vunpack.c.l.b16 %v7132
        %v7645 = vunpack.c.l.b16 %v7133
        %v7646 = vunpack.c.l.b16 %v7134
        %v7647 = vunpack.c.l.b16 %v7135
        %v7648 = vunpack.c.l.b16 %v7136
        %v7649 = vunpack.c.l.b16 %v7137
        %v7650 = vunpack.c.l.b16 %v7138
        %v7651 = vunpack.c.l.b16 %v7139
        %v7652 = vunpack.c.l.b16 %v7140
        %v7653 = vunpack.c.l.b16 %v7141
        %v7654 = vunpack.c.l.b16 %v7142
        %v7655 = vunpack.c.l.b16 %v7143
        %v7656 = vunpack.c.l.b16 %v7144
        %v7657 = vunpack.c.l.b16 %v7145
        %v7658 = vunpack.c.l.b16 %v7146
        %v7659 = vunpack.c.l.b16 %v7147
        %v7660 = vpack.c.b16 %v7309, %v7644
        %v7661 = vpack.c.b16 %v7311, %v7645
        %v7662 = vpack.c.b16 %v7313, %v7646
        %v7663 = vpack.c.b16 %v7315, %v7647
        %v7664 = vpack.c.b16 %v7317, %v7648
        %v7665 = vpack.c.b16 %v7319, %v7649
        %v7666 = vpack.c.b16 %v7321, %v7650
        %v7667 = vpack.c.b16 %v7323, %v7651
        %v7668 = vpack.c.b16 %v7325, %v7652
        %v7669 = vpack.c.b16 %v7327, %v7653
        %v7670 = vpack.c.b16 %v7329, %v7654
        %v7671 = vpack.c.b16 %v7331, %v7655
        %v7672 = vpack.c.b16 %v7333, %v7656
        %v7673 = vpack.c.b16 %v7335, %v7657
        %v7674 = vpack.c.b16 %v7337, %v7658
        %v7675 = vpack.c.b16 %v7339, %v7659
        %v7676 = vrot.slane %v7660, 1
        %v7677 = vrot.slane %v7388, 1
        %v7678 = vsel %vm1698, %v7676, %v7677
        %v7679 = vrot.slane %v7661, 1
        %v7680 = vrot.slane %v7389, 1
        %v7681 = vsel %vm1698, %v7679, %v7680
        %v7682 = vrot.slane %v7662, 1
        %v7683 = vrot.slane %v7390, 1
        %v7684 = vsel %vm1698, %v7682, %v7683
        %v7685 = vrot.slane %v7663, 1
        %v7686 = vrot.slane %v7391, 1
        %v7687 = vsel %vm1698, %v7685, %v7686
        %v7688 = vrot.slane %v7664, 1
        %v7689 = vrot.slane %v7392, 1
        %v7690 = vsel %vm1698, %v7688, %v7689
        %v7691 = vrot.slane %v7665, 1
        %v7692 = vrot.slane %v7393, 1
        %v7693 = vsel %vm1698, %v7691, %v7692
        %v7694 = vrot.slane %v7666, 1
        %v7695 = vrot.slane %v7394, 1
        %v7696 = vsel %vm1698, %v7694, %v7695
        %v7697 = vrot.slane %v7667, 1
        %v7698 = vrot.slane %v7395, 1
        %v7699 = vsel %vm1698, %v7697, %v7698
        %v7700 = vrot.slane %v7668, 1
        %v7701 = vrot.slane %v7396, 1
        %v7702 = vsel %vm1698, %v7700, %v7701
        %v7703 = vrot.slane %v7669, 1
        %v7704 = vrot.slane %v7397, 1
        %v7705 = vsel %vm1698, %v7703, %v7704
        %v7706 = vrot.slane %v7670, 1
        %v7707 = vrot.slane %v7398, 1
        %v7708 = vsel %vm1698, %v7706, %v7707
        %v7709 = vrot.slane %v7671, 1
        %v7710 = vrot.slane %v7399, 1
        %v7711 = vsel %vm1698, %v7709, %v7710
        %v7712 = vrot.slane %v7672, 1
        %v7713 = vrot.slane %v7400, 1
        %v7714 = vsel %vm1698, %v7712, %v7713
        %v7715 = vrot.slane %v7673, 1
        %v7716 = vrot.slane %v7401, 1
        %v7717 = vsel %vm1698, %v7715, %v7716
        %v7718 = vrot.slane %v7674, 1
        %v7719 = vrot.slane %v7402, 1
        %v7720 = vsel %vm1698, %v7718, %v7719
        %v7721 = vrot.slane %v7675, 1
        %v7722 = vrot.slane %v7403, 1
        %v7723 = vsel %vm1698, %v7721, %v7722
        %7724 = vrot.lane.b32.xlu0 %v7678, 64
        %v7725 = vpop.permute.xlu0 %7724
        %7726 = vrot.lane.b32.xlu0 %v7681, 64
        %v7727 = vpop.permute.xlu0 %7726
        %7728 = vrot.lane.b32.xlu0 %v7684, 64
        %v7729 = vpop.permute.xlu0 %7728
        %7730 = vrot.lane.b32.xlu0 %v7687, 64
        %v7731 = vpop.permute.xlu0 %7730
        %7732 = vrot.lane.b32.xlu0 %v7690, 64
        %v7733 = vpop.permute.xlu0 %7732
        %7734 = vrot.lane.b32.xlu0 %v7693, 64
        %v7735 = vpop.permute.xlu0 %7734
        %7736 = vrot.lane.b32.xlu0 %v7696, 64
        %v7737 = vpop.permute.xlu0 %7736
        %7738 = vrot.lane.b32.xlu0 %v7699, 64
        %v7739 = vpop.permute.xlu0 %7738
        %7740 = vrot.lane.b32.xlu0 %v7702, 64
        %v7741 = vpop.permute.xlu0 %7740
        %7742 = vrot.lane.b32.xlu0 %v7705, 64
        %v7743 = vpop.permute.xlu0 %7742
        %7744 = vrot.lane.b32.xlu0 %v7708, 64
        %v7745 = vpop.permute.xlu0 %7744
        %7746 = vrot.lane.b32.xlu0 %v7711, 64
        %v7747 = vpop.permute.xlu0 %7746
        %7748 = vrot.lane.b32.xlu0 %v7714, 64
        %v7749 = vpop.permute.xlu0 %7748
        %7750 = vrot.lane.b32.xlu0 %v7717, 64
        %v7751 = vpop.permute.xlu0 %7750
        %7752 = vrot.lane.b32.xlu0 %v7720, 64
        %v7753 = vpop.permute.xlu0 %7752
        %7754 = vrot.lane.b32.xlu0 %v7723, 64
        %v7755 = vpop.permute.xlu0 %7754
        %v7788 = vunpack.c.l.b16 %v7148
        %v7789 = vunpack.c.l.b16 %v7149
        %v7790 = vunpack.c.l.b16 %v7150
        %v7791 = vunpack.c.l.b16 %v7151
        %v7792 = vunpack.c.l.b16 %v7152
        %v7793 = vunpack.c.l.b16 %v7153
        %v7794 = vunpack.c.l.b16 %v7154
        %v7795 = vunpack.c.l.b16 %v7155
        %v7796 = vunpack.c.l.b16 %v7156
        %v7797 = vunpack.c.l.b16 %v7157
        %v7798 = vunpack.c.l.b16 %v7158
        %v7799 = vunpack.c.l.b16 %v7159
        %v7800 = vunpack.c.l.b16 %v7160
        %v7801 = vunpack.c.l.b16 %v7161
        %v7802 = vunpack.c.l.b16 %v7162
        %v7803 = vunpack.c.l.b16 %v7163
        %v7804 = vunpack.c.l.b16 %v7164
        %v7805 = vunpack.c.l.b16 %v7165
        %v7806 = vunpack.c.l.b16 %v7166
        %v7807 = vunpack.c.l.b16 %v7167
        %v7808 = vunpack.c.l.b16 %v7168
        %v7809 = vunpack.c.l.b16 %v7169
        %v7810 = vunpack.c.l.b16 %v7170
        %v7811 = vunpack.c.l.b16 %v7171
        %v7812 = vunpack.c.l.b16 %v7172
        %v7813 = vunpack.c.l.b16 %v7173
        %v7814 = vunpack.c.l.b16 %v7174
        %v7815 = vunpack.c.l.b16 %v7175
        %v7816 = vunpack.c.l.b16 %v7176
        %v7817 = vunpack.c.l.b16 %v7177
        %v7818 = vunpack.c.l.b16 %v7178
        %v7819 = vunpack.c.l.b16 %v7179
        %v7820 = vpack.c.b16 %v7789, %v7788
        %v7821 = vpack.c.b16 %v7791, %v7790
        %v7822 = vpack.c.b16 %v7793, %v7792
        %v7823 = vpack.c.b16 %v7795, %v7794
        %v7824 = vpack.c.b16 %v7797, %v7796
        %v7825 = vpack.c.b16 %v7799, %v7798
        %v7826 = vpack.c.b16 %v7801, %v7800
        %v7827 = vpack.c.b16 %v7803, %v7802
        %v7828 = vpack.c.b16 %v7805, %v7804
        %v7829 = vpack.c.b16 %v7807, %v7806
        %v7830 = vpack.c.b16 %v7809, %v7808
        %v7831 = vpack.c.b16 %v7811, %v7810
        %v7832 = vpack.c.b16 %v7813, %v7812
        %v7833 = vpack.c.b16 %v7815, %v7814
        %v7834 = vpack.c.b16 %v7817, %v7816
        %v7835 = vpack.c.b16 %v7819, %v7818
        %7836 = vrot.lane.b32.xlu0 %v7820, 96
        %v7837 = vpop.permute.xlu0 %7836
        %7838 = vrot.lane.b32.xlu0 %v7821, 96
        %v7839 = vpop.permute.xlu0 %7838
        %7840 = vrot.lane.b32.xlu0 %v7822, 96
        %v7841 = vpop.permute.xlu0 %7840
        %7842 = vrot.lane.b32.xlu0 %v7823, 96
        %v7843 = vpop.permute.xlu0 %7842
        %7844 = vrot.lane.b32.xlu0 %v7824, 96
        %v7845 = vpop.permute.xlu0 %7844
        %7846 = vrot.lane.b32.xlu0 %v7825, 96
        %v7847 = vpop.permute.xlu0 %7846
        %7848 = vrot.lane.b32.xlu0 %v7826, 96
        %v7849 = vpop.permute.xlu0 %7848
        %7850 = vrot.lane.b32.xlu0 %v7827, 96
        %v7851 = vpop.permute.xlu0 %7850
        %7852 = vrot.lane.b32.xlu0 %v7828, 96
        %v7853 = vpop.permute.xlu0 %7852
        %7854 = vrot.lane.b32.xlu0 %v7829, 96
        %v7855 = vpop.permute.xlu0 %7854
        %7856 = vrot.lane.b32.xlu0 %v7830, 96
        %v7857 = vpop.permute.xlu0 %7856
        %7858 = vrot.lane.b32.xlu0 %v7831, 96
        %v7859 = vpop.permute.xlu0 %7858
        %7860 = vrot.lane.b32.xlu0 %v7832, 96
        %v7861 = vpop.permute.xlu0 %7860
        %7862 = vrot.lane.b32.xlu0 %v7833, 96
        %v7863 = vpop.permute.xlu0 %7862
        %7864 = vrot.lane.b32.xlu0 %v7834, 96
        %v7865 = vpop.permute.xlu0 %7864
        %7866 = vrot.lane.b32.xlu0 %v7835, 96
        %v7867 = vpop.permute.xlu0 %7866
        %v7884 = vunpack.c.l.b16 %v7180
        %v7885 = vunpack.c.l.b16 %v7181
        %v7886 = vunpack.c.l.b16 %v7182
        %v7887 = vunpack.c.l.b16 %v7183
        %v7888 = vunpack.c.l.b16 %v7184
        %v7889 = vunpack.c.l.b16 %v7185
        %v7890 = vunpack.c.l.b16 %v7186
        %v7891 = vunpack.c.l.b16 %v7187
        %v7892 = vunpack.c.l.b16 %v7188
        %v7893 = vunpack.c.l.b16 %v7189
        %v7894 = vunpack.c.l.b16 %v7190
        %v7895 = vunpack.c.l.b16 %v7191
        %v7896 = vunpack.c.l.b16 %v7192
        %v7897 = vunpack.c.l.b16 %v7193
        %v7898 = vunpack.c.l.b16 %v7194
        %v7899 = vunpack.c.l.b16 %v7195
        %v7900 = vpack.c.b16 %v7884, %v7884
        %v7901 = vpack.c.b16 %v7885, %v7885
        %v7902 = vpack.c.b16 %v7886, %v7886
        %v7903 = vpack.c.b16 %v7887, %v7887
        %v7904 = vpack.c.b16 %v7888, %v7888
        %v7905 = vpack.c.b16 %v7889, %v7889
        %v7906 = vpack.c.b16 %v7890, %v7890
        %v7907 = vpack.c.b16 %v7891, %v7891
        %v7908 = vpack.c.b16 %v7892, %v7892
        %v7909 = vpack.c.b16 %v7893, %v7893
        %v7910 = vpack.c.b16 %v7894, %v7894
        %v7911 = vpack.c.b16 %v7895, %v7895
        %v7912 = vpack.c.b16 %v7896, %v7896
        %v7913 = vpack.c.b16 %v7897, %v7897
        %v7914 = vpack.c.b16 %v7898, %v7898
        %v7915 = vpack.c.b16 %v7899, %v7899
        %v7917 = vshrl.u32 %v7820, 16
        %v7919 = vshll.u32 %v7820, 16
        %v7921 = vrot.slane %v7919, 1
        %v7922 = vor.u32 %v7917, %v7921
        %v7924 = vshll.u32 %v7900, 16
        %v7926 = vrot.slane %v7924, 1
        %v7927 = vsel %vm1425, %v7922, %v7926
        %v7929 = vshrl.u32 %v7821, 16
        %v7931 = vshll.u32 %v7821, 16
        %v7933 = vrot.slane %v7931, 1
        %v7934 = vor.u32 %v7929, %v7933
        %v7936 = vshll.u32 %v7901, 16
        %v7938 = vrot.slane %v7936, 1
        %v7939 = vsel %vm1425, %v7934, %v7938
        %v7941 = vshrl.u32 %v7822, 16
        %v7943 = vshll.u32 %v7822, 16
        %v7945 = vrot.slane %v7943, 1
        %v7946 = vor.u32 %v7941, %v7945
        %v7948 = vshll.u32 %v7902, 16
        %v7950 = vrot.slane %v7948, 1
        %v7951 = vsel %vm1425, %v7946, %v7950
        %v7953 = vshrl.u32 %v7823, 16
        %v7955 = vshll.u32 %v7823, 16
        %v7957 = vrot.slane %v7955, 1
        %v7958 = vor.u32 %v7953, %v7957
        %v7960 = vshll.u32 %v7903, 16
        %v7962 = vrot.slane %v7960, 1
        %v7963 = vsel %vm1425, %v7958, %v7962
        %v7965 = vshrl.u32 %v7824, 16
        %v7967 = vshll.u32 %v7824, 16
        %v7969 = vrot.slane %v7967, 1
        %v7970 = vor.u32 %v7965, %v7969
        %v7972 = vshll.u32 %v7904, 16
        %v7974 = vrot.slane %v7972, 1
        %v7975 = vsel %vm1425, %v7970, %v7974
        %v7977 = vshrl.u32 %v7825, 16
        %v7979 = vshll.u32 %v7825, 16
        %v7981 = vrot.slane %v7979, 1
        %v7982 = vor.u32 %v7977, %v7981
        %v7984 = vshll.u32 %v7905, 16
        %v7986 = vrot.slane %v7984, 1
        %v7987 = vsel %vm1425, %v7982, %v7986
        %v7989 = vshrl.u32 %v7826, 16
        %v7991 = vshll.u32 %v7826, 16
        %v7993 = vrot.slane %v7991, 1
        %v7994 = vor.u32 %v7989, %v7993
        %v7996 = vshll.u32 %v7906, 16
        %v7998 = vrot.slane %v7996, 1
        %v7999 = vsel %vm1425, %v7994, %v7998
        %v8001 = vshrl.u32 %v7827, 16
        %v8003 = vshll.u32 %v7827, 16
        %v8005 = vrot.slane %v8003, 1
        %v8006 = vor.u32 %v8001, %v8005
        %v8008 = vshll.u32 %v7907, 16
        %v8010 = vrot.slane %v8008, 1
        %v8011 = vsel %vm1425, %v8006, %v8010
        %v8013 = vshrl.u32 %v7828, 16
        %v8015 = vshll.u32 %v7828, 16
        %v8017 = vrot.slane %v8015, 1
        %v8018 = vor.u32 %v8013, %v8017
        %v8020 = vshll.u32 %v7908, 16
        %v8022 = vrot.slane %v8020, 1
        %v8023 = vsel %vm1425, %v8018, %v8022
        %v8025 = vshrl.u32 %v7829, 16
        %v8027 = vshll.u32 %v7829, 16
        %v8029 = vrot.slane %v8027, 1
        %v8030 = vor.u32 %v8025, %v8029
        %v8032 = vshll.u32 %v7909, 16
        %v8034 = vrot.slane %v8032, 1
        %v8035 = vsel %vm1425, %v8030, %v8034
        %v8037 = vshrl.u32 %v7830, 16
        %v8039 = vshll.u32 %v7830, 16
        %v8041 = vrot.slane %v8039, 1
        %v8042 = vor.u32 %v8037, %v8041
        %v8044 = vshll.u32 %v7910, 16
        %v8046 = vrot.slane %v8044, 1
        %v8047 = vsel %vm1425, %v8042, %v8046
        %v8049 = vshrl.u32 %v7831, 16
        %v8051 = vshll.u32 %v7831, 16
        %v8053 = vrot.slane %v8051, 1
        %v8054 = vor.u32 %v8049, %v8053
        %v8056 = vshll.u32 %v7911, 16
        %v8058 = vrot.slane %v8056, 1
        %v8059 = vsel %vm1425, %v8054, %v8058
        %v8061 = vshrl.u32 %v7832, 16
        %v8063 = vshll.u32 %v7832, 16
        %v8065 = vrot.slane %v8063, 1
        %v8066 = vor.u32 %v8061, %v8065
        %v8068 = vshll.u32 %v7912, 16
        %v8070 = vrot.slane %v8068, 1
        %v8071 = vsel %vm1425, %v8066, %v8070
        %v8073 = vshrl.u32 %v7833, 16
        %v8075 = vshll.u32 %v7833, 16
        %v8077 = vrot.slane %v8075, 1
        %v8078 = vor.u32 %v8073, %v8077
        %v8080 = vshll.u32 %v7913, 16
        %v8082 = vrot.slane %v8080, 1
        %v8083 = vsel %vm1425, %v8078, %v8082
        %v8085 = vshrl.u32 %v7834, 16
        %v8087 = vshll.u32 %v7834, 16
        %v8089 = vrot.slane %v8087, 1
        %v8090 = vor.u32 %v8085, %v8089
        %v8092 = vshll.u32 %v7914, 16
        %v8094 = vrot.slane %v8092, 1
        %v8095 = vsel %vm1425, %v8090, %v8094
        %v8097 = vshrl.u32 %v7835, 16
        %v8099 = vshll.u32 %v7835, 16
        %v8101 = vrot.slane %v8099, 1
        %v8102 = vor.u32 %v8097, %v8101
        %v8104 = vshll.u32 %v7915, 16
        %v8106 = vrot.slane %v8104, 1
        %v8107 = vsel %vm1425, %v8102, %v8106
        %v8124 = vunpack.c.l.b16 %v7196
        %v8125 = vunpack.c.l.b16 %v7197
        %v8126 = vunpack.c.l.b16 %v7198
        %v8127 = vunpack.c.l.b16 %v7199
        %v8128 = vunpack.c.l.b16 %v7200
        %v8129 = vunpack.c.l.b16 %v7201
        %v8130 = vunpack.c.l.b16 %v7202
        %v8131 = vunpack.c.l.b16 %v7203
        %v8132 = vunpack.c.l.b16 %v7204
        %v8133 = vunpack.c.l.b16 %v7205
        %v8134 = vunpack.c.l.b16 %v7206
        %v8135 = vunpack.c.l.b16 %v7207
        %v8136 = vunpack.c.l.b16 %v7208
        %v8137 = vunpack.c.l.b16 %v7209
        %v8138 = vunpack.c.l.b16 %v7210
        %v8139 = vunpack.c.l.b16 %v7211
        %v8140 = vpack.c.b16 %v7789, %v8124
        %v8141 = vpack.c.b16 %v7791, %v8125
        %v8142 = vpack.c.b16 %v7793, %v8126
        %v8143 = vpack.c.b16 %v7795, %v8127
        %v8144 = vpack.c.b16 %v7797, %v8128
        %v8145 = vpack.c.b16 %v7799, %v8129
        %v8146 = vpack.c.b16 %v7801, %v8130
        %v8147 = vpack.c.b16 %v7803, %v8131
        %v8148 = vpack.c.b16 %v7805, %v8132
        %v8149 = vpack.c.b16 %v7807, %v8133
        %v8150 = vpack.c.b16 %v7809, %v8134
        %v8151 = vpack.c.b16 %v7811, %v8135
        %v8152 = vpack.c.b16 %v7813, %v8136
        %v8153 = vpack.c.b16 %v7815, %v8137
        %v8154 = vpack.c.b16 %v7817, %v8138
        %v8155 = vpack.c.b16 %v7819, %v8139
        %v8156 = vrot.slane %v8140, 1
        %v8157 = vrot.slane %v7900, 1
        %v8158 = vsel %vm1698, %v8156, %v8157
        %v8159 = vrot.slane %v8141, 1
        %v8160 = vrot.slane %v7901, 1
        %v8161 = vsel %vm1698, %v8159, %v8160
        %v8162 = vrot.slane %v8142, 1
        %v8163 = vrot.slane %v7902, 1
        %v8164 = vsel %vm1698, %v8162, %v8163
        %v8165 = vrot.slane %v8143, 1
        %v8166 = vrot.slane %v7903, 1
        %v8167 = vsel %vm1698, %v8165, %v8166
        %v8168 = vrot.slane %v8144, 1
        %v8169 = vrot.slane %v7904, 1
        %v8170 = vsel %vm1698, %v8168, %v8169
        %v8171 = vrot.slane %v8145, 1
        %v8172 = vrot.slane %v7905, 1
        %v8173 = vsel %vm1698, %v8171, %v8172
        %v8174 = vrot.slane %v8146, 1
        %v8175 = vrot.slane %v7906, 1
        %v8176 = vsel %vm1698, %v8174, %v8175
        %v8177 = vrot.slane %v8147, 1
        %v8178 = vrot.slane %v7907, 1
        %v8179 = vsel %vm1698, %v8177, %v8178
        %v8180 = vrot.slane %v8148, 1
        %v8181 = vrot.slane %v7908, 1
        %v8182 = vsel %vm1698, %v8180, %v8181
        %v8183 = vrot.slane %v8149, 1
        %v8184 = vrot.slane %v7909, 1
        %v8185 = vsel %vm1698, %v8183, %v8184
        %v8186 = vrot.slane %v8150, 1
        %v8187 = vrot.slane %v7910, 1
        %v8188 = vsel %vm1698, %v8186, %v8187
        %v8189 = vrot.slane %v8151, 1
        %v8190 = vrot.slane %v7911, 1
        %v8191 = vsel %vm1698, %v8189, %v8190
        %v8192 = vrot.slane %v8152, 1
        %v8193 = vrot.slane %v7912, 1
        %v8194 = vsel %vm1698, %v8192, %v8193
        %v8195 = vrot.slane %v8153, 1
        %v8196 = vrot.slane %v7913, 1
        %v8197 = vsel %vm1698, %v8195, %v8196
        %v8198 = vrot.slane %v8154, 1
        %v8199 = vrot.slane %v7914, 1
        %v8200 = vsel %vm1698, %v8198, %v8199
        %v8201 = vrot.slane %v8155, 1
        %v8202 = vrot.slane %v7915, 1
        %v8203 = vsel %vm1698, %v8201, %v8202
        %8204 = vrot.lane.b32.xlu0 %v8158, 32
        %v8205 = vpop.permute.xlu0 %8204
        %8206 = vrot.lane.b32.xlu0 %v8161, 32
        %v8207 = vpop.permute.xlu0 %8206
        %8208 = vrot.lane.b32.xlu0 %v8164, 32
        %v8209 = vpop.permute.xlu0 %8208
        %8210 = vrot.lane.b32.xlu0 %v8167, 32
        %v8211 = vpop.permute.xlu0 %8210
        %8212 = vrot.lane.b32.xlu0 %v8170, 32
        %v8213 = vpop.permute.xlu0 %8212
        %8214 = vrot.lane.b32.xlu0 %v8173, 32
        %v8215 = vpop.permute.xlu0 %8214
        %8216 = vrot.lane.b32.xlu0 %v8176, 32
        %v8217 = vpop.permute.xlu0 %8216
        %8218 = vrot.lane.b32.xlu0 %v8179, 32
        %v8219 = vpop.permute.xlu0 %8218
        %8220 = vrot.lane.b32.xlu0 %v8182, 32
        %v8221 = vpop.permute.xlu0 %8220
        %8222 = vrot.lane.b32.xlu0 %v8185, 32
        %v8223 = vpop.permute.xlu0 %8222
        %8224 = vrot.lane.b32.xlu0 %v8188, 32
        %v8225 = vpop.permute.xlu0 %8224
        %8226 = vrot.lane.b32.xlu0 %v8191, 32
        %v8227 = vpop.permute.xlu0 %8226
        %8228 = vrot.lane.b32.xlu0 %v8194, 32
        %v8229 = vpop.permute.xlu0 %8228
        %8230 = vrot.lane.b32.xlu0 %v8197, 32
        %v8231 = vpop.permute.xlu0 %8230
        %8232 = vrot.lane.b32.xlu0 %v8200, 32
        %v8233 = vpop.permute.xlu0 %8232
        %8234 = vrot.lane.b32.xlu0 %v8203, 32
        %v8235 = vpop.permute.xlu0 %8234
        %v8268 = vunpack.c.l.b16 %v7212
        %v8269 = vunpack.c.l.b16 %v7213
        %v8270 = vunpack.c.l.b16 %v7214
        %v8271 = vunpack.c.l.b16 %v7215
        %v8272 = vunpack.c.l.b16 %v7216
        %v8273 = vunpack.c.l.b16 %v7217
        %v8274 = vunpack.c.l.b16 %v7218
        %v8275 = vunpack.c.l.b16 %v7219
        %v8276 = vunpack.c.l.b16 %v7220
        %v8277 = vunpack.c.l.b16 %v7221
        %v8278 = vunpack.c.l.b16 %v7222
        %v8279 = vunpack.c.l.b16 %v7223
        %v8280 = vunpack.c.l.b16 %v7224
        %v8281 = vunpack.c.l.b16 %v7225
        %v8282 = vunpack.c.l.b16 %v7226
        %v8283 = vunpack.c.l.b16 %v7227
        %v8284 = vunpack.c.l.b16 %v7228
        %v8285 = vunpack.c.l.b16 %v7229
        %v8286 = vunpack.c.l.b16 %v7230
        %v8287 = vunpack.c.l.b16 %v7231
        %v8288 = vunpack.c.l.b16 %v7232
        %v8289 = vunpack.c.l.b16 %v7233
        %v8290 = vunpack.c.l.b16 %v7234
        %v8291 = vunpack.c.l.b16 %v7235
        %v8292 = vunpack.c.l.b16 %v7236
        %v8293 = vunpack.c.l.b16 %v7237
        %v8294 = vunpack.c.l.b16 %v7238
        %v8295 = vunpack.c.l.b16 %v7239
        %v8296 = vunpack.c.l.b16 %v7240
        %v8297 = vunpack.c.l.b16 %v7241
        %v8298 = vunpack.c.l.b16 %v7242
        %v8299 = vunpack.c.l.b16 %v7243
        %v8300 = vpack.c.b16 %v8269, %v8268
        %v8301 = vpack.c.b16 %v8271, %v8270
        %v8302 = vpack.c.b16 %v8273, %v8272
        %v8303 = vpack.c.b16 %v8275, %v8274
        %v8304 = vpack.c.b16 %v8277, %v8276
        %v8305 = vpack.c.b16 %v8279, %v8278
        %v8306 = vpack.c.b16 %v8281, %v8280
        %v8307 = vpack.c.b16 %v8283, %v8282
        %v8308 = vpack.c.b16 %v8285, %v8284
        %v8309 = vpack.c.b16 %v8287, %v8286
        %v8310 = vpack.c.b16 %v8289, %v8288
        %v8311 = vpack.c.b16 %v8291, %v8290
        %v8312 = vpack.c.b16 %v8293, %v8292
        %v8313 = vpack.c.b16 %v8295, %v8294
        %v8314 = vpack.c.b16 %v8297, %v8296
        %v8315 = vpack.c.b16 %v8299, %v8298
        %8316 = vrot.lane.b32.xlu0 %v8300, 64
        %v8317 = vpop.permute.xlu0 %8316
        %8318 = vrot.lane.b32.xlu0 %v8301, 64
        %v8319 = vpop.permute.xlu0 %8318
        %8320 = vrot.lane.b32.xlu0 %v8302, 64
        %v8321 = vpop.permute.xlu0 %8320
        %8322 = vrot.lane.b32.xlu0 %v8303, 64
        %v8323 = vpop.permute.xlu0 %8322
        %8324 = vrot.lane.b32.xlu0 %v8304, 64
        %v8325 = vpop.permute.xlu0 %8324
        %8326 = vrot.lane.b32.xlu0 %v8305, 64
        %v8327 = vpop.permute.xlu0 %8326
        %8328 = vrot.lane.b32.xlu0 %v8306, 64
        %v8329 = vpop.permute.xlu0 %8328
        %8330 = vrot.lane.b32.xlu0 %v8307, 64
        %v8331 = vpop.permute.xlu0 %8330
        %8332 = vrot.lane.b32.xlu0 %v8308, 64
        %v8333 = vpop.permute.xlu0 %8332
        %8334 = vrot.lane.b32.xlu0 %v8309, 64
        %v8335 = vpop.permute.xlu0 %8334
        %8336 = vrot.lane.b32.xlu0 %v8310, 64
        %v8337 = vpop.permute.xlu0 %8336
        %8338 = vrot.lane.b32.xlu0 %v8311, 64
        %v8339 = vpop.permute.xlu0 %8338
        %8340 = vrot.lane.b32.xlu0 %v8312, 64
        %v8341 = vpop.permute.xlu0 %8340
        %8342 = vrot.lane.b32.xlu0 %v8313, 64
        %v8343 = vpop.permute.xlu0 %8342
        %8344 = vrot.lane.b32.xlu0 %v8314, 64
        %v8345 = vpop.permute.xlu0 %8344
        %8346 = vrot.lane.b32.xlu0 %v8315, 64
        %v8347 = vpop.permute.xlu0 %8346
        %v8364 = vunpack.c.l.b16 %v7244
        %v8365 = vunpack.c.l.b16 %v7245
        %v8366 = vunpack.c.l.b16 %v7246
        %v8367 = vunpack.c.l.b16 %v7247
        %v8368 = vunpack.c.l.b16 %v7248
        %v8369 = vunpack.c.l.b16 %v7249
        %v8370 = vunpack.c.l.b16 %v7250
        %v8371 = vunpack.c.l.b16 %v7251
        %v8372 = vunpack.c.l.b16 %v7252
        %v8373 = vunpack.c.l.b16 %v7253
        %v8374 = vunpack.c.l.b16 %v7254
        %v8375 = vunpack.c.l.b16 %v7255
        %v8376 = vunpack.c.l.b16 %v7256
        %v8377 = vunpack.c.l.b16 %v7257
        %v8378 = vunpack.c.l.b16 %v7258
        %v8379 = vunpack.c.l.b16 %v7259
        %v8380 = vpack.c.b16 %v8364, %v8364
        %v8381 = vpack.c.b16 %v8365, %v8365
        %v8382 = vpack.c.b16 %v8366, %v8366
        %v8383 = vpack.c.b16 %v8367, %v8367
        %v8384 = vpack.c.b16 %v8368, %v8368
        %v8385 = vpack.c.b16 %v8369, %v8369
        %v8386 = vpack.c.b16 %v8370, %v8370
        %v8387 = vpack.c.b16 %v8371, %v8371
        %v8388 = vpack.c.b16 %v8372, %v8372
        %v8389 = vpack.c.b16 %v8373, %v8373
        %v8390 = vpack.c.b16 %v8374, %v8374
        %v8391 = vpack.c.b16 %v8375, %v8375
        %v8392 = vpack.c.b16 %v8376, %v8376
        %v8393 = vpack.c.b16 %v8377, %v8377
        %v8394 = vpack.c.b16 %v8378, %v8378
        %v8395 = vpack.c.b16 %v8379, %v8379
        %v8397 = vshrl.u32 %v8300, 16
        %v8399 = vshll.u32 %v8300, 16
        %v8401 = vrot.slane %v8399, 1
        %v8402 = vor.u32 %v8397, %v8401
        %v8404 = vshll.u32 %v8380, 16
        %v8406 = vrot.slane %v8404, 1
        %v8407 = vsel %vm1425, %v8402, %v8406
        %v8409 = vshrl.u32 %v8301, 16
        %v8411 = vshll.u32 %v8301, 16
        %v8413 = vrot.slane %v8411, 1
        %v8414 = vor.u32 %v8409, %v8413
        %v8416 = vshll.u32 %v8381, 16
        %v8418 = vrot.slane %v8416, 1
        %v8419 = vsel %vm1425, %v8414, %v8418
        %v8421 = vshrl.u32 %v8302, 16
        %v8423 = vshll.u32 %v8302, 16
        %v8425 = vrot.slane %v8423, 1
        %v8426 = vor.u32 %v8421, %v8425
        %v8428 = vshll.u32 %v8382, 16
        %v8430 = vrot.slane %v8428, 1
        %v8431 = vsel %vm1425, %v8426, %v8430
        %v8433 = vshrl.u32 %v8303, 16
        %v8435 = vshll.u32 %v8303, 16
        %v8437 = vrot.slane %v8435, 1
        %v8438 = vor.u32 %v8433, %v8437
        %v8440 = vshll.u32 %v8383, 16
        %v8442 = vrot.slane %v8440, 1
        %v8443 = vsel %vm1425, %v8438, %v8442
        %v8445 = vshrl.u32 %v8304, 16
        %v8447 = vshll.u32 %v8304, 16
        %v8449 = vrot.slane %v8447, 1
        %v8450 = vor.u32 %v8445, %v8449
        %v8452 = vshll.u32 %v8384, 16
        %v8454 = vrot.slane %v8452, 1
        %v8455 = vsel %vm1425, %v8450, %v8454
        %v8457 = vshrl.u32 %v8305, 16
        %v8459 = vshll.u32 %v8305, 16
        %v8461 = vrot.slane %v8459, 1
        %v8462 = vor.u32 %v8457, %v8461
        %v8464 = vshll.u32 %v8385, 16
        %v8466 = vrot.slane %v8464, 1
        %v8467 = vsel %vm1425, %v8462, %v8466
        %v8469 = vshrl.u32 %v8306, 16
        %v8471 = vshll.u32 %v8306, 16
        %v8473 = vrot.slane %v8471, 1
        %v8474 = vor.u32 %v8469, %v8473
        %v8476 = vshll.u32 %v8386, 16
        %v8478 = vrot.slane %v8476, 1
        %v8479 = vsel %vm1425, %v8474, %v8478
        %v8481 = vshrl.u32 %v8307, 16
        %v8483 = vshll.u32 %v8307, 16
        %v8485 = vrot.slane %v8483, 1
        %v8486 = vor.u32 %v8481, %v8485
        %v8488 = vshll.u32 %v8387, 16
        %v8490 = vrot.slane %v8488, 1
        %v8491 = vsel %vm1425, %v8486, %v8490
        %v8493 = vshrl.u32 %v8308, 16
        %v8495 = vshll.u32 %v8308, 16
        %v8497 = vrot.slane %v8495, 1
        %v8498 = vor.u32 %v8493, %v8497
        %v8500 = vshll.u32 %v8388, 16
        %v8502 = vrot.slane %v8500, 1
        %v8503 = vsel %vm1425, %v8498, %v8502
        %v8505 = vshrl.u32 %v8309, 16
        %v8507 = vshll.u32 %v8309, 16
        %v8509 = vrot.slane %v8507, 1
        %v8510 = vor.u32 %v8505, %v8509
        %v8512 = vshll.u32 %v8389, 16
        %v8514 = vrot.slane %v8512, 1
        %v8515 = vsel %vm1425, %v8510, %v8514
        %v8517 = vshrl.u32 %v8310, 16
        %v8519 = vshll.u32 %v8310, 16
        %v8521 = vrot.slane %v8519, 1
        %v8522 = vor.u32 %v8517, %v8521
        %v8524 = vshll.u32 %v8390, 16
        %v8526 = vrot.slane %v8524, 1
        %v8527 = vsel %vm1425, %v8522, %v8526
        %v8529 = vshrl.u32 %v8311, 16
        %v8531 = vshll.u32 %v8311, 16
        %v8533 = vrot.slane %v8531, 1
        %v8534 = vor.u32 %v8529, %v8533
        %v8536 = vshll.u32 %v8391, 16
        %v8538 = vrot.slane %v8536, 1
        %v8539 = vsel %vm1425, %v8534, %v8538
        %v8541 = vshrl.u32 %v8312, 16
        %v8543 = vshll.u32 %v8312, 16
        %v8545 = vrot.slane %v8543, 1
        %v8546 = vor.u32 %v8541, %v8545
        %v8548 = vshll.u32 %v8392, 16
        %v8550 = vrot.slane %v8548, 1
        %v8551 = vsel %vm1425, %v8546, %v8550
        %v8553 = vshrl.u32 %v8313, 16
        %v8555 = vshll.u32 %v8313, 16
        %v8557 = vrot.slane %v8555, 1
        %v8558 = vor.u32 %v8553, %v8557
        %v8560 = vshll.u32 %v8393, 16
        %v8562 = vrot.slane %v8560, 1
        %v8563 = vsel %vm1425, %v8558, %v8562
        %v8565 = vshrl.u32 %v8314, 16
        %v8567 = vshll.u32 %v8314, 16
        %v8569 = vrot.slane %v8567, 1
        %v8570 = vor.u32 %v8565, %v8569
        %v8572 = vshll.u32 %v8394, 16
        %v8574 = vrot.slane %v8572, 1
        %v8575 = vsel %vm1425, %v8570, %v8574
        %v8577 = vshrl.u32 %v8315, 16
        %v8579 = vshll.u32 %v8315, 16
        %v8581 = vrot.slane %v8579, 1
        %v8582 = vor.u32 %v8577, %v8581
        %v8584 = vshll.u32 %v8395, 16
        %v8586 = vrot.slane %v8584, 1
        %v8587 = vsel %vm1425, %v8582, %v8586
        %8588 = vrot.lane.b32.xlu0 %v8407, 96
        %v8589 = vpop.permute.xlu0 %8588
        %8590 = vrot.lane.b32.xlu0 %v8419, 96
        %v8591 = vpop.permute.xlu0 %8590
        %8592 = vrot.lane.b32.xlu0 %v8431, 96
        %v8593 = vpop.permute.xlu0 %8592
        %8594 = vrot.lane.b32.xlu0 %v8443, 96
        %v8595 = vpop.permute.xlu0 %8594
        %8596 = vrot.lane.b32.xlu0 %v8455, 96
        %v8597 = vpop.permute.xlu0 %8596
        %8598 = vrot.lane.b32.xlu0 %v8467, 96
        %v8599 = vpop.permute.xlu0 %8598
        %8600 = vrot.lane.b32.xlu0 %v8479, 96
        %v8601 = vpop.permute.xlu0 %8600
        %8602 = vrot.lane.b32.xlu0 %v8491, 96
        %v8603 = vpop.permute.xlu0 %8602
        %8604 = vrot.lane.b32.xlu0 %v8503, 96
        %v8605 = vpop.permute.xlu0 %8604
        %8606 = vrot.lane.b32.xlu0 %v8515, 96
        %v8607 = vpop.permute.xlu0 %8606
        %8608 = vrot.lane.b32.xlu0 %v8527, 96
        %v8609 = vpop.permute.xlu0 %8608
        %8610 = vrot.lane.b32.xlu0 %v8539, 96
        %v8611 = vpop.permute.xlu0 %8610
        %8612 = vrot.lane.b32.xlu0 %v8551, 96
        %v8613 = vpop.permute.xlu0 %8612
        %8614 = vrot.lane.b32.xlu0 %v8563, 96
        %v8615 = vpop.permute.xlu0 %8614
        %8616 = vrot.lane.b32.xlu0 %v8575, 96
        %v8617 = vpop.permute.xlu0 %8616
        %8618 = vrot.lane.b32.xlu0 %v8587, 96
        %v8619 = vpop.permute.xlu0 %8618
        %v8636 = vunpack.c.l.b16 %v7260
        %v8637 = vunpack.c.l.b16 %v7261
        %v8638 = vunpack.c.l.b16 %v7262
        %v8639 = vunpack.c.l.b16 %v7263
        %v8640 = vunpack.c.l.b16 %v7264
        %v8641 = vunpack.c.l.b16 %v7265
        %v8642 = vunpack.c.l.b16 %v7266
        %v8643 = vunpack.c.l.b16 %v7267
        %v8644 = vunpack.c.l.b16 %v7268
        %v8645 = vunpack.c.l.b16 %v7269
        %v8646 = vunpack.c.l.b16 %v7270
        %v8647 = vunpack.c.l.b16 %v7271
        %v8648 = vunpack.c.l.b16 %v7272
        %v8649 = vunpack.c.l.b16 %v7273
        %v8650 = vunpack.c.l.b16 %v7274
        %v8651 = vunpack.c.l.b16 %v7275
        %v8652 = vpack.c.b16 %v8269, %v8636
        %v8653 = vpack.c.b16 %v8271, %v8637
        %v8654 = vpack.c.b16 %v8273, %v8638
        %v8655 = vpack.c.b16 %v8275, %v8639
        %v8656 = vpack.c.b16 %v8277, %v8640
        %v8657 = vpack.c.b16 %v8279, %v8641
        %v8658 = vpack.c.b16 %v8281, %v8642
        %v8659 = vpack.c.b16 %v8283, %v8643
        %v8660 = vpack.c.b16 %v8285, %v8644
        %v8661 = vpack.c.b16 %v8287, %v8645
        %v8662 = vpack.c.b16 %v8289, %v8646
        %v8663 = vpack.c.b16 %v8291, %v8647
        %v8664 = vpack.c.b16 %v8293, %v8648
        %v8665 = vpack.c.b16 %v8295, %v8649
        %v8666 = vpack.c.b16 %v8297, %v8650
        %v8667 = vpack.c.b16 %v8299, %v8651
        %v8668 = vrot.slane %v8652, 1
        %v8669 = vrot.slane %v8380, 1
        %v8670 = vsel %vm1698, %v8668, %v8669
        %v8671 = vrot.slane %v8653, 1
        %v8672 = vrot.slane %v8381, 1
        %v8673 = vsel %vm1698, %v8671, %v8672
        %v8674 = vrot.slane %v8654, 1
        %v8675 = vrot.slane %v8382, 1
        %v8676 = vsel %vm1698, %v8674, %v8675
        %v8677 = vrot.slane %v8655, 1
        %v8678 = vrot.slane %v8383, 1
        %v8679 = vsel %vm1698, %v8677, %v8678
        %v8680 = vrot.slane %v8656, 1
        %v8681 = vrot.slane %v8384, 1
        %v8682 = vsel %vm1698, %v8680, %v8681
        %v8683 = vrot.slane %v8657, 1
        %v8684 = vrot.slane %v8385, 1
        %v8685 = vsel %vm1698, %v8683, %v8684
        %v8686 = vrot.slane %v8658, 1
        %v8687 = vrot.slane %v8386, 1
        %v8688 = vsel %vm1698, %v8686, %v8687
        %v8689 = vrot.slane %v8659, 1
        %v8690 = vrot.slane %v8387, 1
        %v8691 = vsel %vm1698, %v8689, %v8690
        %v8692 = vrot.slane %v8660, 1
        %v8693 = vrot.slane %v8388, 1
        %v8694 = vsel %vm1698, %v8692, %v8693
        %v8695 = vrot.slane %v8661, 1
        %v8696 = vrot.slane %v8389, 1
        %v8697 = vsel %vm1698, %v8695, %v8696
        %v8698 = vrot.slane %v8662, 1
        %v8699 = vrot.slane %v8390, 1
        %v8700 = vsel %vm1698, %v8698, %v8699
        %v8701 = vrot.slane %v8663, 1
        %v8702 = vrot.slane %v8391, 1
        %v8703 = vsel %vm1698, %v8701, %v8702
        %v8704 = vrot.slane %v8664, 1
        %v8705 = vrot.slane %v8392, 1
        %v8706 = vsel %vm1698, %v8704, %v8705
        %v8707 = vrot.slane %v8665, 1
        %v8708 = vrot.slane %v8393, 1
        %v8709 = vsel %vm1698, %v8707, %v8708
        %v8710 = vrot.slane %v8666, 1
        %v8711 = vrot.slane %v8394, 1
        %v8712 = vsel %vm1698, %v8710, %v8711
        %v8713 = vrot.slane %v8667, 1
        %v8714 = vrot.slane %v8395, 1
        %v8715 = vsel %vm1698, %v8713, %v8714
        %v8717 = vsel %vm2804, %v7340, %v7597
        %v8719 = vsel %vm2804, %v7341, %v7599
        %v8721 = vsel %vm2804, %v7342, %v7601
        %v8723 = vsel %vm2804, %v7343, %v7603
        %v8725 = vsel %vm2804, %v7344, %v7605
        %v8727 = vsel %vm2804, %v7345, %v7607
        %v8729 = vsel %vm2804, %v7346, %v7609
        %v8731 = vsel %vm2804, %v7347, %v7611
        %v8733 = vsel %vm2804, %v7348, %v7613
        %v8735 = vsel %vm2804, %v7349, %v7615
        %v8737 = vsel %vm2804, %v7350, %v7617
        %v8739 = vsel %vm2804, %v7351, %v7619
        %v8741 = vsel %vm2804, %v7352, %v7621
        %v8743 = vsel %vm2804, %v7353, %v7623
        %v8745 = vsel %vm2804, %v7354, %v7625
        %v8747 = vsel %vm2804, %v7355, %v7627
        %v8749 = vsel %vm2870, %v8717, %v7725
        %v8751 = vsel %vm2870, %v8719, %v7727
        %v8753 = vsel %vm2870, %v8721, %v7729
        %v8755 = vsel %vm2870, %v8723, %v7731
        %v8757 = vsel %vm2870, %v8725, %v7733
        %v8759 = vsel %vm2870, %v8727, %v7735
        %v8761 = vsel %vm2870, %v8729, %v7737
        %v8763 = vsel %vm2870, %v8731, %v7739
        %v8765 = vsel %vm2870, %v8733, %v7741
        %v8767 = vsel %vm2870, %v8735, %v7743
        %v8769 = vsel %vm2870, %v8737, %v7745
        %v8771 = vsel %vm2870, %v8739, %v7747
        %v8773 = vsel %vm2870, %v8741, %v7749
        %v8775 = vsel %vm2870, %v8743, %v7751
        %v8777 = vsel %vm2870, %v8745, %v7753
        %v8779 = vsel %vm2870, %v8747, %v7755
        %v8781 = vsel %vm2936, %v8749, %v7837
        %v8784 = vsel %vm2936, %v8751, %v7839
        %v8787 = vsel %vm2936, %v8753, %v7841
        %v8790 = vsel %vm2936, %v8755, %v7843
        %v8793 = vsel %vm2936, %v8757, %v7845
        %v8796 = vsel %vm2936, %v8759, %v7847
        %v8799 = vsel %vm2936, %v8761, %v7849
        %v8802 = vsel %vm2936, %v8763, %v7851
        %v8805 = vsel %vm2936, %v8765, %v7853
        %v8808 = vsel %vm2936, %v8767, %v7855
        %v8811 = vsel %vm2936, %v8769, %v7857
        %v8814 = vsel %vm2936, %v8771, %v7859
        %v8817 = vsel %vm2936, %v8773, %v7861
        %v8820 = vsel %vm2936, %v8775, %v7863
        %v8823 = vsel %vm2936, %v8777, %v7865
        %v8826 = vsel %vm2936, %v8779, %v7867
        %v8830 = vsel %vm2804, %v7927, %v8205
        %v8833 = vsel %vm2804, %v7939, %v8207
        %v8836 = vsel %vm2804, %v7951, %v8209
        %v8839 = vsel %vm2804, %v7963, %v8211
        %v8842 = vsel %vm2804, %v7975, %v8213
        %v8845 = vsel %vm2804, %v7987, %v8215
        %v8848 = vsel %vm2804, %v7999, %v8217
        %v8851 = vsel %vm2804, %v8011, %v8219
        %v8854 = vsel %vm2804, %v8023, %v8221
        %v8857 = vsel %vm2804, %v8035, %v8223
        %v8860 = vsel %vm2804, %v8047, %v8225
        %v8863 = vsel %vm2804, %v8059, %v8227
        %v8866 = vsel %vm2804, %v8071, %v8229
        %v8869 = vsel %vm2804, %v8083, %v8231
        %v8872 = vsel %vm2804, %v8095, %v8233
        %v8875 = vsel %vm2804, %v8107, %v8235
        %v8877 = vsel %vm2870, %v8830, %v8317
        %v8879 = vsel %vm2870, %v8833, %v8319
        %v8881 = vsel %vm2870, %v8836, %v8321
        %v8883 = vsel %vm2870, %v8839, %v8323
        %v8885 = vsel %vm2870, %v8842, %v8325
        %v8887 = vsel %vm2870, %v8845, %v8327
        %v8889 = vsel %vm2870, %v8848, %v8329
        %v8891 = vsel %vm2870, %v8851, %v8331
        %v8893 = vsel %vm2870, %v8854, %v8333
        %v8895 = vsel %vm2870, %v8857, %v8335
        %v8897 = vsel %vm2870, %v8860, %v8337
        %v8899 = vsel %vm2870, %v8863, %v8339
        %v8901 = vsel %vm2870, %v8866, %v8341
        %v8903 = vsel %vm2870, %v8869, %v8343
        %v8905 = vsel %vm2870, %v8872, %v8345
        %v8907 = vsel %vm2870, %v8875, %v8347
        %v8909 = vsel %vm2936, %v8877, %v8589
        %v8912 = vsel %vm2936, %v8879, %v8591
        %v8915 = vsel %vm2936, %v8881, %v8593
        %v8918 = vsel %vm2936, %v8883, %v8595
        %v8921 = vsel %vm2936, %v8885, %v8597
        %v8924 = vsel %vm2936, %v8887, %v8599
        %v8927 = vsel %vm2936, %v8889, %v8601
        %v8930 = vsel %vm2936, %v8891, %v8603
        %v8933 = vsel %vm2936, %v8893, %v8605
        %v8936 = vsel %vm2936, %v8895, %v8607
        %v8939 = vsel %vm2936, %v8897, %v8609
        %v8942 = vsel %vm2936, %v8899, %v8611
        %v8945 = vsel %vm2936, %v8901, %v8613
        %v8948 = vsel %vm2936, %v8903, %v8615
        %v8951 = vsel %vm2936, %v8905, %v8617
        %v8954 = vsel %vm2936, %v8907, %v8619
        %v8956 = vld [vmem:[%s7] sm:$0xf]
        %v8957 = vld [vmem:[%s7 + $0x4] sm:$0xf]
        %v8958 = vld [vmem:[%s7 + $0x8] sm:$0xf]
        %v8959 = vld [vmem:[%s7 + $0xc] sm:$0xf]
        %v8960 = vld [vmem:[%s7 + $0x10] sm:$0xf]
        %v8961 = vld [vmem:[%s7 + $0x14] sm:$0xf]
        %v8962 = vld [vmem:[%s7 + $0x18] sm:$0xf]
        %v8963 = vld [vmem:[%s7 + $0x1c] sm:$0xf]
        %v8964 = vld [vmem:[%s7 + $0x20] sm:$0xf]
        %v8965 = vld [vmem:[%s7 + $0x24] sm:$0xf]
        %v8966 = vld [vmem:[%s7 + $0x28] sm:$0xf]
        %v8967 = vld [vmem:[%s7 + $0x2c] sm:$0xf]
        %v8968 = vld [vmem:[%s7 + $0x30] sm:$0xf]
        %v8969 = vld [vmem:[%s7 + $0x34] sm:$0xf]
        %v8970 = vld [vmem:[%s7 + $0x38] sm:$0xf]
        %v8971 = vld [vmem:[%s7 + $0x3c] sm:$0xf]
        %v8972 = vld [vmem:[%s7 + $0x40] sm:$0xf]
        %v8973 = vld [vmem:[%s7 + $0x44] sm:$0xf]
        %v8974 = vld [vmem:[%s7 + $0x48] sm:$0xf]
        %v8975 = vld [vmem:[%s7 + $0x4c] sm:$0xf]
        %v8976 = vld [vmem:[%s7 + $0x50] sm:$0xf]
        %v8977 = vld [vmem:[%s7 + $0x54] sm:$0xf]
        %v8978 = vld [vmem:[%s7 + $0x58] sm:$0xf]
        %v8979 = vld [vmem:[%s7 + $0x5c] sm:$0xf]
        %v8980 = vld [vmem:[%s7 + $0x60] sm:$0xf]
        %v8981 = vld [vmem:[%s7 + $0x64] sm:$0xf]
        %v8982 = vld [vmem:[%s7 + $0x68] sm:$0xf]
        %v8983 = vld [vmem:[%s7 + $0x6c] sm:$0xf]
        %v8984 = vld [vmem:[%s7 + $0x70] sm:$0xf]
        %v8985 = vld [vmem:[%s7 + $0x74] sm:$0xf]
        %v8986 = vld [vmem:[%s7 + $0x78] sm:$0xf]
        %v8987 = vld [vmem:[%s7 + $0x7c] sm:$0xf]
        %v8988 = vld [vmem:[%s7 + $0x80] sm:$0xf]
        %v8989 = vld [vmem:[%s7 + $0x84] sm:$0xf]
        %v8990 = vld [vmem:[%s7 + $0x88] sm:$0xf]
        %v8991 = vld [vmem:[%s7 + $0x8c] sm:$0xf]
        %v9028 = vunpack.c.l.b16 %v8956
        %v9029 = vunpack.c.l.b16 %v8957
        %v9030 = vunpack.c.l.b16 %v8958
        %v9031 = vunpack.c.l.b16 %v8959
        %v9032 = vunpack.c.l.b16 %v8960
        %v9033 = vunpack.c.l.b16 %v8961
        %v9034 = vunpack.c.l.b16 %v8962
        %v9035 = vunpack.c.l.b16 %v8963
        %v9036 = vunpack.c.l.b16 %v8964
        %v9037 = vunpack.c.l.b16 %v8965
        %v9038 = vunpack.c.l.b16 %v8966
        %v9039 = vunpack.c.l.b16 %v8967
        %v9040 = vunpack.c.l.b16 %v8968
        %v9041 = vunpack.c.l.b16 %v8969
        %v9042 = vunpack.c.l.b16 %v8970
        %v9043 = vunpack.c.l.b16 %v8971
        %v9044 = vunpack.c.l.b16 %v8972
        %v9045 = vunpack.c.l.b16 %v8973
        %v9046 = vunpack.c.l.b16 %v8974
        %v9047 = vunpack.c.l.b16 %v8975
        %v9048 = vunpack.c.l.b16 %v8976
        %v9049 = vunpack.c.l.b16 %v8977
        %v9050 = vunpack.c.l.b16 %v8978
        %v9051 = vunpack.c.l.b16 %v8979
        %v9052 = vunpack.c.l.b16 %v8980
        %v9053 = vunpack.c.l.b16 %v8981
        %v9054 = vunpack.c.l.b16 %v8982
        %v9055 = vunpack.c.l.b16 %v8983
        %v9056 = vunpack.c.l.b16 %v8984
        %v9057 = vunpack.c.l.b16 %v8985
        %v9058 = vunpack.c.l.b16 %v8986
        %v9059 = vunpack.c.l.b16 %v8987
        %v9060 = vunpack.c.l.b16 %v8988
        %v9061 = vunpack.c.l.b16 %v8989
        %v9062 = vunpack.c.l.b16 %v8990
        %v9063 = vunpack.c.l.b16 %v8991
        %v9064 = vpack.c.b16 %v9029, %v9028
        %v9065 = vpack.c.b16 %v9031, %v9030
        %v9066 = vpack.c.b16 %v9033, %v9032
        %v9067 = vpack.c.b16 %v9035, %v9034
        %v9068 = vpack.c.b16 %v9037, %v9036
        %v9069 = vpack.c.b16 %v9039, %v9038
        %v9070 = vpack.c.b16 %v9041, %v9040
        %v9071 = vpack.c.b16 %v9043, %v9042
        %v9072 = vpack.c.b16 %v9045, %v9044
        %v9073 = vpack.c.b16 %v9047, %v9046
        %v9074 = vpack.c.b16 %v9049, %v9048
        %v9075 = vpack.c.b16 %v9051, %v9050
        %v9076 = vpack.c.b16 %v9053, %v9052
        %v9077 = vpack.c.b16 %v9055, %v9054
        %v9078 = vpack.c.b16 %v9057, %v9056
        %v9079 = vpack.c.b16 %v9059, %v9058
        %v9080 = vpack.c.b16 %v9061, %v9060
        %v9081 = vpack.c.b16 %v9063, %v9062
        %v9101 = vsel %vm2804, %v8670, 0
        %v9104 = vsel %vm2804, %v8673, 0
        %v9107 = vsel %vm2804, %v8676, 0
        %v9110 = vsel %vm2804, %v8679, 0
        %v9113 = vsel %vm2804, %v8682, 0
        %v9116 = vsel %vm2804, %v8685, 0
        %v9119 = vsel %vm2804, %v8688, 0
        %v9122 = vsel %vm2804, %v8691, 0
        %v9125 = vsel %vm2804, %v8694, 0
        %v9128 = vsel %vm2804, %v8697, 0
        %v9131 = vsel %vm2804, %v8700, 0
        %v9134 = vsel %vm2804, %v8703, 0
        %v9137 = vsel %vm2804, %v8706, 0
        %v9140 = vsel %vm2804, %v8709, 0
        %v9143 = vsel %vm2804, %v8712, 0
        %v9146 = vsel %vm2804, %v8715, 0
        %9148 = vmatprep.subr.bf16.mxu0 0
        %9149 = vmatpush1.bf16.msra.mxu0 %v9064
        %9150 = vmatprep.subr.bf16.mxu0 0
        %9151 = vmatpush1.bf16.msra.mxu0 %v9065
        %9152 = vmatprep.subr.bf16.mxu0 0
        %9153 = vmatpush1.bf16.msra.mxu0 %v9066
        %9154 = vmatprep.subr.bf16.mxu0 0
        %9155 = vmatpush1.bf16.msra.mxu0 %v9067
        %9156 = vmatprep.subr.bf16.mxu0 0
        %9157 = vmatpush1.bf16.msra.mxu0 %v9068
        %9158 = vmatprep.subr.bf16.mxu0 0
        %9159 = vmatpush1.bf16.msra.mxu0 %v9069
        %9160 = vmatprep.subr.bf16.mxu0 0
        %9161 = vmatpush1.bf16.msra.mxu0 %v9070
        %9162 = vmatprep.subr.bf16.mxu0 0
        %9163 = vmatpush1.bf16.msra.mxu0 %v9071
        %9164 = vmatprep.subr.bf16.mxu0 0
        %9165 = vmatpush1.bf16.msra.mxu0 %v9072
        %9166 = vmatprep.subr.bf16.mxu0 0
        %9167 = vmatpush1.bf16.msra.mxu0 %v9073
        %9168 = vmatprep.subr.bf16.mxu0 0
        %9169 = vmatpush1.bf16.msra.mxu0 %v9074
        %9170 = vmatprep.subr.bf16.mxu0 0
        %9171 = vmatpush1.bf16.msra.mxu0 %v9075
        %9172 = vmatprep.subr.bf16.mxu0 0
        %9173 = vmatpush1.bf16.msra.mxu0 %v9076
        %9174 = vmatprep.subr.bf16.mxu0 0
        %9175 = vmatpush1.bf16.msra.mxu0 %v9077
        %9176 = vmatprep.subr.bf16.mxu0 0
        %9177 = vmatpush1.bf16.msra.mxu0 %v9078
        %9178 = vmatprep.subr.bf16.mxu0 0
        %9179 = vmatpush1.bf16.msra.mxu0 %v9079
        %9180 = vmatprep.mubr.bf16.mxu0 %v8909
        %9181 = vmatmul.mubr.bf16.gmra.mrb[0].mxu0 %v8781
        %v9182 = vpop.f32.mrb[0].mxu0
        %v9183 = vadd.f32 0.0, %v9182
        %v9184 = vpop.f32.mrb[0].mxu0
        %v9185 = vpop.f32.mrb[0].mxu0
        %v9186 = vadd.f32 0.0, %v9185
        %v9187 = vpop.f32.mrb[0].mxu0
        %9188 = vmatprep.mubr.bf16.mxu0 %v8912
        %9189 = vmatmul.mubr.bf16.gmra.mrb[0].mxu0 %v8784
        %v9190 = vpop.f32.mrb[0].mxu0
        %v9191 = vadd.f32 0.0, %v9190
        %v9192 = vpop.f32.mrb[0].mxu0
        %v9193 = vpop.f32.mrb[0].mxu0
        %v9194 = vadd.f32 0.0, %v9193
        %v9195 = vpop.f32.mrb[0].mxu0
        %9196 = vmatprep.mubr.bf16.mxu0 %v8915
        %9197 = vmatmul.mubr.bf16.gmra.mrb[0].mxu0 %v8787
        %v9198 = vpop.f32.mrb[0].mxu0
        %v9199 = vadd.f32 0.0, %v9198
        %v9200 = vpop.f32.mrb[0].mxu0
        %v9201 = vpop.f32.mrb[0].mxu0
        %v9202 = vadd.f32 0.0, %v9201
        %v9203 = vpop.f32.mrb[0].mxu0
        %9204 = vmatprep.mubr.bf16.mxu0 %v8918
        %9205 = vmatmul.mubr.bf16.gmra.mrb[0].mxu0 %v8790
        %v9206 = vpop.f32.mrb[0].mxu0
        %v9207 = vadd.f32 0.0, %v9206
        %v9208 = vpop.f32.mrb[0].mxu0
        %v9209 = vpop.f32.mrb[0].mxu0
        %v9210 = vadd.f32 0.0, %v9209
        %v9211 = vpop.f32.mrb[0].mxu0
        %9212 = vmatprep.mubr.bf16.mxu0 %v8921
        %9213 = vmatmul.mubr.bf16.gmra.mrb[0].mxu0 %v8793
        %v9214 = vpop.f32.mrb[0].mxu0
        %v9215 = vadd.f32 0.0, %v9214
        %v9216 = vpop.f32.mrb[0].mxu0
        %v9217 = vpop.f32.mrb[0].mxu0
        %v9218 = vadd.f32 0.0, %v9217
        %v9219 = vpop.f32.mrb[0].mxu0
        %9220 = vmatprep.mubr.bf16.mxu0 %v8924
        %9221 = vmatmul.mubr.bf16.gmra.mrb[0].mxu0 %v8796
        %v9222 = vpop.f32.mrb[0].mxu0
        %v9223 = vadd.f32 0.0, %v9222
        %v9224 = vpop.f32.mrb[0].mxu0
        %v9225 = vpop.f32.mrb[0].mxu0
        %v9226 = vadd.f32 0.0, %v9225
        %v9227 = vpop.f32.mrb[0].mxu0
        %9228 = vmatprep.mubr.bf16.mxu0 %v8927
        %9229 = vmatmul.mubr.bf16.gmra.mrb[0].mxu0 %v8799
        %v9230 = vpop.f32.mrb[0].mxu0
        %v9231 = vadd.f32 0.0, %v9230
        %v9232 = vpop.f32.mrb[0].mxu0
        %v9233 = vpop.f32.mrb[0].mxu0
        %v9234 = vadd.f32 0.0, %v9233
        %v9235 = vpop.f32.mrb[0].mxu0
        %9236 = vmatprep.mubr.bf16.mxu0 %v8930
        %9237 = vmatmul.mubr.bf16.gmra.mrb[0].mxu0 %v8802
        %v9238 = vpop.f32.mrb[0].mxu0
        %v9239 = vadd.f32 0.0, %v9238
        %v9240 = vpop.f32.mrb[0].mxu0
        %v9241 = vpop.f32.mrb[0].mxu0
        %v9242 = vadd.f32 0.0, %v9241
        %v9243 = vpop.f32.mrb[0].mxu0
        %9244 = vmatprep.mubr.bf16.mxu0 %v8933
        %9245 = vmatmul.mubr.bf16.gmra.mrb[0].mxu0 %v8805
        %v9246 = vpop.f32.mrb[0].mxu0
        %v9247 = vadd.f32 0.0, %v9246
        %v9248 = vpop.f32.mrb[0].mxu0
        %v9249 = vpop.f32.mrb[0].mxu0
        %v9250 = vadd.f32 0.0, %v9249
        %v9251 = vpop.f32.mrb[0].mxu0
        %9252 = vmatprep.mubr.bf16.mxu0 %v8936
        %9253 = vmatmul.mubr.bf16.gmra.mrb[0].mxu0 %v8808
        %v9254 = vpop.f32.mrb[0].mxu0
        %v9255 = vadd.f32 0.0, %v9254
        %v9256 = vpop.f32.mrb[0].mxu0
        %v9257 = vpop.f32.mrb[0].mxu0
        %v9258 = vadd.f32 0.0, %v9257
        %v9259 = vpop.f32.mrb[0].mxu0
        %9260 = vmatprep.mubr.bf16.mxu0 %v8939
        %9261 = vmatmul.mubr.bf16.gmra.mrb[0].mxu0 %v8811
        %v9262 = vpop.f32.mrb[0].mxu0
        %v9263 = vadd.f32 0.0, %v9262
        %v9264 = vpop.f32.mrb[0].mxu0
        %v9265 = vpop.f32.mrb[0].mxu0
        %v9266 = vadd.f32 0.0, %v9265
        %v9267 = vpop.f32.mrb[0].mxu0
        %9268 = vmatprep.mubr.bf16.mxu0 %v8942
        %9269 = vmatmul.mubr.bf16.gmra.mrb[0].mxu0 %v8814
        %v9270 = vpop.f32.mrb[0].mxu0
        %v9271 = vadd.f32 0.0, %v9270
        %v9272 = vpop.f32.mrb[0].mxu0
        %v9273 = vpop.f32.mrb[0].mxu0
        %v9274 = vadd.f32 0.0, %v9273
        %v9275 = vpop.f32.mrb[0].mxu0
        %9276 = vmatprep.mubr.bf16.mxu0 %v8945
        %9277 = vmatmul.mubr.bf16.gmra.mrb[0].mxu0 %v8817
        %v9278 = vpop.f32.mrb[0].mxu0
        %v9279 = vadd.f32 0.0, %v9278
        %v9280 = vpop.f32.mrb[0].mxu0
        %v9281 = vpop.f32.mrb[0].mxu0
        %v9282 = vadd.f32 0.0, %v9281
        %v9283 = vpop.f32.mrb[0].mxu0
        %9284 = vmatprep.mubr.bf16.mxu0 %v8948
        %9285 = vmatmul.mubr.bf16.gmra.mrb[0].mxu0 %v8820
        %v9286 = vpop.f32.mrb[0].mxu0
        %v9287 = vadd.f32 0.0, %v9286
        %v9288 = vpop.f32.mrb[0].mxu0
        %v9289 = vpop.f32.mrb[0].mxu0
        %v9290 = vadd.f32 0.0, %v9289
        %v9291 = vpop.f32.mrb[0].mxu0
        %9292 = vmatprep.mubr.bf16.mxu0 %v8951
        %9293 = vmatmul.mubr.bf16.gmra.mrb[0].mxu0 %v8823
        %v9294 = vpop.f32.mrb[0].mxu0
        %v9295 = vadd.f32 0.0, %v9294
        %v9296 = vpop.f32.mrb[0].mxu0
        %v9297 = vpop.f32.mrb[0].mxu0
        %v9298 = vadd.f32 0.0, %v9297
        %v9299 = vpop.f32.mrb[0].mxu0
        %9300 = vmatprep.mubr.bf16.mxu0 %v8954
        %9301 = vmatmul.mubr.bf16.gmra.mrb[0].mxu0 %v8826
        %v9302 = vpop.f32.mrb[0].mxu0
        %v9303 = vadd.f32 0.0, %v9302
        %v9304 = vpop.f32.mrb[0].mxu0
        %v9305 = vpop.f32.mrb[0].mxu0
        %v9306 = vadd.f32 0.0, %v9305
        %v9307 = vpop.f32.mrb[0].mxu0
        %9308 = vdwg.mxu0
        %9309 = vmatprep.subr.bf16.mxu0 0
        %9310 = vmatpush1.bf16.msra.mxu0 %v9080
        %9311 = vmatprep.subr.bf16.mxu0 0
        %9312 = vmatpush1.bf16.msra.mxu0 %v9081
        %9313 = vmatprep.subr.bf16.mxu0 0
        %9314 = vmatpush1.bf16.msra.mxu0 0
        %9315 = vmatprep.subr.bf16.mxu0 0
        %9316 = vmatpush1.bf16.msra.mxu0 0
        %9317 = vmatprep.subr.bf16.mxu0 0
        %9318 = vmatpush1.bf16.msra.mxu0 0
        %9319 = vmatprep.subr.bf16.mxu0 0
        %9320 = vmatpush1.bf16.msra.mxu0 0
        %9321 = vmatprep.subr.bf16.mxu0 0
        %9322 = vmatpush1.bf16.msra.mxu0 0
        %9323 = vmatprep.subr.bf16.mxu0 0
        %9324 = vmatpush1.bf16.msra.mxu0 0
        %9325 = vmatprep.subr.bf16.mxu0 0
        %9326 = vmatpush1.bf16.msra.mxu0 0
        %9327 = vmatprep.subr.bf16.mxu0 0
        %9328 = vmatpush1.bf16.msra.mxu0 0
        %9329 = vmatprep.subr.bf16.mxu0 0
        %9330 = vmatpush1.bf16.msra.mxu0 0
        %9331 = vmatprep.subr.bf16.mxu0 0
        %9332 = vmatpush1.bf16.msra.mxu0 0
        %9333 = vmatprep.subr.bf16.mxu0 0
        %9334 = vmatpush1.bf16.msra.mxu0 0
        %9335 = vmatprep.subr.bf16.mxu0 0
        %9336 = vmatpush1.bf16.msra.mxu0 0
        %9337 = vmatprep.subr.bf16.mxu0 0
        %9338 = vmatpush1.bf16.msra.mxu0 0
        %9339 = vmatprep.subr.bf16.mxu0 0
        %9340 = vmatpush1.bf16.msra.mxu0 0
        %9341 = vmatprep.mubr.bf16.mxu0 0
        %9342 = vmatmul.mubr.bf16.gmra.mrb[0].mxu0 %v9101
        %v9343 = vpop.f32.mrb[0].mxu0
        %v9344 = vadd.f32 %v9183, %v9343
        %v9345 = vpop.f32.mrb[0].mxu0
        %v9346 = vpop.f32.mrb[0].mxu0
        %v9347 = vadd.f32 %v9186, %v9346
        %v9348 = vpop.f32.mrb[0].mxu0
        %9349 = vmatprep.mubr.bf16.mxu0 0
        %9350 = vmatmul.mubr.bf16.gmra.mrb[0].mxu0 %v9104
        %v9351 = vpop.f32.mrb[0].mxu0
        %v9352 = vadd.f32 %v9191, %v9351
        %v9353 = vpop.f32.mrb[0].mxu0
        %v9354 = vpop.f32.mrb[0].mxu0
        %v9355 = vadd.f32 %v9194, %v9354
        %v9356 = vpop.f32.mrb[0].mxu0
        %9357 = vmatprep.mubr.bf16.mxu0 0
        %9358 = vmatmul.mubr.bf16.gmra.mrb[0].mxu0 %v9107
        %v9359 = vpop.f32.mrb[0].mxu0
        %v9360 = vadd.f32 %v9199, %v9359
        %v9361 = vpop.f32.mrb[0].mxu0
        %v9362 = vpop.f32.mrb[0].mxu0
        %v9363 = vadd.f32 %v9202, %v9362
        %v9364 = vpop.f32.mrb[0].mxu0
        %9365 = vmatprep.mubr.bf16.mxu0 0
        %9366 = vmatmul.mubr.bf16.gmra.mrb[0].mxu0 %v9110
        %v9367 = vpop.f32.mrb[0].mxu0
        %v9368 = vadd.f32 %v9207, %v9367
        %v9369 = vpop.f32.mrb[0].mxu0
        %v9370 = vpop.f32.mrb[0].mxu0
        %v9371 = vadd.f32 %v9210, %v9370
        %v9372 = vpop.f32.mrb[0].mxu0
        %9373 = vmatprep.mubr.bf16.mxu0 0
        %9374 = vmatmul.mubr.bf16.gmra.mrb[0].mxu0 %v9113
        %v9375 = vpop.f32.mrb[0].mxu0
        %v9376 = vadd.f32 %v9215, %v9375
        %v9377 = vpop.f32.mrb[0].mxu0
        %v9378 = vpop.f32.mrb[0].mxu0
        %v9379 = vadd.f32 %v9218, %v9378
        %v9380 = vpop.f32.mrb[0].mxu0
        %9381 = vmatprep.mubr.bf16.mxu0 0
        %9382 = vmatmul.mubr.bf16.gmra.mrb[0].mxu0 %v9116
        %v9383 = vpop.f32.mrb[0].mxu0
        %v9384 = vadd.f32 %v9223, %v9383
        %v9385 = vpop.f32.mrb[0].mxu0
        %v9386 = vpop.f32.mrb[0].mxu0
        %v9387 = vadd.f32 %v9226, %v9386
        %v9388 = vpop.f32.mrb[0].mxu0
        %9389 = vmatprep.mubr.bf16.mxu0 0
        %9390 = vmatmul.mubr.bf16.gmra.mrb[0].mxu0 %v9119
        %v9391 = vpop.f32.mrb[0].mxu0
        %v9392 = vadd.f32 %v9231, %v9391
        %v9393 = vpop.f32.mrb[0].mxu0
        %v9394 = vpop.f32.mrb[0].mxu0
        %v9395 = vadd.f32 %v9234, %v9394
        %v9396 = vpop.f32.mrb[0].mxu0
        %9397 = vmatprep.mubr.bf16.mxu0 0
        %9398 = vmatmul.mubr.bf16.gmra.mrb[0].mxu0 %v9122
        %v9399 = vpop.f32.mrb[0].mxu0
        %v9400 = vadd.f32 %v9239, %v9399
        %v9401 = vpop.f32.mrb[0].mxu0
        %v9402 = vpop.f32.mrb[0].mxu0
        %v9403 = vadd.f32 %v9242, %v9402
        %v9404 = vpop.f32.mrb[0].mxu0
        %9405 = vmatprep.mubr.bf16.mxu0 0
        %9406 = vmatmul.mubr.bf16.gmra.mrb[0].mxu0 %v9125
        %v9407 = vpop.f32.mrb[0].mxu0
        %v9408 = vadd.f32 %v9247, %v9407
        %v9409 = vpop.f32.mrb[0].mxu0
        %v9410 = vpop.f32.mrb[0].mxu0
        %v9411 = vadd.f32 %v9250, %v9410
        %v9412 = vpop.f32.mrb[0].mxu0
        %9413 = vmatprep.mubr.bf16.mxu0 0
        %9414 = vmatmul.mubr.bf16.gmra.mrb[0].mxu0 %v9128
        %v9415 = vpop.f32.mrb[0].mxu0
        %v9416 = vadd.f32 %v9255, %v9415
        %v9417 = vpop.f32.mrb[0].mxu0
        %v9418 = vpop.f32.mrb[0].mxu0
        %v9419 = vadd.f32 %v9258, %v9418
        %v9420 = vpop.f32.mrb[0].mxu0
        %9421 = vmatprep.mubr.bf16.mxu0 0
        %9422 = vmatmul.mubr.bf16.gmra.mrb[0].mxu0 %v9131
        %v9423 = vpop.f32.mrb[0].mxu0
        %v9424 = vadd.f32 %v9263, %v9423
        %v9425 = vpop.f32.mrb[0].mxu0
        %v9426 = vpop.f32.mrb[0].mxu0
        %v9427 = vadd.f32 %v9266, %v9426
        %v9428 = vpop.f32.mrb[0].mxu0
        %9429 = vmatprep.mubr.bf16.mxu0 0
        %9430 = vmatmul.mubr.bf16.gmra.mrb[0].mxu0 %v9134
        %v9431 = vpop.f32.mrb[0].mxu0
        %v9432 = vadd.f32 %v9271, %v9431
        %v9433 = vpop.f32.mrb[0].mxu0
        %v9434 = vpop.f32.mrb[0].mxu0
        %v9435 = vadd.f32 %v9274, %v9434
        %v9436 = vpop.f32.mrb[0].mxu0
        %9437 = vmatprep.mubr.bf16.mxu0 0
        %9438 = vmatmul.mubr.bf16.gmra.mrb[0].mxu0 %v9137
        %v9439 = vpop.f32.mrb[0].mxu0
        %v9440 = vadd.f32 %v9279, %v9439
        %v9441 = vpop.f32.mrb[0].mxu0
        %v9442 = vpop.f32.mrb[0].mxu0
        %v9443 = vadd.f32 %v9282, %v9442
        %v9444 = vpop.f32.mrb[0].mxu0
        %9445 = vmatprep.mubr.bf16.mxu0 0
        %9446 = vmatmul.mubr.bf16.gmra.mrb[0].mxu0 %v9140
        %v9447 = vpop.f32.mrb[0].mxu0
        %v9448 = vadd.f32 %v9287, %v9447
        %v9449 = vpop.f32.mrb[0].mxu0
        %v9450 = vpop.f32.mrb[0].mxu0
        %v9451 = vadd.f32 %v9290, %v9450
        %v9452 = vpop.f32.mrb[0].mxu0
        %9453 = vmatprep.mubr.bf16.mxu0 0
        %9454 = vmatmul.mubr.bf16.gmra.mrb[0].mxu0 %v9143
        %v9455 = vpop.f32.mrb[0].mxu0
        %v9456 = vadd.f32 %v9295, %v9455
        %v9457 = vpop.f32.mrb[0].mxu0
        %v9458 = vpop.f32.mrb[0].mxu0
        %v9459 = vadd.f32 %v9298, %v9458
        %v9460 = vpop.f32.mrb[0].mxu0
        %9461 = vmatprep.mubr.bf16.mxu0 0
        %9462 = vmatmul.mubr.bf16.gmra.mrb[0].mxu0 %v9146
        %v9463 = vpop.f32.mrb[0].mxu0
        %v9464 = vadd.f32 %v9303, %v9463
        %v9465 = vpop.f32.mrb[0].mxu0
        %v9466 = vpop.f32.mrb[0].mxu0
        %v9467 = vadd.f32 %v9306, %v9466
        %v9468 = vpop.f32.mrb[0].mxu0
        %9469 = vdwg.mxu0
        %v9470 = vld [vmem:[%s8] sm:$0x1]
        %v9472 = vlaneseq
        %v9473 = vshrl.u32 %v9472, 7
        %v9474 = vsub.s32 0, %v9473
        %v9475 = vrot.slane %v9470, %v9474
        %v9477 = vmul.f32 %v9344, %v9475
        %v9478 = vmul.f32 %v9347, %v9475
        %v9479 = vmul.f32 %v9352, %v9475
        %v9480 = vmul.f32 %v9355, %v9475
        %v9481 = vmul.f32 %v9360, %v9475
        %v9482 = vmul.f32 %v9363, %v9475
        %v9483 = vmul.f32 %v9368, %v9475
        %v9484 = vmul.f32 %v9371, %v9475
        %v9485 = vmul.f32 %v9376, %v9475
        %v9486 = vmul.f32 %v9379, %v9475
        %v9487 = vmul.f32 %v9384, %v9475
        %v9488 = vmul.f32 %v9387, %v9475
        %v9489 = vmul.f32 %v9392, %v9475
        %v9490 = vmul.f32 %v9395, %v9475
        %v9491 = vmul.f32 %v9400, %v9475
        %v9492 = vmul.f32 %v9403, %v9475
        %v9493 = vmul.f32 %v9408, %v9475
        %v9494 = vmul.f32 %v9411, %v9475
        %v9495 = vmul.f32 %v9416, %v9475
        %v9496 = vmul.f32 %v9419, %v9475
        %v9497 = vmul.f32 %v9424, %v9475
        %v9498 = vmul.f32 %v9427, %v9475
        %v9499 = vmul.f32 %v9432, %v9475
        %v9500 = vmul.f32 %v9435, %v9475
        %v9501 = vmul.f32 %v9440, %v9475
        %v9502 = vmul.f32 %v9443, %v9475
        %v9503 = vmul.f32 %v9448, %v9475
        %v9504 = vmul.f32 %v9451, %v9475
        %v9505 = vmul.f32 %v9456, %v9475
        %v9506 = vmul.f32 %v9459, %v9475
        %v9507 = vmul.f32 %v9464, %v9475
        %v9508 = vmul.f32 %v9467, %v9475
        %v9509 = vld [vmem:[%s9] sm:$0x1]
        %v9511 = vlaneseq
        %v9512 = vshrl.u32 %v9511, 7
        %v9513 = vsub.s32 0, %v9512
        %v9514 = vrot.slane %v9509, %v9513
        %v9516 = vadd.f32 %v9477, %v9514
        %v9517 = vadd.f32 %v9478, %v9514
        %v9518 = vadd.f32 %v9479, %v9514
        %v9519 = vadd.f32 %v9480, %v9514
        %v9520 = vadd.f32 %v9481, %v9514
        %v9521 = vadd.f32 %v9482, %v9514
        %v9522 = vadd.f32 %v9483, %v9514
        %v9523 = vadd.f32 %v9484, %v9514
        %v9524 = vadd.f32 %v9485, %v9514
        %v9525 = vadd.f32 %v9486, %v9514
        %v9526 = vadd.f32 %v9487, %v9514
        %v9527 = vadd.f32 %v9488, %v9514
        %v9528 = vadd.f32 %v9489, %v9514
        %v9529 = vadd.f32 %v9490, %v9514
        %v9530 = vadd.f32 %v9491, %v9514
        %v9531 = vadd.f32 %v9492, %v9514
        %v9532 = vadd.f32 %v9493, %v9514
        %v9533 = vadd.f32 %v9494, %v9514
        %v9534 = vadd.f32 %v9495, %v9514
        %v9535 = vadd.f32 %v9496, %v9514
        %v9536 = vadd.f32 %v9497, %v9514
        %v9537 = vadd.f32 %v9498, %v9514
        %v9538 = vadd.f32 %v9499, %v9514
        %v9539 = vadd.f32 %v9500, %v9514
        %v9540 = vadd.f32 %v9501, %v9514
        %v9541 = vadd.f32 %v9502, %v9514
        %v9542 = vadd.f32 %v9503, %v9514
        %v9543 = vadd.f32 %v9504, %v9514
        %v9544 = vadd.f32 %v9505, %v9514
        %v9545 = vadd.f32 %v9506, %v9514
        %v9546 = vadd.f32 %v9507, %v9514
        %v9547 = vadd.f32 %v9508, %v9514
        %v9548 = vmax.f32 %v9516, 0.0
        %v9549 = vmax.f32 %v9517, 0.0
        %v9550 = vmax.f32 %v9518, 0.0
        %v9551 = vmax.f32 %v9519, 0.0
        %v9552 = vmax.f32 %v9520, 0.0
        %v9553 = vmax.f32 %v9521, 0.0
        %v9554 = vmax.f32 %v9522, 0.0
        %v9555 = vmax.f32 %v9523, 0.0
        %v9556 = vmax.f32 %v9524, 0.0
        %v9557 = vmax.f32 %v9525, 0.0
        %v9558 = vmax.f32 %v9526, 0.0
        %v9559 = vmax.f32 %v9527, 0.0
        %v9560 = vmax.f32 %v9528, 0.0
        %v9561 = vmax.f32 %v9529, 0.0
        %v9562 = vmax.f32 %v9530, 0.0
        %v9563 = vmax.f32 %v9531, 0.0
        %v9564 = vmax.f32 %v9532, 0.0
        %v9565 = vmax.f32 %v9533, 0.0
        %v9566 = vmax.f32 %v9534, 0.0
        %v9567 = vmax.f32 %v9535, 0.0
        %v9568 = vmax.f32 %v9536, 0.0
        %v9569 = vmax.f32 %v9537, 0.0
        %v9570 = vmax.f32 %v9538, 0.0
        %v9571 = vmax.f32 %v9539, 0.0
        %v9572 = vmax.f32 %v9540, 0.0
        %v9573 = vmax.f32 %v9541, 0.0
        %v9574 = vmax.f32 %v9542, 0.0
        %v9575 = vmax.f32 %v9543, 0.0
        %v9576 = vmax.f32 %v9544, 0.0
        %v9577 = vmax.f32 %v9545, 0.0
        %v9578 = vmax.f32 %v9546, 0.0
        %v9579 = vmax.f32 %v9547, 0.0
        %9580 = vst.msk [vmem:[#allocation4] sm:$0xff] %vm2804, %v9548
        %9581 = vst.msk [vmem:[#allocation4 + $0x8] sm:$0xff] %vm2804, %v9549
        %9582 = vst.msk [vmem:[#allocation4 + $0x10] sm:$0xff] %vm2804, %v9550
        %9583 = vst.msk [vmem:[#allocation4 + $0x18] sm:$0xff] %vm2804, %v9551
        %9584 = vst.msk [vmem:[#allocation4 + $0x20] sm:$0xff] %vm2804, %v9552
        %9585 = vst.msk [vmem:[#allocation4 + $0x28] sm:$0xff] %vm2804, %v9553
        %9586 = vst.msk [vmem:[#allocation4 + $0x30] sm:$0xff] %vm2804, %v9554
        %9587 = vst.msk [vmem:[#allocation4 + $0x38] sm:$0xff] %vm2804, %v9555
        %9588 = vst.msk [vmem:[#allocation4 + $0x40] sm:$0xff] %vm2804, %v9556
        %9589 = vst.msk [vmem:[#allocation4 + $0x48] sm:$0xff] %vm2804, %v9557
        %9590 = vst.msk [vmem:[#allocation4 + $0x50] sm:$0xff] %vm2804, %v9558
        %9591 = vst.msk [vmem:[#allocation4 + $0x58] sm:$0xff] %vm2804, %v9559
        %9592 = vst.msk [vmem:[#allocation4 + $0x60] sm:$0xff] %vm2804, %v9560
        %9593 = vst.msk [vmem:[#allocation4 + $0x68] sm:$0xff] %vm2804, %v9561
        %9594 = vst.msk [vmem:[#allocation4 + $0x70] sm:$0xff] %vm2804, %v9562
        %9595 = vst.msk [vmem:[#allocation4 + $0x78] sm:$0xff] %vm2804, %v9563
        %9596 = vst.msk [vmem:[#allocation4 + $0x80] sm:$0xff] %vm2804, %v9564
        %9597 = vst.msk [vmem:[#allocation4 + $0x88] sm:$0xff] %vm2804, %v9565
        %9598 = vst.msk [vmem:[#allocation4 + $0x90] sm:$0xff] %vm2804, %v9566
        %9599 = vst.msk [vmem:[#allocation4 + $0x98] sm:$0xff] %vm2804, %v9567
        %9600 = vst.msk [vmem:[#allocation4 + $0xa0] sm:$0xff] %vm2804, %v9568
        %9601 = vst.msk [vmem:[#allocation4 + $0xa8] sm:$0xff] %vm2804, %v9569
        %9602 = vst.msk [vmem:[#allocation4 + $0xb0] sm:$0xff] %vm2804, %v9570
        %9603 = vst.msk [vmem:[#allocation4 + $0xb8] sm:$0xff] %vm2804, %v9571
        %9604 = vst.msk [vmem:[#allocation4 + $0xc0] sm:$0xff] %vm2804, %v9572
        %9605 = vst.msk [vmem:[#allocation4 + $0xc8] sm:$0xff] %vm2804, %v9573
        %9606 = vst.msk [vmem:[#allocation4 + $0xd0] sm:$0xff] %vm2804, %v9574
        %9607 = vst.msk [vmem:[#allocation4 + $0xd8] sm:$0xff] %vm2804, %v9575
        %9608 = vst.msk [vmem:[#allocation4 + $0xe0] sm:$0xff] %vm2804, %v9576
        %9609 = vst.msk [vmem:[#allocation4 + $0xe8] sm:$0xff] %vm2804, %v9577
        %9610 = vst.msk [vmem:[#allocation4 + $0xf0] sm:$0xff] %vm2804, %v9578
        %9611 = vst.msk [vmem:[#allocation4 + $0xf8] sm:$0xff] %vm2804, %v9579
        %v9612 = vld [vmem:[#allocation4] ss:$2 sm:$0xff]
        %s9613 = scalar_lea.vmem [#allocation4], 32
        %v9614 = vld [vmem:[%s9613] ss:$2 sm:$0xff]
        %s9615 = scalar_lea.vmem [#allocation4], 64
        %v9616 = vld [vmem:[%s9615] ss:$2 sm:$0xff]
        %s9617 = scalar_lea.vmem [#allocation4], 96
        %v9618 = vld [vmem:[%s9617] ss:$2 sm:$0xff]
        %s9619 = scalar_lea.vmem [#allocation4], 128
        %v9620 = vld [vmem:[%s9619] ss:$2 sm:$0xff]
        %s9621 = scalar_lea.vmem [#allocation4], 160
        %v9622 = vld [vmem:[%s9621] ss:$2 sm:$0xff]
        %s9623 = scalar_lea.vmem [#allocation4], 192
        %v9624 = vld [vmem:[%s9623] ss:$2 sm:$0xff]
        %s9625 = scalar_lea.vmem [#allocation4], 224
        %v9626 = vld [vmem:[%s9625] ss:$2 sm:$0xff]
        %s9627 = scalar_lea.vmem [#allocation4], 1
        %v9628 = vld [vmem:[%s9627] ss:$2 sm:$0xff]
        %s9629 = scalar_lea.vmem [#allocation4], 33
        %v9630 = vld [vmem:[%s9629] ss:$2 sm:$0xff]
        %s9631 = scalar_lea.vmem [#allocation4], 65
        %v9632 = vld [vmem:[%s9631] ss:$2 sm:$0xff]
        %s9633 = scalar_lea.vmem [#allocation4], 97
        %v9634 = vld [vmem:[%s9633] ss:$2 sm:$0xff]
        %s9635 = scalar_lea.vmem [#allocation4], 129
        %v9636 = vld [vmem:[%s9635] ss:$2 sm:$0xff]
        %s9637 = scalar_lea.vmem [#allocation4], 161
        %v9638 = vld [vmem:[%s9637] ss:$2 sm:$0xff]
        %s9639 = scalar_lea.vmem [#allocation4], 193
        %v9640 = vld [vmem:[%s9639] ss:$2 sm:$0xff]
        %s9641 = scalar_lea.vmem [#allocation4], 225
        %v9642 = vld [vmem:[%s9641] ss:$2 sm:$0xff]
        %s9643 = scalar_lea.vmem [#allocation4], 16
        %v9644 = vld [vmem:[%s9643] ss:$2 sm:$0xff]
        %s9645 = scalar_lea.vmem %s9643, 32 [#allocation4]
        %v9646 = vld [vmem:[%s9645] ss:$2 sm:$0xff]
        %s9647 = scalar_lea.vmem %s9643, 64 [#allocation4]
        %v9648 = vld [vmem:[%s9647] ss:$2 sm:$0xff]
        %s9649 = scalar_lea.vmem %s9643, 96 [#allocation4]
        %v9650 = vld [vmem:[%s9649] ss:$2 sm:$0xff]
        %s9651 = scalar_lea.vmem %s9643, 128 [#allocation4]
        %v9652 = vld [vmem:[%s9651] ss:$2 sm:$0xff]
        %s9653 = scalar_lea.vmem %s9643, 160 [#allocation4]
        %v9654 = vld [vmem:[%s9653] ss:$2 sm:$0xff]
        %s9655 = scalar_lea.vmem %s9643, 192 [#allocation4]
        %v9656 = vld [vmem:[%s9655] ss:$2 sm:$0xff]
        %s9657 = scalar_lea.vmem %s9643, 224 [#allocation4]
        %v9658 = vld [vmem:[%s9657] ss:$2 sm:$0xff]
        %s9659 = scalar_lea.vmem %s9643, 1 [#allocation4]
        %v9660 = vld [vmem:[%s9659] ss:$2 sm:$0xff]
        %s9661 = scalar_lea.vmem %s9643, 33 [#allocation4]
        %v9662 = vld [vmem:[%s9661] ss:$2 sm:$0xff]
        %s9663 = scalar_lea.vmem %s9643, 65 [#allocation4]
        %v9664 = vld [vmem:[%s9663] ss:$2 sm:$0xff]
        %s9665 = scalar_lea.vmem %s9643, 97 [#allocation4]
        %v9666 = vld [vmem:[%s9665] ss:$2 sm:$0xff]
        %s9667 = scalar_lea.vmem %s9643, 129 [#allocation4]
        %v9668 = vld [vmem:[%s9667] ss:$2 sm:$0xff]
        %s9669 = scalar_lea.vmem %s9643, 161 [#allocation4]
        %v9670 = vld [vmem:[%s9669] ss:$2 sm:$0xff]
        %s9671 = scalar_lea.vmem %s9643, 193 [#allocation4]
        %v9672 = vld [vmem:[%s9671] ss:$2 sm:$0xff]
        %s9673 = scalar_lea.vmem %s9643, 225 [#allocation4]
        %v9674 = vld [vmem:[%s9673] ss:$2 sm:$0xff]
        %v9675 = vmax.f32 %v9612, %v9628
        %v9676 = vmax.f32 %v9614, %v9630
        %v9677 = vmax.f32 %v9616, %v9632
        %v9678 = vmax.f32 %v9618, %v9634
        %v9679 = vmax.f32 %v9620, %v9636
        %v9680 = vmax.f32 %v9622, %v9638
        %v9681 = vmax.f32 %v9624, %v9640
        %v9682 = vmax.f32 %v9626, %v9642
        %v9683 = vmax.f32 %v9644, %v9660
        %v9684 = vmax.f32 %v9646, %v9662
        %v9685 = vmax.f32 %v9648, %v9664
        %v9686 = vmax.f32 %v9650, %v9666
        %v9687 = vmax.f32 %v9652, %v9668
        %v9688 = vmax.f32 %v9654, %v9670
        %v9689 = vmax.f32 %v9656, %v9672
        %v9690 = vmax.f32 %v9658, %v9674
        %v9691 = vmax.f32 %v9675, %v9683
        %v9692 = vmax.f32 %v9676, %v9684
        %v9693 = vmax.f32 %v9677, %v9685
        %v9694 = vmax.f32 %v9678, %v9686
        %v9695 = vmax.f32 %v9679, %v9687
        %v9696 = vmax.f32 %v9680, %v9688
        %v9697 = vmax.f32 %v9681, %v9689
        %v9698 = vmax.f32 %v9682, %v9690
        %v9699 = vlaneseq
        %v9700 = vshrl.u32 %v9699, 7
        %v9701 = vmul.u32 %v9700, 2
        %v9702 = vadd.s32 %v9701, 32
        %v9703 = vadd.s32 %v9701, 64
        %v9704 = vadd.s32 %v9701, 96
        %v9705 = vadd.s32 %v9701, 128
        %v9706 = vadd.s32 %v9701, 160
        %v9707 = vadd.s32 %v9701, 192
        %v9708 = vadd.s32 %v9701, 224
        %vm9709 = vcmp.eq.f32.partialorder %v9612, %v9691
        %vm9710 = vcmp.eq.f32.partialorder %v9614, %v9692
        %vm9711 = vcmp.eq.f32.partialorder %v9616, %v9693
        %vm9712 = vcmp.eq.f32.partialorder %v9618, %v9694
        %vm9713 = vcmp.eq.f32.partialorder %v9620, %v9695
        %vm9714 = vcmp.eq.f32.partialorder %v9622, %v9696
        %vm9715 = vcmp.eq.f32.partialorder %v9624, %v9697
        %vm9716 = vcmp.eq.f32.partialorder %v9626, %v9698
        %vm9717 = vcmp.eq.f32.partialorder %v9628, %v9691
        %vm9718 = vcmp.eq.f32.partialorder %v9630, %v9692
        %vm9719 = vcmp.eq.f32.partialorder %v9632, %v9693
        %vm9720 = vcmp.eq.f32.partialorder %v9634, %v9694
        %vm9721 = vcmp.eq.f32.partialorder %v9636, %v9695
        %vm9722 = vcmp.eq.f32.partialorder %v9638, %v9696
        %vm9723 = vcmp.eq.f32.partialorder %v9640, %v9697
        %vm9724 = vcmp.eq.f32.partialorder %v9642, %v9698
        %v9725 = vadd.s32 %v9701, 1
        %v9726 = vadd.s32 %v9702, 1
        %v9727 = vadd.s32 %v9703, 1
        %v9728 = vadd.s32 %v9704, 1
        %v9729 = vadd.s32 %v9705, 1
        %v9730 = vadd.s32 %v9706, 1
        %v9731 = vadd.s32 %v9707, 1
        %v9732 = vadd.s32 %v9708, 1
        %vm9733 = vcmp.eq.f32.partialorder %v9644, %v9691
        %vm9734 = vcmp.eq.f32.partialorder %v9646, %v9692
        %vm9735 = vcmp.eq.f32.partialorder %v9648, %v9693
        %vm9736 = vcmp.eq.f32.partialorder %v9650, %v9694
        %vm9737 = vcmp.eq.f32.partialorder %v9652, %v9695
        %vm9738 = vcmp.eq.f32.partialorder %v9654, %v9696
        %vm9739 = vcmp.eq.f32.partialorder %v9656, %v9697
        %vm9740 = vcmp.eq.f32.partialorder %v9658, %v9698
        %v9741 = vadd.s32 %v9701, 16
        %v9742 = vadd.s32 %v9702, 16
        %v9743 = vadd.s32 %v9703, 16
        %v9744 = vadd.s32 %v9704, 16
        %v9745 = vadd.s32 %v9705, 16
        %v9746 = vadd.s32 %v9706, 16
        %v9747 = vadd.s32 %v9707, 16
        %v9748 = vadd.s32 %v9708, 16
        %v9749 = vadd.s32 %v9741, 1
        %v9750 = vadd.s32 %v9742, 1
        %v9751 = vadd.s32 %v9743, 1
        %v9752 = vadd.s32 %v9744, 1
        %v9753 = vadd.s32 %v9745, 1
        %v9754 = vadd.s32 %v9746, 1
        %v9755 = vadd.s32 %v9747, 1
        %v9756 = vadd.s32 %v9748, 1
        %v9757 = vsel %vm9733, %v9741, %v9749
        %v9758 = vsel %vm9734, %v9742, %v9750
        %v9759 = vsel %vm9735, %v9743, %v9751
        %v9760 = vsel %vm9736, %v9744, %v9752
        %v9761 = vsel %vm9737, %v9745, %v9753
        %v9762 = vsel %vm9738, %v9746, %v9754
        %v9763 = vsel %vm9739, %v9747, %v9755
        %v9764 = vsel %vm9740, %v9748, %v9756
        %v9765 = vsel %vm9717, %v9725, %v9757
        %v9766 = vsel %vm9718, %v9726, %v9758
        %v9767 = vsel %vm9719, %v9727, %v9759
        %v9768 = vsel %vm9720, %v9728, %v9760
        %v9769 = vsel %vm9721, %v9729, %v9761
        %v9770 = vsel %vm9722, %v9730, %v9762
        %v9771 = vsel %vm9723, %v9731, %v9763
        %v9772 = vsel %vm9724, %v9732, %v9764
        %v9773 = vsel %vm9709, %v9701, %v9765
        %v9774 = vsel %vm9710, %v9702, %v9766
        %v9775 = vsel %vm9711, %v9703, %v9767
        %v9776 = vsel %vm9712, %v9704, %v9768
        %v9777 = vsel %vm9713, %v9705, %v9769
        %v9778 = vsel %vm9714, %v9706, %v9770
        %v9779 = vsel %vm9715, %v9707, %v9771
        %v9780 = vsel %vm9716, %v9708, %v9772
        %9781 = vst.msk [vmem:[%s408] sm:$0xff] %vm2804, %v9691
        %9782 = vst.msk [vmem:[%s408 + $0x8] sm:$0xff] %vm2804, %v9692
        %9783 = vst.msk [vmem:[%s408 + $0x10] sm:$0xff] %vm2804, %v9693
        %9784 = vst.msk [vmem:[%s408 + $0x18] sm:$0xff] %vm2804, %v9694
        %9785 = vst.msk [vmem:[%s408 + $0x20] sm:$0xff] %vm2804, %v9695
        %9786 = vst.msk [vmem:[%s408 + $0x28] sm:$0xff] %vm2804, %v9696
        %9787 = vst.msk [vmem:[%s408 + $0x30] sm:$0xff] %vm2804, %v9697
        %9788 = vst.msk [vmem:[%s408 + $0x38] sm:$0xff] %vm2804, %v9698
        %9789 = vst.msk [vmem:[%s415] sm:$0xff] %vm2804, %v9773
        %9790 = vst.msk [vmem:[%s415 + $0x8] sm:$0xff] %vm2804, %v9774
        %9791 = vst.msk [vmem:[%s415 + $0x10] sm:$0xff] %vm2804, %v9775
        %9792 = vst.msk [vmem:[%s415 + $0x18] sm:$0xff] %vm2804, %v9776
        %9793 = vst.msk [vmem:[%s415 + $0x20] sm:$0xff] %vm2804, %v9777
        %9794 = vst.msk [vmem:[%s415 + $0x28] sm:$0xff] %vm2804, %v9778
        %9795 = vst.msk [vmem:[%s415 + $0x30] sm:$0xff] %vm2804, %v9779
        %9796 = vst.msk [vmem:[%s415 + $0x38] sm:$0xff] %vm2804, %v9780
        %s9797 = sand.u32 %s255, 1
        %s9798 = scalar_lea.sflag [#allocation7], %s9797
        %s9799 = sand.u32 %s255, 1
        %s9800 = smul.addr %s9799, 64
        %s9801 = scalar_lea.vmem [#allocation8], %s9800
        %s9802 = sand.u32 %s281, 1
        %s9803 = scalar_lea.sflag [#allocation10], %s9802
        %s9804 = sand.u32 %s281, 1
        %s9805 = smul.addr %s9804, 64
        %s9806 = scalar_lea.vmem [#allocation9], %s9805
        // Predicated region
        $region65: #{tpu_custom_call.1} parent=59 // pred_check
          %p9807 = pneg %p265
        $region66: #{tpu_custom_call.1} parent=59 // pred_check_branch
          %9809 = sbr.rel (%p9807) target = $region68
        $region67: #{tpu_custom_call.1} parent=59 // pred_region
          %s9811 = ssub.s32 1024, 1024
          %9812 = vsyncadd %s9798, %s9811
          %s9813 = smul.addr %s32, 8
          %s9814 = smul.addr %s9813, 128
          %s9815 = scalar_lea.hbm %s10, %s9814
          %s9816 = sshll.u32 %s9801, 4
          %s9817 = int_to_ptr.vmem [resolvable:$true] %s9816
          %9822 = dma.vmem_to_hbm [thread:$0]  %s9817, 1024, %s9815, %s9798, 128, 128, 8
        $region68: #{tpu_custom_call.1} parent=59 // pred_fallthru
          _
        // Predicated region
        $region69: #{tpu_custom_call.1} parent=59 // pred_check
          %p9823 = pneg %p291
        $region70: #{tpu_custom_call.1} parent=59 // pred_check_branch
          %9825 = sbr.rel (%p9823) target = $region72
        $region71: #{tpu_custom_call.1} parent=59 // pred_region
          %s9827 = ssub.s32 1024, 1024
          %9828 = vsyncadd %s9803, %s9827
          %s9829 = smul.addr %s32, 8
          %s9830 = smul.addr %s9829, 128
          %s9831 = scalar_lea.hbm %s11, %s9830
          %s9832 = sshll.u32 %s9806, 4
          %s9833 = int_to_ptr.vmem [resolvable:$true] %s9832
          %9838 = dma.vmem_to_hbm [thread:$0]  %s9833, 1024, %s9831, %s9803, 128, 128, 8
        $region72: #{tpu_custom_call.1} parent=59 // pred_fallthru
          _
      $region60: #{tpu_custom_call.1} parent=5 // pred_fallthru
        _
      %p9839 = scmp.le.s32.totalorder 2, %s27
      // Predicated region
      $region73: #{tpu_custom_call.1} parent=5 // pred_check
        %p9840 = pneg %p9839
      $region74: #{tpu_custom_call.1} parent=5 // pred_check_branch
        %9842 = sbr.rel (%p9840) target = $region76
      $region75: #{tpu_custom_call.1} parent=5 // pred_region
        %s9843 = ssub.s32 %s27, 2
        // Predicated region
        $region77: #{tpu_custom_call.1} parent=75 // pred_check
          %p9844 = pneg %p271
        $region78: #{tpu_custom_call.1} parent=75 // pred_check_branch
          %9846 = sbr.rel (%p9844) target = $region80
        $region79: #{tpu_custom_call.1} parent=75 // pred_region
          %s9847 = sand.u32 %s256, 1
          %s9848 = scalar_lea.sflag [#allocation7], %s9847
          %s9849 = sand.u32 %s256, 1
          %s9850 = smul.addr %s9849, 64
          %s9851 = scalar_lea.vmem [#allocation8], %s9850
          %9852 = dma.done %s9848, 1024
        $region80: #{tpu_custom_call.1} parent=75 // pred_fallthru
          _
        // Predicated region
        $region81: #{tpu_custom_call.1} parent=75 // pred_check
          %p9853 = pneg %p297
        $region82: #{tpu_custom_call.1} parent=75 // pred_check_branch
          %9855 = sbr.rel (%p9853) target = $region84
        $region83: #{tpu_custom_call.1} parent=75 // pred_region
          %s9856 = sand.u32 %s282, 1
          %s9857 = scalar_lea.sflag [#allocation10], %s9856
          %s9858 = sand.u32 %s282, 1
          %s9859 = smul.addr %s9858, 64
          %s9860 = scalar_lea.vmem [#allocation9], %s9859
          %9861 = dma.done %s9857, 1024
        $region84: #{tpu_custom_call.1} parent=75 // pred_fallthru
          _
      $region76: #{tpu_custom_call.1} parent=5 // pred_fallthru
        _
    $region6: #{tpu_custom_call.1} parent=1 // loop_footer
      %s31 = sadd.s32 1, %s27
    $region7: #{tpu_custom_call.1} parent=1 // loop_footer_branch
      %26 = sbr.rel target = $region3
    $region8: #{tpu_custom_call.1} parent=1 // loop_exit
      _
    %9862 = vsyncpa [#allocation6], 1
    %s9863 = scalar_lea.sflag [#allocation6], 1
    %9864 = vsyncpa %s9863, 1
    %9865 = vsyncpa [#allocation7], 1
    %s9866 = scalar_lea.sflag [#allocation7], 1
    %9867 = vsyncpa %s9866, 1
    %9868 = vsyncpa [#allocation10], 1
    %s9869 = scalar_lea.sflag [#allocation10], 1
    %9870 = vsyncpa %s9869, 1

</llo_original>
